<compile_context>
chip_gen: v7x
topology: tpu7x:2x2x1
jax: 0.10.0
libtpu: 0.0.40
codegen_flags: <defaults>
</compile_context>

<pallas_src>
import functools

import numpy as np
import jax
import jax.numpy as jnp
from jax import lax
from jax.experimental import pallas as pl
from jax.experimental.pallas import tpu as pltpu

LANE = 128  # lane width: channels are padded to this for dense vregs/stores


def _t3_kernel(xp_ref, w1_ref, s1_ref, b1_ref, w2_ref, s2_ref, b2_ref,
               wsk_ref, ssk_ref, bsk_ref, mask_ref, pmat_ref, smat_ref,
               out_ref, y1p_ref, *, wp, n1, base):
    cp = xp_ref.shape[-1]
    npf = y1p_ref.shape[0]
    f32 = jnp.float32
    # flat-index offset of tap t = 3*dy + dx relative to the output position
    offs = [(dy - 1) * wp + (dx - 1) for dy in range(3) for dx in range(3)]

    # ---- T1: 3x3 conv (stride 1, pad 1) + BN + ReLU ------------------------
    # Nine full-K (K=128) MXU matmuls over contiguous shifted views of the
    # flattened pre-padded input, accumulated in f32 registers.
    acc = jnp.dot(xp_ref[base + offs[0]:base + offs[0] + n1, :], w1_ref[0],
                  preferred_element_type=f32)
    for t in range(1, 9):
        o = offs[t]
        acc = acc + jnp.dot(xp_ref[base + o:base + o + n1, :], w1_ref[t],
                            preferred_element_type=f32)
    # mask zeroes the row-wrap positions so the scratch holds zero-padded y1
    y1 = jnp.maximum(acc * s1_ref[...] + b1_ref[...], 0.0) * mask_ref[...]

    # ---- store y1 into the zero-padded flat scratch -------------------------
    # Only the halo is (re)zeroed each step; the interior write is one large
    # aligned dense store (base is a multiple of 8).
    tail = (base + n1) // 8 * 8
    y1p_ref[0:base, :] = jnp.zeros((base, cp), f32)
    y1p_ref[tail:npf, :] = jnp.zeros((npf - tail, cp), f32)
    y1p_ref[base:base + n1, :] = y1

    # ---- ConvBNA(Identity): 3x3 conv (stride 1, pad 1) + BN -----------------
    acc2 = jnp.dot(y1p_ref[base + offs[0]:base + offs[0] + n1, :], w2_ref[0],
                   preferred_element_type=f32)
    for t in range(1, 9):
        o = offs[t]
        acc2 = acc2 + jnp.dot(y1p_ref[base + o:base + o + n1, :], w2_ref[t],
                              preferred_element_type=f32)
    y2 = acc2 * s2_ref[...] + b2_ref[...]

    # ---- AvgPool2d(3, stride 2, pad 1, count_include_pad=True) as a matmul --
    # pmat only references interior positions, so the row-wrap garbage in y2
    # is multiplied by zero and padded taps contribute 0 (divide-by-9 folded in).
    pooled = jnp.dot(pmat_ref[...], y2, preferred_element_type=f32)

    # ---- skip branch: 1x1 conv, stride 2, pad 0 + BN ------------------------
    # The stride-2 spatial gather is a constant one-hot matmul (no strided
    # sublane slices), followed by the 1x1 conv and folded BN.
    xs = jnp.dot(smat_ref[...], xp_ref[...], preferred_element_type=f32)
    sk = jnp.dot(xs, wsk_ref[...], preferred_element_type=f32)
    sk = sk * ssk_ref[...] + bsk_ref[...]

    out_ref[...] = pooled + sk


def t3_forward(x, params):
    """x: (B, H, W, Cin) float32 (NHWC). Returns (B, Ho, Wo, Cod) float32."""
    w1, s1, b1, w2, s2, b2, wsk, ssk, bsk = params
    B, H, W, Cin = x.shape
    Cod = w1.shape[-1]
    assert Cin <= LANE and Cod <= LANE
    Hp, Wp = H + 2, W + 2
    Ho, Wo = (H - 1) // 2 + 1, (W - 1) // 2 + 1
    NPO = Ho * Wo
    front = (-(Wp + 1)) % 8                   # aligns the interior scratch write
    base = front + Wp + 1                     # first interior flat position
    N1 = (H - 1) * Wp + W                     # contiguous compute-range length
    NPF = ((front + Hp * Wp + 7) // 8) * 8    # flat padded length (x8)

    # --- wrapper-side prep: lane-dense channel pad, spatial pre-pad, flatten -
    xp = jnp.pad(x, ((0, 0), (1, 1), (1, 1), (0, LANE - Cin)))
    xp = xp.reshape(B, Hp * Wp, LANE)
    xp = jnp.pad(xp, ((0, 0), (front, NPF - front - Hp * Wp), (0, 0)))

    w1p = jnp.zeros((9, LANE, LANE), jnp.float32).at[:, :Cin, :Cod].set(w1)
    w2p = jnp.zeros((9, LANE, LANE), jnp.float32).at[:, :Cod, :Cod].set(w2)
    wskp = jnp.zeros((LANE, LANE), jnp.float32).at[:Cin, :Cod].set(wsk)

    def padc(v):
        return jnp.pad(v, ((0, 0), (0, LANE - v.shape[-1])))

    s1p, b1p, s2p, b2p, sskp, bskp = (padc(v) for v in (s1, b1, s2, b2, ssk, bsk))

    # column mask: zero the row-wrap positions inside the compute range
    col = (np.arange(N1) + Wp + 1) % Wp
    mask = jnp.asarray(((col >= 1) & (col <= W)).astype(np.float32).reshape(N1, 1))

    # avg-pool as a (Ho*Wo, N1) matrix over the compute range (1/9 folded in)
    pmat_np = np.zeros((NPO, N1), np.float32)
    for i in range(Ho):
        for j in range(Wo):
            for dy in range(3):
                for dx in range(3):
                    r, c = 2 * i + dy, 2 * j + dx
                    if 1 <= r <= H and 1 <= c <= W:
                        pmat_np[i * Wo + j, r * Wp + c - (Wp + 1)] = 1.0 / 9.0
    pmat = jnp.asarray(pmat_np)

    # stride-2 spatial selection for the 1x1 skip conv
    smat_np = np.zeros((NPO, NPF), np.float32)
    for i in range(Ho):
        for j in range(Wo):
            smat_np[i * Wo + j, front + (2 * i + 1) * Wp + (2 * j + 1)] = 1.0
    smat = jnp.asarray(smat_np)

    def full(shape):
        return pl.BlockSpec(shape, lambda b, _n=len(shape): (0,) * _n)

    kernel = functools.partial(_t3_kernel, wp=Wp, n1=N1, base=base)

    grid_spec = pltpu.PrefetchScalarGridSpec(
        num_scalar_prefetch=0,
        grid=(B,),
        in_specs=[
            pl.BlockSpec((None, NPF, LANE), lambda b: (b, 0, 0)),  # xp
            full((9, LANE, LANE)),                                 # w1
            full((1, LANE)), full((1, LANE)),                      # s1, b1
            full((9, LANE, LANE)),                                 # w2
            full((1, LANE)), full((1, LANE)),                      # s2, b2
            full((LANE, LANE)),                                    # wsk
            full((1, LANE)), full((1, LANE)),                      # ssk, bsk
            full((N1, 1)),                                         # mask
            full((NPO, N1)),                                       # pool matrix
            full((NPO, NPF)),                                      # skip select
        ],
        out_specs=pl.BlockSpec((None, NPO, LANE), lambda b: (b, 0, 0)),
        scratch_shapes=[pltpu.VMEM((NPF, LANE), jnp.float32)],     # padded y1
    )
    out = pl.pallas_call(
        kernel,
        out_shape=jax.ShapeDtypeStruct((B, NPO, LANE), jnp.float32),
        grid_spec=grid_spec,
        compiler_params=pltpu.CompilerParams(
            dimension_semantics=("parallel",)),  # batch is independent -> v7x megacore
    )(xp, w1p, s1p, b1p, w2p, s2p, b2p, wskp, sskp, bskp, mask, pmat, smat)
    return out.reshape(B, Ho, Wo, LANE)[..., :Cod]


def init_params(key, idim, odim):
    """Deterministic parameter construction (synthetic, not a checkpoint)."""
    ks = jax.random.split(key, 15)
    eps = 1e-5

    def bn(kg, kb, km, kv):
        gamma = 1.0 + 0.1 * jax.random.normal(kg, (1, odim), jnp.float32)
        beta = 0.1 * jax.random.normal(kb, (1, odim), jnp.float32)
        mean = 0.1 * jax.random.normal(km, (1, odim), jnp.float32)
        var = jnp.abs(jax.random.normal(kv, (1, odim), jnp.float32)) + 0.5
        scale = gamma * lax.rsqrt(var + eps)
        bias = beta - mean * scale
        return scale, bias

    w1 = 0.3 * jax.random.normal(ks[0], (9, idim, odim), jnp.float32)
    w2 = 0.3 * jax.random.normal(ks[1], (9, odim, odim), jnp.float32)
    wsk = 0.3 * jax.random.normal(ks[2], (idim, odim), jnp.float32)
    s1, b1 = bn(ks[3], ks[4], ks[5], ks[6])
    s2, b2 = bn(ks[7], ks[8], ks[9], ks[10])
    ssk, bsk = bn(ks[11], ks[12], ks[13], ks[14])
    return (w1, s1, b1, w2, s2, b2, wsk, ssk, bsk)


def t3_reference(x, params):
    """Pure-JAX (XLA) reference in the same NHWC layout."""
    w1, s1, b1, w2, s2, b2, wsk, ssk, bsk = params
    Cin = x.shape[-1]
    Cod = w1.shape[-1]
    dn = ('NHWC', 'HWIO', 'NHWC')
    hp = lax.Precision.HIGHEST
    y = lax.conv_general_dilated(x, w1.reshape(3, 3, Cin, Cod), (1, 1), 'SAME',
                                 dimension_numbers=dn, precision=hp)
    y = jnp.maximum(y * s1 + b1, 0.0)
    y = lax.conv_general_dilated(y, w2.reshape(3, 3, Cod, Cod), (1, 1), 'SAME',
                                 dimension_numbers=dn, precision=hp)
    y = y * s2 + b2
    ysum = lax.reduce_window(y, 0.0, lax.add,
                             (1, 3, 3, 1), (1, 2, 2, 1),
                             [(0, 0), (1, 1), (1, 1), (0, 0)])
    pooled = ysum / 9.0
    sk = jnp.einsum('bhwc,cd->bhwd', x[:, ::2, ::2, :], wsk, precision=hp)
    sk = sk * ssk + bsk
    return pooled + sk


if __name__ == "__main__":
    key = jax.random.PRNGKey(0)
    kx, kp = jax.random.split(key)

    B, Cin, H, W = 2, 4, 16, 16      # module input (NCHW, as in PyTorch)
    Cod = 8                          # odim

    x_nchw = jax.random.normal(kx, (B, Cin, H, W), jnp.float32)
    x = jnp.transpose(x_nchw, (0, 2, 3, 1))   # -> NHWC for the kernel

    params = init_params(kp, Cin, Cod)

    out = t3_forward(x, params)
    out = jax.block_until_ready(out)

    ref = t3_reference(x, params)
    Ho = (H - 1) // 2 + 1
    Wo = (W - 1) // 2 + 1
    assert out.shape == (B, Ho, Wo, Cod), out.shape
    max_err = jnp.max(jnp.abs(out - ref))
    if not bool(jnp.allclose(out, ref, atol=3e-3, rtol=3e-3)):
        raise AssertionError(f"Pallas output mismatch, max abs err = {max_err}")
    print("KERNEL_OK")
</pallas_src>

<mosaic_0001>
module attributes {stable_mosaic.version = 11 : i64} {
  func.func @_t3_kernel(%arg0: i32, %arg1: memref<1x336x128xf32, #tpu.memory_space<vmem>>, %arg2: memref<9x128x128xf32, #tpu.memory_space<vmem>>, %arg3: memref<1x128xf32, #tpu.memory_space<vmem>>, %arg4: memref<1x128xf32, #tpu.memory_space<vmem>>, %arg5: memref<9x128x128xf32, #tpu.memory_space<vmem>>, %arg6: memref<1x128xf32, #tpu.memory_space<vmem>>, %arg7: memref<1x128xf32, #tpu.memory_space<vmem>>, %arg8: memref<128x128xf32, #tpu.memory_space<vmem>>, %arg9: memref<1x128xf32, #tpu.memory_space<vmem>>, %arg10: memref<1x128xf32, #tpu.memory_space<vmem>>, %arg11: memref<286x1xf32, #tpu.memory_space<vmem>>, %arg12: memref<64x286xf32, #tpu.memory_space<vmem>>, %arg13: memref<64x336xf32, #tpu.memory_space<vmem>>, %arg14: memref<1x64x128xf32, #tpu.memory_space<vmem>>, %arg15: memref<336x128xf32, #tpu.memory_space<vmem>>) attributes {dimension_semantics = [#tpu.dimension_semantics<parallel>], iteration_bounds = array<i64: 2>, scalar_prefetch = 0 : i64, scratch_operands = 1 : i64, tpu.core_type = #tpu.core_type<tc>, window_params = [{transform_indices = @transform_0, window_bounds = array<i64: 1, 336, 128>}, {pipeline_mode = #tpu.pipeline_mode<synchronous>, transform_indices = @transform_1, window_bounds = array<i64: 9, 128, 128>}, {pipeline_mode = #tpu.pipeline_mode<synchronous>, transform_indices = @transform_2, window_bounds = array<i64: 1, 128>}, {pipeline_mode = #tpu.pipeline_mode<synchronous>, transform_indices = @transform_3, window_bounds = array<i64: 1, 128>}, {pipeline_mode = #tpu.pipeline_mode<synchronous>, transform_indices = @transform_4, window_bounds = array<i64: 9, 128, 128>}, {pipeline_mode = #tpu.pipeline_mode<synchronous>, transform_indices = @transform_5, window_bounds = array<i64: 1, 128>}, {pipeline_mode = #tpu.pipeline_mode<synchronous>, transform_indices = @transform_6, window_bounds = array<i64: 1, 128>}, {pipeline_mode = #tpu.pipeline_mode<synchronous>, transform_indices = @transform_7, window_bounds = array<i64: 128, 128>}, {pipeline_mode = #tpu.pipeline_mode<synchronous>, transform_indices = @transform_8, window_bounds = array<i64: 1, 128>}, {pipeline_mode = #tpu.pipeline_mode<synchronous>, transform_indices = @transform_9, window_bounds = array<i64: 1, 128>}, {pipeline_mode = #tpu.pipeline_mode<synchronous>, transform_indices = @transform_10, window_bounds = array<i64: 286, 1>}, {pipeline_mode = #tpu.pipeline_mode<synchronous>, transform_indices = @transform_11, window_bounds = array<i64: 64, 286>}, {pipeline_mode = #tpu.pipeline_mode<synchronous>, transform_indices = @transform_12, window_bounds = array<i64: 64, 336>}, {transform_indices = @transform_13, window_bounds = array<i64: 1, 64, 128>}]} {
    %c0 = arith.constant 0 : index
    %c5 = arith.constant 5 : index
    %c0_0 = arith.constant 0 : index
    %0 = vector.load %arg1[%c0, %c5, %c0_0] : memref<1x336x128xf32, #tpu.memory_space<vmem>>, vector<1x286x128xf32>
    %1 = vector.shape_cast %0 : vector<1x286x128xf32> to vector<286x128xf32>
    %c0_1 = arith.constant 0 : index
    %c0_2 = arith.constant 0 : index
    %c0_3 = arith.constant 0 : index
    %2 = vector.load %arg2[%c0_1, %c0_2, %c0_3] : memref<9x128x128xf32, #tpu.memory_space<vmem>>, vector<1x128x128xf32>
    %3 = vector.shape_cast %2 : vector<1x128x128xf32> to vector<128x128xf32>
    %cst = arith.constant dense<0.000000e+00> : vector<286x128xf32>
    %4 = tpu.matmul %1, %3, %cst {dimension_numbers = #tpu.dot_dimension_numbers<[1], [0], [0], [1], [0, 0, 1, 1], [], []>} : vector<286x128xf32>, vector<128x128xf32>, vector<286x128xf32> -> vector<286x128xf32>
    %c0_4 = arith.constant 0 : index
    %c6 = arith.constant 6 : index
    %c0_5 = arith.constant 0 : index
    %5 = vector.load %arg1[%c0_4, %c6, %c0_5] : memref<1x336x128xf32, #tpu.memory_space<vmem>>, vector<1x286x128xf32>
    %6 = vector.shape_cast %5 : vector<1x286x128xf32> to vector<286x128xf32>
    %c1 = arith.constant 1 : index
    %c0_6 = arith.constant 0 : index
    %c0_7 = arith.constant 0 : index
    %7 = vector.load %arg2[%c1, %c0_6, %c0_7] : memref<9x128x128xf32, #tpu.memory_space<vmem>>, vector<1x128x128xf32>
    %8 = vector.shape_cast %7 : vector<1x128x128xf32> to vector<128x128xf32>
    %cst_8 = arith.constant dense<0.000000e+00> : vector<286x128xf32>
    %9 = tpu.matmul %6, %8, %cst_8 {dimension_numbers = #tpu.dot_dimension_numbers<[1], [0], [0], [1], [0, 0, 1, 1], [], []>} : vector<286x128xf32>, vector<128x128xf32>, vector<286x128xf32> -> vector<286x128xf32>
    %10 = arith.addf %4, %9 : vector<286x128xf32>
    %c0_9 = arith.constant 0 : index
    %c7 = arith.constant 7 : index
    %c0_10 = arith.constant 0 : index
    %11 = vector.load %arg1[%c0_9, %c7, %c0_10] : memref<1x336x128xf32, #tpu.memory_space<vmem>>, vector<1x286x128xf32>
    %12 = vector.shape_cast %11 : vector<1x286x128xf32> to vector<286x128xf32>
    %c2 = arith.constant 2 : index
    %c0_11 = arith.constant 0 : index
    %c0_12 = arith.constant 0 : index
    %13 = vector.load %arg2[%c2, %c0_11, %c0_12] : memref<9x128x128xf32, #tpu.memory_space<vmem>>, vector<1x128x128xf32>
    %14 = vector.shape_cast %13 : vector<1x128x128xf32> to vector<128x128xf32>
    %cst_13 = arith.constant dense<0.000000e+00> : vector<286x128xf32>
    %15 = tpu.matmul %12, %14, %cst_13 {dimension_numbers = #tpu.dot_dimension_numbers<[1], [0], [0], [1], [0, 0, 1, 1], [], []>} : vector<286x128xf32>, vector<128x128xf32>, vector<286x128xf32> -> vector<286x128xf32>
    %16 = arith.addf %10, %15 : vector<286x128xf32>
    %c0_14 = arith.constant 0 : index
    %c23 = arith.constant 23 : index
    %c0_15 = arith.constant 0 : index
    %17 = vector.load %arg1[%c0_14, %c23, %c0_15] : memref<1x336x128xf32, #tpu.memory_space<vmem>>, vector<1x286x128xf32>
    %18 = vector.shape_cast %17 : vector<1x286x128xf32> to vector<286x128xf32>
    %c3 = arith.constant 3 : index
    %c0_16 = arith.constant 0 : index
    %c0_17 = arith.constant 0 : index
    %19 = vector.load %arg2[%c3, %c0_16, %c0_17] : memref<9x128x128xf32, #tpu.memory_space<vmem>>, vector<1x128x128xf32>
    %20 = vector.shape_cast %19 : vector<1x128x128xf32> to vector<128x128xf32>
    %cst_18 = arith.constant dense<0.000000e+00> : vector<286x128xf32>
    %21 = tpu.matmul %18, %20, %cst_18 {dimension_numbers = #tpu.dot_dimension_numbers<[1], [0], [0], [1], [0, 0, 1, 1], [], []>} : vector<286x128xf32>, vector<128x128xf32>, vector<286x128xf32> -> vector<286x128xf32>
    %22 = arith.addf %16, %21 : vector<286x128xf32>
    %c0_19 = arith.constant 0 : index
    %c24 = arith.constant 24 : index
    %c0_20 = arith.constant 0 : index
    %23 = vector.load %arg1[%c0_19, %c24, %c0_20] : memref<1x336x128xf32, #tpu.memory_space<vmem>>, vector<1x286x128xf32>
    %24 = vector.shape_cast %23 : vector<1x286x128xf32> to vector<286x128xf32>
    %c4 = arith.constant 4 : index
    %c0_21 = arith.constant 0 : index
    %c0_22 = arith.constant 0 : index
    %25 = vector.load %arg2[%c4, %c0_21, %c0_22] : memref<9x128x128xf32, #tpu.memory_space<vmem>>, vector<1x128x128xf32>
    %26 = vector.shape_cast %25 : vector<1x128x128xf32> to vector<128x128xf32>
    %cst_23 = arith.constant dense<0.000000e+00> : vector<286x128xf32>
    %27 = tpu.matmul %24, %26, %cst_23 {dimension_numbers = #tpu.dot_dimension_numbers<[1], [0], [0], [1], [0, 0, 1, 1], [], []>} : vector<286x128xf32>, vector<128x128xf32>, vector<286x128xf32> -> vector<286x128xf32>
    %28 = arith.addf %22, %27 : vector<286x128xf32>
    %c0_24 = arith.constant 0 : index
    %c25 = arith.constant 25 : index
    %c0_25 = arith.constant 0 : index
    %29 = vector.load %arg1[%c0_24, %c25, %c0_25] : memref<1x336x128xf32, #tpu.memory_space<vmem>>, vector<1x286x128xf32>
    %30 = vector.shape_cast %29 : vector<1x286x128xf32> to vector<286x128xf32>
    %c5_26 = arith.constant 5 : index
    %c0_27 = arith.constant 0 : index
    %c0_28 = arith.constant 0 : index
    %31 = vector.load %arg2[%c5_26, %c0_27, %c0_28] : memref<9x128x128xf32, #tpu.memory_space<vmem>>, vector<1x128x128xf32>
    %32 = vector.shape_cast %31 : vector<1x128x128xf32> to vector<128x128xf32>
    %cst_29 = arith.constant dense<0.000000e+00> : vector<286x128xf32>
    %33 = tpu.matmul %30, %32, %cst_29 {dimension_numbers = #tpu.dot_dimension_numbers<[1], [0], [0], [1], [0, 0, 1, 1], [], []>} : vector<286x128xf32>, vector<128x128xf32>, vector<286x128xf32> -> vector<286x128xf32>
    %34 = arith.addf %28, %33 : vector<286x128xf32>
    %c0_30 = arith.constant 0 : index
    %c41 = arith.constant 41 : index
    %c0_31 = arith.constant 0 : index
    %35 = vector.load %arg1[%c0_30, %c41, %c0_31] : memref<1x336x128xf32, #tpu.memory_space<vmem>>, vector<1x286x128xf32>
    %36 = vector.shape_cast %35 : vector<1x286x128xf32> to vector<286x128xf32>
    %c6_32 = arith.constant 6 : index
    %c0_33 = arith.constant 0 : index
    %c0_34 = arith.constant 0 : index
    %37 = vector.load %arg2[%c6_32, %c0_33, %c0_34] : memref<9x128x128xf32, #tpu.memory_space<vmem>>, vector<1x128x128xf32>
    %38 = vector.shape_cast %37 : vector<1x128x128xf32> to vector<128x128xf32>
    %cst_35 = arith.constant dense<0.000000e+00> : vector<286x128xf32>
    %39 = tpu.matmul %36, %38, %cst_35 {dimension_numbers = #tpu.dot_dimension_numbers<[1], [0], [0], [1], [0, 0, 1, 1], [], []>} : vector<286x128xf32>, vector<128x128xf32>, vector<286x128xf32> -> vector<286x128xf32>
    %40 = arith.addf %34, %39 : vector<286x128xf32>
    %c0_36 = arith.constant 0 : index
    %c42 = arith.constant 42 : index
    %c0_37 = arith.constant 0 : index
    %41 = vector.load %arg1[%c0_36, %c42, %c0_37] : memref<1x336x128xf32, #tpu.memory_space<vmem>>, vector<1x286x128xf32>
    %42 = vector.shape_cast %41 : vector<1x286x128xf32> to vector<286x128xf32>
    %c7_38 = arith.constant 7 : index
    %c0_39 = arith.constant 0 : index
    %c0_40 = arith.constant 0 : index
    %43 = vector.load %arg2[%c7_38, %c0_39, %c0_40] : memref<9x128x128xf32, #tpu.memory_space<vmem>>, vector<1x128x128xf32>
    %44 = vector.shape_cast %43 : vector<1x128x128xf32> to vector<128x128xf32>
    %cst_41 = arith.constant dense<0.000000e+00> : vector<286x128xf32>
    %45 = tpu.matmul %42, %44, %cst_41 {dimension_numbers = #tpu.dot_dimension_numbers<[1], [0], [0], [1], [0, 0, 1, 1], [], []>} : vector<286x128xf32>, vector<128x128xf32>, vector<286x128xf32> -> vector<286x128xf32>
    %46 = arith.addf %40, %45 : vector<286x128xf32>
    %c0_42 = arith.constant 0 : index
    %c43 = arith.constant 43 : index
    %c0_43 = arith.constant 0 : index
    %47 = vector.load %arg1[%c0_42, %c43, %c0_43] : memref<1x336x128xf32, #tpu.memory_space<vmem>>, vector<1x286x128xf32>
    %48 = vector.shape_cast %47 : vector<1x286x128xf32> to vector<286x128xf32>
    %c8 = arith.constant 8 : index
    %c0_44 = arith.constant 0 : index
    %c0_45 = arith.constant 0 : index
    %49 = vector.load %arg2[%c8, %c0_44, %c0_45] : memref<9x128x128xf32, #tpu.memory_space<vmem>>, vector<1x128x128xf32>
    %50 = vector.shape_cast %49 : vector<1x128x128xf32> to vector<128x128xf32>
    %cst_46 = arith.constant dense<0.000000e+00> : vector<286x128xf32>
    %51 = tpu.matmul %48, %50, %cst_46 {dimension_numbers = #tpu.dot_dimension_numbers<[1], [0], [0], [1], [0, 0, 1, 1], [], []>} : vector<286x128xf32>, vector<128x128xf32>, vector<286x128xf32> -> vector<286x128xf32>
    %52 = arith.addf %46, %51 : vector<286x128xf32>
    %c0_47 = arith.constant 0 : index
    %c0_48 = arith.constant 0 : index
    %53 = vector.load %arg3[%c0_47, %c0_48] : memref<1x128xf32, #tpu.memory_space<vmem>>, vector<1x128xf32>
    %54 = vector.broadcast %53 : vector<1x128xf32> to vector<286x128xf32>
    %55 = arith.mulf %52, %54 : vector<286x128xf32>
    %c0_49 = arith.constant 0 : index
    %c0_50 = arith.constant 0 : index
    %56 = vector.load %arg4[%c0_49, %c0_50] : memref<1x128xf32, #tpu.memory_space<vmem>>, vector<1x128xf32>
    %57 = vector.broadcast %56 : vector<1x128xf32> to vector<286x128xf32>
    %58 = arith.addf %55, %57 : vector<286x128xf32>
    %cst_51 = arith.constant 0.000000e+00 : f32
    %59 = vector.broadcast %cst_51 : f32 to vector<286x128xf32>
    %60 = arith.maximumf %58, %59 : vector<286x128xf32>
    %c0_52 = arith.constant 0 : index
    %c0_53 = arith.constant 0 : index
    %61 = vector.load %arg11[%c0_52, %c0_53] : memref<286x1xf32, #tpu.memory_space<vmem>>, vector<286x1xf32>
    %62 = vector.broadcast %61 : vector<286x1xf32> to vector<286x128xf32>
    %63 = arith.mulf %60, %62 : vector<286x128xf32>
    %cst_54 = arith.constant 0.000000e+00 : f32
    %64 = vector.broadcast %cst_54 : f32 to vector<24x128xf32>
    %c0_55 = arith.constant 0 : index
    %c0_56 = arith.constant 0 : index
    %65 = vector.load %arg15[%c0_55, %c0_56] : memref<336x128xf32, #tpu.memory_space<vmem>>, vector<24x128xf32>
    tpu.vector_store %arg15[%c0_55, %c0_56], %64 {strides = array<i32>} : memref<336x128xf32, #tpu.memory_space<vmem>>, vector<24x128xf32>,
    %cst_57 = arith.constant 0.000000e+00 : f32
    %66 = vector.broadcast %cst_57 : f32 to vector<32x128xf32>
    %c304 = arith.constant 304 : index
    %c0_58 = arith.constant 0 : index
    %67 = vector.load %arg15[%c304, %c0_58] : memref<336x128xf32, #tpu.memory_space<vmem>>, vector<32x128xf32>
    tpu.vector_store %arg15[%c304, %c0_58], %66 {strides = array<i32>} : memref<336x128xf32, #tpu.memory_space<vmem>>, vector<32x128xf32>,
    %c24_59 = arith.constant 24 : index
    %c0_60 = arith.constant 0 : index
    %68 = vector.load %arg15[%c24_59, %c0_60] : memref<336x128xf32, #tpu.memory_space<vmem>>, vector<286x128xf32>
    tpu.vector_store %arg15[%c24_59, %c0_60], %63 {strides = array<i32>} : memref<336x128xf32, #tpu.memory_space<vmem>>, vector<286x128xf32>,
    %c5_61 = arith.constant 5 : index
    %c0_62 = arith.constant 0 : index
    %69 = vector.load %arg15[%c5_61, %c0_62] : memref<336x128xf32, #tpu.memory_space<vmem>>, vector<286x128xf32>
    %c0_63 = arith.constant 0 : index
    %c0_64 = arith.constant 0 : index
    %c0_65 = arith.constant 0 : index
    %70 = vector.load %arg5[%c0_63, %c0_64, %c0_65] : memref<9x128x128xf32, #tpu.memory_space<vmem>>, vector<1x128x128xf32>
    %71 = vector.shape_cast %70 : vector<1x128x128xf32> to vector<128x128xf32>
    %cst_66 = arith.constant dense<0.000000e+00> : vector<286x128xf32>
    %72 = tpu.matmul %69, %71, %cst_66 {dimension_numbers = #tpu.dot_dimension_numbers<[1], [0], [0], [1], [0, 0, 1, 1], [], []>} : vector<286x128xf32>, vector<128x128xf32>, vector<286x128xf32> -> vector<286x128xf32>
    %c6_67 = arith.constant 6 : index
    %c0_68 = arith.constant 0 : index
    %73 = vector.load %arg15[%c6_67, %c0_68] : memref<336x128xf32, #tpu.memory_space<vmem>>, vector<286x128xf32>
    %c1_69 = arith.constant 1 : index
    %c0_70 = arith.constant 0 : index
    %c0_71 = arith.constant 0 : index
    %74 = vector.load %arg5[%c1_69, %c0_70, %c0_71] : memref<9x128x128xf32, #tpu.memory_space<vmem>>, vector<1x128x128xf32>
    %75 = vector.shape_cast %74 : vector<1x128x128xf32> to vector<128x128xf32>
    %cst_72 = arith.constant dense<0.000000e+00> : vector<286x128xf32>
    %76 = tpu.matmul %73, %75, %cst_72 {dimension_numbers = #tpu.dot_dimension_numbers<[1], [0], [0], [1], [0, 0, 1, 1], [], []>} : vector<286x128xf32>, vector<128x128xf32>, vector<286x128xf32> -> vector<286x128xf32>
    %77 = arith.addf %72, %76 : vector<286x128xf32>
    %c7_73 = arith.constant 7 : index
    %c0_74 = arith.constant 0 : index
    %78 = vector.load %arg15[%c7_73, %c0_74] : memref<336x128xf32, #tpu.memory_space<vmem>>, vector<286x128xf32>
    %c2_75 = arith.constant 2 : index
    %c0_76 = arith.constant 0 : index
    %c0_77 = arith.constant 0 : index
    %79 = vector.load %arg5[%c2_75, %c0_76, %c0_77] : memref<9x128x128xf32, #tpu.memory_space<vmem>>, vector<1x128x128xf32>
    %80 = vector.shape_cast %79 : vector<1x128x128xf32> to vector<128x128xf32>
    %cst_78 = arith.constant dense<0.000000e+00> : vector<286x128xf32>
    %81 = tpu.matmul %78, %80, %cst_78 {dimension_numbers = #tpu.dot_dimension_numbers<[1], [0], [0], [1], [0, 0, 1, 1], [], []>} : vector<286x128xf32>, vector<128x128xf32>, vector<286x128xf32> -> vector<286x128xf32>
    %82 = arith.addf %77, %81 : vector<286x128xf32>
    %c23_79 = arith.constant 23 : index
    %c0_80 = arith.constant 0 : index
    %83 = vector.load %arg15[%c23_79, %c0_80] : memref<336x128xf32, #tpu.memory_space<vmem>>, vector<286x128xf32>
    %c3_81 = arith.constant 3 : index
    %c0_82 = arith.constant 0 : index
    %c0_83 = arith.constant 0 : index
    %84 = vector.load %arg5[%c3_81, %c0_82, %c0_83] : memref<9x128x128xf32, #tpu.memory_space<vmem>>, vector<1x128x128xf32>
    %85 = vector.shape_cast %84 : vector<1x128x128xf32> to vector<128x128xf32>
    %cst_84 = arith.constant dense<0.000000e+00> : vector<286x128xf32>
    %86 = tpu.matmul %83, %85, %cst_84 {dimension_numbers = #tpu.dot_dimension_numbers<[1], [0], [0], [1], [0, 0, 1, 1], [], []>} : vector<286x128xf32>, vector<128x128xf32>, vector<286x128xf32> -> vector<286x128xf32>
    %87 = arith.addf %82, %86 : vector<286x128xf32>
    %c24_85 = arith.constant 24 : index
    %c0_86 = arith.constant 0 : index
    %88 = vector.load %arg15[%c24_85, %c0_86] : memref<336x128xf32, #tpu.memory_space<vmem>>, vector<286x128xf32>
    %c4_87 = arith.constant 4 : index
    %c0_88 = arith.constant 0 : index
    %c0_89 = arith.constant 0 : index
    %89 = vector.load %arg5[%c4_87, %c0_88, %c0_89] : memref<9x128x128xf32, #tpu.memory_space<vmem>>, vector<1x128x128xf32>
    %90 = vector.shape_cast %89 : vector<1x128x128xf32> to vector<128x128xf32>
    %cst_90 = arith.constant dense<0.000000e+00> : vector<286x128xf32>
    %91 = tpu.matmul %88, %90, %cst_90 {dimension_numbers = #tpu.dot_dimension_numbers<[1], [0], [0], [1], [0, 0, 1, 1], [], []>} : vector<286x128xf32>, vector<128x128xf32>, vector<286x128xf32> -> vector<286x128xf32>
    %92 = arith.addf %87, %91 : vector<286x128xf32>
    %c25_91 = arith.constant 25 : index
    %c0_92 = arith.constant 0 : index
    %93 = vector.load %arg15[%c25_91, %c0_92] : memref<336x128xf32, #tpu.memory_space<vmem>>, vector<286x128xf32>
    %c5_93 = arith.constant 5 : index
    %c0_94 = arith.constant 0 : index
    %c0_95 = arith.constant 0 : index
    %94 = vector.load %arg5[%c5_93, %c0_94, %c0_95] : memref<9x128x128xf32, #tpu.memory_space<vmem>>, vector<1x128x128xf32>
    %95 = vector.shape_cast %94 : vector<1x128x128xf32> to vector<128x128xf32>
    %cst_96 = arith.constant dense<0.000000e+00> : vector<286x128xf32>
    %96 = tpu.matmul %93, %95, %cst_96 {dimension_numbers = #tpu.dot_dimension_numbers<[1], [0], [0], [1], [0, 0, 1, 1], [], []>} : vector<286x128xf32>, vector<128x128xf32>, vector<286x128xf32> -> vector<286x128xf32>
    %97 = arith.addf %92, %96 : vector<286x128xf32>
    %c41_97 = arith.constant 41 : index
    %c0_98 = arith.constant 0 : index
    %98 = vector.load %arg15[%c41_97, %c0_98] : memref<336x128xf32, #tpu.memory_space<vmem>>, vector<286x128xf32>
    %c6_99 = arith.constant 6 : index
    %c0_100 = arith.constant 0 : index
    %c0_101 = arith.constant 0 : index
    %99 = vector.load %arg5[%c6_99, %c0_100, %c0_101] : memref<9x128x128xf32, #tpu.memory_space<vmem>>, vector<1x128x128xf32>
    %100 = vector.shape_cast %99 : vector<1x128x128xf32> to vector<128x128xf32>
    %cst_102 = arith.constant dense<0.000000e+00> : vector<286x128xf32>
    %101 = tpu.matmul %98, %100, %cst_102 {dimension_numbers = #tpu.dot_dimension_numbers<[1], [0], [0], [1], [0, 0, 1, 1], [], []>} : vector<286x128xf32>, vector<128x128xf32>, vector<286x128xf32> -> vector<286x128xf32>
    %102 = arith.addf %97, %101 : vector<286x128xf32>
    %c42_103 = arith.constant 42 : index
    %c0_104 = arith.constant 0 : index
    %103 = vector.load %arg15[%c42_103, %c0_104] : memref<336x128xf32, #tpu.memory_space<vmem>>, vector<286x128xf32>
    %c7_105 = arith.constant 7 : index
    %c0_106 = arith.constant 0 : index
    %c0_107 = arith.constant 0 : index
    %104 = vector.load %arg5[%c7_105, %c0_106, %c0_107] : memref<9x128x128xf32, #tpu.memory_space<vmem>>, vector<1x128x128xf32>
    %105 = vector.shape_cast %104 : vector<1x128x128xf32> to vector<128x128xf32>
    %cst_108 = arith.constant dense<0.000000e+00> : vector<286x128xf32>
    %106 = tpu.matmul %103, %105, %cst_108 {dimension_numbers = #tpu.dot_dimension_numbers<[1], [0], [0], [1], [0, 0, 1, 1], [], []>} : vector<286x128xf32>, vector<128x128xf32>, vector<286x128xf32> -> vector<286x128xf32>
    %107 = arith.addf %102, %106 : vector<286x128xf32>
    %c43_109 = arith.constant 43 : index
    %c0_110 = arith.constant 0 : index
    %108 = vector.load %arg15[%c43_109, %c0_110] : memref<336x128xf32, #tpu.memory_space<vmem>>, vector<286x128xf32>
    %c8_111 = arith.constant 8 : index
    %c0_112 = arith.constant 0 : index
    %c0_113 = arith.constant 0 : index
    %109 = vector.load %arg5[%c8_111, %c0_112, %c0_113] : memref<9x128x128xf32, #tpu.memory_space<vmem>>, vector<1x128x128xf32>
    %110 = vector.shape_cast %109 : vector<1x128x128xf32> to vector<128x128xf32>
    %cst_114 = arith.constant dense<0.000000e+00> : vector<286x128xf32>
    %111 = tpu.matmul %108, %110, %cst_114 {dimension_numbers = #tpu.dot_dimension_numbers<[1], [0], [0], [1], [0, 0, 1, 1], [], []>} : vector<286x128xf32>, vector<128x128xf32>, vector<286x128xf32> -> vector<286x128xf32>
    %112 = arith.addf %107, %111 : vector<286x128xf32>
    %c0_115 = arith.constant 0 : index
    %c0_116 = arith.constant 0 : index
    %113 = vector.load %arg6[%c0_115, %c0_116] : memref<1x128xf32, #tpu.memory_space<vmem>>, vector<1x128xf32>
    %114 = vector.broadcast %113 : vector<1x128xf32> to vector<286x128xf32>
    %115 = arith.mulf %112, %114 : vector<286x128xf32>
    %c0_117 = arith.constant 0 : index
    %c0_118 = arith.constant 0 : index
    %116 = vector.load %arg7[%c0_117, %c0_118] : memref<1x128xf32, #tpu.memory_space<vmem>>, vector<1x128xf32>
    %117 = vector.broadcast %116 : vector<1x128xf32> to vector<286x128xf32>
    %118 = arith.addf %115, %117 : vector<286x128xf32>
    %c0_119 = arith.constant 0 : index
    %c0_120 = arith.constant 0 : index
    %119 = vector.load %arg12[%c0_119, %c0_120] : memref<64x286xf32, #tpu.memory_space<vmem>>, vector<64x286xf32>
    %cst_121 = arith.constant dense<0.000000e+00> : vector<64x128xf32>
    %120 = tpu.matmul %119, %118, %cst_121 {dimension_numbers = #tpu.dot_dimension_numbers<[1], [0], [0], [1], [0, 0, 1, 1], [], []>} : vector<64x286xf32>, vector<286x128xf32>, vector<64x128xf32> -> vector<64x128xf32>
    %c0_122 = arith.constant 0 : index
    %c0_123 = arith.constant 0 : index
    %121 = vector.load %arg13[%c0_122, %c0_123] : memref<64x336xf32, #tpu.memory_space<vmem>>, vector<64x336xf32>
    %c0_124 = arith.constant 0 : index
    %c0_125 = arith.constant 0 : index
    %c0_126 = arith.constant 0 : index
    %122 = vector.load %arg1[%c0_124, %c0_125, %c0_126] : memref<1x336x128xf32, #tpu.memory_space<vmem>>, vector<1x336x128xf32>
    %123 = vector.shape_cast %122 : vector<1x336x128xf32> to vector<336x128xf32>
    %cst_127 = arith.constant dense<0.000000e+00> : vector<64x128xf32>
    %124 = tpu.matmul %121, %123, %cst_127 {dimension_numbers = #tpu.dot_dimension_numbers<[1], [0], [0], [1], [0, 0, 1, 1], [], []>} : vector<64x336xf32>, vector<336x128xf32>, vector<64x128xf32> -> vector<64x128xf32>
    %c0_128 = arith.constant 0 : index
    %c0_129 = arith.constant 0 : index
    %125 = vector.load %arg8[%c0_128, %c0_129] : memref<128x128xf32, #tpu.memory_space<vmem>>, vector<128x128xf32>
    %cst_130 = arith.constant dense<0.000000e+00> : vector<64x128xf32>
    %126 = tpu.matmul %124, %125, %cst_130 {dimension_numbers = #tpu.dot_dimension_numbers<[1], [0], [0], [1], [0, 0, 1, 1], [], []>} : vector<64x128xf32>, vector<128x128xf32>, vector<64x128xf32> -> vector<64x128xf32>
    %c0_131 = arith.constant 0 : index
    %c0_132 = arith.constant 0 : index
    %127 = vector.load %arg9[%c0_131, %c0_132] : memref<1x128xf32, #tpu.memory_space<vmem>>, vector<1x128xf32>
    %128 = vector.broadcast %127 : vector<1x128xf32> to vector<64x128xf32>
    %129 = arith.mulf %126, %128 : vector<64x128xf32>
    %c0_133 = arith.constant 0 : index
    %c0_134 = arith.constant 0 : index
    %130 = vector.load %arg10[%c0_133, %c0_134] : memref<1x128xf32, #tpu.memory_space<vmem>>, vector<1x128xf32>
    %131 = vector.broadcast %130 : vector<1x128xf32> to vector<64x128xf32>
    %132 = arith.addf %129, %131 : vector<64x128xf32>
    %133 = arith.addf %120, %132 : vector<64x128xf32>
    %c0_135 = arith.constant 0 : index
    %c0_136 = arith.constant 0 : index
    %c0_137 = arith.constant 0 : index
    %134 = vector.load %arg14[%c0_135, %c0_136, %c0_137] : memref<1x64x128xf32, #tpu.memory_space<vmem>>, vector<1x64x128xf32>
    %135 = vector.shape_cast %134 : vector<1x64x128xf32> to vector<64x128xf32>
    %136 = vector.shape_cast %133 : vector<64x128xf32> to vector<1x64x128xf32>
    tpu.vector_store %arg14[%c0_135, %c0_136, %c0_137], %136 {strides = array<i32>} : memref<1x64x128xf32, #tpu.memory_space<vmem>>, vector<1x64x128xf32>,
    return
  }
  func.func @transform_0(%arg0: i32) -> (i32, i32, i32) {
    %c0_i32 = arith.constant 0 : i32
    %c0_i32_0 = arith.constant 0 : i32
    %c0_i32_1 = arith.constant 0 : i32
    return %arg0, %c0_i32, %c0_i32_0 : i32, i32, i32
  }
  func.func @transform_1(%arg0: i32) -> (i32, i32, i32) {
    %c0_i32 = arith.constant 0 : i32
    %c0_i32_0 = arith.constant 0 : i32
    %c0_i32_1 = arith.constant 0 : i32
    %c0_i32_2 = arith.constant 0 : i32
    return %c0_i32, %c0_i32_0, %c0_i32_1 : i32, i32, i32
  }
  func.func @transform_2(%arg0: i32) -> (i32, i32) {
    %c0_i32 = arith.constant 0 : i32
    %c0_i32_0 = arith.constant 0 : i32
    %c0_i32_1 = arith.constant 0 : i32
    return %c0_i32, %c0_i32_0 : i32, i32
  }
  func.func @transform_3(%arg0: i32) -> (i32, i32) {
    %c0_i32 = arith.constant 0 : i32
    %c0_i32_0 = arith.constant 0 : i32
    %c0_i32_1 = arith.constant 0 : i32
    return %c0_i32, %c0_i32_0 : i32, i32
  }
  func.func @transform_4(%arg0: i32) -> (i32, i32, i32) {
    %c0_i32 = arith.constant 0 : i32
    %c0_i32_0 = arith.constant 0 : i32
    %c0_i32_1 = arith.constant 0 : i32
    %c0_i32_2 = arith.constant 0 : i32
    return %c0_i32, %c0_i32_0, %c0_i32_1 : i32, i32, i32
  }
  func.func @transform_5(%arg0: i32) -> (i32, i32) {
    %c0_i32 = arith.constant 0 : i32
    %c0_i32_0 = arith.constant 0 : i32
    %c0_i32_1 = arith.constant 0 : i32
    return %c0_i32, %c0_i32_0 : i32, i32
  }
  func.func @transform_6(%arg0: i32) -> (i32, i32) {
    %c0_i32 = arith.constant 0 : i32
    %c0_i32_0 = arith.constant 0 : i32
    %c0_i32_1 = arith.constant 0 : i32
    return %c0_i32, %c0_i32_0 : i32, i32
  }
  func.func @transform_7(%arg0: i32) -> (i32, i32) {
    %c0_i32 = arith.constant 0 : i32
    %c0_i32_0 = arith.constant 0 : i32
    %c0_i32_1 = arith.constant 0 : i32
    return %c0_i32, %c0_i32_0 : i32, i32
  }
  func.func @transform_8(%arg0: i32) -> (i32, i32) {
    %c0_i32 = arith.constant 0 : i32
    %c0_i32_0 = arith.constant 0 : i32
    %c0_i32_1 = arith.constant 0 : i32
    return %c0_i32, %c0_i32_0 : i32, i32
  }
  func.func @transform_9(%arg0: i32) -> (i32, i32) {
    %c0_i32 = arith.constant 0 : i32
    %c0_i32_0 = arith.constant 0 : i32
    %c0_i32_1 = arith.constant 0 : i32
    return %c0_i32, %c0_i32_0 : i32, i32
  }
  func.func @transform_10(%arg0: i32) -> (i32, i32) {
    %c0_i32 = arith.constant 0 : i32
    %c0_i32_0 = arith.constant 0 : i32
    %c0_i32_1 = arith.constant 0 : i32
    return %c0_i32, %c0_i32_0 : i32, i32
  }
  func.func @transform_11(%arg0: i32) -> (i32, i32) {
    %c0_i32 = arith.constant 0 : i32
    %c0_i32_0 = arith.constant 0 : i32
    %c0_i32_1 = arith.constant 0 : i32
    return %c0_i32, %c0_i32_0 : i32, i32
  }
  func.func @transform_12(%arg0: i32) -> (i32, i32) {
    %c0_i32 = arith.constant 0 : i32
    %c0_i32_0 = arith.constant 0 : i32
    %c0_i32_1 = arith.constant 0 : i32
    return %c0_i32, %c0_i32_0 : i32, i32
  }
  func.func @transform_13(%arg0: i32) -> (i32, i32, i32) {
    %c0_i32 = arith.constant 0 : i32
    %c0_i32_0 = arith.constant 0 : i32
    %c0_i32_1 = arith.constant 0 : i32
    return %arg0, %c0_i32, %c0_i32_0 : i32, i32, i32
  }
}

</mosaic_0001>

<llo_original>
// kernel: tpu_custom_call.1
$region0: #{tpu_custom_call.1}
  #allocation0 [shape = 'u32[]', space=smem, size = 0x4, offset = 0x4, fixed_abs, tag = 'smem constant byte address 0x4 - core index']
  #allocation1 [shape = 'u32[144,128]{1,0:T(1,128)}', space=vmem, size = 0x12000, scoped, tag = 'internal scratch']
  #allocation2 [shape = 'f32[336,128]{1,0:T(8,128)}', space=vmem, size = 0x2a000, scoped, tag = 'scratch operand']
  %s0 = inlined_call_operand.hbm [shape: f32[2,336,128], index: 0, kind: input, shape index: {}]
  %s1 = inlined_call_operand.hbm [shape: f32[9,128,128], index: 1, kind: input, shape index: {}]
  %s2 = inlined_call_operand.vmem [shape: f32[1,128], index: 2, kind: input, shape index: {}]
  %s3 = inlined_call_operand.vmem [shape: f32[1,128], index: 3, kind: input, shape index: {}]
  %s4 = inlined_call_operand.hbm [shape: f32[9,128,128], index: 4, kind: input, shape index: {}]
  %s5 = inlined_call_operand.vmem [shape: f32[1,128], index: 5, kind: input, shape index: {}]
  %s6 = inlined_call_operand.vmem [shape: f32[1,128], index: 6, kind: input, shape index: {}]
  %s7 = inlined_call_operand.vmem [shape: f32[128,128], index: 7, kind: input, shape index: {}]
  %s8 = inlined_call_operand.vmem [shape: f32[1,128], index: 8, kind: input, shape index: {}]
  %s9 = inlined_call_operand.vmem [shape: f32[1,128], index: 9, kind: input, shape index: {}]
  %s10 = inlined_call_operand.vmem [shape: f32[286,1], index: 10, kind: input, shape index: {}]
  %s11 = inlined_call_operand.vmem [shape: f32[64,286], index: 11, kind: input, shape index: {}]
  %s12 = inlined_call_operand.hbm [shape: f32[64,336], index: 12, kind: input, shape index: {}]
  %s13 = inlined_call_operand.hbm [shape: f32[2,64,128], index: 13, kind: output, shape index: {}]
  %s14 = sld [smem:[#allocation0]]
  $region101: #{tpu_custom_call.1} parent=0
    _
  %s16 = ssub.s32 1, %s14
  %s17 = scalar_select 0, %s16, %s14
  $region1: #{tpu_custom_call.1} parent=0
    #allocation3 [shape = 'u8[344064]{0}', space=vmem, size = 0x54000, scoped, tag = 'input window, operand 0']
    #allocation4 [shape = 's32[2]{0}', space=sflag, size = 0x8, scoped, tag = 'scoped memory for tpu_custom_call.1']
    #allocation5 [shape = 's32[2]{0}', space=sflag, size = 0x8, scoped, tag = 'scoped memory for tpu_custom_call.1']
    #allocation6 [shape = 'u8[589824]{0}', space=vmem, size = 0x90000, scoped, tag = 'input window, operand 1, single buffered']
    #allocation7 [shape = 's32[1]{0}', space=sflag, size = 0x4, scoped, tag = 'scoped memory for tpu_custom_call.1']
    #allocation8 [shape = 'u8[589824]{0}', space=vmem, size = 0x90000, scoped, tag = 'input window, operand 4, single buffered']
    #allocation9 [shape = 'u8[98304]{0}', space=vmem, size = 0x18000, scoped, tag = 'input window, operand 12, single buffered']
    #allocation10 [shape = 's32[1]{0}', space=sflag, size = 0x4, scoped, tag = 'scoped memory for tpu_custom_call.1']
    #allocation11 [shape = 'u8[65536]{0}', space=vmem, size = 0x10000, scoped, tag = 'output window, operand 0']
    %18 = vsyncpa [#allocation4], 0
    %s19 = scalar_lea.sflag [#allocation4], 1
    %20 = vsyncpa %s19, 0
    %21 = vsyncpa [#allocation7], 0
    %22 = vsyncpa [#allocation10], 0
    %23 = vsyncpa [#allocation5], 0
    %s24 = scalar_lea.sflag [#allocation5], 1
    %25 = vsyncpa %s24, 0
    loop: start=0, step=1, limit=4
    $region2: #{tpu_custom_call.1} parent=1 // loop_pre_header
      _
    $region3: #{tpu_custom_call.1} parent=1 // loop_header
      %s27 = sphi 0, %s31
      %p28 = scmp.ge.s32.totalorder %s27, 4
      %s37 = sphi 0, %s39
      %s40 = sphi 0, %s37
      %s41 = sphi 0, %s40
      %s57 = sphi 0, %s41
      %s61 = sphi 0, %s61
      %s63 = sphi 0, %s61
      %s64 = sphi 0, %s63
      %s78 = sphi 0, %s64
      %s82 = sphi 0, %s82
      %s84 = sphi 0, %s82
      %s85 = sphi 0, %s84
      %s99 = sphi 0, %s85
      %s103 = sphi 0, %s103
      %s105 = sphi 0, %s103
      %s106 = sphi 0, %s105
      %s120 = sphi 0, %s106
      %s124 = sphi 0, %s124
      %s126 = sphi 0, %s124
      %s127 = sphi 0, %s126
      %s141 = sphi 0, %s127
      %s145 = sphi 0, %s145
      %s147 = sphi 0, %s145
      %s148 = sphi 0, %s147
      %s162 = sphi 0, %s148
      %s166 = sphi 0, %s166
      %s168 = sphi 0, %s166
      %s169 = sphi 0, %s168
      %s183 = sphi 0, %s169
      %s187 = sphi 0, %s187
      %s189 = sphi 0, %s187
      %s190 = sphi 0, %s189
      %s204 = sphi 0, %s190
      %s208 = sphi 0, %s208
      %s210 = sphi 0, %s208
      %s211 = sphi 0, %s210
      %s225 = sphi 0, %s211
      %s229 = sphi 0, %s229
      %s231 = sphi 0, %s229
      %s232 = sphi 0, %s231
      %s246 = sphi 0, %s232
      %s250 = sphi 0, %s250
      %s252 = sphi 0, %s250
      %s253 = sphi 0, %s252
      %s267 = sphi 0, %s253
      %s271 = sphi 0, %s271
      %s273 = sphi 0, %s271
      %s274 = sphi 0, %s273
      %s288 = sphi 0, %s274
      %s292 = sphi 0, %s292
      %s294 = sphi 0, %s292
      %s295 = sphi 0, %s294
      %s309 = sphi 0, %s295
      %s315 = sphi 0, %s317
      %s318 = sphi 0, %s315
      %s319 = sphi 0, %s318
      %s335 = sphi 0, %s319
    $region4: #{tpu_custom_call.1} parent=1 // loop_header_branch
      %30 = sbr.rel (%p28) target = $region8
    $region5: #{tpu_custom_call.1} parent=1 // loop_body
      %s32 = ssub.s32 %s27, 1
      %s33 = ssub.s32 %s27, 2
      %s34 = sadd.s32 %s27, 1
      %s35 = ssub.s32 %s27, %s34
      %p36 = scmp.eq.s32.totalorder %s35, 0
      %s38 = sadd.s32 %s37, 1
      %s39 = scalar_select %p36, %s37, %s38
      %p42 = pneg %p36
      %p43 = scmp.eq.s32.totalorder %s27, 1
      %p44 = por %p42, %p43
      %p45 = scmp.ne.s32.totalorder %s37, %s40
      %p46 = scmp.eq.s32.totalorder %s27, 0
      %p47 = por %p45, %p46
      %p48 = scmp.ne.s32.totalorder %s37, %s40
      %p49 = scmp.eq.s32.totalorder %s32, 1
      %p50 = por %p48, %p49
      %p51 = scmp.ne.s32.totalorder %s40, %s41
      %p52 = scmp.eq.s32.totalorder %s32, 0
      %p53 = por %p51, %p52
      %p54 = scmp.ne.s32.totalorder %s40, %s41
      %p55 = scmp.eq.s32.totalorder %s33, 1
      %p56 = por %p54, %p55
      %p58 = scmp.ne.s32.totalorder %s41, %s57
      %p59 = scmp.eq.s32.totalorder %s33, 0
      %p60 = por %p58, %p59
      %s62 = sadd.s32 %s61, 1
      %p65 = scmp.eq.s32.totalorder %s27, 1
      %p66 = scmp.ne.s32.totalorder %s61, %s63
      %p67 = scmp.eq.s32.totalorder %s27, 0
      %p68 = por %p66, %p67
      %p69 = scmp.ne.s32.totalorder %s61, %s63
      %p70 = scmp.eq.s32.totalorder %s32, 1
      %p71 = por %p69, %p70
      %p72 = scmp.ne.s32.totalorder %s63, %s64
      %p73 = scmp.eq.s32.totalorder %s32, 0
      %p74 = por %p72, %p73
      %p75 = scmp.ne.s32.totalorder %s63, %s64
      %p76 = scmp.eq.s32.totalorder %s33, 1
      %p77 = por %p75, %p76
      %p79 = scmp.ne.s32.totalorder %s64, %s78
      %p80 = scmp.eq.s32.totalorder %s33, 0
      %p81 = por %p79, %p80
      %s83 = sadd.s32 %s82, 1
      %p86 = scmp.eq.s32.totalorder %s27, 1
      %p87 = scmp.ne.s32.totalorder %s82, %s84
      %p88 = scmp.eq.s32.totalorder %s27, 0
      %p89 = por %p87, %p88
      %p90 = scmp.ne.s32.totalorder %s82, %s84
      %p91 = scmp.eq.s32.totalorder %s32, 1
      %p92 = por %p90, %p91
      %p93 = scmp.ne.s32.totalorder %s84, %s85
      %p94 = scmp.eq.s32.totalorder %s32, 0
      %p95 = por %p93, %p94
      %p96 = scmp.ne.s32.totalorder %s84, %s85
      %p97 = scmp.eq.s32.totalorder %s33, 1
      %p98 = por %p96, %p97
      %p100 = scmp.ne.s32.totalorder %s85, %s99
      %p101 = scmp.eq.s32.totalorder %s33, 0
      %p102 = por %p100, %p101
      %s104 = sadd.s32 %s103, 1
      %p107 = scmp.eq.s32.totalorder %s27, 1
      %p108 = scmp.ne.s32.totalorder %s103, %s105
      %p109 = scmp.eq.s32.totalorder %s27, 0
      %p110 = por %p108, %p109
      %p111 = scmp.ne.s32.totalorder %s103, %s105
      %p112 = scmp.eq.s32.totalorder %s32, 1
      %p113 = por %p111, %p112
      %p114 = scmp.ne.s32.totalorder %s105, %s106
      %p115 = scmp.eq.s32.totalorder %s32, 0
      %p116 = por %p114, %p115
      %p117 = scmp.ne.s32.totalorder %s105, %s106
      %p118 = scmp.eq.s32.totalorder %s33, 1
      %p119 = por %p117, %p118
      %p121 = scmp.ne.s32.totalorder %s106, %s120
      %p122 = scmp.eq.s32.totalorder %s33, 0
      %p123 = por %p121, %p122
      %s125 = sadd.s32 %s124, 1
      %p128 = scmp.eq.s32.totalorder %s27, 1
      %p129 = scmp.ne.s32.totalorder %s124, %s126
      %p130 = scmp.eq.s32.totalorder %s27, 0
      %p131 = por %p129, %p130
      %p132 = scmp.ne.s32.totalorder %s124, %s126
      %p133 = scmp.eq.s32.totalorder %s32, 1
      %p134 = por %p132, %p133
      %p135 = scmp.ne.s32.totalorder %s126, %s127
      %p136 = scmp.eq.s32.totalorder %s32, 0
      %p137 = por %p135, %p136
      %p138 = scmp.ne.s32.totalorder %s126, %s127
      %p139 = scmp.eq.s32.totalorder %s33, 1
      %p140 = por %p138, %p139
      %p142 = scmp.ne.s32.totalorder %s127, %s141
      %p143 = scmp.eq.s32.totalorder %s33, 0
      %p144 = por %p142, %p143
      %s146 = sadd.s32 %s145, 1
      %p149 = scmp.eq.s32.totalorder %s27, 1
      %p150 = scmp.ne.s32.totalorder %s145, %s147
      %p151 = scmp.eq.s32.totalorder %s27, 0
      %p152 = por %p150, %p151
      %p153 = scmp.ne.s32.totalorder %s145, %s147
      %p154 = scmp.eq.s32.totalorder %s32, 1
      %p155 = por %p153, %p154
      %p156 = scmp.ne.s32.totalorder %s147, %s148
      %p157 = scmp.eq.s32.totalorder %s32, 0
      %p158 = por %p156, %p157
      %p159 = scmp.ne.s32.totalorder %s147, %s148
      %p160 = scmp.eq.s32.totalorder %s33, 1
      %p161 = por %p159, %p160
      %p163 = scmp.ne.s32.totalorder %s148, %s162
      %p164 = scmp.eq.s32.totalorder %s33, 0
      %p165 = por %p163, %p164
      %s167 = sadd.s32 %s166, 1
      %p170 = scmp.eq.s32.totalorder %s27, 1
      %p171 = scmp.ne.s32.totalorder %s166, %s168
      %p172 = scmp.eq.s32.totalorder %s27, 0
      %p173 = por %p171, %p172
      %p174 = scmp.ne.s32.totalorder %s166, %s168
      %p175 = scmp.eq.s32.totalorder %s32, 1
      %p176 = por %p174, %p175
      %p177 = scmp.ne.s32.totalorder %s168, %s169
      %p178 = scmp.eq.s32.totalorder %s32, 0
      %p179 = por %p177, %p178
      %p180 = scmp.ne.s32.totalorder %s168, %s169
      %p181 = scmp.eq.s32.totalorder %s33, 1
      %p182 = por %p180, %p181
      %p184 = scmp.ne.s32.totalorder %s169, %s183
      %p185 = scmp.eq.s32.totalorder %s33, 0
      %p186 = por %p184, %p185
      %s188 = sadd.s32 %s187, 1
      %p191 = scmp.eq.s32.totalorder %s27, 1
      %p192 = scmp.ne.s32.totalorder %s187, %s189
      %p193 = scmp.eq.s32.totalorder %s27, 0
      %p194 = por %p192, %p193
      %p195 = scmp.ne.s32.totalorder %s187, %s189
      %p196 = scmp.eq.s32.totalorder %s32, 1
      %p197 = por %p195, %p196
      %p198 = scmp.ne.s32.totalorder %s189, %s190
      %p199 = scmp.eq.s32.totalorder %s32, 0
      %p200 = por %p198, %p199
      %p201 = scmp.ne.s32.totalorder %s189, %s190
      %p202 = scmp.eq.s32.totalorder %s33, 1
      %p203 = por %p201, %p202
      %p205 = scmp.ne.s32.totalorder %s190, %s204
      %p206 = scmp.eq.s32.totalorder %s33, 0
      %p207 = por %p205, %p206
      %s209 = sadd.s32 %s208, 1
      %p212 = scmp.eq.s32.totalorder %s27, 1
      %p213 = scmp.ne.s32.totalorder %s208, %s210
      %p214 = scmp.eq.s32.totalorder %s27, 0
      %p215 = por %p213, %p214
      %p216 = scmp.ne.s32.totalorder %s208, %s210
      %p217 = scmp.eq.s32.totalorder %s32, 1
      %p218 = por %p216, %p217
      %p219 = scmp.ne.s32.totalorder %s210, %s211
      %p220 = scmp.eq.s32.totalorder %s32, 0
      %p221 = por %p219, %p220
      %p222 = scmp.ne.s32.totalorder %s210, %s211
      %p223 = scmp.eq.s32.totalorder %s33, 1
      %p224 = por %p222, %p223
      %p226 = scmp.ne.s32.totalorder %s211, %s225
      %p227 = scmp.eq.s32.totalorder %s33, 0
      %p228 = por %p226, %p227
      %s230 = sadd.s32 %s229, 1
      %p233 = scmp.eq.s32.totalorder %s27, 1
      %p234 = scmp.ne.s32.totalorder %s229, %s231
      %p235 = scmp.eq.s32.totalorder %s27, 0
      %p236 = por %p234, %p235
      %p237 = scmp.ne.s32.totalorder %s229, %s231
      %p238 = scmp.eq.s32.totalorder %s32, 1
      %p239 = por %p237, %p238
      %p240 = scmp.ne.s32.totalorder %s231, %s232
      %p241 = scmp.eq.s32.totalorder %s32, 0
      %p242 = por %p240, %p241
      %p243 = scmp.ne.s32.totalorder %s231, %s232
      %p244 = scmp.eq.s32.totalorder %s33, 1
      %p245 = por %p243, %p244
      %p247 = scmp.ne.s32.totalorder %s232, %s246
      %p248 = scmp.eq.s32.totalorder %s33, 0
      %p249 = por %p247, %p248
      %s251 = sadd.s32 %s250, 1
      %p254 = scmp.eq.s32.totalorder %s27, 1
      %p255 = scmp.ne.s32.totalorder %s250, %s252
      %p256 = scmp.eq.s32.totalorder %s27, 0
      %p257 = por %p255, %p256
      %p258 = scmp.ne.s32.totalorder %s250, %s252
      %p259 = scmp.eq.s32.totalorder %s32, 1
      %p260 = por %p258, %p259
      %p261 = scmp.ne.s32.totalorder %s252, %s253
      %p262 = scmp.eq.s32.totalorder %s32, 0
      %p263 = por %p261, %p262
      %p264 = scmp.ne.s32.totalorder %s252, %s253
      %p265 = scmp.eq.s32.totalorder %s33, 1
      %p266 = por %p264, %p265
      %p268 = scmp.ne.s32.totalorder %s253, %s267
      %p269 = scmp.eq.s32.totalorder %s33, 0
      %p270 = por %p268, %p269
      %s272 = sadd.s32 %s271, 1
      %p275 = scmp.eq.s32.totalorder %s27, 1
      %p276 = scmp.ne.s32.totalorder %s271, %s273
      %p277 = scmp.eq.s32.totalorder %s27, 0
      %p278 = por %p276, %p277
      %p279 = scmp.ne.s32.totalorder %s271, %s273
      %p280 = scmp.eq.s32.totalorder %s32, 1
      %p281 = por %p279, %p280
      %p282 = scmp.ne.s32.totalorder %s273, %s274
      %p283 = scmp.eq.s32.totalorder %s32, 0
      %p284 = por %p282, %p283
      %p285 = scmp.ne.s32.totalorder %s273, %s274
      %p286 = scmp.eq.s32.totalorder %s33, 1
      %p287 = por %p285, %p286
      %p289 = scmp.ne.s32.totalorder %s274, %s288
      %p290 = scmp.eq.s32.totalorder %s33, 0
      %p291 = por %p289, %p290
      %s293 = sadd.s32 %s292, 1
      %p296 = scmp.eq.s32.totalorder %s27, 1
      %p297 = scmp.ne.s32.totalorder %s292, %s294
      %p298 = scmp.eq.s32.totalorder %s27, 0
      %p299 = por %p297, %p298
      %p300 = scmp.ne.s32.totalorder %s292, %s294
      %p301 = scmp.eq.s32.totalorder %s32, 1
      %p302 = por %p300, %p301
      %p303 = scmp.ne.s32.totalorder %s294, %s295
      %p304 = scmp.eq.s32.totalorder %s32, 0
      %p305 = por %p303, %p304
      %p306 = scmp.ne.s32.totalorder %s294, %s295
      %p307 = scmp.eq.s32.totalorder %s33, 1
      %p308 = por %p306, %p307
      %p310 = scmp.ne.s32.totalorder %s295, %s309
      %p311 = scmp.eq.s32.totalorder %s33, 0
      %p312 = por %p310, %p311
      %s313 = ssub.s32 %s27, %s34
      %p314 = scmp.eq.s32.totalorder %s313, 0
      %s316 = sadd.s32 %s315, 1
      %s317 = scalar_select %p314, %s315, %s316
      %p320 = pneg %p314
      %p321 = scmp.eq.s32.totalorder %s27, 1
      %p322 = por %p320, %p321
      %p323 = scmp.ne.s32.totalorder %s315, %s318
      %p324 = scmp.eq.s32.totalorder %s27, 0
      %p325 = por %p323, %p324
      %p326 = scmp.ne.s32.totalorder %s315, %s318
      %p327 = scmp.eq.s32.totalorder %s32, 1
      %p328 = por %p326, %p327
      %p329 = scmp.ne.s32.totalorder %s318, %s319
      %p330 = scmp.eq.s32.totalorder %s32, 0
      %p331 = por %p329, %p330
      %p332 = scmp.ne.s32.totalorder %s318, %s319
      %p333 = scmp.eq.s32.totalorder %s33, 1
      %p334 = por %p332, %p333
      %p336 = scmp.ne.s32.totalorder %s319, %s335
      %p337 = scmp.eq.s32.totalorder %s33, 0
      %p338 = por %p336, %p337
      %p339 = scmp.le.s32.totalorder 1, %s27
      %p340 = scmp.lt.s32.totalorder %s27, 3
      %p341 = pnand %p339, %p340
      %p342 = pneg %p341
      // Predicated region
      $region9: #{tpu_custom_call.1} parent=5 // pred_check
        _
      $region10: #{tpu_custom_call.1} parent=5 // pred_check_branch
        %344 = sbr.rel (%p341) target = $region12
      $region11: #{tpu_custom_call.1} parent=5 // pred_region
        %s345 = ssub.s32 %s27, 1
        // Predicated region
        $region13: #{tpu_custom_call.1} parent=11 // pred_check
          %p346 = pneg %p74
        $region14: #{tpu_custom_call.1} parent=11 // pred_check_branch
          %348 = sbr.rel (%p346) target = $region16
        $region15: #{tpu_custom_call.1} parent=11 // pred_region
          %s350 = ssub.s32 18432, 18432
          %351 = vsyncadd [#allocation7], %s350
          %s352 = sshll.u32 [#allocation6], 4
          %s353 = int_to_ptr.vmem [resolvable:$true] %s352
          %358 = dma.hbm_to_vmem [thread:$0]  %s1, 18432, %s353, [#allocation7], 128, 128, 8
        $region16: #{tpu_custom_call.1} parent=11 // pred_fallthru
          _
        // Predicated region
        $region17: #{tpu_custom_call.1} parent=11 // pred_check
          %p359 = pneg %p95
        $region18: #{tpu_custom_call.1} parent=11 // pred_check_branch
          %361 = sbr.rel (%p359) target = $region20
        $region19: #{tpu_custom_call.1} parent=11 // pred_region
          _
        $region20: #{tpu_custom_call.1} parent=11 // pred_fallthru
          _
        // Predicated region
        $region21: #{tpu_custom_call.1} parent=11 // pred_check
          %p362 = pneg %p116
        $region22: #{tpu_custom_call.1} parent=11 // pred_check_branch
          %364 = sbr.rel (%p362) target = $region24
        $region23: #{tpu_custom_call.1} parent=11 // pred_region
          _
        $region24: #{tpu_custom_call.1} parent=11 // pred_fallthru
          _
        // Predicated region
        $region25: #{tpu_custom_call.1} parent=11 // pred_check
          %p365 = pneg %p137
        $region26: #{tpu_custom_call.1} parent=11 // pred_check_branch
          %367 = sbr.rel (%p365) target = $region28
        $region27: #{tpu_custom_call.1} parent=11 // pred_region
          %s369 = ssub.s32 18432, 18432
          %370 = vsyncadd [#allocation7], %s369
          %s371 = sshll.u32 [#allocation8], 4
          %s372 = int_to_ptr.vmem [resolvable:$true] %s371
          %377 = dma.hbm_to_vmem [thread:$0]  %s4, 18432, %s372, [#allocation7], 128, 128, 8
        $region28: #{tpu_custom_call.1} parent=11 // pred_fallthru
          _
        // Predicated region
        $region29: #{tpu_custom_call.1} parent=11 // pred_check
          %p378 = pneg %p158
        $region30: #{tpu_custom_call.1} parent=11 // pred_check_branch
          %380 = sbr.rel (%p378) target = $region32
        $region31: #{tpu_custom_call.1} parent=11 // pred_region
          _
        $region32: #{tpu_custom_call.1} parent=11 // pred_fallthru
          _
        // Predicated region
        $region33: #{tpu_custom_call.1} parent=11 // pred_check
          %p381 = pneg %p179
        $region34: #{tpu_custom_call.1} parent=11 // pred_check_branch
          %383 = sbr.rel (%p381) target = $region36
        $region35: #{tpu_custom_call.1} parent=11 // pred_region
          _
        $region36: #{tpu_custom_call.1} parent=11 // pred_fallthru
          _
        // Predicated region
        $region37: #{tpu_custom_call.1} parent=11 // pred_check
          %p384 = pneg %p200
        $region38: #{tpu_custom_call.1} parent=11 // pred_check_branch
          %386 = sbr.rel (%p384) target = $region40
        $region39: #{tpu_custom_call.1} parent=11 // pred_region
          _
        $region40: #{tpu_custom_call.1} parent=11 // pred_fallthru
          _
        // Predicated region
        $region41: #{tpu_custom_call.1} parent=11 // pred_check
          %p387 = pneg %p221
        $region42: #{tpu_custom_call.1} parent=11 // pred_check_branch
          %389 = sbr.rel (%p387) target = $region44
        $region43: #{tpu_custom_call.1} parent=11 // pred_region
          _
        $region44: #{tpu_custom_call.1} parent=11 // pred_fallthru
          _
        // Predicated region
        $region45: #{tpu_custom_call.1} parent=11 // pred_check
          %p390 = pneg %p242
        $region46: #{tpu_custom_call.1} parent=11 // pred_check_branch
          %392 = sbr.rel (%p390) target = $region48
        $region47: #{tpu_custom_call.1} parent=11 // pred_region
          _
        $region48: #{tpu_custom_call.1} parent=11 // pred_fallthru
          _
        // Predicated region
        $region49: #{tpu_custom_call.1} parent=11 // pred_check
          %p393 = pneg %p263
        $region50: #{tpu_custom_call.1} parent=11 // pred_check_branch
          %395 = sbr.rel (%p393) target = $region52
        $region51: #{tpu_custom_call.1} parent=11 // pred_region
          _
        $region52: #{tpu_custom_call.1} parent=11 // pred_fallthru
          _
        // Predicated region
        $region53: #{tpu_custom_call.1} parent=11 // pred_check
          %p396 = pneg %p284
        $region54: #{tpu_custom_call.1} parent=11 // pred_check_branch
          %398 = sbr.rel (%p396) target = $region56
        $region55: #{tpu_custom_call.1} parent=11 // pred_region
          _
        $region56: #{tpu_custom_call.1} parent=11 // pred_fallthru
          _
        // Predicated region
        $region57: #{tpu_custom_call.1} parent=11 // pred_check
          %p399 = pneg %p305
        $region58: #{tpu_custom_call.1} parent=11 // pred_check_branch
          %401 = sbr.rel (%p399) target = $region60
        $region59: #{tpu_custom_call.1} parent=11 // pred_region
          %s403 = ssub.s32 3072, 3072
          %404 = vsyncadd [#allocation10], %s403
          %s405 = sshll.u32 [#allocation9], 4
          %s406 = int_to_ptr.vmem [resolvable:$true] %s405
          %411 = dma.hbm_to_vmem [thread:$0]  %s12, 3072, %s406, [#allocation10], 384, 384, 24
        $region60: #{tpu_custom_call.1} parent=11 // pred_fallthru
          _
      $region12: #{tpu_custom_call.1} parent=5 // pred_fallthru
        _
      %p412 = scmp.lt.s32.totalorder %s27, 2
      // Predicated region
      $region61: #{tpu_custom_call.1} parent=5 // pred_check
        %p413 = pneg %p412
      $region62: #{tpu_custom_call.1} parent=5 // pred_check_branch
        %415 = sbr.rel (%p413) target = $region64
      $region63: #{tpu_custom_call.1} parent=5 // pred_region
        // Predicated region
        $region65: #{tpu_custom_call.1} parent=63 // pred_check
          %p416 = pneg %p47
        $region66: #{tpu_custom_call.1} parent=63 // pred_check_branch
          %418 = sbr.rel (%p416) target = $region68
        $region67: #{tpu_custom_call.1} parent=63 // pred_region
          %s419 = sand.u32 %s37, 1
          %s420 = scalar_lea.sflag [#allocation4], %s419
          %s421 = sand.u32 %s37, 1
          %s422 = smul.addr %s421, 336
          %s423 = scalar_lea.vmem [#allocation3], %s422
          %s425 = ssub.s32 5376, 5376
          %426 = vsyncadd %s420, %s425
          %s427 = smul.addr %s27, 42
          %s428 = smul.addr %s427, 128
          %s429 = scalar_lea.hbm %s0, %s428
          %s430 = sshll.u32 %s423, 4
          %s431 = int_to_ptr.vmem [resolvable:$true] %s430
          %436 = dma.hbm_to_vmem [thread:$0]  %s429, 5376, %s431, %s420, 128, 128, 8
        $region68: #{tpu_custom_call.1} parent=63 // pred_fallthru
          _
      $region64: #{tpu_custom_call.1} parent=5 // pred_fallthru
        _
      %p437 = scmp.le.s32.totalorder 1, %s27
      %p438 = scmp.lt.s32.totalorder %s27, 3
      %p439 = pnand %p437, %p438
      %p440 = pneg %p439
      // Predicated region
      $region69: #{tpu_custom_call.1} parent=5 // pred_check
        _
      $region70: #{tpu_custom_call.1} parent=5 // pred_check_branch
        %442 = sbr.rel (%p439) target = $region72
      $region71: #{tpu_custom_call.1} parent=5 // pred_region
        %s443 = ssub.s32 %s27, 1
        %s444 = sand.u32 %s40, 1
        %s445 = scalar_lea.sflag [#allocation4], %s444
        %s446 = sand.u32 %s40, 1
        %s447 = smul.addr %s446, 336
        %s448 = scalar_lea.vmem [#allocation3], %s447
        // Predicated region
        $region73: #{tpu_custom_call.1} parent=71 // pred_check
          %p449 = pneg %p53
        $region74: #{tpu_custom_call.1} parent=71 // pred_check_branch
          %451 = sbr.rel (%p449) target = $region76
        $region75: #{tpu_custom_call.1} parent=71 // pred_region
          %452 = dma.done %s445, 5376
        $region76: #{tpu_custom_call.1} parent=71 // pred_fallthru
          _
        // Predicated region
        $region77: #{tpu_custom_call.1} parent=71 // pred_check
          %p453 = pneg %p74
        $region78: #{tpu_custom_call.1} parent=71 // pred_check_branch
          %455 = sbr.rel (%p453) target = $region80
        $region79: #{tpu_custom_call.1} parent=71 // pred_region
          %456 = dma.done [#allocation7], 18432
        $region80: #{tpu_custom_call.1} parent=71 // pred_fallthru
          _
        // Predicated region
        $region81: #{tpu_custom_call.1} parent=71 // pred_check
          %p457 = pneg %p137
        $region82: #{tpu_custom_call.1} parent=71 // pred_check_branch
          %459 = sbr.rel (%p457) target = $region84
        $region83: #{tpu_custom_call.1} parent=71 // pred_region
          %460 = dma.done [#allocation7], 18432
        $region84: #{tpu_custom_call.1} parent=71 // pred_fallthru
          _
        // Predicated region
        $region85: #{tpu_custom_call.1} parent=71 // pred_check
          %p461 = pneg %p305
        $region86: #{tpu_custom_call.1} parent=71 // pred_check_branch
          %463 = sbr.rel (%p461) target = $region88
        $region87: #{tpu_custom_call.1} parent=71 // pred_region
          %464 = dma.done [#allocation10], 3072
        $region88: #{tpu_custom_call.1} parent=71 // pred_fallthru
          _
        %s465 = sand.u32 %s40, 1
        %s466 = scalar_lea.sflag [#allocation4], %s465
        %s467 = sand.u32 %s40, 1
        %s468 = smul.addr %s467, 336
        %s469 = scalar_lea.vmem [#allocation3], %s468
        %p470 = pneg %p53
        %p471 = pneg %p50
        %p472 = pneg %p74
        %p473 = pneg %p71
        %p474 = pneg %p95
        %p475 = pneg %p92
        %p476 = pneg %p116
        %p477 = pneg %p113
        %p478 = pneg %p137
        %p479 = pneg %p134
        %p480 = pneg %p158
        %p481 = pneg %p155
        %p482 = pneg %p179
        %p483 = pneg %p176
        %p484 = pneg %p200
        %p485 = pneg %p197
        %p486 = pneg %p221
        %p487 = pneg %p218
        %p488 = pneg %p242
        %p489 = pneg %p239
        %p490 = pneg %p263
        %p491 = pneg %p260
        %p492 = pneg %p284
        %p493 = pneg %p281
        %p494 = pneg %p305
        %p495 = pneg %p302
        %p496 = pneg %p331
        %p497 = pneg %p328
        %s498 = sand.u32 %s318, 1
        %s499 = scalar_lea.sflag [#allocation5], %s498
        %s500 = sand.u32 %s318, 1
        %s501 = smul.addr %s500, 64
        %s502 = scalar_lea.vmem [#allocation11], %s501
        %v503 = vld [vmem:[%s448 + $0x5] sm:$0xff]
        %v504 = vld [vmem:[%s448 + $0xd] sm:$0xff]
        %v505 = vld [vmem:[%s448 + $0x15] sm:$0xff]
        %v506 = vld [vmem:[%s448 + $0x1d] sm:$0xff]
        %v507 = vld [vmem:[%s448 + $0x25] sm:$0xff]
        %v508 = vld [vmem:[%s448 + $0x2d] sm:$0xff]
        %v509 = vld [vmem:[%s448 + $0x35] sm:$0xff]
        %v510 = vld [vmem:[%s448 + $0x3d] sm:$0xff]
        %v511 = vld [vmem:[%s448 + $0x45] sm:$0xff]
        %v512 = vld [vmem:[%s448 + $0x4d] sm:$0xff]
        %v513 = vld [vmem:[%s448 + $0x55] sm:$0xff]
        %v514 = vld [vmem:[%s448 + $0x5d] sm:$0xff]
        %v515 = vld [vmem:[%s448 + $0x65] sm:$0xff]
        %v516 = vld [vmem:[%s448 + $0x6d] sm:$0xff]
        %v517 = vld [vmem:[%s448 + $0x75] sm:$0xff]
        %v518 = vld [vmem:[%s448 + $0x7d] sm:$0xff]
        %v519 = vld [vmem:[%s448 + $0x85] sm:$0xff]
        %v520 = vld [vmem:[%s448 + $0x8d] sm:$0xff]
        %v521 = vld [vmem:[%s448 + $0x95] sm:$0xff]
        %v522 = vld [vmem:[%s448 + $0x9d] sm:$0xff]
        %v523 = vld [vmem:[%s448 + $0xa5] sm:$0xff]
        %v524 = vld [vmem:[%s448 + $0xad] sm:$0xff]
        %v525 = vld [vmem:[%s448 + $0xb5] sm:$0xff]
        %v526 = vld [vmem:[%s448 + $0xbd] sm:$0xff]
        %v527 = vld [vmem:[%s448 + $0xc5] sm:$0xff]
        %v528 = vld [vmem:[%s448 + $0xcd] sm:$0xff]
        %v529 = vld [vmem:[%s448 + $0xd5] sm:$0xff]
        %v530 = vld [vmem:[%s448 + $0xdd] sm:$0xff]
        %v531 = vld [vmem:[%s448 + $0xe5] sm:$0xff]
        %v532 = vld [vmem:[%s448 + $0xed] sm:$0xff]
        %v533 = vld [vmem:[%s448 + $0xf5] sm:$0xff]
        %v534 = vld [vmem:[%s448 + $0xfd] sm:$0xff]
        %v535 = vld [vmem:[%s448 + $0x105] sm:$0xff]
        %v536 = vld [vmem:[%s448 + $0x10d] sm:$0xff]
        %v537 = vld [vmem:[%s448 + $0x115] sm:$0xff]
        %v538 = vld [vmem:[%s448 + $0x11d] sm:$0x3f]
        %v539 = vld [vmem:[#allocation6] sm:$0xff]
        %v540 = vld [vmem:[#allocation6 + $0x8] sm:$0xff]
        %v541 = vld [vmem:[#allocation6 + $0x10] sm:$0xff]
        %v542 = vld [vmem:[#allocation6 + $0x18] sm:$0xff]
        %v543 = vld [vmem:[#allocation6 + $0x20] sm:$0xff]
        %v544 = vld [vmem:[#allocation6 + $0x28] sm:$0xff]
        %v545 = vld [vmem:[#allocation6 + $0x30] sm:$0xff]
        %v546 = vld [vmem:[#allocation6 + $0x38] sm:$0xff]
        %v547 = vld [vmem:[#allocation6 + $0x40] sm:$0xff]
        %v548 = vld [vmem:[#allocation6 + $0x48] sm:$0xff]
        %v549 = vld [vmem:[#allocation6 + $0x50] sm:$0xff]
        %v550 = vld [vmem:[#allocation6 + $0x58] sm:$0xff]
        %v551 = vld [vmem:[#allocation6 + $0x60] sm:$0xff]
        %v552 = vld [vmem:[#allocation6 + $0x68] sm:$0xff]
        %v553 = vld [vmem:[#allocation6 + $0x70] sm:$0xff]
        %v554 = vld [vmem:[#allocation6 + $0x78] sm:$0xff]
        %v555 = vld [vmem:[%s448 + $0x6] sm:$0xff]
        %v556 = vld [vmem:[%s448 + $0xe] sm:$0xff]
        %v557 = vld [vmem:[%s448 + $0x16] sm:$0xff]
        %v558 = vld [vmem:[%s448 + $0x1e] sm:$0xff]
        %v559 = vld [vmem:[%s448 + $0x26] sm:$0xff]
        %v560 = vld [vmem:[%s448 + $0x2e] sm:$0xff]
        %v561 = vld [vmem:[%s448 + $0x36] sm:$0xff]
        %v562 = vld [vmem:[%s448 + $0x3e] sm:$0xff]
        %v563 = vld [vmem:[%s448 + $0x46] sm:$0xff]
        %v564 = vld [vmem:[%s448 + $0x4e] sm:$0xff]
        %v565 = vld [vmem:[%s448 + $0x56] sm:$0xff]
        %v566 = vld [vmem:[%s448 + $0x5e] sm:$0xff]
        %v567 = vld [vmem:[%s448 + $0x66] sm:$0xff]
        %v568 = vld [vmem:[%s448 + $0x6e] sm:$0xff]
        %v569 = vld [vmem:[%s448 + $0x76] sm:$0xff]
        %v570 = vld [vmem:[%s448 + $0x7e] sm:$0xff]
        %v571 = vld [vmem:[%s448 + $0x86] sm:$0xff]
        %v572 = vld [vmem:[%s448 + $0x8e] sm:$0xff]
        %v573 = vld [vmem:[%s448 + $0x96] sm:$0xff]
        %v574 = vld [vmem:[%s448 + $0x9e] sm:$0xff]
        %v575 = vld [vmem:[%s448 + $0xa6] sm:$0xff]
        %v576 = vld [vmem:[%s448 + $0xae] sm:$0xff]
        %v577 = vld [vmem:[%s448 + $0xb6] sm:$0xff]
        %v578 = vld [vmem:[%s448 + $0xbe] sm:$0xff]
        %v579 = vld [vmem:[%s448 + $0xc6] sm:$0xff]
        %v580 = vld [vmem:[%s448 + $0xce] sm:$0xff]
        %v581 = vld [vmem:[%s448 + $0xd6] sm:$0xff]
        %v582 = vld [vmem:[%s448 + $0xde] sm:$0xff]
        %v583 = vld [vmem:[%s448 + $0xe6] sm:$0xff]
        %v584 = vld [vmem:[%s448 + $0xee] sm:$0xff]
        %v585 = vld [vmem:[%s448 + $0xf6] sm:$0xff]
        %v586 = vld [vmem:[%s448 + $0xfe] sm:$0xff]
        %v587 = vld [vmem:[%s448 + $0x106] sm:$0xff]
        %v588 = vld [vmem:[%s448 + $0x10e] sm:$0xff]
        %v589 = vld [vmem:[%s448 + $0x116] sm:$0xff]
        %v590 = vld [vmem:[%s448 + $0x11e] sm:$0x3f]
        %s591 = scalar_lea.vmem [#allocation6], 128
        %v592 = vld [vmem:[%s591] sm:$0xff]
        %v593 = vld [vmem:[%s591 + $0x8] sm:$0xff]
        %v594 = vld [vmem:[%s591 + $0x10] sm:$0xff]
        %v595 = vld [vmem:[%s591 + $0x18] sm:$0xff]
        %v596 = vld [vmem:[%s591 + $0x20] sm:$0xff]
        %v597 = vld [vmem:[%s591 + $0x28] sm:$0xff]
        %v598 = vld [vmem:[%s591 + $0x30] sm:$0xff]
        %v599 = vld [vmem:[%s591 + $0x38] sm:$0xff]
        %v600 = vld [vmem:[%s591 + $0x40] sm:$0xff]
        %v601 = vld [vmem:[%s591 + $0x48] sm:$0xff]
        %v602 = vld [vmem:[%s591 + $0x50] sm:$0xff]
        %v603 = vld [vmem:[%s591 + $0x58] sm:$0xff]
        %v604 = vld [vmem:[%s591 + $0x60] sm:$0xff]
        %v605 = vld [vmem:[%s591 + $0x68] sm:$0xff]
        %v606 = vld [vmem:[%s591 + $0x70] sm:$0xff]
        %v607 = vld [vmem:[%s591 + $0x78] sm:$0xff]
        %608 = vmatprep.subr.mxu0 0.0
        %609 = vmatpush1.msra.mxu0 %v592
        %610 = vmatprep.subr.mxu0 0.0
        %611 = vmatpush1.msra.mxu0 %v593
        %612 = vmatprep.subr.mxu0 0.0
        %613 = vmatpush1.msra.mxu0 %v594
        %614 = vmatprep.subr.mxu0 0.0
        %615 = vmatpush1.msra.mxu0 %v595
        %616 = vmatprep.subr.mxu0 0.0
        %617 = vmatpush1.msra.mxu0 %v596
        %618 = vmatprep.subr.mxu0 0.0
        %619 = vmatpush1.msra.mxu0 %v597
        %620 = vmatprep.subr.mxu0 0.0
        %621 = vmatpush1.msra.mxu0 %v598
        %622 = vmatprep.subr.mxu0 0.0
        %623 = vmatpush1.msra.mxu0 %v599
        %624 = vmatprep.subr.mxu0 0.0
        %625 = vmatpush1.msra.mxu0 %v600
        %626 = vmatprep.subr.mxu0 0.0
        %627 = vmatpush1.msra.mxu0 %v601
        %628 = vmatprep.subr.mxu0 0.0
        %629 = vmatpush1.msra.mxu0 %v602
        %630 = vmatprep.subr.mxu0 0.0
        %631 = vmatpush1.msra.mxu0 %v603
        %632 = vmatprep.subr.mxu0 0.0
        %633 = vmatpush1.msra.mxu0 %v604
        %634 = vmatprep.subr.mxu0 0.0
        %635 = vmatpush1.msra.mxu0 %v605
        %636 = vmatprep.subr.mxu0 0.0
        %637 = vmatpush1.msra.mxu0 %v606
        %638 = vmatprep.subr.mxu0 0.0
        %639 = vmatpush1.msra.mxu0 %v607
        %640 = vmatprep.subr.mxu0 0.0
        %641 = vmatpush1.msra.mxu0 0.0
        %642 = vmatprep.subr.mxu0 0.0
        %643 = vmatpush1.msra.mxu0 0.0
        %644 = vmatprep.subr.mxu0 0.0
        %645 = vmatpush1.msra.mxu0 0.0
        %646 = vmatprep.subr.mxu0 0.0
        %647 = vmatpush1.msra.mxu0 0.0
        %648 = vmatprep.subr.mxu0 0.0
        %649 = vmatpush1.msra.mxu0 0.0
        %650 = vmatprep.subr.mxu0 0.0
        %651 = vmatpush1.msra.mxu0 0.0
        %652 = vmatprep.subr.mxu0 0.0
        %653 = vmatpush1.msra.mxu0 0.0
        %654 = vmatprep.subr.mxu0 0.0
        %655 = vmatpush1.msra.mxu0 0.0
        %656 = vmatprep.subr.mxu0 0.0
        %657 = vmatpush1.msra.mxu0 0.0
        %658 = vmatprep.subr.mxu0 0.0
        %659 = vmatpush1.msra.mxu0 0.0
        %660 = vmatprep.subr.mxu0 0.0
        %661 = vmatpush1.msra.mxu0 0.0
        %662 = vmatprep.subr.mxu0 0.0
        %663 = vmatpush1.msra.mxu0 0.0
        %664 = vmatprep.subr.mxu0 0.0
        %665 = vmatpush1.msra.mxu0 0.0
        %666 = vmatprep.subr.mxu0 0.0
        %667 = vmatpush1.msra.mxu0 0.0
        %668 = vmatprep.subr.mxu0 0.0
        %669 = vmatpush1.msra.mxu0 0.0
        %670 = vmatprep.subr.mxu0 0.0
        %671 = vmatpush1.msra.mxu0 0.0
        %672 = vmatprep.mubr.f32.mxu0 0.0
        %673 = vmatmul.mubr.f32.gmra.mrb[0].mxu0 %v555
        %v674 = vpop.f32.mrb[0].mxu0
        %v675 = vadd.f32 0.0, %v674
        %v676 = vpop.f32.mrb[0].mxu0
        %677 = vmatprep.mubr.f32.mxu0 0.0
        %678 = vmatmul.mubr.f32.gmra.mrb[0].mxu0 %v556
        %v679 = vpop.f32.mrb[0].mxu0
        %v680 = vadd.f32 0.0, %v679
        %v681 = vpop.f32.mrb[0].mxu0
        %682 = vmatprep.mubr.f32.mxu0 0.0
        %683 = vmatmul.mubr.f32.gmra.mrb[0].mxu0 %v557
        %v684 = vpop.f32.mrb[0].mxu0
        %v685 = vadd.f32 0.0, %v684
        %v686 = vpop.f32.mrb[0].mxu0
        %687 = vmatprep.mubr.f32.mxu0 0.0
        %688 = vmatmul.mubr.f32.gmra.mrb[0].mxu0 %v558
        %v689 = vpop.f32.mrb[0].mxu0
        %v690 = vadd.f32 0.0, %v689
        %v691 = vpop.f32.mrb[0].mxu0
        %692 = vmatprep.mubr.f32.mxu0 0.0
        %693 = vmatmul.mubr.f32.gmra.mrb[0].mxu0 %v559
        %v694 = vpop.f32.mrb[0].mxu0
        %v695 = vadd.f32 0.0, %v694
        %v696 = vpop.f32.mrb[0].mxu0
        %697 = vmatprep.mubr.f32.mxu0 0.0
        %698 = vmatmul.mubr.f32.gmra.mrb[0].mxu0 %v560
        %v699 = vpop.f32.mrb[0].mxu0
        %v700 = vadd.f32 0.0, %v699
        %v701 = vpop.f32.mrb[0].mxu0
        %702 = vmatprep.mubr.f32.mxu0 0.0
        %703 = vmatmul.mubr.f32.gmra.mrb[0].mxu0 %v561
        %v704 = vpop.f32.mrb[0].mxu0
        %v705 = vadd.f32 0.0, %v704
        %v706 = vpop.f32.mrb[0].mxu0
        %707 = vmatprep.mubr.f32.mxu0 0.0
        %708 = vmatmul.mubr.f32.gmra.mrb[0].mxu0 %v562
        %v709 = vpop.f32.mrb[0].mxu0
        %v710 = vadd.f32 0.0, %v709
        %v711 = vpop.f32.mrb[0].mxu0
        %712 = vmatprep.mubr.f32.mxu0 0.0
        %713 = vmatmul.mubr.f32.gmra.mrb[0].mxu0 %v563
        %v714 = vpop.f32.mrb[0].mxu0
        %v715 = vadd.f32 0.0, %v714
        %v716 = vpop.f32.mrb[0].mxu0
        %717 = vmatprep.mubr.f32.mxu0 0.0
        %718 = vmatmul.mubr.f32.gmra.mrb[0].mxu0 %v564
        %v719 = vpop.f32.mrb[0].mxu0
        %v720 = vadd.f32 0.0, %v719
        %v721 = vpop.f32.mrb[0].mxu0
        %722 = vmatprep.mubr.f32.mxu0 0.0
        %723 = vmatmul.mubr.f32.gmra.mrb[0].mxu0 %v565
        %v724 = vpop.f32.mrb[0].mxu0
        %v725 = vadd.f32 0.0, %v724
        %v726 = vpop.f32.mrb[0].mxu0
        %727 = vmatprep.mubr.f32.mxu0 0.0
        %728 = vmatmul.mubr.f32.gmra.mrb[0].mxu0 %v566
        %v729 = vpop.f32.mrb[0].mxu0
        %v730 = vadd.f32 0.0, %v729
        %v731 = vpop.f32.mrb[0].mxu0
        %732 = vmatprep.mubr.f32.mxu0 0.0
        %733 = vmatmul.mubr.f32.gmra.mrb[0].mxu0 %v567
        %v734 = vpop.f32.mrb[0].mxu0
        %v735 = vadd.f32 0.0, %v734
        %v736 = vpop.f32.mrb[0].mxu0
        %737 = vmatprep.mubr.f32.mxu0 0.0
        %738 = vmatmul.mubr.f32.gmra.mrb[0].mxu0 %v568
        %v739 = vpop.f32.mrb[0].mxu0
        %v740 = vadd.f32 0.0, %v739
        %v741 = vpop.f32.mrb[0].mxu0
        %742 = vmatprep.mubr.f32.mxu0 0.0
        %743 = vmatmul.mubr.f32.gmra.mrb[0].mxu0 %v569
        %v744 = vpop.f32.mrb[0].mxu0
        %v745 = vadd.f32 0.0, %v744
        %v746 = vpop.f32.mrb[0].mxu0
        %747 = vmatprep.mubr.f32.mxu0 0.0
        %748 = vmatmul.mubr.f32.gmra.mrb[0].mxu0 %v570
        %v749 = vpop.f32.mrb[0].mxu0
        %v750 = vadd.f32 0.0, %v749
        %v751 = vpop.f32.mrb[0].mxu0
        %752 = vmatprep.mubr.f32.mxu0 0.0
        %753 = vmatmul.mubr.f32.gmra.mrb[0].mxu0 %v571
        %v754 = vpop.f32.mrb[0].mxu0
        %v755 = vadd.f32 0.0, %v754
        %v756 = vpop.f32.mrb[0].mxu0
        %757 = vmatprep.mubr.f32.mxu0 0.0
        %758 = vmatmul.mubr.f32.gmra.mrb[0].mxu0 %v572
        %v759 = vpop.f32.mrb[0].mxu0
        %v760 = vadd.f32 0.0, %v759
        %v761 = vpop.f32.mrb[0].mxu0
        %762 = vmatprep.mubr.f32.mxu0 0.0
        %763 = vmatmul.mubr.f32.gmra.mrb[0].mxu0 %v573
        %v764 = vpop.f32.mrb[0].mxu0
        %v765 = vadd.f32 0.0, %v764
        %v766 = vpop.f32.mrb[0].mxu0
        %767 = vmatprep.mubr.f32.mxu0 0.0
        %768 = vmatmul.mubr.f32.gmra.mrb[0].mxu0 %v574
        %v769 = vpop.f32.mrb[0].mxu0
        %v770 = vadd.f32 0.0, %v769
        %v771 = vpop.f32.mrb[0].mxu0
        %772 = vmatprep.mubr.f32.mxu0 0.0
        %773 = vmatmul.mubr.f32.gmra.mrb[0].mxu0 %v575
        %v774 = vpop.f32.mrb[0].mxu0
        %v775 = vadd.f32 0.0, %v774
        %v776 = vpop.f32.mrb[0].mxu0
        %777 = vmatprep.mubr.f32.mxu0 0.0
        %778 = vmatmul.mubr.f32.gmra.mrb[0].mxu0 %v576
        %v779 = vpop.f32.mrb[0].mxu0
        %v780 = vadd.f32 0.0, %v779
        %v781 = vpop.f32.mrb[0].mxu0
        %782 = vmatprep.mubr.f32.mxu0 0.0
        %783 = vmatmul.mubr.f32.gmra.mrb[0].mxu0 %v577
        %v784 = vpop.f32.mrb[0].mxu0
        %v785 = vadd.f32 0.0, %v784
        %v786 = vpop.f32.mrb[0].mxu0
        %787 = vmatprep.mubr.f32.mxu0 0.0
        %788 = vmatmul.mubr.f32.gmra.mrb[0].mxu0 %v578
        %v789 = vpop.f32.mrb[0].mxu0
        %v790 = vadd.f32 0.0, %v789
        %v791 = vpop.f32.mrb[0].mxu0
        %792 = vmatprep.mubr.f32.mxu0 0.0
        %793 = vmatmul.mubr.f32.gmra.mrb[0].mxu0 %v579
        %v794 = vpop.f32.mrb[0].mxu0
        %v795 = vadd.f32 0.0, %v794
        %v796 = vpop.f32.mrb[0].mxu0
        %797 = vmatprep.mubr.f32.mxu0 0.0
        %798 = vmatmul.mubr.f32.gmra.mrb[0].mxu0 %v580
        %v799 = vpop.f32.mrb[0].mxu0
        %v800 = vadd.f32 0.0, %v799
        %v801 = vpop.f32.mrb[0].mxu0
        %802 = vmatprep.mubr.f32.mxu0 0.0
        %803 = vmatmul.mubr.f32.gmra.mrb[0].mxu0 %v581
        %v804 = vpop.f32.mrb[0].mxu0
        %v805 = vadd.f32 0.0, %v804
        %v806 = vpop.f32.mrb[0].mxu0
        %807 = vmatprep.mubr.f32.mxu0 0.0
        %808 = vmatmul.mubr.f32.gmra.mrb[0].mxu0 %v582
        %v809 = vpop.f32.mrb[0].mxu0
        %v810 = vadd.f32 0.0, %v809
        %v811 = vpop.f32.mrb[0].mxu0
        %812 = vmatprep.mubr.f32.mxu0 0.0
        %813 = vmatmul.mubr.f32.gmra.mrb[0].mxu0 %v583
        %v814 = vpop.f32.mrb[0].mxu0
        %v815 = vadd.f32 0.0, %v814
        %v816 = vpop.f32.mrb[0].mxu0
        %817 = vmatprep.mubr.f32.mxu0 0.0
        %818 = vmatmul.mubr.f32.gmra.mrb[0].mxu0 %v584
        %v819 = vpop.f32.mrb[0].mxu0
        %v820 = vadd.f32 0.0, %v819
        %v821 = vpop.f32.mrb[0].mxu0
        %822 = vmatprep.mubr.f32.mxu0 0.0
        %823 = vmatmul.mubr.f32.gmra.mrb[0].mxu0 %v585
        %v824 = vpop.f32.mrb[0].mxu0
        %v825 = vadd.f32 0.0, %v824
        %v826 = vpop.f32.mrb[0].mxu0
        %827 = vmatprep.mubr.f32.mxu0 0.0
        %828 = vmatmul.mubr.f32.gmra.mrb[0].mxu0 %v586
        %v829 = vpop.f32.mrb[0].mxu0
        %v830 = vadd.f32 0.0, %v829
        %v831 = vpop.f32.mrb[0].mxu0
        %832 = vmatprep.mubr.f32.mxu0 0.0
        %833 = vmatmul.mubr.f32.gmra.mrb[0].mxu0 %v587
        %v834 = vpop.f32.mrb[0].mxu0
        %v835 = vadd.f32 0.0, %v834
        %v836 = vpop.f32.mrb[0].mxu0
        %837 = vmatprep.mubr.f32.mxu0 0.0
        %838 = vmatmul.mubr.f32.gmra.mrb[0].mxu0 %v588
        %v839 = vpop.f32.mrb[0].mxu0
        %v840 = vadd.f32 0.0, %v839
        %v841 = vpop.f32.mrb[0].mxu0
        %842 = vmatprep.mubr.f32.mxu0 0.0
        %843 = vmatmul.mubr.f32.gmra.mrb[0].mxu0 %v589
        %v844 = vpop.f32.mrb[0].mxu0
        %v845 = vadd.f32 0.0, %v844
        %v846 = vpop.f32.mrb[0].mxu0
        %847 = vmatprep.mubr.f32.mxu0 0.0
        %848 = vmatmul.mubr.f32.gmra.mrb[0].mxu0 %v590
        %v849 = vpop.f32.mrb[0].mxu0
        %v850 = vadd.f32 0.0, %v849
        %v851 = vpop.f32.mrb[0].mxu0
        %852 = vdwg.mxu0
        %853 = vmatprep.subr.mxu0 0.0
        %854 = vmatpush1.msra.mxu0 %v539
        %855 = vmatprep.subr.mxu0 0.0
        %856 = vmatpush1.msra.mxu0 %v540
        %857 = vmatprep.subr.mxu0 0.0
        %858 = vmatpush1.msra.mxu0 %v541
        %859 = vmatprep.subr.mxu0 0.0
        %860 = vmatpush1.msra.mxu0 %v542
        %861 = vmatprep.subr.mxu0 0.0
        %862 = vmatpush1.msra.mxu0 %v543
        %863 = vmatprep.subr.mxu0 0.0
        %864 = vmatpush1.msra.mxu0 %v544
        %865 = vmatprep.subr.mxu0 0.0
        %866 = vmatpush1.msra.mxu0 %v545
        %867 = vmatprep.subr.mxu0 0.0
        %868 = vmatpush1.msra.mxu0 %v546
        %869 = vmatprep.subr.mxu0 0.0
        %870 = vmatpush1.msra.mxu0 %v547
        %871 = vmatprep.subr.mxu0 0.0
        %872 = vmatpush1.msra.mxu0 %v548
        %873 = vmatprep.subr.mxu0 0.0
        %874 = vmatpush1.msra.mxu0 %v549
        %875 = vmatprep.subr.mxu0 0.0
        %876 = vmatpush1.msra.mxu0 %v550
        %877 = vmatprep.subr.mxu0 0.0
        %878 = vmatpush1.msra.mxu0 %v551
        %879 = vmatprep.subr.mxu0 0.0
        %880 = vmatpush1.msra.mxu0 %v552
        %881 = vmatprep.subr.mxu0 0.0
        %882 = vmatpush1.msra.mxu0 %v553
        %883 = vmatprep.subr.mxu0 0.0
        %884 = vmatpush1.msra.mxu0 %v554
        %885 = vmatprep.subr.mxu0 0.0
        %886 = vmatpush1.msra.mxu0 0.0
        %887 = vmatprep.subr.mxu0 0.0
        %888 = vmatpush1.msra.mxu0 0.0
        %889 = vmatprep.subr.mxu0 0.0
        %890 = vmatpush1.msra.mxu0 0.0
        %891 = vmatprep.subr.mxu0 0.0
        %892 = vmatpush1.msra.mxu0 0.0
        %893 = vmatprep.subr.mxu0 0.0
        %894 = vmatpush1.msra.mxu0 0.0
        %895 = vmatprep.subr.mxu0 0.0
        %896 = vmatpush1.msra.mxu0 0.0
        %897 = vmatprep.subr.mxu0 0.0
        %898 = vmatpush1.msra.mxu0 0.0
        %899 = vmatprep.subr.mxu0 0.0
        %900 = vmatpush1.msra.mxu0 0.0
        %901 = vmatprep.subr.mxu0 0.0
        %902 = vmatpush1.msra.mxu0 0.0
        %903 = vmatprep.subr.mxu0 0.0
        %904 = vmatpush1.msra.mxu0 0.0
        %905 = vmatprep.subr.mxu0 0.0
        %906 = vmatpush1.msra.mxu0 0.0
        %907 = vmatprep.subr.mxu0 0.0
        %908 = vmatpush1.msra.mxu0 0.0
        %909 = vmatprep.subr.mxu0 0.0
        %910 = vmatpush1.msra.mxu0 0.0
        %911 = vmatprep.subr.mxu0 0.0
        %912 = vmatpush1.msra.mxu0 0.0
        %913 = vmatprep.subr.mxu0 0.0
        %914 = vmatpush1.msra.mxu0 0.0
        %915 = vmatprep.subr.mxu0 0.0
        %916 = vmatpush1.msra.mxu0 0.0
        %917 = vmatprep.mubr.f32.mxu0 0.0
        %918 = vmatmul.mubr.f32.gmra.mrb[0].mxu0 %v503
        %v919 = vpop.f32.mrb[0].mxu0
        %v920 = vadd.f32 %v675, %v919
        %v921 = vpop.f32.mrb[0].mxu0
        %922 = vmatprep.mubr.f32.mxu0 0.0
        %923 = vmatmul.mubr.f32.gmra.mrb[0].mxu0 %v504
        %v924 = vpop.f32.mrb[0].mxu0
        %v925 = vadd.f32 %v680, %v924
        %v926 = vpop.f32.mrb[0].mxu0
        %927 = vmatprep.mubr.f32.mxu0 0.0
        %928 = vmatmul.mubr.f32.gmra.mrb[0].mxu0 %v505
        %v929 = vpop.f32.mrb[0].mxu0
        %v930 = vadd.f32 %v685, %v929
        %v931 = vpop.f32.mrb[0].mxu0
        %932 = vmatprep.mubr.f32.mxu0 0.0
        %933 = vmatmul.mubr.f32.gmra.mrb[0].mxu0 %v506
        %v934 = vpop.f32.mrb[0].mxu0
        %v935 = vadd.f32 %v690, %v934
        %v936 = vpop.f32.mrb[0].mxu0
        %937 = vmatprep.mubr.f32.mxu0 0.0
        %938 = vmatmul.mubr.f32.gmra.mrb[0].mxu0 %v507
        %v939 = vpop.f32.mrb[0].mxu0
        %v940 = vadd.f32 %v695, %v939
        %v941 = vpop.f32.mrb[0].mxu0
        %942 = vmatprep.mubr.f32.mxu0 0.0
        %943 = vmatmul.mubr.f32.gmra.mrb[0].mxu0 %v508
        %v944 = vpop.f32.mrb[0].mxu0
        %v945 = vadd.f32 %v700, %v944
        %v946 = vpop.f32.mrb[0].mxu0
        %947 = vmatprep.mubr.f32.mxu0 0.0
        %948 = vmatmul.mubr.f32.gmra.mrb[0].mxu0 %v509
        %v949 = vpop.f32.mrb[0].mxu0
        %v950 = vadd.f32 %v705, %v949
        %v951 = vpop.f32.mrb[0].mxu0
        %952 = vmatprep.mubr.f32.mxu0 0.0
        %953 = vmatmul.mubr.f32.gmra.mrb[0].mxu0 %v510
        %v954 = vpop.f32.mrb[0].mxu0
        %v955 = vadd.f32 %v710, %v954
        %v956 = vpop.f32.mrb[0].mxu0
        %957 = vmatprep.mubr.f32.mxu0 0.0
        %958 = vmatmul.mubr.f32.gmra.mrb[0].mxu0 %v511
        %v959 = vpop.f32.mrb[0].mxu0
        %v960 = vadd.f32 %v715, %v959
        %v961 = vpop.f32.mrb[0].mxu0
        %962 = vmatprep.mubr.f32.mxu0 0.0
        %963 = vmatmul.mubr.f32.gmra.mrb[0].mxu0 %v512
        %v964 = vpop.f32.mrb[0].mxu0
        %v965 = vadd.f32 %v720, %v964
        %v966 = vpop.f32.mrb[0].mxu0
        %967 = vmatprep.mubr.f32.mxu0 0.0
        %968 = vmatmul.mubr.f32.gmra.mrb[0].mxu0 %v513
        %v969 = vpop.f32.mrb[0].mxu0
        %v970 = vadd.f32 %v725, %v969
        %v971 = vpop.f32.mrb[0].mxu0
        %972 = vmatprep.mubr.f32.mxu0 0.0
        %973 = vmatmul.mubr.f32.gmra.mrb[0].mxu0 %v514
        %v974 = vpop.f32.mrb[0].mxu0
        %v975 = vadd.f32 %v730, %v974
        %v976 = vpop.f32.mrb[0].mxu0
        %977 = vmatprep.mubr.f32.mxu0 0.0
        %978 = vmatmul.mubr.f32.gmra.mrb[0].mxu0 %v515
        %v979 = vpop.f32.mrb[0].mxu0
        %v980 = vadd.f32 %v735, %v979
        %v981 = vpop.f32.mrb[0].mxu0
        %982 = vmatprep.mubr.f32.mxu0 0.0
        %983 = vmatmul.mubr.f32.gmra.mrb[0].mxu0 %v516
        %v984 = vpop.f32.mrb[0].mxu0
        %v985 = vadd.f32 %v740, %v984
        %v986 = vpop.f32.mrb[0].mxu0
        %987 = vmatprep.mubr.f32.mxu0 0.0
        %988 = vmatmul.mubr.f32.gmra.mrb[0].mxu0 %v517
        %v989 = vpop.f32.mrb[0].mxu0
        %v990 = vadd.f32 %v745, %v989
        %v991 = vpop.f32.mrb[0].mxu0
        %992 = vmatprep.mubr.f32.mxu0 0.0
        %993 = vmatmul.mubr.f32.gmra.mrb[0].mxu0 %v518
        %v994 = vpop.f32.mrb[0].mxu0
        %v995 = vadd.f32 %v750, %v994
        %v996 = vpop.f32.mrb[0].mxu0
        %997 = vmatprep.mubr.f32.mxu0 0.0
        %998 = vmatmul.mubr.f32.gmra.mrb[0].mxu0 %v519
        %v999 = vpop.f32.mrb[0].mxu0
        %v1000 = vadd.f32 %v755, %v999
        %v1001 = vpop.f32.mrb[0].mxu0
        %1002 = vmatprep.mubr.f32.mxu0 0.0
        %1003 = vmatmul.mubr.f32.gmra.mrb[0].mxu0 %v520
        %v1004 = vpop.f32.mrb[0].mxu0
        %v1005 = vadd.f32 %v760, %v1004
        %v1006 = vpop.f32.mrb[0].mxu0
        %1007 = vmatprep.mubr.f32.mxu0 0.0
        %1008 = vmatmul.mubr.f32.gmra.mrb[0].mxu0 %v521
        %v1009 = vpop.f32.mrb[0].mxu0
        %v1010 = vadd.f32 %v765, %v1009
        %v1011 = vpop.f32.mrb[0].mxu0
        %1012 = vmatprep.mubr.f32.mxu0 0.0
        %1013 = vmatmul.mubr.f32.gmra.mrb[0].mxu0 %v522
        %v1014 = vpop.f32.mrb[0].mxu0
        %v1015 = vadd.f32 %v770, %v1014
        %v1016 = vpop.f32.mrb[0].mxu0
        %1017 = vmatprep.mubr.f32.mxu0 0.0
        %1018 = vmatmul.mubr.f32.gmra.mrb[0].mxu0 %v523
        %v1019 = vpop.f32.mrb[0].mxu0
        %v1020 = vadd.f32 %v775, %v1019
        %v1021 = vpop.f32.mrb[0].mxu0
        %1022 = vmatprep.mubr.f32.mxu0 0.0
        %1023 = vmatmul.mubr.f32.gmra.mrb[0].mxu0 %v524
        %v1024 = vpop.f32.mrb[0].mxu0
        %v1025 = vadd.f32 %v780, %v1024
        %v1026 = vpop.f32.mrb[0].mxu0
        %1027 = vmatprep.mubr.f32.mxu0 0.0
        %1028 = vmatmul.mubr.f32.gmra.mrb[0].mxu0 %v525
        %v1029 = vpop.f32.mrb[0].mxu0
        %v1030 = vadd.f32 %v785, %v1029
        %v1031 = vpop.f32.mrb[0].mxu0
        %1032 = vmatprep.mubr.f32.mxu0 0.0
        %1033 = vmatmul.mubr.f32.gmra.mrb[0].mxu0 %v526
        %v1034 = vpop.f32.mrb[0].mxu0
        %v1035 = vadd.f32 %v790, %v1034
        %v1036 = vpop.f32.mrb[0].mxu0
        %1037 = vmatprep.mubr.f32.mxu0 0.0
        %1038 = vmatmul.mubr.f32.gmra.mrb[0].mxu0 %v527
        %v1039 = vpop.f32.mrb[0].mxu0
        %v1040 = vadd.f32 %v795, %v1039
        %v1041 = vpop.f32.mrb[0].mxu0
        %1042 = vmatprep.mubr.f32.mxu0 0.0
        %1043 = vmatmul.mubr.f32.gmra.mrb[0].mxu0 %v528
        %v1044 = vpop.f32.mrb[0].mxu0
        %v1045 = vadd.f32 %v800, %v1044
        %v1046 = vpop.f32.mrb[0].mxu0
        %1047 = vmatprep.mubr.f32.mxu0 0.0
        %1048 = vmatmul.mubr.f32.gmra.mrb[0].mxu0 %v529
        %v1049 = vpop.f32.mrb[0].mxu0
        %v1050 = vadd.f32 %v805, %v1049
        %v1051 = vpop.f32.mrb[0].mxu0
        %1052 = vmatprep.mubr.f32.mxu0 0.0
        %1053 = vmatmul.mubr.f32.gmra.mrb[0].mxu0 %v530
        %v1054 = vpop.f32.mrb[0].mxu0
        %v1055 = vadd.f32 %v810, %v1054
        %v1056 = vpop.f32.mrb[0].mxu0
        %1057 = vmatprep.mubr.f32.mxu0 0.0
        %1058 = vmatmul.mubr.f32.gmra.mrb[0].mxu0 %v531
        %v1059 = vpop.f32.mrb[0].mxu0
        %v1060 = vadd.f32 %v815, %v1059
        %v1061 = vpop.f32.mrb[0].mxu0
        %1062 = vmatprep.mubr.f32.mxu0 0.0
        %1063 = vmatmul.mubr.f32.gmra.mrb[0].mxu0 %v532
        %v1064 = vpop.f32.mrb[0].mxu0
        %v1065 = vadd.f32 %v820, %v1064
        %v1066 = vpop.f32.mrb[0].mxu0
        %1067 = vmatprep.mubr.f32.mxu0 0.0
        %1068 = vmatmul.mubr.f32.gmra.mrb[0].mxu0 %v533
        %v1069 = vpop.f32.mrb[0].mxu0
        %v1070 = vadd.f32 %v825, %v1069
        %v1071 = vpop.f32.mrb[0].mxu0
        %1072 = vmatprep.mubr.f32.mxu0 0.0
        %1073 = vmatmul.mubr.f32.gmra.mrb[0].mxu0 %v534
        %v1074 = vpop.f32.mrb[0].mxu0
        %v1075 = vadd.f32 %v830, %v1074
        %v1076 = vpop.f32.mrb[0].mxu0
        %1077 = vmatprep.mubr.f32.mxu0 0.0
        %1078 = vmatmul.mubr.f32.gmra.mrb[0].mxu0 %v535
        %v1079 = vpop.f32.mrb[0].mxu0
        %v1080 = vadd.f32 %v835, %v1079
        %v1081 = vpop.f32.mrb[0].mxu0
        %1082 = vmatprep.mubr.f32.mxu0 0.0
        %1083 = vmatmul.mubr.f32.gmra.mrb[0].mxu0 %v536
        %v1084 = vpop.f32.mrb[0].mxu0
        %v1085 = vadd.f32 %v840, %v1084
        %v1086 = vpop.f32.mrb[0].mxu0
        %1087 = vmatprep.mubr.f32.mxu0 0.0
        %1088 = vmatmul.mubr.f32.gmra.mrb[0].mxu0 %v537
        %v1089 = vpop.f32.mrb[0].mxu0
        %v1090 = vadd.f32 %v845, %v1089
        %v1091 = vpop.f32.mrb[0].mxu0
        %1092 = vmatprep.mubr.f32.mxu0 0.0
        %1093 = vmatmul.mubr.f32.gmra.mrb[0].mxu0 %v538
        %v1094 = vpop.f32.mrb[0].mxu0
        %v1095 = vadd.f32 %v850, %v1094
        %v1096 = vpop.f32.mrb[0].mxu0
        %1097 = vdwg.mxu0
        %v1098 = vld [vmem:[%s448 + $0x7] sm:$0xff]
        %v1099 = vld [vmem:[%s448 + $0xf] sm:$0xff]
        %v1100 = vld [vmem:[%s448 + $0x17] sm:$0xff]
        %v1101 = vld [vmem:[%s448 + $0x1f] sm:$0xff]
        %v1102 = vld [vmem:[%s448 + $0x27] sm:$0xff]
        %v1103 = vld [vmem:[%s448 + $0x2f] sm:$0xff]
        %v1104 = vld [vmem:[%s448 + $0x37] sm:$0xff]
        %v1105 = vld [vmem:[%s448 + $0x3f] sm:$0xff]
        %v1106 = vld [vmem:[%s448 + $0x47] sm:$0xff]
        %v1107 = vld [vmem:[%s448 + $0x4f] sm:$0xff]
        %v1108 = vld [vmem:[%s448 + $0x57] sm:$0xff]
        %v1109 = vld [vmem:[%s448 + $0x5f] sm:$0xff]
        %v1110 = vld [vmem:[%s448 + $0x67] sm:$0xff]
        %v1111 = vld [vmem:[%s448 + $0x6f] sm:$0xff]
        %v1112 = vld [vmem:[%s448 + $0x77] sm:$0xff]
        %v1113 = vld [vmem:[%s448 + $0x7f] sm:$0xff]
        %v1114 = vld [vmem:[%s448 + $0x87] sm:$0xff]
        %v1115 = vld [vmem:[%s448 + $0x8f] sm:$0xff]
        %v1116 = vld [vmem:[%s448 + $0x97] sm:$0xff]
        %v1117 = vld [vmem:[%s448 + $0x9f] sm:$0xff]
        %v1118 = vld [vmem:[%s448 + $0xa7] sm:$0xff]
        %v1119 = vld [vmem:[%s448 + $0xaf] sm:$0xff]
        %v1120 = vld [vmem:[%s448 + $0xb7] sm:$0xff]
        %v1121 = vld [vmem:[%s448 + $0xbf] sm:$0xff]
        %v1122 = vld [vmem:[%s448 + $0xc7] sm:$0xff]
        %v1123 = vld [vmem:[%s448 + $0xcf] sm:$0xff]
        %v1124 = vld [vmem:[%s448 + $0xd7] sm:$0xff]
        %v1125 = vld [vmem:[%s448 + $0xdf] sm:$0xff]
        %v1126 = vld [vmem:[%s448 + $0xe7] sm:$0xff]
        %v1127 = vld [vmem:[%s448 + $0xef] sm:$0xff]
        %v1128 = vld [vmem:[%s448 + $0xf7] sm:$0xff]
        %v1129 = vld [vmem:[%s448 + $0xff] sm:$0xff]
        %v1130 = vld [vmem:[%s448 + $0x107] sm:$0xff]
        %v1131 = vld [vmem:[%s448 + $0x10f] sm:$0xff]
        %v1132 = vld [vmem:[%s448 + $0x117] sm:$0xff]
        %v1133 = vld [vmem:[%s448 + $0x11f] sm:$0x3f]
        %s1134 = scalar_lea.vmem [#allocation6], 256
        %v1135 = vld [vmem:[%s1134] sm:$0xff]
        %v1136 = vld [vmem:[%s1134 + $0x8] sm:$0xff]
        %v1137 = vld [vmem:[%s1134 + $0x10] sm:$0xff]
        %v1138 = vld [vmem:[%s1134 + $0x18] sm:$0xff]
        %v1139 = vld [vmem:[%s1134 + $0x20] sm:$0xff]
        %v1140 = vld [vmem:[%s1134 + $0x28] sm:$0xff]
        %v1141 = vld [vmem:[%s1134 + $0x30] sm:$0xff]
        %v1142 = vld [vmem:[%s1134 + $0x38] sm:$0xff]
        %v1143 = vld [vmem:[%s1134 + $0x40] sm:$0xff]
        %v1144 = vld [vmem:[%s1134 + $0x48] sm:$0xff]
        %v1145 = vld [vmem:[%s1134 + $0x50] sm:$0xff]
        %v1146 = vld [vmem:[%s1134 + $0x58] sm:$0xff]
        %v1147 = vld [vmem:[%s1134 + $0x60] sm:$0xff]
        %v1148 = vld [vmem:[%s1134 + $0x68] sm:$0xff]
        %v1149 = vld [vmem:[%s1134 + $0x70] sm:$0xff]
        %v1150 = vld [vmem:[%s1134 + $0x78] sm:$0xff]
        %1151 = vmatprep.subr.mxu0 0.0
        %1152 = vmatpush1.msra.mxu0 %v1135
        %1153 = vmatprep.subr.mxu0 0.0
        %1154 = vmatpush1.msra.mxu0 %v1136
        %1155 = vmatprep.subr.mxu0 0.0
        %1156 = vmatpush1.msra.mxu0 %v1137
        %1157 = vmatprep.subr.mxu0 0.0
        %1158 = vmatpush1.msra.mxu0 %v1138
        %1159 = vmatprep.subr.mxu0 0.0
        %1160 = vmatpush1.msra.mxu0 %v1139
        %1161 = vmatprep.subr.mxu0 0.0
        %1162 = vmatpush1.msra.mxu0 %v1140
        %1163 = vmatprep.subr.mxu0 0.0
        %1164 = vmatpush1.msra.mxu0 %v1141
        %1165 = vmatprep.subr.mxu0 0.0
        %1166 = vmatpush1.msra.mxu0 %v1142
        %1167 = vmatprep.subr.mxu0 0.0
        %1168 = vmatpush1.msra.mxu0 %v1143
        %1169 = vmatprep.subr.mxu0 0.0
        %1170 = vmatpush1.msra.mxu0 %v1144
        %1171 = vmatprep.subr.mxu0 0.0
        %1172 = vmatpush1.msra.mxu0 %v1145
        %1173 = vmatprep.subr.mxu0 0.0
        %1174 = vmatpush1.msra.mxu0 %v1146
        %1175 = vmatprep.subr.mxu0 0.0
        %1176 = vmatpush1.msra.mxu0 %v1147
        %1177 = vmatprep.subr.mxu0 0.0
        %1178 = vmatpush1.msra.mxu0 %v1148
        %1179 = vmatprep.subr.mxu0 0.0
        %1180 = vmatpush1.msra.mxu0 %v1149
        %1181 = vmatprep.subr.mxu0 0.0
        %1182 = vmatpush1.msra.mxu0 %v1150
        %1183 = vmatprep.subr.mxu0 0.0
        %1184 = vmatpush1.msra.mxu0 0.0
        %1185 = vmatprep.subr.mxu0 0.0
        %1186 = vmatpush1.msra.mxu0 0.0
        %1187 = vmatprep.subr.mxu0 0.0
        %1188 = vmatpush1.msra.mxu0 0.0
        %1189 = vmatprep.subr.mxu0 0.0
        %1190 = vmatpush1.msra.mxu0 0.0
        %1191 = vmatprep.subr.mxu0 0.0
        %1192 = vmatpush1.msra.mxu0 0.0
        %1193 = vmatprep.subr.mxu0 0.0
        %1194 = vmatpush1.msra.mxu0 0.0
        %1195 = vmatprep.subr.mxu0 0.0
        %1196 = vmatpush1.msra.mxu0 0.0
        %1197 = vmatprep.subr.mxu0 0.0
        %1198 = vmatpush1.msra.mxu0 0.0
        %1199 = vmatprep.subr.mxu0 0.0
        %1200 = vmatpush1.msra.mxu0 0.0
        %1201 = vmatprep.subr.mxu0 0.0
        %1202 = vmatpush1.msra.mxu0 0.0
        %1203 = vmatprep.subr.mxu0 0.0
        %1204 = vmatpush1.msra.mxu0 0.0
        %1205 = vmatprep.subr.mxu0 0.0
        %1206 = vmatpush1.msra.mxu0 0.0
        %1207 = vmatprep.subr.mxu0 0.0
        %1208 = vmatpush1.msra.mxu0 0.0
        %1209 = vmatprep.subr.mxu0 0.0
        %1210 = vmatpush1.msra.mxu0 0.0
        %1211 = vmatprep.subr.mxu0 0.0
        %1212 = vmatpush1.msra.mxu0 0.0
        %1213 = vmatprep.subr.mxu0 0.0
        %1214 = vmatpush1.msra.mxu0 0.0
        %1215 = vmatprep.mubr.f32.mxu0 0.0
        %1216 = vmatmul.mubr.f32.gmra.mrb[0].mxu0 %v1098
        %v1217 = vpop.f32.mrb[0].mxu0
        %v1218 = vadd.f32 0.0, %v1217
        %v1219 = vpop.f32.mrb[0].mxu0
        %1220 = vmatprep.mubr.f32.mxu0 0.0
        %1221 = vmatmul.mubr.f32.gmra.mrb[0].mxu0 %v1099
        %v1222 = vpop.f32.mrb[0].mxu0
        %v1223 = vadd.f32 0.0, %v1222
        %v1224 = vpop.f32.mrb[0].mxu0
        %1225 = vmatprep.mubr.f32.mxu0 0.0
        %1226 = vmatmul.mubr.f32.gmra.mrb[0].mxu0 %v1100
        %v1227 = vpop.f32.mrb[0].mxu0
        %v1228 = vadd.f32 0.0, %v1227
        %v1229 = vpop.f32.mrb[0].mxu0
        %1230 = vmatprep.mubr.f32.mxu0 0.0
        %1231 = vmatmul.mubr.f32.gmra.mrb[0].mxu0 %v1101
        %v1232 = vpop.f32.mrb[0].mxu0
        %v1233 = vadd.f32 0.0, %v1232
        %v1234 = vpop.f32.mrb[0].mxu0
        %1235 = vmatprep.mubr.f32.mxu0 0.0
        %1236 = vmatmul.mubr.f32.gmra.mrb[0].mxu0 %v1102
        %v1237 = vpop.f32.mrb[0].mxu0
        %v1238 = vadd.f32 0.0, %v1237
        %v1239 = vpop.f32.mrb[0].mxu0
        %1240 = vmatprep.mubr.f32.mxu0 0.0
        %1241 = vmatmul.mubr.f32.gmra.mrb[0].mxu0 %v1103
        %v1242 = vpop.f32.mrb[0].mxu0
        %v1243 = vadd.f32 0.0, %v1242
        %v1244 = vpop.f32.mrb[0].mxu0
        %1245 = vmatprep.mubr.f32.mxu0 0.0
        %1246 = vmatmul.mubr.f32.gmra.mrb[0].mxu0 %v1104
        %v1247 = vpop.f32.mrb[0].mxu0
        %v1248 = vadd.f32 0.0, %v1247
        %v1249 = vpop.f32.mrb[0].mxu0
        %1250 = vmatprep.mubr.f32.mxu0 0.0
        %1251 = vmatmul.mubr.f32.gmra.mrb[0].mxu0 %v1105
        %v1252 = vpop.f32.mrb[0].mxu0
        %v1253 = vadd.f32 0.0, %v1252
        %v1254 = vpop.f32.mrb[0].mxu0
        %1255 = vmatprep.mubr.f32.mxu0 0.0
        %1256 = vmatmul.mubr.f32.gmra.mrb[0].mxu0 %v1106
        %v1257 = vpop.f32.mrb[0].mxu0
        %v1258 = vadd.f32 0.0, %v1257
        %v1259 = vpop.f32.mrb[0].mxu0
        %1260 = vmatprep.mubr.f32.mxu0 0.0
        %1261 = vmatmul.mubr.f32.gmra.mrb[0].mxu0 %v1107
        %v1262 = vpop.f32.mrb[0].mxu0
        %v1263 = vadd.f32 0.0, %v1262
        %v1264 = vpop.f32.mrb[0].mxu0
        %1265 = vmatprep.mubr.f32.mxu0 0.0
        %1266 = vmatmul.mubr.f32.gmra.mrb[0].mxu0 %v1108
        %v1267 = vpop.f32.mrb[0].mxu0
        %v1268 = vadd.f32 0.0, %v1267
        %v1269 = vpop.f32.mrb[0].mxu0
        %1270 = vmatprep.mubr.f32.mxu0 0.0
        %1271 = vmatmul.mubr.f32.gmra.mrb[0].mxu0 %v1109
        %v1272 = vpop.f32.mrb[0].mxu0
        %v1273 = vadd.f32 0.0, %v1272
        %v1274 = vpop.f32.mrb[0].mxu0
        %1275 = vmatprep.mubr.f32.mxu0 0.0
        %1276 = vmatmul.mubr.f32.gmra.mrb[0].mxu0 %v1110
        %v1277 = vpop.f32.mrb[0].mxu0
        %v1278 = vadd.f32 0.0, %v1277
        %v1279 = vpop.f32.mrb[0].mxu0
        %1280 = vmatprep.mubr.f32.mxu0 0.0
        %1281 = vmatmul.mubr.f32.gmra.mrb[0].mxu0 %v1111
        %v1282 = vpop.f32.mrb[0].mxu0
        %v1283 = vadd.f32 0.0, %v1282
        %v1284 = vpop.f32.mrb[0].mxu0
        %1285 = vmatprep.mubr.f32.mxu0 0.0
        %1286 = vmatmul.mubr.f32.gmra.mrb[0].mxu0 %v1112
        %v1287 = vpop.f32.mrb[0].mxu0
        %v1288 = vadd.f32 0.0, %v1287
        %v1289 = vpop.f32.mrb[0].mxu0
        %1290 = vmatprep.mubr.f32.mxu0 0.0
        %1291 = vmatmul.mubr.f32.gmra.mrb[0].mxu0 %v1113
        %v1292 = vpop.f32.mrb[0].mxu0
        %v1293 = vadd.f32 0.0, %v1292
        %v1294 = vpop.f32.mrb[0].mxu0
        %1295 = vmatprep.mubr.f32.mxu0 0.0
        %1296 = vmatmul.mubr.f32.gmra.mrb[0].mxu0 %v1114
        %v1297 = vpop.f32.mrb[0].mxu0
        %v1298 = vadd.f32 0.0, %v1297
        %v1299 = vpop.f32.mrb[0].mxu0
        %1300 = vmatprep.mubr.f32.mxu0 0.0
        %1301 = vmatmul.mubr.f32.gmra.mrb[0].mxu0 %v1115
        %v1302 = vpop.f32.mrb[0].mxu0
        %v1303 = vadd.f32 0.0, %v1302
        %v1304 = vpop.f32.mrb[0].mxu0
        %1305 = vmatprep.mubr.f32.mxu0 0.0
        %1306 = vmatmul.mubr.f32.gmra.mrb[0].mxu0 %v1116
        %v1307 = vpop.f32.mrb[0].mxu0
        %v1308 = vadd.f32 0.0, %v1307
        %v1309 = vpop.f32.mrb[0].mxu0
        %1310 = vmatprep.mubr.f32.mxu0 0.0
        %1311 = vmatmul.mubr.f32.gmra.mrb[0].mxu0 %v1117
        %v1312 = vpop.f32.mrb[0].mxu0
        %v1313 = vadd.f32 0.0, %v1312
        %v1314 = vpop.f32.mrb[0].mxu0
        %1315 = vmatprep.mubr.f32.mxu0 0.0
        %1316 = vmatmul.mubr.f32.gmra.mrb[0].mxu0 %v1118
        %v1317 = vpop.f32.mrb[0].mxu0
        %v1318 = vadd.f32 0.0, %v1317
        %v1319 = vpop.f32.mrb[0].mxu0
        %1320 = vmatprep.mubr.f32.mxu0 0.0
        %1321 = vmatmul.mubr.f32.gmra.mrb[0].mxu0 %v1119
        %v1322 = vpop.f32.mrb[0].mxu0
        %v1323 = vadd.f32 0.0, %v1322
        %v1324 = vpop.f32.mrb[0].mxu0
        %1325 = vmatprep.mubr.f32.mxu0 0.0
        %1326 = vmatmul.mubr.f32.gmra.mrb[0].mxu0 %v1120
        %v1327 = vpop.f32.mrb[0].mxu0
        %v1328 = vadd.f32 0.0, %v1327
        %v1329 = vpop.f32.mrb[0].mxu0
        %1330 = vmatprep.mubr.f32.mxu0 0.0
        %1331 = vmatmul.mubr.f32.gmra.mrb[0].mxu0 %v1121
        %v1332 = vpop.f32.mrb[0].mxu0
        %v1333 = vadd.f32 0.0, %v1332
        %v1334 = vpop.f32.mrb[0].mxu0
        %1335 = vmatprep.mubr.f32.mxu0 0.0
        %1336 = vmatmul.mubr.f32.gmra.mrb[0].mxu0 %v1122
        %v1337 = vpop.f32.mrb[0].mxu0
        %v1338 = vadd.f32 0.0, %v1337
        %v1339 = vpop.f32.mrb[0].mxu0
        %1340 = vmatprep.mubr.f32.mxu0 0.0
        %1341 = vmatmul.mubr.f32.gmra.mrb[0].mxu0 %v1123
        %v1342 = vpop.f32.mrb[0].mxu0
        %v1343 = vadd.f32 0.0, %v1342
        %v1344 = vpop.f32.mrb[0].mxu0
        %1345 = vmatprep.mubr.f32.mxu0 0.0
        %1346 = vmatmul.mubr.f32.gmra.mrb[0].mxu0 %v1124
        %v1347 = vpop.f32.mrb[0].mxu0
        %v1348 = vadd.f32 0.0, %v1347
        %v1349 = vpop.f32.mrb[0].mxu0
        %1350 = vmatprep.mubr.f32.mxu0 0.0
        %1351 = vmatmul.mubr.f32.gmra.mrb[0].mxu0 %v1125
        %v1352 = vpop.f32.mrb[0].mxu0
        %v1353 = vadd.f32 0.0, %v1352
        %v1354 = vpop.f32.mrb[0].mxu0
        %1355 = vmatprep.mubr.f32.mxu0 0.0
        %1356 = vmatmul.mubr.f32.gmra.mrb[0].mxu0 %v1126
        %v1357 = vpop.f32.mrb[0].mxu0
        %v1358 = vadd.f32 0.0, %v1357
        %v1359 = vpop.f32.mrb[0].mxu0
        %1360 = vmatprep.mubr.f32.mxu0 0.0
        %1361 = vmatmul.mubr.f32.gmra.mrb[0].mxu0 %v1127
        %v1362 = vpop.f32.mrb[0].mxu0
        %v1363 = vadd.f32 0.0, %v1362
        %v1364 = vpop.f32.mrb[0].mxu0
        %1365 = vmatprep.mubr.f32.mxu0 0.0
        %1366 = vmatmul.mubr.f32.gmra.mrb[0].mxu0 %v1128
        %v1367 = vpop.f32.mrb[0].mxu0
        %v1368 = vadd.f32 0.0, %v1367
        %v1369 = vpop.f32.mrb[0].mxu0
        %1370 = vmatprep.mubr.f32.mxu0 0.0
        %1371 = vmatmul.mubr.f32.gmra.mrb[0].mxu0 %v1129
        %v1372 = vpop.f32.mrb[0].mxu0
        %v1373 = vadd.f32 0.0, %v1372
        %v1374 = vpop.f32.mrb[0].mxu0
        %1375 = vmatprep.mubr.f32.mxu0 0.0
        %1376 = vmatmul.mubr.f32.gmra.mrb[0].mxu0 %v1130
        %v1377 = vpop.f32.mrb[0].mxu0
        %v1378 = vadd.f32 0.0, %v1377
        %v1379 = vpop.f32.mrb[0].mxu0
        %1380 = vmatprep.mubr.f32.mxu0 0.0
        %1381 = vmatmul.mubr.f32.gmra.mrb[0].mxu0 %v1131
        %v1382 = vpop.f32.mrb[0].mxu0
        %v1383 = vadd.f32 0.0, %v1382
        %v1384 = vpop.f32.mrb[0].mxu0
        %1385 = vmatprep.mubr.f32.mxu0 0.0
        %1386 = vmatmul.mubr.f32.gmra.mrb[0].mxu0 %v1132
        %v1387 = vpop.f32.mrb[0].mxu0
        %v1388 = vadd.f32 0.0, %v1387
        %v1389 = vpop.f32.mrb[0].mxu0
        %1390 = vmatprep.mubr.f32.mxu0 0.0
        %1391 = vmatmul.mubr.f32.gmra.mrb[0].mxu0 %v1133
        %v1392 = vpop.f32.mrb[0].mxu0
        %v1393 = vadd.f32 0.0, %v1392
        %v1394 = vpop.f32.mrb[0].mxu0
        %1395 = vdwg.mxu0
        %v1396 = vadd.f32 %v920, %v1218
        %v1397 = vadd.f32 %v925, %v1223
        %v1398 = vadd.f32 %v930, %v1228
        %v1399 = vadd.f32 %v935, %v1233
        %v1400 = vadd.f32 %v940, %v1238
        %v1401 = vadd.f32 %v945, %v1243
        %v1402 = vadd.f32 %v950, %v1248
        %v1403 = vadd.f32 %v955, %v1253
        %v1404 = vadd.f32 %v960, %v1258
        %v1405 = vadd.f32 %v965, %v1263
        %v1406 = vadd.f32 %v970, %v1268
        %v1407 = vadd.f32 %v975, %v1273
        %v1408 = vadd.f32 %v980, %v1278
        %v1409 = vadd.f32 %v985, %v1283
        %v1410 = vadd.f32 %v990, %v1288
        %v1411 = vadd.f32 %v995, %v1293
        %v1412 = vadd.f32 %v1000, %v1298
        %v1413 = vadd.f32 %v1005, %v1303
        %v1414 = vadd.f32 %v1010, %v1308
        %v1415 = vadd.f32 %v1015, %v1313
        %v1416 = vadd.f32 %v1020, %v1318
        %v1417 = vadd.f32 %v1025, %v1323
        %v1418 = vadd.f32 %v1030, %v1328
        %v1419 = vadd.f32 %v1035, %v1333
        %v1420 = vadd.f32 %v1040, %v1338
        %v1421 = vadd.f32 %v1045, %v1343
        %v1422 = vadd.f32 %v1050, %v1348
        %v1423 = vadd.f32 %v1055, %v1353
        %v1424 = vadd.f32 %v1060, %v1358
        %v1425 = vadd.f32 %v1065, %v1363
        %v1426 = vadd.f32 %v1070, %v1368
        %v1427 = vadd.f32 %v1075, %v1373
        %v1428 = vadd.f32 %v1080, %v1378
        %v1429 = vadd.f32 %v1085, %v1383
        %v1430 = vadd.f32 %v1090, %v1388
        %v1431 = vadd.f32 %v1095, %v1393
        %v1432 = vld [vmem:[%s448 + $0x17] sm:$0xff]
        %v1433 = vld [vmem:[%s448 + $0x1f] sm:$0xff]
        %v1434 = vld [vmem:[%s448 + $0x27] sm:$0xff]
        %v1435 = vld [vmem:[%s448 + $0x2f] sm:$0xff]
        %v1436 = vld [vmem:[%s448 + $0x37] sm:$0xff]
        %v1437 = vld [vmem:[%s448 + $0x3f] sm:$0xff]
        %v1438 = vld [vmem:[%s448 + $0x47] sm:$0xff]
        %v1439 = vld [vmem:[%s448 + $0x4f] sm:$0xff]
        %v1440 = vld [vmem:[%s448 + $0x57] sm:$0xff]
        %v1441 = vld [vmem:[%s448 + $0x5f] sm:$0xff]
        %v1442 = vld [vmem:[%s448 + $0x67] sm:$0xff]
        %v1443 = vld [vmem:[%s448 + $0x6f] sm:$0xff]
        %v1444 = vld [vmem:[%s448 + $0x77] sm:$0xff]
        %v1445 = vld [vmem:[%s448 + $0x7f] sm:$0xff]
        %v1446 = vld [vmem:[%s448 + $0x87] sm:$0xff]
        %v1447 = vld [vmem:[%s448 + $0x8f] sm:$0xff]
        %v1448 = vld [vmem:[%s448 + $0x97] sm:$0xff]
        %v1449 = vld [vmem:[%s448 + $0x9f] sm:$0xff]
        %v1450 = vld [vmem:[%s448 + $0xa7] sm:$0xff]
        %v1451 = vld [vmem:[%s448 + $0xaf] sm:$0xff]
        %v1452 = vld [vmem:[%s448 + $0xb7] sm:$0xff]
        %v1453 = vld [vmem:[%s448 + $0xbf] sm:$0xff]
        %v1454 = vld [vmem:[%s448 + $0xc7] sm:$0xff]
        %v1455 = vld [vmem:[%s448 + $0xcf] sm:$0xff]
        %v1456 = vld [vmem:[%s448 + $0xd7] sm:$0xff]
        %v1457 = vld [vmem:[%s448 + $0xdf] sm:$0xff]
        %v1458 = vld [vmem:[%s448 + $0xe7] sm:$0xff]
        %v1459 = vld [vmem:[%s448 + $0xef] sm:$0xff]
        %v1460 = vld [vmem:[%s448 + $0xf7] sm:$0xff]
        %v1461 = vld [vmem:[%s448 + $0xff] sm:$0xff]
        %v1462 = vld [vmem:[%s448 + $0x107] sm:$0xff]
        %v1463 = vld [vmem:[%s448 + $0x10f] sm:$0xff]
        %v1464 = vld [vmem:[%s448 + $0x117] sm:$0xff]
        %v1465 = vld [vmem:[%s448 + $0x11f] sm:$0xff]
        %v1466 = vld [vmem:[%s448 + $0x127] sm:$0xff]
        %v1467 = vld [vmem:[%s448 + $0x12f] sm:$0x3f]
        %s1468 = scalar_lea.vmem [#allocation6], 384
        %v1469 = vld [vmem:[%s1468] sm:$0xff]
        %v1470 = vld [vmem:[%s1468 + $0x8] sm:$0xff]
        %v1471 = vld [vmem:[%s1468 + $0x10] sm:$0xff]
        %v1472 = vld [vmem:[%s1468 + $0x18] sm:$0xff]
        %v1473 = vld [vmem:[%s1468 + $0x20] sm:$0xff]
        %v1474 = vld [vmem:[%s1468 + $0x28] sm:$0xff]
        %v1475 = vld [vmem:[%s1468 + $0x30] sm:$0xff]
        %v1476 = vld [vmem:[%s1468 + $0x38] sm:$0xff]
        %v1477 = vld [vmem:[%s1468 + $0x40] sm:$0xff]
        %v1478 = vld [vmem:[%s1468 + $0x48] sm:$0xff]
        %v1479 = vld [vmem:[%s1468 + $0x50] sm:$0xff]
        %v1480 = vld [vmem:[%s1468 + $0x58] sm:$0xff]
        %v1481 = vld [vmem:[%s1468 + $0x60] sm:$0xff]
        %v1482 = vld [vmem:[%s1468 + $0x68] sm:$0xff]
        %v1483 = vld [vmem:[%s1468 + $0x70] sm:$0xff]
        %v1484 = vld [vmem:[%s1468 + $0x78] sm:$0xff]
        %1485 = vmatprep.subr.mxu0 0.0
        %1486 = vmatpush1.msra.mxu0 %v1469
        %1487 = vmatprep.subr.mxu0 0.0
        %1488 = vmatpush1.msra.mxu0 %v1470
        %1489 = vmatprep.subr.mxu0 0.0
        %1490 = vmatpush1.msra.mxu0 %v1471
        %1491 = vmatprep.subr.mxu0 0.0
        %1492 = vmatpush1.msra.mxu0 %v1472
        %1493 = vmatprep.subr.mxu0 0.0
        %1494 = vmatpush1.msra.mxu0 %v1473
        %1495 = vmatprep.subr.mxu0 0.0
        %1496 = vmatpush1.msra.mxu0 %v1474
        %1497 = vmatprep.subr.mxu0 0.0
        %1498 = vmatpush1.msra.mxu0 %v1475
        %1499 = vmatprep.subr.mxu0 0.0
        %1500 = vmatpush1.msra.mxu0 %v1476
        %1501 = vmatprep.subr.mxu0 0.0
        %1502 = vmatpush1.msra.mxu0 %v1477
        %1503 = vmatprep.subr.mxu0 0.0
        %1504 = vmatpush1.msra.mxu0 %v1478
        %1505 = vmatprep.subr.mxu0 0.0
        %1506 = vmatpush1.msra.mxu0 %v1479
        %1507 = vmatprep.subr.mxu0 0.0
        %1508 = vmatpush1.msra.mxu0 %v1480
        %1509 = vmatprep.subr.mxu0 0.0
        %1510 = vmatpush1.msra.mxu0 %v1481
        %1511 = vmatprep.subr.mxu0 0.0
        %1512 = vmatpush1.msra.mxu0 %v1482
        %1513 = vmatprep.subr.mxu0 0.0
        %1514 = vmatpush1.msra.mxu0 %v1483
        %1515 = vmatprep.subr.mxu0 0.0
        %1516 = vmatpush1.msra.mxu0 %v1484
        %1517 = vmatprep.subr.mxu0 0.0
        %1518 = vmatpush1.msra.mxu0 0.0
        %1519 = vmatprep.subr.mxu0 0.0
        %1520 = vmatpush1.msra.mxu0 0.0
        %1521 = vmatprep.subr.mxu0 0.0
        %1522 = vmatpush1.msra.mxu0 0.0
        %1523 = vmatprep.subr.mxu0 0.0
        %1524 = vmatpush1.msra.mxu0 0.0
        %1525 = vmatprep.subr.mxu0 0.0
        %1526 = vmatpush1.msra.mxu0 0.0
        %1527 = vmatprep.subr.mxu0 0.0
        %1528 = vmatpush1.msra.mxu0 0.0
        %1529 = vmatprep.subr.mxu0 0.0
        %1530 = vmatpush1.msra.mxu0 0.0
        %1531 = vmatprep.subr.mxu0 0.0
        %1532 = vmatpush1.msra.mxu0 0.0
        %1533 = vmatprep.subr.mxu0 0.0
        %1534 = vmatpush1.msra.mxu0 0.0
        %1535 = vmatprep.subr.mxu0 0.0
        %1536 = vmatpush1.msra.mxu0 0.0
        %1537 = vmatprep.subr.mxu0 0.0
        %1538 = vmatpush1.msra.mxu0 0.0
        %1539 = vmatprep.subr.mxu0 0.0
        %1540 = vmatpush1.msra.mxu0 0.0
        %1541 = vmatprep.subr.mxu0 0.0
        %1542 = vmatpush1.msra.mxu0 0.0
        %1543 = vmatprep.subr.mxu0 0.0
        %1544 = vmatpush1.msra.mxu0 0.0
        %1545 = vmatprep.subr.mxu0 0.0
        %1546 = vmatpush1.msra.mxu0 0.0
        %1547 = vmatprep.subr.mxu0 0.0
        %1548 = vmatpush1.msra.mxu0 0.0
        %1549 = vmatprep.mubr.f32.mxu0 0.0
        %1550 = vmatmul.mubr.f32.gmra.mrb[0].mxu0 %v1432
        %v1551 = vpop.f32.mrb[0].mxu0
        %v1552 = vadd.f32 0.0, %v1551
        %v1553 = vpop.f32.mrb[0].mxu0
        %1554 = vmatprep.mubr.f32.mxu0 0.0
        %1555 = vmatmul.mubr.f32.gmra.mrb[0].mxu0 %v1433
        %v1556 = vpop.f32.mrb[0].mxu0
        %v1557 = vadd.f32 0.0, %v1556
        %v1558 = vpop.f32.mrb[0].mxu0
        %1559 = vmatprep.mubr.f32.mxu0 0.0
        %1560 = vmatmul.mubr.f32.gmra.mrb[0].mxu0 %v1434
        %v1561 = vpop.f32.mrb[0].mxu0
        %v1562 = vadd.f32 0.0, %v1561
        %v1563 = vpop.f32.mrb[0].mxu0
        %1564 = vmatprep.mubr.f32.mxu0 0.0
        %1565 = vmatmul.mubr.f32.gmra.mrb[0].mxu0 %v1435
        %v1566 = vpop.f32.mrb[0].mxu0
        %v1567 = vadd.f32 0.0, %v1566
        %v1568 = vpop.f32.mrb[0].mxu0
        %1569 = vmatprep.mubr.f32.mxu0 0.0
        %1570 = vmatmul.mubr.f32.gmra.mrb[0].mxu0 %v1436
        %v1571 = vpop.f32.mrb[0].mxu0
        %v1572 = vadd.f32 0.0, %v1571
        %v1573 = vpop.f32.mrb[0].mxu0
        %1574 = vmatprep.mubr.f32.mxu0 0.0
        %1575 = vmatmul.mubr.f32.gmra.mrb[0].mxu0 %v1437
        %v1576 = vpop.f32.mrb[0].mxu0
        %v1577 = vadd.f32 0.0, %v1576
        %v1578 = vpop.f32.mrb[0].mxu0
        %1579 = vmatprep.mubr.f32.mxu0 0.0
        %1580 = vmatmul.mubr.f32.gmra.mrb[0].mxu0 %v1438
        %v1581 = vpop.f32.mrb[0].mxu0
        %v1582 = vadd.f32 0.0, %v1581
        %v1583 = vpop.f32.mrb[0].mxu0
        %1584 = vmatprep.mubr.f32.mxu0 0.0
        %1585 = vmatmul.mubr.f32.gmra.mrb[0].mxu0 %v1439
        %v1586 = vpop.f32.mrb[0].mxu0
        %v1587 = vadd.f32 0.0, %v1586
        %v1588 = vpop.f32.mrb[0].mxu0
        %1589 = vmatprep.mubr.f32.mxu0 0.0
        %1590 = vmatmul.mubr.f32.gmra.mrb[0].mxu0 %v1440
        %v1591 = vpop.f32.mrb[0].mxu0
        %v1592 = vadd.f32 0.0, %v1591
        %v1593 = vpop.f32.mrb[0].mxu0
        %1594 = vmatprep.mubr.f32.mxu0 0.0
        %1595 = vmatmul.mubr.f32.gmra.mrb[0].mxu0 %v1441
        %v1596 = vpop.f32.mrb[0].mxu0
        %v1597 = vadd.f32 0.0, %v1596
        %v1598 = vpop.f32.mrb[0].mxu0
        %1599 = vmatprep.mubr.f32.mxu0 0.0
        %1600 = vmatmul.mubr.f32.gmra.mrb[0].mxu0 %v1442
        %v1601 = vpop.f32.mrb[0].mxu0
        %v1602 = vadd.f32 0.0, %v1601
        %v1603 = vpop.f32.mrb[0].mxu0
        %1604 = vmatprep.mubr.f32.mxu0 0.0
        %1605 = vmatmul.mubr.f32.gmra.mrb[0].mxu0 %v1443
        %v1606 = vpop.f32.mrb[0].mxu0
        %v1607 = vadd.f32 0.0, %v1606
        %v1608 = vpop.f32.mrb[0].mxu0
        %1609 = vmatprep.mubr.f32.mxu0 0.0
        %1610 = vmatmul.mubr.f32.gmra.mrb[0].mxu0 %v1444
        %v1611 = vpop.f32.mrb[0].mxu0
        %v1612 = vadd.f32 0.0, %v1611
        %v1613 = vpop.f32.mrb[0].mxu0
        %1614 = vmatprep.mubr.f32.mxu0 0.0
        %1615 = vmatmul.mubr.f32.gmra.mrb[0].mxu0 %v1445
        %v1616 = vpop.f32.mrb[0].mxu0
        %v1617 = vadd.f32 0.0, %v1616
        %v1618 = vpop.f32.mrb[0].mxu0
        %1619 = vmatprep.mubr.f32.mxu0 0.0
        %1620 = vmatmul.mubr.f32.gmra.mrb[0].mxu0 %v1446
        %v1621 = vpop.f32.mrb[0].mxu0
        %v1622 = vadd.f32 0.0, %v1621
        %v1623 = vpop.f32.mrb[0].mxu0
        %1624 = vmatprep.mubr.f32.mxu0 0.0
        %1625 = vmatmul.mubr.f32.gmra.mrb[0].mxu0 %v1447
        %v1626 = vpop.f32.mrb[0].mxu0
        %v1627 = vadd.f32 0.0, %v1626
        %v1628 = vpop.f32.mrb[0].mxu0
        %1629 = vmatprep.mubr.f32.mxu0 0.0
        %1630 = vmatmul.mubr.f32.gmra.mrb[0].mxu0 %v1448
        %v1631 = vpop.f32.mrb[0].mxu0
        %v1632 = vadd.f32 0.0, %v1631
        %v1633 = vpop.f32.mrb[0].mxu0
        %1634 = vmatprep.mubr.f32.mxu0 0.0
        %1635 = vmatmul.mubr.f32.gmra.mrb[0].mxu0 %v1449
        %v1636 = vpop.f32.mrb[0].mxu0
        %v1637 = vadd.f32 0.0, %v1636
        %v1638 = vpop.f32.mrb[0].mxu0
        %1639 = vmatprep.mubr.f32.mxu0 0.0
        %1640 = vmatmul.mubr.f32.gmra.mrb[0].mxu0 %v1450
        %v1641 = vpop.f32.mrb[0].mxu0
        %v1642 = vadd.f32 0.0, %v1641
        %v1643 = vpop.f32.mrb[0].mxu0
        %1644 = vmatprep.mubr.f32.mxu0 0.0
        %1645 = vmatmul.mubr.f32.gmra.mrb[0].mxu0 %v1451
        %v1646 = vpop.f32.mrb[0].mxu0
        %v1647 = vadd.f32 0.0, %v1646
        %v1648 = vpop.f32.mrb[0].mxu0
        %1649 = vmatprep.mubr.f32.mxu0 0.0
        %1650 = vmatmul.mubr.f32.gmra.mrb[0].mxu0 %v1452
        %v1651 = vpop.f32.mrb[0].mxu0
        %v1652 = vadd.f32 0.0, %v1651
        %v1653 = vpop.f32.mrb[0].mxu0
        %1654 = vmatprep.mubr.f32.mxu0 0.0
        %1655 = vmatmul.mubr.f32.gmra.mrb[0].mxu0 %v1453
        %v1656 = vpop.f32.mrb[0].mxu0
        %v1657 = vadd.f32 0.0, %v1656
        %v1658 = vpop.f32.mrb[0].mxu0
        %1659 = vmatprep.mubr.f32.mxu0 0.0
        %1660 = vmatmul.mubr.f32.gmra.mrb[0].mxu0 %v1454
        %v1661 = vpop.f32.mrb[0].mxu0
        %v1662 = vadd.f32 0.0, %v1661
        %v1663 = vpop.f32.mrb[0].mxu0
        %1664 = vmatprep.mubr.f32.mxu0 0.0
        %1665 = vmatmul.mubr.f32.gmra.mrb[0].mxu0 %v1455
        %v1666 = vpop.f32.mrb[0].mxu0
        %v1667 = vadd.f32 0.0, %v1666
        %v1668 = vpop.f32.mrb[0].mxu0
        %1669 = vmatprep.mubr.f32.mxu0 0.0
        %1670 = vmatmul.mubr.f32.gmra.mrb[0].mxu0 %v1456
        %v1671 = vpop.f32.mrb[0].mxu0
        %v1672 = vadd.f32 0.0, %v1671
        %v1673 = vpop.f32.mrb[0].mxu0
        %1674 = vmatprep.mubr.f32.mxu0 0.0
        %1675 = vmatmul.mubr.f32.gmra.mrb[0].mxu0 %v1457
        %v1676 = vpop.f32.mrb[0].mxu0
        %v1677 = vadd.f32 0.0, %v1676
        %v1678 = vpop.f32.mrb[0].mxu0
        %1679 = vmatprep.mubr.f32.mxu0 0.0
        %1680 = vmatmul.mubr.f32.gmra.mrb[0].mxu0 %v1458
        %v1681 = vpop.f32.mrb[0].mxu0
        %v1682 = vadd.f32 0.0, %v1681
        %v1683 = vpop.f32.mrb[0].mxu0
        %1684 = vmatprep.mubr.f32.mxu0 0.0
        %1685 = vmatmul.mubr.f32.gmra.mrb[0].mxu0 %v1459
        %v1686 = vpop.f32.mrb[0].mxu0
        %v1687 = vadd.f32 0.0, %v1686
        %v1688 = vpop.f32.mrb[0].mxu0
        %1689 = vmatprep.mubr.f32.mxu0 0.0
        %1690 = vmatmul.mubr.f32.gmra.mrb[0].mxu0 %v1460
        %v1691 = vpop.f32.mrb[0].mxu0
        %v1692 = vadd.f32 0.0, %v1691
        %v1693 = vpop.f32.mrb[0].mxu0
        %1694 = vmatprep.mubr.f32.mxu0 0.0
        %1695 = vmatmul.mubr.f32.gmra.mrb[0].mxu0 %v1461
        %v1696 = vpop.f32.mrb[0].mxu0
        %v1697 = vadd.f32 0.0, %v1696
        %v1698 = vpop.f32.mrb[0].mxu0
        %1699 = vmatprep.mubr.f32.mxu0 0.0
        %1700 = vmatmul.mubr.f32.gmra.mrb[0].mxu0 %v1462
        %v1701 = vpop.f32.mrb[0].mxu0
        %v1702 = vadd.f32 0.0, %v1701
        %v1703 = vpop.f32.mrb[0].mxu0
        %1704 = vmatprep.mubr.f32.mxu0 0.0
        %1705 = vmatmul.mubr.f32.gmra.mrb[0].mxu0 %v1463
        %v1706 = vpop.f32.mrb[0].mxu0
        %v1707 = vadd.f32 0.0, %v1706
        %v1708 = vpop.f32.mrb[0].mxu0
        %1709 = vmatprep.mubr.f32.mxu0 0.0
        %1710 = vmatmul.mubr.f32.gmra.mrb[0].mxu0 %v1464
        %v1711 = vpop.f32.mrb[0].mxu0
        %v1712 = vadd.f32 0.0, %v1711
        %v1713 = vpop.f32.mrb[0].mxu0
        %1714 = vmatprep.mubr.f32.mxu0 0.0
        %1715 = vmatmul.mubr.f32.gmra.mrb[0].mxu0 %v1465
        %v1716 = vpop.f32.mrb[0].mxu0
        %v1717 = vadd.f32 0.0, %v1716
        %v1718 = vpop.f32.mrb[0].mxu0
        %1719 = vmatprep.mubr.f32.mxu0 0.0
        %1720 = vmatmul.mubr.f32.gmra.mrb[0].mxu0 %v1466
        %v1721 = vpop.f32.mrb[0].mxu0
        %v1722 = vadd.f32 0.0, %v1721
        %v1723 = vpop.f32.mrb[0].mxu0
        %1724 = vmatprep.mubr.f32.mxu0 0.0
        %1725 = vmatmul.mubr.f32.gmra.mrb[0].mxu0 %v1467
        %v1726 = vpop.f32.mrb[0].mxu0
        %v1727 = vadd.f32 0.0, %v1726
        %v1728 = vpop.f32.mrb[0].mxu0
        %1729 = vdwg.mxu0
        %v1730 = vadd.f32 %v1396, %v1552
        %v1731 = vadd.f32 %v1397, %v1557
        %v1732 = vadd.f32 %v1398, %v1562
        %v1733 = vadd.f32 %v1399, %v1567
        %v1734 = vadd.f32 %v1400, %v1572
        %v1735 = vadd.f32 %v1401, %v1577
        %v1736 = vadd.f32 %v1402, %v1582
        %v1737 = vadd.f32 %v1403, %v1587
        %v1738 = vadd.f32 %v1404, %v1592
        %v1739 = vadd.f32 %v1405, %v1597
        %v1740 = vadd.f32 %v1406, %v1602
        %v1741 = vadd.f32 %v1407, %v1607
        %v1742 = vadd.f32 %v1408, %v1612
        %v1743 = vadd.f32 %v1409, %v1617
        %v1744 = vadd.f32 %v1410, %v1622
        %v1745 = vadd.f32 %v1411, %v1627
        %v1746 = vadd.f32 %v1412, %v1632
        %v1747 = vadd.f32 %v1413, %v1637
        %v1748 = vadd.f32 %v1414, %v1642
        %v1749 = vadd.f32 %v1415, %v1647
        %v1750 = vadd.f32 %v1416, %v1652
        %v1751 = vadd.f32 %v1417, %v1657
        %v1752 = vadd.f32 %v1418, %v1662
        %v1753 = vadd.f32 %v1419, %v1667
        %v1754 = vadd.f32 %v1420, %v1672
        %v1755 = vadd.f32 %v1421, %v1677
        %v1756 = vadd.f32 %v1422, %v1682
        %v1757 = vadd.f32 %v1423, %v1687
        %v1758 = vadd.f32 %v1424, %v1692
        %v1759 = vadd.f32 %v1425, %v1697
        %v1760 = vadd.f32 %v1426, %v1702
        %v1761 = vadd.f32 %v1427, %v1707
        %v1762 = vadd.f32 %v1428, %v1712
        %v1763 = vadd.f32 %v1429, %v1717
        %v1764 = vadd.f32 %v1430, %v1722
        %v1765 = vadd.f32 %v1431, %v1727
        %v1766 = vld [vmem:[%s448 + $0x18] sm:$0xff]
        %v1767 = vld [vmem:[%s448 + $0x20] sm:$0xff]
        %v1768 = vld [vmem:[%s448 + $0x28] sm:$0xff]
        %v1769 = vld [vmem:[%s448 + $0x30] sm:$0xff]
        %v1770 = vld [vmem:[%s448 + $0x38] sm:$0xff]
        %v1771 = vld [vmem:[%s448 + $0x40] sm:$0xff]
        %v1772 = vld [vmem:[%s448 + $0x48] sm:$0xff]
        %v1773 = vld [vmem:[%s448 + $0x50] sm:$0xff]
        %v1774 = vld [vmem:[%s448 + $0x58] sm:$0xff]
        %v1775 = vld [vmem:[%s448 + $0x60] sm:$0xff]
        %v1776 = vld [vmem:[%s448 + $0x68] sm:$0xff]
        %v1777 = vld [vmem:[%s448 + $0x70] sm:$0xff]
        %v1778 = vld [vmem:[%s448 + $0x78] sm:$0xff]
        %v1779 = vld [vmem:[%s448 + $0x80] sm:$0xff]
        %v1780 = vld [vmem:[%s448 + $0x88] sm:$0xff]
        %v1781 = vld [vmem:[%s448 + $0x90] sm:$0xff]
        %v1782 = vld [vmem:[%s448 + $0x98] sm:$0xff]
        %v1783 = vld [vmem:[%s448 + $0xa0] sm:$0xff]
        %v1784 = vld [vmem:[%s448 + $0xa8] sm:$0xff]
        %v1785 = vld [vmem:[%s448 + $0xb0] sm:$0xff]
        %v1786 = vld [vmem:[%s448 + $0xb8] sm:$0xff]
        %v1787 = vld [vmem:[%s448 + $0xc0] sm:$0xff]
        %v1788 = vld [vmem:[%s448 + $0xc8] sm:$0xff]
        %v1789 = vld [vmem:[%s448 + $0xd0] sm:$0xff]
        %v1790 = vld [vmem:[%s448 + $0xd8] sm:$0xff]
        %v1791 = vld [vmem:[%s448 + $0xe0] sm:$0xff]
        %v1792 = vld [vmem:[%s448 + $0xe8] sm:$0xff]
        %v1793 = vld [vmem:[%s448 + $0xf0] sm:$0xff]
        %v1794 = vld [vmem:[%s448 + $0xf8] sm:$0xff]
        %v1795 = vld [vmem:[%s448 + $0x100] sm:$0xff]
        %v1796 = vld [vmem:[%s448 + $0x108] sm:$0xff]
        %v1797 = vld [vmem:[%s448 + $0x110] sm:$0xff]
        %v1798 = vld [vmem:[%s448 + $0x118] sm:$0xff]
        %v1799 = vld [vmem:[%s448 + $0x120] sm:$0xff]
        %v1800 = vld [vmem:[%s448 + $0x128] sm:$0xff]
        %v1801 = vld [vmem:[%s448 + $0x130] sm:$0x3f]
        %s1802 = scalar_lea.vmem [#allocation6], 512
        %v1803 = vld [vmem:[%s1802] sm:$0xff]
        %v1804 = vld [vmem:[%s1802 + $0x8] sm:$0xff]
        %v1805 = vld [vmem:[%s1802 + $0x10] sm:$0xff]
        %v1806 = vld [vmem:[%s1802 + $0x18] sm:$0xff]
        %v1807 = vld [vmem:[%s1802 + $0x20] sm:$0xff]
        %v1808 = vld [vmem:[%s1802 + $0x28] sm:$0xff]
        %v1809 = vld [vmem:[%s1802 + $0x30] sm:$0xff]
        %v1810 = vld [vmem:[%s1802 + $0x38] sm:$0xff]
        %v1811 = vld [vmem:[%s1802 + $0x40] sm:$0xff]
        %v1812 = vld [vmem:[%s1802 + $0x48] sm:$0xff]
        %v1813 = vld [vmem:[%s1802 + $0x50] sm:$0xff]
        %v1814 = vld [vmem:[%s1802 + $0x58] sm:$0xff]
        %v1815 = vld [vmem:[%s1802 + $0x60] sm:$0xff]
        %v1816 = vld [vmem:[%s1802 + $0x68] sm:$0xff]
        %v1817 = vld [vmem:[%s1802 + $0x70] sm:$0xff]
        %v1818 = vld [vmem:[%s1802 + $0x78] sm:$0xff]
        %1819 = vmatprep.subr.mxu0 0.0
        %1820 = vmatpush1.msra.mxu0 %v1803
        %1821 = vmatprep.subr.mxu0 0.0
        %1822 = vmatpush1.msra.mxu0 %v1804
        %1823 = vmatprep.subr.mxu0 0.0
        %1824 = vmatpush1.msra.mxu0 %v1805
        %1825 = vmatprep.subr.mxu0 0.0
        %1826 = vmatpush1.msra.mxu0 %v1806
        %1827 = vmatprep.subr.mxu0 0.0
        %1828 = vmatpush1.msra.mxu0 %v1807
        %1829 = vmatprep.subr.mxu0 0.0
        %1830 = vmatpush1.msra.mxu0 %v1808
        %1831 = vmatprep.subr.mxu0 0.0
        %1832 = vmatpush1.msra.mxu0 %v1809
        %1833 = vmatprep.subr.mxu0 0.0
        %1834 = vmatpush1.msra.mxu0 %v1810
        %1835 = vmatprep.subr.mxu0 0.0
        %1836 = vmatpush1.msra.mxu0 %v1811
        %1837 = vmatprep.subr.mxu0 0.0
        %1838 = vmatpush1.msra.mxu0 %v1812
        %1839 = vmatprep.subr.mxu0 0.0
        %1840 = vmatpush1.msra.mxu0 %v1813
        %1841 = vmatprep.subr.mxu0 0.0
        %1842 = vmatpush1.msra.mxu0 %v1814
        %1843 = vmatprep.subr.mxu0 0.0
        %1844 = vmatpush1.msra.mxu0 %v1815
        %1845 = vmatprep.subr.mxu0 0.0
        %1846 = vmatpush1.msra.mxu0 %v1816
        %1847 = vmatprep.subr.mxu0 0.0
        %1848 = vmatpush1.msra.mxu0 %v1817
        %1849 = vmatprep.subr.mxu0 0.0
        %1850 = vmatpush1.msra.mxu0 %v1818
        %1851 = vmatprep.subr.mxu0 0.0
        %1852 = vmatpush1.msra.mxu0 0.0
        %1853 = vmatprep.subr.mxu0 0.0
        %1854 = vmatpush1.msra.mxu0 0.0
        %1855 = vmatprep.subr.mxu0 0.0
        %1856 = vmatpush1.msra.mxu0 0.0
        %1857 = vmatprep.subr.mxu0 0.0
        %1858 = vmatpush1.msra.mxu0 0.0
        %1859 = vmatprep.subr.mxu0 0.0
        %1860 = vmatpush1.msra.mxu0 0.0
        %1861 = vmatprep.subr.mxu0 0.0
        %1862 = vmatpush1.msra.mxu0 0.0
        %1863 = vmatprep.subr.mxu0 0.0
        %1864 = vmatpush1.msra.mxu0 0.0
        %1865 = vmatprep.subr.mxu0 0.0
        %1866 = vmatpush1.msra.mxu0 0.0
        %1867 = vmatprep.subr.mxu0 0.0
        %1868 = vmatpush1.msra.mxu0 0.0
        %1869 = vmatprep.subr.mxu0 0.0
        %1870 = vmatpush1.msra.mxu0 0.0
        %1871 = vmatprep.subr.mxu0 0.0
        %1872 = vmatpush1.msra.mxu0 0.0
        %1873 = vmatprep.subr.mxu0 0.0
        %1874 = vmatpush1.msra.mxu0 0.0
        %1875 = vmatprep.subr.mxu0 0.0
        %1876 = vmatpush1.msra.mxu0 0.0
        %1877 = vmatprep.subr.mxu0 0.0
        %1878 = vmatpush1.msra.mxu0 0.0
        %1879 = vmatprep.subr.mxu0 0.0
        %1880 = vmatpush1.msra.mxu0 0.0
        %1881 = vmatprep.subr.mxu0 0.0
        %1882 = vmatpush1.msra.mxu0 0.0
        %1883 = vmatprep.mubr.f32.mxu0 0.0
        %1884 = vmatmul.mubr.f32.gmra.mrb[0].mxu0 %v1766
        %v1885 = vpop.f32.mrb[0].mxu0
        %v1886 = vadd.f32 0.0, %v1885
        %v1887 = vpop.f32.mrb[0].mxu0
        %1888 = vmatprep.mubr.f32.mxu0 0.0
        %1889 = vmatmul.mubr.f32.gmra.mrb[0].mxu0 %v1767
        %v1890 = vpop.f32.mrb[0].mxu0
        %v1891 = vadd.f32 0.0, %v1890
        %v1892 = vpop.f32.mrb[0].mxu0
        %1893 = vmatprep.mubr.f32.mxu0 0.0
        %1894 = vmatmul.mubr.f32.gmra.mrb[0].mxu0 %v1768
        %v1895 = vpop.f32.mrb[0].mxu0
        %v1896 = vadd.f32 0.0, %v1895
        %v1897 = vpop.f32.mrb[0].mxu0
        %1898 = vmatprep.mubr.f32.mxu0 0.0
        %1899 = vmatmul.mubr.f32.gmra.mrb[0].mxu0 %v1769
        %v1900 = vpop.f32.mrb[0].mxu0
        %v1901 = vadd.f32 0.0, %v1900
        %v1902 = vpop.f32.mrb[0].mxu0
        %1903 = vmatprep.mubr.f32.mxu0 0.0
        %1904 = vmatmul.mubr.f32.gmra.mrb[0].mxu0 %v1770
        %v1905 = vpop.f32.mrb[0].mxu0
        %v1906 = vadd.f32 0.0, %v1905
        %v1907 = vpop.f32.mrb[0].mxu0
        %1908 = vmatprep.mubr.f32.mxu0 0.0
        %1909 = vmatmul.mubr.f32.gmra.mrb[0].mxu0 %v1771
        %v1910 = vpop.f32.mrb[0].mxu0
        %v1911 = vadd.f32 0.0, %v1910
        %v1912 = vpop.f32.mrb[0].mxu0
        %1913 = vmatprep.mubr.f32.mxu0 0.0
        %1914 = vmatmul.mubr.f32.gmra.mrb[0].mxu0 %v1772
        %v1915 = vpop.f32.mrb[0].mxu0
        %v1916 = vadd.f32 0.0, %v1915
        %v1917 = vpop.f32.mrb[0].mxu0
        %1918 = vmatprep.mubr.f32.mxu0 0.0
        %1919 = vmatmul.mubr.f32.gmra.mrb[0].mxu0 %v1773
        %v1920 = vpop.f32.mrb[0].mxu0
        %v1921 = vadd.f32 0.0, %v1920
        %v1922 = vpop.f32.mrb[0].mxu0
        %1923 = vmatprep.mubr.f32.mxu0 0.0
        %1924 = vmatmul.mubr.f32.gmra.mrb[0].mxu0 %v1774
        %v1925 = vpop.f32.mrb[0].mxu0
        %v1926 = vadd.f32 0.0, %v1925
        %v1927 = vpop.f32.mrb[0].mxu0
        %1928 = vmatprep.mubr.f32.mxu0 0.0
        %1929 = vmatmul.mubr.f32.gmra.mrb[0].mxu0 %v1775
        %v1930 = vpop.f32.mrb[0].mxu0
        %v1931 = vadd.f32 0.0, %v1930
        %v1932 = vpop.f32.mrb[0].mxu0
        %1933 = vmatprep.mubr.f32.mxu0 0.0
        %1934 = vmatmul.mubr.f32.gmra.mrb[0].mxu0 %v1776
        %v1935 = vpop.f32.mrb[0].mxu0
        %v1936 = vadd.f32 0.0, %v1935
        %v1937 = vpop.f32.mrb[0].mxu0
        %1938 = vmatprep.mubr.f32.mxu0 0.0
        %1939 = vmatmul.mubr.f32.gmra.mrb[0].mxu0 %v1777
        %v1940 = vpop.f32.mrb[0].mxu0
        %v1941 = vadd.f32 0.0, %v1940
        %v1942 = vpop.f32.mrb[0].mxu0
        %1943 = vmatprep.mubr.f32.mxu0 0.0
        %1944 = vmatmul.mubr.f32.gmra.mrb[0].mxu0 %v1778
        %v1945 = vpop.f32.mrb[0].mxu0
        %v1946 = vadd.f32 0.0, %v1945
        %v1947 = vpop.f32.mrb[0].mxu0
        %1948 = vmatprep.mubr.f32.mxu0 0.0
        %1949 = vmatmul.mubr.f32.gmra.mrb[0].mxu0 %v1779
        %v1950 = vpop.f32.mrb[0].mxu0
        %v1951 = vadd.f32 0.0, %v1950
        %v1952 = vpop.f32.mrb[0].mxu0
        %1953 = vmatprep.mubr.f32.mxu0 0.0
        %1954 = vmatmul.mubr.f32.gmra.mrb[0].mxu0 %v1780
        %v1955 = vpop.f32.mrb[0].mxu0
        %v1956 = vadd.f32 0.0, %v1955
        %v1957 = vpop.f32.mrb[0].mxu0
        %1958 = vmatprep.mubr.f32.mxu0 0.0
        %1959 = vmatmul.mubr.f32.gmra.mrb[0].mxu0 %v1781
        %v1960 = vpop.f32.mrb[0].mxu0
        %v1961 = vadd.f32 0.0, %v1960
        %v1962 = vpop.f32.mrb[0].mxu0
        %1963 = vmatprep.mubr.f32.mxu0 0.0
        %1964 = vmatmul.mubr.f32.gmra.mrb[0].mxu0 %v1782
        %v1965 = vpop.f32.mrb[0].mxu0
        %v1966 = vadd.f32 0.0, %v1965
        %v1967 = vpop.f32.mrb[0].mxu0
        %1968 = vmatprep.mubr.f32.mxu0 0.0
        %1969 = vmatmul.mubr.f32.gmra.mrb[0].mxu0 %v1783
        %v1970 = vpop.f32.mrb[0].mxu0
        %v1971 = vadd.f32 0.0, %v1970
        %v1972 = vpop.f32.mrb[0].mxu0
        %1973 = vmatprep.mubr.f32.mxu0 0.0
        %1974 = vmatmul.mubr.f32.gmra.mrb[0].mxu0 %v1784
        %v1975 = vpop.f32.mrb[0].mxu0
        %v1976 = vadd.f32 0.0, %v1975
        %v1977 = vpop.f32.mrb[0].mxu0
        %1978 = vmatprep.mubr.f32.mxu0 0.0
        %1979 = vmatmul.mubr.f32.gmra.mrb[0].mxu0 %v1785
        %v1980 = vpop.f32.mrb[0].mxu0
        %v1981 = vadd.f32 0.0, %v1980
        %v1982 = vpop.f32.mrb[0].mxu0
        %1983 = vmatprep.mubr.f32.mxu0 0.0
        %1984 = vmatmul.mubr.f32.gmra.mrb[0].mxu0 %v1786
        %v1985 = vpop.f32.mrb[0].mxu0
        %v1986 = vadd.f32 0.0, %v1985
        %v1987 = vpop.f32.mrb[0].mxu0
        %1988 = vmatprep.mubr.f32.mxu0 0.0
        %1989 = vmatmul.mubr.f32.gmra.mrb[0].mxu0 %v1787
        %v1990 = vpop.f32.mrb[0].mxu0
        %v1991 = vadd.f32 0.0, %v1990
        %v1992 = vpop.f32.mrb[0].mxu0
        %1993 = vmatprep.mubr.f32.mxu0 0.0
        %1994 = vmatmul.mubr.f32.gmra.mrb[0].mxu0 %v1788
        %v1995 = vpop.f32.mrb[0].mxu0
        %v1996 = vadd.f32 0.0, %v1995
        %v1997 = vpop.f32.mrb[0].mxu0
        %1998 = vmatprep.mubr.f32.mxu0 0.0
        %1999 = vmatmul.mubr.f32.gmra.mrb[0].mxu0 %v1789
        %v2000 = vpop.f32.mrb[0].mxu0
        %v2001 = vadd.f32 0.0, %v2000
        %v2002 = vpop.f32.mrb[0].mxu0
        %2003 = vmatprep.mubr.f32.mxu0 0.0
        %2004 = vmatmul.mubr.f32.gmra.mrb[0].mxu0 %v1790
        %v2005 = vpop.f32.mrb[0].mxu0
        %v2006 = vadd.f32 0.0, %v2005
        %v2007 = vpop.f32.mrb[0].mxu0
        %2008 = vmatprep.mubr.f32.mxu0 0.0
        %2009 = vmatmul.mubr.f32.gmra.mrb[0].mxu0 %v1791
        %v2010 = vpop.f32.mrb[0].mxu0
        %v2011 = vadd.f32 0.0, %v2010
        %v2012 = vpop.f32.mrb[0].mxu0
        %2013 = vmatprep.mubr.f32.mxu0 0.0
        %2014 = vmatmul.mubr.f32.gmra.mrb[0].mxu0 %v1792
        %v2015 = vpop.f32.mrb[0].mxu0
        %v2016 = vadd.f32 0.0, %v2015
        %v2017 = vpop.f32.mrb[0].mxu0
        %2018 = vmatprep.mubr.f32.mxu0 0.0
        %2019 = vmatmul.mubr.f32.gmra.mrb[0].mxu0 %v1793
        %v2020 = vpop.f32.mrb[0].mxu0
        %v2021 = vadd.f32 0.0, %v2020
        %v2022 = vpop.f32.mrb[0].mxu0
        %2023 = vmatprep.mubr.f32.mxu0 0.0
        %2024 = vmatmul.mubr.f32.gmra.mrb[0].mxu0 %v1794
        %v2025 = vpop.f32.mrb[0].mxu0
        %v2026 = vadd.f32 0.0, %v2025
        %v2027 = vpop.f32.mrb[0].mxu0
        %2028 = vmatprep.mubr.f32.mxu0 0.0
        %2029 = vmatmul.mubr.f32.gmra.mrb[0].mxu0 %v1795
        %v2030 = vpop.f32.mrb[0].mxu0
        %v2031 = vadd.f32 0.0, %v2030
        %v2032 = vpop.f32.mrb[0].mxu0
        %2033 = vmatprep.mubr.f32.mxu0 0.0
        %2034 = vmatmul.mubr.f32.gmra.mrb[0].mxu0 %v1796
        %v2035 = vpop.f32.mrb[0].mxu0
        %v2036 = vadd.f32 0.0, %v2035
        %v2037 = vpop.f32.mrb[0].mxu0
        %2038 = vmatprep.mubr.f32.mxu0 0.0
        %2039 = vmatmul.mubr.f32.gmra.mrb[0].mxu0 %v1797
        %v2040 = vpop.f32.mrb[0].mxu0
        %v2041 = vadd.f32 0.0, %v2040
        %v2042 = vpop.f32.mrb[0].mxu0
        %2043 = vmatprep.mubr.f32.mxu0 0.0
        %2044 = vmatmul.mubr.f32.gmra.mrb[0].mxu0 %v1798
        %v2045 = vpop.f32.mrb[0].mxu0
        %v2046 = vadd.f32 0.0, %v2045
        %v2047 = vpop.f32.mrb[0].mxu0
        %2048 = vmatprep.mubr.f32.mxu0 0.0
        %2049 = vmatmul.mubr.f32.gmra.mrb[0].mxu0 %v1799
        %v2050 = vpop.f32.mrb[0].mxu0
        %v2051 = vadd.f32 0.0, %v2050
        %v2052 = vpop.f32.mrb[0].mxu0
        %2053 = vmatprep.mubr.f32.mxu0 0.0
        %2054 = vmatmul.mubr.f32.gmra.mrb[0].mxu0 %v1800
        %v2055 = vpop.f32.mrb[0].mxu0
        %v2056 = vadd.f32 0.0, %v2055
        %v2057 = vpop.f32.mrb[0].mxu0
        %2058 = vmatprep.mubr.f32.mxu0 0.0
        %2059 = vmatmul.mubr.f32.gmra.mrb[0].mxu0 %v1801
        %v2060 = vpop.f32.mrb[0].mxu0
        %v2061 = vadd.f32 0.0, %v2060
        %v2062 = vpop.f32.mrb[0].mxu0
        %2063 = vdwg.mxu0
        %v2064 = vadd.f32 %v1730, %v1886
        %v2065 = vadd.f32 %v1731, %v1891
        %v2066 = vadd.f32 %v1732, %v1896
        %v2067 = vadd.f32 %v1733, %v1901
        %v2068 = vadd.f32 %v1734, %v1906
        %v2069 = vadd.f32 %v1735, %v1911
        %v2070 = vadd.f32 %v1736, %v1916
        %v2071 = vadd.f32 %v1737, %v1921
        %v2072 = vadd.f32 %v1738, %v1926
        %v2073 = vadd.f32 %v1739, %v1931
        %v2074 = vadd.f32 %v1740, %v1936
        %v2075 = vadd.f32 %v1741, %v1941
        %v2076 = vadd.f32 %v1742, %v1946
        %v2077 = vadd.f32 %v1743, %v1951
        %v2078 = vadd.f32 %v1744, %v1956
        %v2079 = vadd.f32 %v1745, %v1961
        %v2080 = vadd.f32 %v1746, %v1966
        %v2081 = vadd.f32 %v1747, %v1971
        %v2082 = vadd.f32 %v1748, %v1976
        %v2083 = vadd.f32 %v1749, %v1981
        %v2084 = vadd.f32 %v1750, %v1986
        %v2085 = vadd.f32 %v1751, %v1991
        %v2086 = vadd.f32 %v1752, %v1996
        %v2087 = vadd.f32 %v1753, %v2001
        %v2088 = vadd.f32 %v1754, %v2006
        %v2089 = vadd.f32 %v1755, %v2011
        %v2090 = vadd.f32 %v1756, %v2016
        %v2091 = vadd.f32 %v1757, %v2021
        %v2092 = vadd.f32 %v1758, %v2026
        %v2093 = vadd.f32 %v1759, %v2031
        %v2094 = vadd.f32 %v1760, %v2036
        %v2095 = vadd.f32 %v1761, %v2041
        %v2096 = vadd.f32 %v1762, %v2046
        %v2097 = vadd.f32 %v1763, %v2051
        %v2098 = vadd.f32 %v1764, %v2056
        %v2099 = vadd.f32 %v1765, %v2061
        %v2100 = vld [vmem:[%s448 + $0x19] sm:$0xff]
        %v2101 = vld [vmem:[%s448 + $0x21] sm:$0xff]
        %v2102 = vld [vmem:[%s448 + $0x29] sm:$0xff]
        %v2103 = vld [vmem:[%s448 + $0x31] sm:$0xff]
        %v2104 = vld [vmem:[%s448 + $0x39] sm:$0xff]
        %v2105 = vld [vmem:[%s448 + $0x41] sm:$0xff]
        %v2106 = vld [vmem:[%s448 + $0x49] sm:$0xff]
        %v2107 = vld [vmem:[%s448 + $0x51] sm:$0xff]
        %v2108 = vld [vmem:[%s448 + $0x59] sm:$0xff]
        %v2109 = vld [vmem:[%s448 + $0x61] sm:$0xff]
        %v2110 = vld [vmem:[%s448 + $0x69] sm:$0xff]
        %v2111 = vld [vmem:[%s448 + $0x71] sm:$0xff]
        %v2112 = vld [vmem:[%s448 + $0x79] sm:$0xff]
        %v2113 = vld [vmem:[%s448 + $0x81] sm:$0xff]
        %v2114 = vld [vmem:[%s448 + $0x89] sm:$0xff]
        %v2115 = vld [vmem:[%s448 + $0x91] sm:$0xff]
        %v2116 = vld [vmem:[%s448 + $0x99] sm:$0xff]
        %v2117 = vld [vmem:[%s448 + $0xa1] sm:$0xff]
        %v2118 = vld [vmem:[%s448 + $0xa9] sm:$0xff]
        %v2119 = vld [vmem:[%s448 + $0xb1] sm:$0xff]
        %v2120 = vld [vmem:[%s448 + $0xb9] sm:$0xff]
        %v2121 = vld [vmem:[%s448 + $0xc1] sm:$0xff]
        %v2122 = vld [vmem:[%s448 + $0xc9] sm:$0xff]
        %v2123 = vld [vmem:[%s448 + $0xd1] sm:$0xff]
        %v2124 = vld [vmem:[%s448 + $0xd9] sm:$0xff]
        %v2125 = vld [vmem:[%s448 + $0xe1] sm:$0xff]
        %v2126 = vld [vmem:[%s448 + $0xe9] sm:$0xff]
        %v2127 = vld [vmem:[%s448 + $0xf1] sm:$0xff]
        %v2128 = vld [vmem:[%s448 + $0xf9] sm:$0xff]
        %v2129 = vld [vmem:[%s448 + $0x101] sm:$0xff]
        %v2130 = vld [vmem:[%s448 + $0x109] sm:$0xff]
        %v2131 = vld [vmem:[%s448 + $0x111] sm:$0xff]
        %v2132 = vld [vmem:[%s448 + $0x119] sm:$0xff]
        %v2133 = vld [vmem:[%s448 + $0x121] sm:$0xff]
        %v2134 = vld [vmem:[%s448 + $0x129] sm:$0xff]
        %v2135 = vld [vmem:[%s448 + $0x131] sm:$0x3f]
        %s2136 = scalar_lea.vmem [#allocation6], 640
        %v2137 = vld [vmem:[%s2136] sm:$0xff]
        %v2138 = vld [vmem:[%s2136 + $0x8] sm:$0xff]
        %v2139 = vld [vmem:[%s2136 + $0x10] sm:$0xff]
        %v2140 = vld [vmem:[%s2136 + $0x18] sm:$0xff]
        %v2141 = vld [vmem:[%s2136 + $0x20] sm:$0xff]
        %v2142 = vld [vmem:[%s2136 + $0x28] sm:$0xff]
        %v2143 = vld [vmem:[%s2136 + $0x30] sm:$0xff]
        %v2144 = vld [vmem:[%s2136 + $0x38] sm:$0xff]
        %v2145 = vld [vmem:[%s2136 + $0x40] sm:$0xff]
        %v2146 = vld [vmem:[%s2136 + $0x48] sm:$0xff]
        %v2147 = vld [vmem:[%s2136 + $0x50] sm:$0xff]
        %v2148 = vld [vmem:[%s2136 + $0x58] sm:$0xff]
        %v2149 = vld [vmem:[%s2136 + $0x60] sm:$0xff]
        %v2150 = vld [vmem:[%s2136 + $0x68] sm:$0xff]
        %v2151 = vld [vmem:[%s2136 + $0x70] sm:$0xff]
        %v2152 = vld [vmem:[%s2136 + $0x78] sm:$0xff]
        %2153 = vmatprep.subr.mxu0 0.0
        %2154 = vmatpush1.msra.mxu0 %v2137
        %2155 = vmatprep.subr.mxu0 0.0
        %2156 = vmatpush1.msra.mxu0 %v2138
        %2157 = vmatprep.subr.mxu0 0.0
        %2158 = vmatpush1.msra.mxu0 %v2139
        %2159 = vmatprep.subr.mxu0 0.0
        %2160 = vmatpush1.msra.mxu0 %v2140
        %2161 = vmatprep.subr.mxu0 0.0
        %2162 = vmatpush1.msra.mxu0 %v2141
        %2163 = vmatprep.subr.mxu0 0.0
        %2164 = vmatpush1.msra.mxu0 %v2142
        %2165 = vmatprep.subr.mxu0 0.0
        %2166 = vmatpush1.msra.mxu0 %v2143
        %2167 = vmatprep.subr.mxu0 0.0
        %2168 = vmatpush1.msra.mxu0 %v2144
        %2169 = vmatprep.subr.mxu0 0.0
        %2170 = vmatpush1.msra.mxu0 %v2145
        %2171 = vmatprep.subr.mxu0 0.0
        %2172 = vmatpush1.msra.mxu0 %v2146
        %2173 = vmatprep.subr.mxu0 0.0
        %2174 = vmatpush1.msra.mxu0 %v2147
        %2175 = vmatprep.subr.mxu0 0.0
        %2176 = vmatpush1.msra.mxu0 %v2148
        %2177 = vmatprep.subr.mxu0 0.0
        %2178 = vmatpush1.msra.mxu0 %v2149
        %2179 = vmatprep.subr.mxu0 0.0
        %2180 = vmatpush1.msra.mxu0 %v2150
        %2181 = vmatprep.subr.mxu0 0.0
        %2182 = vmatpush1.msra.mxu0 %v2151
        %2183 = vmatprep.subr.mxu0 0.0
        %2184 = vmatpush1.msra.mxu0 %v2152
        %2185 = vmatprep.subr.mxu0 0.0
        %2186 = vmatpush1.msra.mxu0 0.0
        %2187 = vmatprep.subr.mxu0 0.0
        %2188 = vmatpush1.msra.mxu0 0.0
        %2189 = vmatprep.subr.mxu0 0.0
        %2190 = vmatpush1.msra.mxu0 0.0
        %2191 = vmatprep.subr.mxu0 0.0
        %2192 = vmatpush1.msra.mxu0 0.0
        %2193 = vmatprep.subr.mxu0 0.0
        %2194 = vmatpush1.msra.mxu0 0.0
        %2195 = vmatprep.subr.mxu0 0.0
        %2196 = vmatpush1.msra.mxu0 0.0
        %2197 = vmatprep.subr.mxu0 0.0
        %2198 = vmatpush1.msra.mxu0 0.0
        %2199 = vmatprep.subr.mxu0 0.0
        %2200 = vmatpush1.msra.mxu0 0.0
        %2201 = vmatprep.subr.mxu0 0.0
        %2202 = vmatpush1.msra.mxu0 0.0
        %2203 = vmatprep.subr.mxu0 0.0
        %2204 = vmatpush1.msra.mxu0 0.0
        %2205 = vmatprep.subr.mxu0 0.0
        %2206 = vmatpush1.msra.mxu0 0.0
        %2207 = vmatprep.subr.mxu0 0.0
        %2208 = vmatpush1.msra.mxu0 0.0
        %2209 = vmatprep.subr.mxu0 0.0
        %2210 = vmatpush1.msra.mxu0 0.0
        %2211 = vmatprep.subr.mxu0 0.0
        %2212 = vmatpush1.msra.mxu0 0.0
        %2213 = vmatprep.subr.mxu0 0.0
        %2214 = vmatpush1.msra.mxu0 0.0
        %2215 = vmatprep.subr.mxu0 0.0
        %2216 = vmatpush1.msra.mxu0 0.0
        %2217 = vmatprep.mubr.f32.mxu0 0.0
        %2218 = vmatmul.mubr.f32.gmra.mrb[0].mxu0 %v2100
        %v2219 = vpop.f32.mrb[0].mxu0
        %v2220 = vadd.f32 0.0, %v2219
        %v2221 = vpop.f32.mrb[0].mxu0
        %2222 = vmatprep.mubr.f32.mxu0 0.0
        %2223 = vmatmul.mubr.f32.gmra.mrb[0].mxu0 %v2101
        %v2224 = vpop.f32.mrb[0].mxu0
        %v2225 = vadd.f32 0.0, %v2224
        %v2226 = vpop.f32.mrb[0].mxu0
        %2227 = vmatprep.mubr.f32.mxu0 0.0
        %2228 = vmatmul.mubr.f32.gmra.mrb[0].mxu0 %v2102
        %v2229 = vpop.f32.mrb[0].mxu0
        %v2230 = vadd.f32 0.0, %v2229
        %v2231 = vpop.f32.mrb[0].mxu0
        %2232 = vmatprep.mubr.f32.mxu0 0.0
        %2233 = vmatmul.mubr.f32.gmra.mrb[0].mxu0 %v2103
        %v2234 = vpop.f32.mrb[0].mxu0
        %v2235 = vadd.f32 0.0, %v2234
        %v2236 = vpop.f32.mrb[0].mxu0
        %2237 = vmatprep.mubr.f32.mxu0 0.0
        %2238 = vmatmul.mubr.f32.gmra.mrb[0].mxu0 %v2104
        %v2239 = vpop.f32.mrb[0].mxu0
        %v2240 = vadd.f32 0.0, %v2239
        %v2241 = vpop.f32.mrb[0].mxu0
        %2242 = vmatprep.mubr.f32.mxu0 0.0
        %2243 = vmatmul.mubr.f32.gmra.mrb[0].mxu0 %v2105
        %v2244 = vpop.f32.mrb[0].mxu0
        %v2245 = vadd.f32 0.0, %v2244
        %v2246 = vpop.f32.mrb[0].mxu0
        %2247 = vmatprep.mubr.f32.mxu0 0.0
        %2248 = vmatmul.mubr.f32.gmra.mrb[0].mxu0 %v2106
        %v2249 = vpop.f32.mrb[0].mxu0
        %v2250 = vadd.f32 0.0, %v2249
        %v2251 = vpop.f32.mrb[0].mxu0
        %2252 = vmatprep.mubr.f32.mxu0 0.0
        %2253 = vmatmul.mubr.f32.gmra.mrb[0].mxu0 %v2107
        %v2254 = vpop.f32.mrb[0].mxu0
        %v2255 = vadd.f32 0.0, %v2254
        %v2256 = vpop.f32.mrb[0].mxu0
        %2257 = vmatprep.mubr.f32.mxu0 0.0
        %2258 = vmatmul.mubr.f32.gmra.mrb[0].mxu0 %v2108
        %v2259 = vpop.f32.mrb[0].mxu0
        %v2260 = vadd.f32 0.0, %v2259
        %v2261 = vpop.f32.mrb[0].mxu0
        %2262 = vmatprep.mubr.f32.mxu0 0.0
        %2263 = vmatmul.mubr.f32.gmra.mrb[0].mxu0 %v2109
        %v2264 = vpop.f32.mrb[0].mxu0
        %v2265 = vadd.f32 0.0, %v2264
        %v2266 = vpop.f32.mrb[0].mxu0
        %2267 = vmatprep.mubr.f32.mxu0 0.0
        %2268 = vmatmul.mubr.f32.gmra.mrb[0].mxu0 %v2110
        %v2269 = vpop.f32.mrb[0].mxu0
        %v2270 = vadd.f32 0.0, %v2269
        %v2271 = vpop.f32.mrb[0].mxu0
        %2272 = vmatprep.mubr.f32.mxu0 0.0
        %2273 = vmatmul.mubr.f32.gmra.mrb[0].mxu0 %v2111
        %v2274 = vpop.f32.mrb[0].mxu0
        %v2275 = vadd.f32 0.0, %v2274
        %v2276 = vpop.f32.mrb[0].mxu0
        %2277 = vmatprep.mubr.f32.mxu0 0.0
        %2278 = vmatmul.mubr.f32.gmra.mrb[0].mxu0 %v2112
        %v2279 = vpop.f32.mrb[0].mxu0
        %v2280 = vadd.f32 0.0, %v2279
        %v2281 = vpop.f32.mrb[0].mxu0
        %2282 = vmatprep.mubr.f32.mxu0 0.0
        %2283 = vmatmul.mubr.f32.gmra.mrb[0].mxu0 %v2113
        %v2284 = vpop.f32.mrb[0].mxu0
        %v2285 = vadd.f32 0.0, %v2284
        %v2286 = vpop.f32.mrb[0].mxu0
        %2287 = vmatprep.mubr.f32.mxu0 0.0
        %2288 = vmatmul.mubr.f32.gmra.mrb[0].mxu0 %v2114
        %v2289 = vpop.f32.mrb[0].mxu0
        %v2290 = vadd.f32 0.0, %v2289
        %v2291 = vpop.f32.mrb[0].mxu0
        %2292 = vmatprep.mubr.f32.mxu0 0.0
        %2293 = vmatmul.mubr.f32.gmra.mrb[0].mxu0 %v2115
        %v2294 = vpop.f32.mrb[0].mxu0
        %v2295 = vadd.f32 0.0, %v2294
        %v2296 = vpop.f32.mrb[0].mxu0
        %2297 = vmatprep.mubr.f32.mxu0 0.0
        %2298 = vmatmul.mubr.f32.gmra.mrb[0].mxu0 %v2116
        %v2299 = vpop.f32.mrb[0].mxu0
        %v2300 = vadd.f32 0.0, %v2299
        %v2301 = vpop.f32.mrb[0].mxu0
        %2302 = vmatprep.mubr.f32.mxu0 0.0
        %2303 = vmatmul.mubr.f32.gmra.mrb[0].mxu0 %v2117
        %v2304 = vpop.f32.mrb[0].mxu0
        %v2305 = vadd.f32 0.0, %v2304
        %v2306 = vpop.f32.mrb[0].mxu0
        %2307 = vmatprep.mubr.f32.mxu0 0.0
        %2308 = vmatmul.mubr.f32.gmra.mrb[0].mxu0 %v2118
        %v2309 = vpop.f32.mrb[0].mxu0
        %v2310 = vadd.f32 0.0, %v2309
        %v2311 = vpop.f32.mrb[0].mxu0
        %2312 = vmatprep.mubr.f32.mxu0 0.0
        %2313 = vmatmul.mubr.f32.gmra.mrb[0].mxu0 %v2119
        %v2314 = vpop.f32.mrb[0].mxu0
        %v2315 = vadd.f32 0.0, %v2314
        %v2316 = vpop.f32.mrb[0].mxu0
        %2317 = vmatprep.mubr.f32.mxu0 0.0
        %2318 = vmatmul.mubr.f32.gmra.mrb[0].mxu0 %v2120
        %v2319 = vpop.f32.mrb[0].mxu0
        %v2320 = vadd.f32 0.0, %v2319
        %v2321 = vpop.f32.mrb[0].mxu0
        %2322 = vmatprep.mubr.f32.mxu0 0.0
        %2323 = vmatmul.mubr.f32.gmra.mrb[0].mxu0 %v2121
        %v2324 = vpop.f32.mrb[0].mxu0
        %v2325 = vadd.f32 0.0, %v2324
        %v2326 = vpop.f32.mrb[0].mxu0
        %2327 = vmatprep.mubr.f32.mxu0 0.0
        %2328 = vmatmul.mubr.f32.gmra.mrb[0].mxu0 %v2122
        %v2329 = vpop.f32.mrb[0].mxu0
        %v2330 = vadd.f32 0.0, %v2329
        %v2331 = vpop.f32.mrb[0].mxu0
        %2332 = vmatprep.mubr.f32.mxu0 0.0
        %2333 = vmatmul.mubr.f32.gmra.mrb[0].mxu0 %v2123
        %v2334 = vpop.f32.mrb[0].mxu0
        %v2335 = vadd.f32 0.0, %v2334
        %v2336 = vpop.f32.mrb[0].mxu0
        %2337 = vmatprep.mubr.f32.mxu0 0.0
        %2338 = vmatmul.mubr.f32.gmra.mrb[0].mxu0 %v2124
        %v2339 = vpop.f32.mrb[0].mxu0
        %v2340 = vadd.f32 0.0, %v2339
        %v2341 = vpop.f32.mrb[0].mxu0
        %2342 = vmatprep.mubr.f32.mxu0 0.0
        %2343 = vmatmul.mubr.f32.gmra.mrb[0].mxu0 %v2125
        %v2344 = vpop.f32.mrb[0].mxu0
        %v2345 = vadd.f32 0.0, %v2344
        %v2346 = vpop.f32.mrb[0].mxu0
        %2347 = vmatprep.mubr.f32.mxu0 0.0
        %2348 = vmatmul.mubr.f32.gmra.mrb[0].mxu0 %v2126
        %v2349 = vpop.f32.mrb[0].mxu0
        %v2350 = vadd.f32 0.0, %v2349
        %v2351 = vpop.f32.mrb[0].mxu0
        %2352 = vmatprep.mubr.f32.mxu0 0.0
        %2353 = vmatmul.mubr.f32.gmra.mrb[0].mxu0 %v2127
        %v2354 = vpop.f32.mrb[0].mxu0
        %v2355 = vadd.f32 0.0, %v2354
        %v2356 = vpop.f32.mrb[0].mxu0
        %2357 = vmatprep.mubr.f32.mxu0 0.0
        %2358 = vmatmul.mubr.f32.gmra.mrb[0].mxu0 %v2128
        %v2359 = vpop.f32.mrb[0].mxu0
        %v2360 = vadd.f32 0.0, %v2359
        %v2361 = vpop.f32.mrb[0].mxu0
        %2362 = vmatprep.mubr.f32.mxu0 0.0
        %2363 = vmatmul.mubr.f32.gmra.mrb[0].mxu0 %v2129
        %v2364 = vpop.f32.mrb[0].mxu0
        %v2365 = vadd.f32 0.0, %v2364
        %v2366 = vpop.f32.mrb[0].mxu0
        %2367 = vmatprep.mubr.f32.mxu0 0.0
        %2368 = vmatmul.mubr.f32.gmra.mrb[0].mxu0 %v2130
        %v2369 = vpop.f32.mrb[0].mxu0
        %v2370 = vadd.f32 0.0, %v2369
        %v2371 = vpop.f32.mrb[0].mxu0
        %2372 = vmatprep.mubr.f32.mxu0 0.0
        %2373 = vmatmul.mubr.f32.gmra.mrb[0].mxu0 %v2131
        %v2374 = vpop.f32.mrb[0].mxu0
        %v2375 = vadd.f32 0.0, %v2374
        %v2376 = vpop.f32.mrb[0].mxu0
        %2377 = vmatprep.mubr.f32.mxu0 0.0
        %2378 = vmatmul.mubr.f32.gmra.mrb[0].mxu0 %v2132
        %v2379 = vpop.f32.mrb[0].mxu0
        %v2380 = vadd.f32 0.0, %v2379
        %v2381 = vpop.f32.mrb[0].mxu0
        %2382 = vmatprep.mubr.f32.mxu0 0.0
        %2383 = vmatmul.mubr.f32.gmra.mrb[0].mxu0 %v2133
        %v2384 = vpop.f32.mrb[0].mxu0
        %v2385 = vadd.f32 0.0, %v2384
        %v2386 = vpop.f32.mrb[0].mxu0
        %2387 = vmatprep.mubr.f32.mxu0 0.0
        %2388 = vmatmul.mubr.f32.gmra.mrb[0].mxu0 %v2134
        %v2389 = vpop.f32.mrb[0].mxu0
        %v2390 = vadd.f32 0.0, %v2389
        %v2391 = vpop.f32.mrb[0].mxu0
        %2392 = vmatprep.mubr.f32.mxu0 0.0
        %2393 = vmatmul.mubr.f32.gmra.mrb[0].mxu0 %v2135
        %v2394 = vpop.f32.mrb[0].mxu0
        %v2395 = vadd.f32 0.0, %v2394
        %v2396 = vpop.f32.mrb[0].mxu0
        %2397 = vdwg.mxu0
        %v2398 = vadd.f32 %v2064, %v2220
        %v2399 = vadd.f32 %v2065, %v2225
        %v2400 = vadd.f32 %v2066, %v2230
        %v2401 = vadd.f32 %v2067, %v2235
        %v2402 = vadd.f32 %v2068, %v2240
        %v2403 = vadd.f32 %v2069, %v2245
        %v2404 = vadd.f32 %v2070, %v2250
        %v2405 = vadd.f32 %v2071, %v2255
        %v2406 = vadd.f32 %v2072, %v2260
        %v2407 = vadd.f32 %v2073, %v2265
        %v2408 = vadd.f32 %v2074, %v2270
        %v2409 = vadd.f32 %v2075, %v2275
        %v2410 = vadd.f32 %v2076, %v2280
        %v2411 = vadd.f32 %v2077, %v2285
        %v2412 = vadd.f32 %v2078, %v2290
        %v2413 = vadd.f32 %v2079, %v2295
        %v2414 = vadd.f32 %v2080, %v2300
        %v2415 = vadd.f32 %v2081, %v2305
        %v2416 = vadd.f32 %v2082, %v2310
        %v2417 = vadd.f32 %v2083, %v2315
        %v2418 = vadd.f32 %v2084, %v2320
        %v2419 = vadd.f32 %v2085, %v2325
        %v2420 = vadd.f32 %v2086, %v2330
        %v2421 = vadd.f32 %v2087, %v2335
        %v2422 = vadd.f32 %v2088, %v2340
        %v2423 = vadd.f32 %v2089, %v2345
        %v2424 = vadd.f32 %v2090, %v2350
        %v2425 = vadd.f32 %v2091, %v2355
        %v2426 = vadd.f32 %v2092, %v2360
        %v2427 = vadd.f32 %v2093, %v2365
        %v2428 = vadd.f32 %v2094, %v2370
        %v2429 = vadd.f32 %v2095, %v2375
        %v2430 = vadd.f32 %v2096, %v2380
        %v2431 = vadd.f32 %v2097, %v2385
        %v2432 = vadd.f32 %v2098, %v2390
        %v2433 = vadd.f32 %v2099, %v2395
        %v2434 = vld [vmem:[%s448 + $0x29] sm:$0xff]
        %v2435 = vld [vmem:[%s448 + $0x31] sm:$0xff]
        %v2436 = vld [vmem:[%s448 + $0x39] sm:$0xff]
        %v2437 = vld [vmem:[%s448 + $0x41] sm:$0xff]
        %v2438 = vld [vmem:[%s448 + $0x49] sm:$0xff]
        %v2439 = vld [vmem:[%s448 + $0x51] sm:$0xff]
        %v2440 = vld [vmem:[%s448 + $0x59] sm:$0xff]
        %v2441 = vld [vmem:[%s448 + $0x61] sm:$0xff]
        %v2442 = vld [vmem:[%s448 + $0x69] sm:$0xff]
        %v2443 = vld [vmem:[%s448 + $0x71] sm:$0xff]
        %v2444 = vld [vmem:[%s448 + $0x79] sm:$0xff]
        %v2445 = vld [vmem:[%s448 + $0x81] sm:$0xff]
        %v2446 = vld [vmem:[%s448 + $0x89] sm:$0xff]
        %v2447 = vld [vmem:[%s448 + $0x91] sm:$0xff]
        %v2448 = vld [vmem:[%s448 + $0x99] sm:$0xff]
        %v2449 = vld [vmem:[%s448 + $0xa1] sm:$0xff]
        %v2450 = vld [vmem:[%s448 + $0xa9] sm:$0xff]
        %v2451 = vld [vmem:[%s448 + $0xb1] sm:$0xff]
        %v2452 = vld [vmem:[%s448 + $0xb9] sm:$0xff]
        %v2453 = vld [vmem:[%s448 + $0xc1] sm:$0xff]
        %v2454 = vld [vmem:[%s448 + $0xc9] sm:$0xff]
        %v2455 = vld [vmem:[%s448 + $0xd1] sm:$0xff]
        %v2456 = vld [vmem:[%s448 + $0xd9] sm:$0xff]
        %v2457 = vld [vmem:[%s448 + $0xe1] sm:$0xff]
        %v2458 = vld [vmem:[%s448 + $0xe9] sm:$0xff]
        %v2459 = vld [vmem:[%s448 + $0xf1] sm:$0xff]
        %v2460 = vld [vmem:[%s448 + $0xf9] sm:$0xff]
        %v2461 = vld [vmem:[%s448 + $0x101] sm:$0xff]
        %v2462 = vld [vmem:[%s448 + $0x109] sm:$0xff]
        %v2463 = vld [vmem:[%s448 + $0x111] sm:$0xff]
        %v2464 = vld [vmem:[%s448 + $0x119] sm:$0xff]
        %v2465 = vld [vmem:[%s448 + $0x121] sm:$0xff]
        %v2466 = vld [vmem:[%s448 + $0x129] sm:$0xff]
        %v2467 = vld [vmem:[%s448 + $0x131] sm:$0xff]
        %v2468 = vld [vmem:[%s448 + $0x139] sm:$0xff]
        %v2469 = vld [vmem:[%s448 + $0x141] sm:$0x3f]
        %s2470 = scalar_lea.vmem [#allocation6], 768
        %v2471 = vld [vmem:[%s2470] sm:$0xff]
        %v2472 = vld [vmem:[%s2470 + $0x8] sm:$0xff]
        %v2473 = vld [vmem:[%s2470 + $0x10] sm:$0xff]
        %v2474 = vld [vmem:[%s2470 + $0x18] sm:$0xff]
        %v2475 = vld [vmem:[%s2470 + $0x20] sm:$0xff]
        %v2476 = vld [vmem:[%s2470 + $0x28] sm:$0xff]
        %v2477 = vld [vmem:[%s2470 + $0x30] sm:$0xff]
        %v2478 = vld [vmem:[%s2470 + $0x38] sm:$0xff]
        %v2479 = vld [vmem:[%s2470 + $0x40] sm:$0xff]
        %v2480 = vld [vmem:[%s2470 + $0x48] sm:$0xff]
        %v2481 = vld [vmem:[%s2470 + $0x50] sm:$0xff]
        %v2482 = vld [vmem:[%s2470 + $0x58] sm:$0xff]
        %v2483 = vld [vmem:[%s2470 + $0x60] sm:$0xff]
        %v2484 = vld [vmem:[%s2470 + $0x68] sm:$0xff]
        %v2485 = vld [vmem:[%s2470 + $0x70] sm:$0xff]
        %v2486 = vld [vmem:[%s2470 + $0x78] sm:$0xff]
        %2487 = vmatprep.subr.mxu0 0.0
        %2488 = vmatpush1.msra.mxu0 %v2471
        %2489 = vmatprep.subr.mxu0 0.0
        %2490 = vmatpush1.msra.mxu0 %v2472
        %2491 = vmatprep.subr.mxu0 0.0
        %2492 = vmatpush1.msra.mxu0 %v2473
        %2493 = vmatprep.subr.mxu0 0.0
        %2494 = vmatpush1.msra.mxu0 %v2474
        %2495 = vmatprep.subr.mxu0 0.0
        %2496 = vmatpush1.msra.mxu0 %v2475
        %2497 = vmatprep.subr.mxu0 0.0
        %2498 = vmatpush1.msra.mxu0 %v2476
        %2499 = vmatprep.subr.mxu0 0.0
        %2500 = vmatpush1.msra.mxu0 %v2477
        %2501 = vmatprep.subr.mxu0 0.0
        %2502 = vmatpush1.msra.mxu0 %v2478
        %2503 = vmatprep.subr.mxu0 0.0
        %2504 = vmatpush1.msra.mxu0 %v2479
        %2505 = vmatprep.subr.mxu0 0.0
        %2506 = vmatpush1.msra.mxu0 %v2480
        %2507 = vmatprep.subr.mxu0 0.0
        %2508 = vmatpush1.msra.mxu0 %v2481
        %2509 = vmatprep.subr.mxu0 0.0
        %2510 = vmatpush1.msra.mxu0 %v2482
        %2511 = vmatprep.subr.mxu0 0.0
        %2512 = vmatpush1.msra.mxu0 %v2483
        %2513 = vmatprep.subr.mxu0 0.0
        %2514 = vmatpush1.msra.mxu0 %v2484
        %2515 = vmatprep.subr.mxu0 0.0
        %2516 = vmatpush1.msra.mxu0 %v2485
        %2517 = vmatprep.subr.mxu0 0.0
        %2518 = vmatpush1.msra.mxu0 %v2486
        %2519 = vmatprep.subr.mxu0 0.0
        %2520 = vmatpush1.msra.mxu0 0.0
        %2521 = vmatprep.subr.mxu0 0.0
        %2522 = vmatpush1.msra.mxu0 0.0
        %2523 = vmatprep.subr.mxu0 0.0
        %2524 = vmatpush1.msra.mxu0 0.0
        %2525 = vmatprep.subr.mxu0 0.0
        %2526 = vmatpush1.msra.mxu0 0.0
        %2527 = vmatprep.subr.mxu0 0.0
        %2528 = vmatpush1.msra.mxu0 0.0
        %2529 = vmatprep.subr.mxu0 0.0
        %2530 = vmatpush1.msra.mxu0 0.0
        %2531 = vmatprep.subr.mxu0 0.0
        %2532 = vmatpush1.msra.mxu0 0.0
        %2533 = vmatprep.subr.mxu0 0.0
        %2534 = vmatpush1.msra.mxu0 0.0
        %2535 = vmatprep.subr.mxu0 0.0
        %2536 = vmatpush1.msra.mxu0 0.0
        %2537 = vmatprep.subr.mxu0 0.0
        %2538 = vmatpush1.msra.mxu0 0.0
        %2539 = vmatprep.subr.mxu0 0.0
        %2540 = vmatpush1.msra.mxu0 0.0
        %2541 = vmatprep.subr.mxu0 0.0
        %2542 = vmatpush1.msra.mxu0 0.0
        %2543 = vmatprep.subr.mxu0 0.0
        %2544 = vmatpush1.msra.mxu0 0.0
        %2545 = vmatprep.subr.mxu0 0.0
        %2546 = vmatpush1.msra.mxu0 0.0
        %2547 = vmatprep.subr.mxu0 0.0
        %2548 = vmatpush1.msra.mxu0 0.0
        %2549 = vmatprep.subr.mxu0 0.0
        %2550 = vmatpush1.msra.mxu0 0.0
        %2551 = vmatprep.mubr.f32.mxu0 0.0
        %2552 = vmatmul.mubr.f32.gmra.mrb[0].mxu0 %v2434
        %v2553 = vpop.f32.mrb[0].mxu0
        %v2554 = vadd.f32 0.0, %v2553
        %v2555 = vpop.f32.mrb[0].mxu0
        %2556 = vmatprep.mubr.f32.mxu0 0.0
        %2557 = vmatmul.mubr.f32.gmra.mrb[0].mxu0 %v2435
        %v2558 = vpop.f32.mrb[0].mxu0
        %v2559 = vadd.f32 0.0, %v2558
        %v2560 = vpop.f32.mrb[0].mxu0
        %2561 = vmatprep.mubr.f32.mxu0 0.0
        %2562 = vmatmul.mubr.f32.gmra.mrb[0].mxu0 %v2436
        %v2563 = vpop.f32.mrb[0].mxu0
        %v2564 = vadd.f32 0.0, %v2563
        %v2565 = vpop.f32.mrb[0].mxu0
        %2566 = vmatprep.mubr.f32.mxu0 0.0
        %2567 = vmatmul.mubr.f32.gmra.mrb[0].mxu0 %v2437
        %v2568 = vpop.f32.mrb[0].mxu0
        %v2569 = vadd.f32 0.0, %v2568
        %v2570 = vpop.f32.mrb[0].mxu0
        %2571 = vmatprep.mubr.f32.mxu0 0.0
        %2572 = vmatmul.mubr.f32.gmra.mrb[0].mxu0 %v2438
        %v2573 = vpop.f32.mrb[0].mxu0
        %v2574 = vadd.f32 0.0, %v2573
        %v2575 = vpop.f32.mrb[0].mxu0
        %2576 = vmatprep.mubr.f32.mxu0 0.0
        %2577 = vmatmul.mubr.f32.gmra.mrb[0].mxu0 %v2439
        %v2578 = vpop.f32.mrb[0].mxu0
        %v2579 = vadd.f32 0.0, %v2578
        %v2580 = vpop.f32.mrb[0].mxu0
        %2581 = vmatprep.mubr.f32.mxu0 0.0
        %2582 = vmatmul.mubr.f32.gmra.mrb[0].mxu0 %v2440
        %v2583 = vpop.f32.mrb[0].mxu0
        %v2584 = vadd.f32 0.0, %v2583
        %v2585 = vpop.f32.mrb[0].mxu0
        %2586 = vmatprep.mubr.f32.mxu0 0.0
        %2587 = vmatmul.mubr.f32.gmra.mrb[0].mxu0 %v2441
        %v2588 = vpop.f32.mrb[0].mxu0
        %v2589 = vadd.f32 0.0, %v2588
        %v2590 = vpop.f32.mrb[0].mxu0
        %2591 = vmatprep.mubr.f32.mxu0 0.0
        %2592 = vmatmul.mubr.f32.gmra.mrb[0].mxu0 %v2442
        %v2593 = vpop.f32.mrb[0].mxu0
        %v2594 = vadd.f32 0.0, %v2593
        %v2595 = vpop.f32.mrb[0].mxu0
        %2596 = vmatprep.mubr.f32.mxu0 0.0
        %2597 = vmatmul.mubr.f32.gmra.mrb[0].mxu0 %v2443
        %v2598 = vpop.f32.mrb[0].mxu0
        %v2599 = vadd.f32 0.0, %v2598
        %v2600 = vpop.f32.mrb[0].mxu0
        %2601 = vmatprep.mubr.f32.mxu0 0.0
        %2602 = vmatmul.mubr.f32.gmra.mrb[0].mxu0 %v2444
        %v2603 = vpop.f32.mrb[0].mxu0
        %v2604 = vadd.f32 0.0, %v2603
        %v2605 = vpop.f32.mrb[0].mxu0
        %2606 = vmatprep.mubr.f32.mxu0 0.0
        %2607 = vmatmul.mubr.f32.gmra.mrb[0].mxu0 %v2445
        %v2608 = vpop.f32.mrb[0].mxu0
        %v2609 = vadd.f32 0.0, %v2608
        %v2610 = vpop.f32.mrb[0].mxu0
        %2611 = vmatprep.mubr.f32.mxu0 0.0
        %2612 = vmatmul.mubr.f32.gmra.mrb[0].mxu0 %v2446
        %v2613 = vpop.f32.mrb[0].mxu0
        %v2614 = vadd.f32 0.0, %v2613
        %v2615 = vpop.f32.mrb[0].mxu0
        %2616 = vmatprep.mubr.f32.mxu0 0.0
        %2617 = vmatmul.mubr.f32.gmra.mrb[0].mxu0 %v2447
        %v2618 = vpop.f32.mrb[0].mxu0
        %v2619 = vadd.f32 0.0, %v2618
        %v2620 = vpop.f32.mrb[0].mxu0
        %2621 = vmatprep.mubr.f32.mxu0 0.0
        %2622 = vmatmul.mubr.f32.gmra.mrb[0].mxu0 %v2448
        %v2623 = vpop.f32.mrb[0].mxu0
        %v2624 = vadd.f32 0.0, %v2623
        %v2625 = vpop.f32.mrb[0].mxu0
        %2626 = vmatprep.mubr.f32.mxu0 0.0
        %2627 = vmatmul.mubr.f32.gmra.mrb[0].mxu0 %v2449
        %v2628 = vpop.f32.mrb[0].mxu0
        %v2629 = vadd.f32 0.0, %v2628
        %v2630 = vpop.f32.mrb[0].mxu0
        %2631 = vmatprep.mubr.f32.mxu0 0.0
        %2632 = vmatmul.mubr.f32.gmra.mrb[0].mxu0 %v2450
        %v2633 = vpop.f32.mrb[0].mxu0
        %v2634 = vadd.f32 0.0, %v2633
        %v2635 = vpop.f32.mrb[0].mxu0
        %2636 = vmatprep.mubr.f32.mxu0 0.0
        %2637 = vmatmul.mubr.f32.gmra.mrb[0].mxu0 %v2451
        %v2638 = vpop.f32.mrb[0].mxu0
        %v2639 = vadd.f32 0.0, %v2638
        %v2640 = vpop.f32.mrb[0].mxu0
        %2641 = vmatprep.mubr.f32.mxu0 0.0
        %2642 = vmatmul.mubr.f32.gmra.mrb[0].mxu0 %v2452
        %v2643 = vpop.f32.mrb[0].mxu0
        %v2644 = vadd.f32 0.0, %v2643
        %v2645 = vpop.f32.mrb[0].mxu0
        %2646 = vmatprep.mubr.f32.mxu0 0.0
        %2647 = vmatmul.mubr.f32.gmra.mrb[0].mxu0 %v2453
        %v2648 = vpop.f32.mrb[0].mxu0
        %v2649 = vadd.f32 0.0, %v2648
        %v2650 = vpop.f32.mrb[0].mxu0
        %2651 = vmatprep.mubr.f32.mxu0 0.0
        %2652 = vmatmul.mubr.f32.gmra.mrb[0].mxu0 %v2454
        %v2653 = vpop.f32.mrb[0].mxu0
        %v2654 = vadd.f32 0.0, %v2653
        %v2655 = vpop.f32.mrb[0].mxu0
        %2656 = vmatprep.mubr.f32.mxu0 0.0
        %2657 = vmatmul.mubr.f32.gmra.mrb[0].mxu0 %v2455
        %v2658 = vpop.f32.mrb[0].mxu0
        %v2659 = vadd.f32 0.0, %v2658
        %v2660 = vpop.f32.mrb[0].mxu0
        %2661 = vmatprep.mubr.f32.mxu0 0.0
        %2662 = vmatmul.mubr.f32.gmra.mrb[0].mxu0 %v2456
        %v2663 = vpop.f32.mrb[0].mxu0
        %v2664 = vadd.f32 0.0, %v2663
        %v2665 = vpop.f32.mrb[0].mxu0
        %2666 = vmatprep.mubr.f32.mxu0 0.0
        %2667 = vmatmul.mubr.f32.gmra.mrb[0].mxu0 %v2457
        %v2668 = vpop.f32.mrb[0].mxu0
        %v2669 = vadd.f32 0.0, %v2668
        %v2670 = vpop.f32.mrb[0].mxu0
        %2671 = vmatprep.mubr.f32.mxu0 0.0
        %2672 = vmatmul.mubr.f32.gmra.mrb[0].mxu0 %v2458
        %v2673 = vpop.f32.mrb[0].mxu0
        %v2674 = vadd.f32 0.0, %v2673
        %v2675 = vpop.f32.mrb[0].mxu0
        %2676 = vmatprep.mubr.f32.mxu0 0.0
        %2677 = vmatmul.mubr.f32.gmra.mrb[0].mxu0 %v2459
        %v2678 = vpop.f32.mrb[0].mxu0
        %v2679 = vadd.f32 0.0, %v2678
        %v2680 = vpop.f32.mrb[0].mxu0
        %2681 = vmatprep.mubr.f32.mxu0 0.0
        %2682 = vmatmul.mubr.f32.gmra.mrb[0].mxu0 %v2460
        %v2683 = vpop.f32.mrb[0].mxu0
        %v2684 = vadd.f32 0.0, %v2683
        %v2685 = vpop.f32.mrb[0].mxu0
        %2686 = vmatprep.mubr.f32.mxu0 0.0
        %2687 = vmatmul.mubr.f32.gmra.mrb[0].mxu0 %v2461
        %v2688 = vpop.f32.mrb[0].mxu0
        %v2689 = vadd.f32 0.0, %v2688
        %v2690 = vpop.f32.mrb[0].mxu0
        %2691 = vmatprep.mubr.f32.mxu0 0.0
        %2692 = vmatmul.mubr.f32.gmra.mrb[0].mxu0 %v2462
        %v2693 = vpop.f32.mrb[0].mxu0
        %v2694 = vadd.f32 0.0, %v2693
        %v2695 = vpop.f32.mrb[0].mxu0
        %2696 = vmatprep.mubr.f32.mxu0 0.0
        %2697 = vmatmul.mubr.f32.gmra.mrb[0].mxu0 %v2463
        %v2698 = vpop.f32.mrb[0].mxu0
        %v2699 = vadd.f32 0.0, %v2698
        %v2700 = vpop.f32.mrb[0].mxu0
        %2701 = vmatprep.mubr.f32.mxu0 0.0
        %2702 = vmatmul.mubr.f32.gmra.mrb[0].mxu0 %v2464
        %v2703 = vpop.f32.mrb[0].mxu0
        %v2704 = vadd.f32 0.0, %v2703
        %v2705 = vpop.f32.mrb[0].mxu0
        %2706 = vmatprep.mubr.f32.mxu0 0.0
        %2707 = vmatmul.mubr.f32.gmra.mrb[0].mxu0 %v2465
        %v2708 = vpop.f32.mrb[0].mxu0
        %v2709 = vadd.f32 0.0, %v2708
        %v2710 = vpop.f32.mrb[0].mxu0
        %2711 = vmatprep.mubr.f32.mxu0 0.0
        %2712 = vmatmul.mubr.f32.gmra.mrb[0].mxu0 %v2466
        %v2713 = vpop.f32.mrb[0].mxu0
        %v2714 = vadd.f32 0.0, %v2713
        %v2715 = vpop.f32.mrb[0].mxu0
        %2716 = vmatprep.mubr.f32.mxu0 0.0
        %2717 = vmatmul.mubr.f32.gmra.mrb[0].mxu0 %v2467
        %v2718 = vpop.f32.mrb[0].mxu0
        %v2719 = vadd.f32 0.0, %v2718
        %v2720 = vpop.f32.mrb[0].mxu0
        %2721 = vmatprep.mubr.f32.mxu0 0.0
        %2722 = vmatmul.mubr.f32.gmra.mrb[0].mxu0 %v2468
        %v2723 = vpop.f32.mrb[0].mxu0
        %v2724 = vadd.f32 0.0, %v2723
        %v2725 = vpop.f32.mrb[0].mxu0
        %2726 = vmatprep.mubr.f32.mxu0 0.0
        %2727 = vmatmul.mubr.f32.gmra.mrb[0].mxu0 %v2469
        %v2728 = vpop.f32.mrb[0].mxu0
        %v2729 = vadd.f32 0.0, %v2728
        %v2730 = vpop.f32.mrb[0].mxu0
        %2731 = vdwg.mxu0
        %v2732 = vadd.f32 %v2398, %v2554
        %v2733 = vadd.f32 %v2399, %v2559
        %v2734 = vadd.f32 %v2400, %v2564
        %v2735 = vadd.f32 %v2401, %v2569
        %v2736 = vadd.f32 %v2402, %v2574
        %v2737 = vadd.f32 %v2403, %v2579
        %v2738 = vadd.f32 %v2404, %v2584
        %v2739 = vadd.f32 %v2405, %v2589
        %v2740 = vadd.f32 %v2406, %v2594
        %v2741 = vadd.f32 %v2407, %v2599
        %v2742 = vadd.f32 %v2408, %v2604
        %v2743 = vadd.f32 %v2409, %v2609
        %v2744 = vadd.f32 %v2410, %v2614
        %v2745 = vadd.f32 %v2411, %v2619
        %v2746 = vadd.f32 %v2412, %v2624
        %v2747 = vadd.f32 %v2413, %v2629
        %v2748 = vadd.f32 %v2414, %v2634
        %v2749 = vadd.f32 %v2415, %v2639
        %v2750 = vadd.f32 %v2416, %v2644
        %v2751 = vadd.f32 %v2417, %v2649
        %v2752 = vadd.f32 %v2418, %v2654
        %v2753 = vadd.f32 %v2419, %v2659
        %v2754 = vadd.f32 %v2420, %v2664
        %v2755 = vadd.f32 %v2421, %v2669
        %v2756 = vadd.f32 %v2422, %v2674
        %v2757 = vadd.f32 %v2423, %v2679
        %v2758 = vadd.f32 %v2424, %v2684
        %v2759 = vadd.f32 %v2425, %v2689
        %v2760 = vadd.f32 %v2426, %v2694
        %v2761 = vadd.f32 %v2427, %v2699
        %v2762 = vadd.f32 %v2428, %v2704
        %v2763 = vadd.f32 %v2429, %v2709
        %v2764 = vadd.f32 %v2430, %v2714
        %v2765 = vadd.f32 %v2431, %v2719
        %v2766 = vadd.f32 %v2432, %v2724
        %v2767 = vadd.f32 %v2433, %v2729
        %v2768 = vld [vmem:[%s448 + $0x2a] sm:$0xff]
        %v2769 = vld [vmem:[%s448 + $0x32] sm:$0xff]
        %v2770 = vld [vmem:[%s448 + $0x3a] sm:$0xff]
        %v2771 = vld [vmem:[%s448 + $0x42] sm:$0xff]
        %v2772 = vld [vmem:[%s448 + $0x4a] sm:$0xff]
        %v2773 = vld [vmem:[%s448 + $0x52] sm:$0xff]
        %v2774 = vld [vmem:[%s448 + $0x5a] sm:$0xff]
        %v2775 = vld [vmem:[%s448 + $0x62] sm:$0xff]
        %v2776 = vld [vmem:[%s448 + $0x6a] sm:$0xff]
        %v2777 = vld [vmem:[%s448 + $0x72] sm:$0xff]
        %v2778 = vld [vmem:[%s448 + $0x7a] sm:$0xff]
        %v2779 = vld [vmem:[%s448 + $0x82] sm:$0xff]
        %v2780 = vld [vmem:[%s448 + $0x8a] sm:$0xff]
        %v2781 = vld [vmem:[%s448 + $0x92] sm:$0xff]
        %v2782 = vld [vmem:[%s448 + $0x9a] sm:$0xff]
        %v2783 = vld [vmem:[%s448 + $0xa2] sm:$0xff]
        %v2784 = vld [vmem:[%s448 + $0xaa] sm:$0xff]
        %v2785 = vld [vmem:[%s448 + $0xb2] sm:$0xff]
        %v2786 = vld [vmem:[%s448 + $0xba] sm:$0xff]
        %v2787 = vld [vmem:[%s448 + $0xc2] sm:$0xff]
        %v2788 = vld [vmem:[%s448 + $0xca] sm:$0xff]
        %v2789 = vld [vmem:[%s448 + $0xd2] sm:$0xff]
        %v2790 = vld [vmem:[%s448 + $0xda] sm:$0xff]
        %v2791 = vld [vmem:[%s448 + $0xe2] sm:$0xff]
        %v2792 = vld [vmem:[%s448 + $0xea] sm:$0xff]
        %v2793 = vld [vmem:[%s448 + $0xf2] sm:$0xff]
        %v2794 = vld [vmem:[%s448 + $0xfa] sm:$0xff]
        %v2795 = vld [vmem:[%s448 + $0x102] sm:$0xff]
        %v2796 = vld [vmem:[%s448 + $0x10a] sm:$0xff]
        %v2797 = vld [vmem:[%s448 + $0x112] sm:$0xff]
        %v2798 = vld [vmem:[%s448 + $0x11a] sm:$0xff]
        %v2799 = vld [vmem:[%s448 + $0x122] sm:$0xff]
        %v2800 = vld [vmem:[%s448 + $0x12a] sm:$0xff]
        %v2801 = vld [vmem:[%s448 + $0x132] sm:$0xff]
        %v2802 = vld [vmem:[%s448 + $0x13a] sm:$0xff]
        %v2803 = vld [vmem:[%s448 + $0x142] sm:$0x3f]
        %s2804 = scalar_lea.vmem [#allocation6], 896
        %v2805 = vld [vmem:[%s2804] sm:$0xff]
        %v2806 = vld [vmem:[%s2804 + $0x8] sm:$0xff]
        %v2807 = vld [vmem:[%s2804 + $0x10] sm:$0xff]
        %v2808 = vld [vmem:[%s2804 + $0x18] sm:$0xff]
        %v2809 = vld [vmem:[%s2804 + $0x20] sm:$0xff]
        %v2810 = vld [vmem:[%s2804 + $0x28] sm:$0xff]
        %v2811 = vld [vmem:[%s2804 + $0x30] sm:$0xff]
        %v2812 = vld [vmem:[%s2804 + $0x38] sm:$0xff]
        %v2813 = vld [vmem:[%s2804 + $0x40] sm:$0xff]
        %v2814 = vld [vmem:[%s2804 + $0x48] sm:$0xff]
        %v2815 = vld [vmem:[%s2804 + $0x50] sm:$0xff]
        %v2816 = vld [vmem:[%s2804 + $0x58] sm:$0xff]
        %v2817 = vld [vmem:[%s2804 + $0x60] sm:$0xff]
        %v2818 = vld [vmem:[%s2804 + $0x68] sm:$0xff]
        %v2819 = vld [vmem:[%s2804 + $0x70] sm:$0xff]
        %v2820 = vld [vmem:[%s2804 + $0x78] sm:$0xff]
        %2821 = vmatprep.subr.mxu0 0.0
        %2822 = vmatpush1.msra.mxu0 %v2805
        %2823 = vmatprep.subr.mxu0 0.0
        %2824 = vmatpush1.msra.mxu0 %v2806
        %2825 = vmatprep.subr.mxu0 0.0
        %2826 = vmatpush1.msra.mxu0 %v2807
        %2827 = vmatprep.subr.mxu0 0.0
        %2828 = vmatpush1.msra.mxu0 %v2808
        %2829 = vmatprep.subr.mxu0 0.0
        %2830 = vmatpush1.msra.mxu0 %v2809
        %2831 = vmatprep.subr.mxu0 0.0
        %2832 = vmatpush1.msra.mxu0 %v2810
        %2833 = vmatprep.subr.mxu0 0.0
        %2834 = vmatpush1.msra.mxu0 %v2811
        %2835 = vmatprep.subr.mxu0 0.0
        %2836 = vmatpush1.msra.mxu0 %v2812
        %2837 = vmatprep.subr.mxu0 0.0
        %2838 = vmatpush1.msra.mxu0 %v2813
        %2839 = vmatprep.subr.mxu0 0.0
        %2840 = vmatpush1.msra.mxu0 %v2814
        %2841 = vmatprep.subr.mxu0 0.0
        %2842 = vmatpush1.msra.mxu0 %v2815
        %2843 = vmatprep.subr.mxu0 0.0
        %2844 = vmatpush1.msra.mxu0 %v2816
        %2845 = vmatprep.subr.mxu0 0.0
        %2846 = vmatpush1.msra.mxu0 %v2817
        %2847 = vmatprep.subr.mxu0 0.0
        %2848 = vmatpush1.msra.mxu0 %v2818
        %2849 = vmatprep.subr.mxu0 0.0
        %2850 = vmatpush1.msra.mxu0 %v2819
        %2851 = vmatprep.subr.mxu0 0.0
        %2852 = vmatpush1.msra.mxu0 %v2820
        %2853 = vmatprep.subr.mxu0 0.0
        %2854 = vmatpush1.msra.mxu0 0.0
        %2855 = vmatprep.subr.mxu0 0.0
        %2856 = vmatpush1.msra.mxu0 0.0
        %2857 = vmatprep.subr.mxu0 0.0
        %2858 = vmatpush1.msra.mxu0 0.0
        %2859 = vmatprep.subr.mxu0 0.0
        %2860 = vmatpush1.msra.mxu0 0.0
        %2861 = vmatprep.subr.mxu0 0.0
        %2862 = vmatpush1.msra.mxu0 0.0
        %2863 = vmatprep.subr.mxu0 0.0
        %2864 = vmatpush1.msra.mxu0 0.0
        %2865 = vmatprep.subr.mxu0 0.0
        %2866 = vmatpush1.msra.mxu0 0.0
        %2867 = vmatprep.subr.mxu0 0.0
        %2868 = vmatpush1.msra.mxu0 0.0
        %2869 = vmatprep.subr.mxu0 0.0
        %2870 = vmatpush1.msra.mxu0 0.0
        %2871 = vmatprep.subr.mxu0 0.0
        %2872 = vmatpush1.msra.mxu0 0.0
        %2873 = vmatprep.subr.mxu0 0.0
        %2874 = vmatpush1.msra.mxu0 0.0
        %2875 = vmatprep.subr.mxu0 0.0
        %2876 = vmatpush1.msra.mxu0 0.0
        %2877 = vmatprep.subr.mxu0 0.0
        %2878 = vmatpush1.msra.mxu0 0.0
        %2879 = vmatprep.subr.mxu0 0.0
        %2880 = vmatpush1.msra.mxu0 0.0
        %2881 = vmatprep.subr.mxu0 0.0
        %2882 = vmatpush1.msra.mxu0 0.0
        %2883 = vmatprep.subr.mxu0 0.0
        %2884 = vmatpush1.msra.mxu0 0.0
        %2885 = vmatprep.mubr.f32.mxu0 0.0
        %2886 = vmatmul.mubr.f32.gmra.mrb[0].mxu0 %v2768
        %v2887 = vpop.f32.mrb[0].mxu0
        %v2888 = vadd.f32 0.0, %v2887
        %v2889 = vpop.f32.mrb[0].mxu0
        %2890 = vmatprep.mubr.f32.mxu0 0.0
        %2891 = vmatmul.mubr.f32.gmra.mrb[0].mxu0 %v2769
        %v2892 = vpop.f32.mrb[0].mxu0
        %v2893 = vadd.f32 0.0, %v2892
        %v2894 = vpop.f32.mrb[0].mxu0
        %2895 = vmatprep.mubr.f32.mxu0 0.0
        %2896 = vmatmul.mubr.f32.gmra.mrb[0].mxu0 %v2770
        %v2897 = vpop.f32.mrb[0].mxu0
        %v2898 = vadd.f32 0.0, %v2897
        %v2899 = vpop.f32.mrb[0].mxu0
        %2900 = vmatprep.mubr.f32.mxu0 0.0
        %2901 = vmatmul.mubr.f32.gmra.mrb[0].mxu0 %v2771
        %v2902 = vpop.f32.mrb[0].mxu0
        %v2903 = vadd.f32 0.0, %v2902
        %v2904 = vpop.f32.mrb[0].mxu0
        %2905 = vmatprep.mubr.f32.mxu0 0.0
        %2906 = vmatmul.mubr.f32.gmra.mrb[0].mxu0 %v2772
        %v2907 = vpop.f32.mrb[0].mxu0
        %v2908 = vadd.f32 0.0, %v2907
        %v2909 = vpop.f32.mrb[0].mxu0
        %2910 = vmatprep.mubr.f32.mxu0 0.0
        %2911 = vmatmul.mubr.f32.gmra.mrb[0].mxu0 %v2773
        %v2912 = vpop.f32.mrb[0].mxu0
        %v2913 = vadd.f32 0.0, %v2912
        %v2914 = vpop.f32.mrb[0].mxu0
        %2915 = vmatprep.mubr.f32.mxu0 0.0
        %2916 = vmatmul.mubr.f32.gmra.mrb[0].mxu0 %v2774
        %v2917 = vpop.f32.mrb[0].mxu0
        %v2918 = vadd.f32 0.0, %v2917
        %v2919 = vpop.f32.mrb[0].mxu0
        %2920 = vmatprep.mubr.f32.mxu0 0.0
        %2921 = vmatmul.mubr.f32.gmra.mrb[0].mxu0 %v2775
        %v2922 = vpop.f32.mrb[0].mxu0
        %v2923 = vadd.f32 0.0, %v2922
        %v2924 = vpop.f32.mrb[0].mxu0
        %2925 = vmatprep.mubr.f32.mxu0 0.0
        %2926 = vmatmul.mubr.f32.gmra.mrb[0].mxu0 %v2776
        %v2927 = vpop.f32.mrb[0].mxu0
        %v2928 = vadd.f32 0.0, %v2927
        %v2929 = vpop.f32.mrb[0].mxu0
        %2930 = vmatprep.mubr.f32.mxu0 0.0
        %2931 = vmatmul.mubr.f32.gmra.mrb[0].mxu0 %v2777
        %v2932 = vpop.f32.mrb[0].mxu0
        %v2933 = vadd.f32 0.0, %v2932
        %v2934 = vpop.f32.mrb[0].mxu0
        %2935 = vmatprep.mubr.f32.mxu0 0.0
        %2936 = vmatmul.mubr.f32.gmra.mrb[0].mxu0 %v2778
        %v2937 = vpop.f32.mrb[0].mxu0
        %v2938 = vadd.f32 0.0, %v2937
        %v2939 = vpop.f32.mrb[0].mxu0
        %2940 = vmatprep.mubr.f32.mxu0 0.0
        %2941 = vmatmul.mubr.f32.gmra.mrb[0].mxu0 %v2779
        %v2942 = vpop.f32.mrb[0].mxu0
        %v2943 = vadd.f32 0.0, %v2942
        %v2944 = vpop.f32.mrb[0].mxu0
        %2945 = vmatprep.mubr.f32.mxu0 0.0
        %2946 = vmatmul.mubr.f32.gmra.mrb[0].mxu0 %v2780
        %v2947 = vpop.f32.mrb[0].mxu0
        %v2948 = vadd.f32 0.0, %v2947
        %v2949 = vpop.f32.mrb[0].mxu0
        %2950 = vmatprep.mubr.f32.mxu0 0.0
        %2951 = vmatmul.mubr.f32.gmra.mrb[0].mxu0 %v2781
        %v2952 = vpop.f32.mrb[0].mxu0
        %v2953 = vadd.f32 0.0, %v2952
        %v2954 = vpop.f32.mrb[0].mxu0
        %2955 = vmatprep.mubr.f32.mxu0 0.0
        %2956 = vmatmul.mubr.f32.gmra.mrb[0].mxu0 %v2782
        %v2957 = vpop.f32.mrb[0].mxu0
        %v2958 = vadd.f32 0.0, %v2957
        %v2959 = vpop.f32.mrb[0].mxu0
        %2960 = vmatprep.mubr.f32.mxu0 0.0
        %2961 = vmatmul.mubr.f32.gmra.mrb[0].mxu0 %v2783
        %v2962 = vpop.f32.mrb[0].mxu0
        %v2963 = vadd.f32 0.0, %v2962
        %v2964 = vpop.f32.mrb[0].mxu0
        %2965 = vmatprep.mubr.f32.mxu0 0.0
        %2966 = vmatmul.mubr.f32.gmra.mrb[0].mxu0 %v2784
        %v2967 = vpop.f32.mrb[0].mxu0
        %v2968 = vadd.f32 0.0, %v2967
        %v2969 = vpop.f32.mrb[0].mxu0
        %2970 = vmatprep.mubr.f32.mxu0 0.0
        %2971 = vmatmul.mubr.f32.gmra.mrb[0].mxu0 %v2785
        %v2972 = vpop.f32.mrb[0].mxu0
        %v2973 = vadd.f32 0.0, %v2972
        %v2974 = vpop.f32.mrb[0].mxu0
        %2975 = vmatprep.mubr.f32.mxu0 0.0
        %2976 = vmatmul.mubr.f32.gmra.mrb[0].mxu0 %v2786
        %v2977 = vpop.f32.mrb[0].mxu0
        %v2978 = vadd.f32 0.0, %v2977
        %v2979 = vpop.f32.mrb[0].mxu0
        %2980 = vmatprep.mubr.f32.mxu0 0.0
        %2981 = vmatmul.mubr.f32.gmra.mrb[0].mxu0 %v2787
        %v2982 = vpop.f32.mrb[0].mxu0
        %v2983 = vadd.f32 0.0, %v2982
        %v2984 = vpop.f32.mrb[0].mxu0
        %2985 = vmatprep.mubr.f32.mxu0 0.0
        %2986 = vmatmul.mubr.f32.gmra.mrb[0].mxu0 %v2788
        %v2987 = vpop.f32.mrb[0].mxu0
        %v2988 = vadd.f32 0.0, %v2987
        %v2989 = vpop.f32.mrb[0].mxu0
        %2990 = vmatprep.mubr.f32.mxu0 0.0
        %2991 = vmatmul.mubr.f32.gmra.mrb[0].mxu0 %v2789
        %v2992 = vpop.f32.mrb[0].mxu0
        %v2993 = vadd.f32 0.0, %v2992
        %v2994 = vpop.f32.mrb[0].mxu0
        %2995 = vmatprep.mubr.f32.mxu0 0.0
        %2996 = vmatmul.mubr.f32.gmra.mrb[0].mxu0 %v2790
        %v2997 = vpop.f32.mrb[0].mxu0
        %v2998 = vadd.f32 0.0, %v2997
        %v2999 = vpop.f32.mrb[0].mxu0
        %3000 = vmatprep.mubr.f32.mxu0 0.0
        %3001 = vmatmul.mubr.f32.gmra.mrb[0].mxu0 %v2791
        %v3002 = vpop.f32.mrb[0].mxu0
        %v3003 = vadd.f32 0.0, %v3002
        %v3004 = vpop.f32.mrb[0].mxu0
        %3005 = vmatprep.mubr.f32.mxu0 0.0
        %3006 = vmatmul.mubr.f32.gmra.mrb[0].mxu0 %v2792
        %v3007 = vpop.f32.mrb[0].mxu0
        %v3008 = vadd.f32 0.0, %v3007
        %v3009 = vpop.f32.mrb[0].mxu0
        %3010 = vmatprep.mubr.f32.mxu0 0.0
        %3011 = vmatmul.mubr.f32.gmra.mrb[0].mxu0 %v2793
        %v3012 = vpop.f32.mrb[0].mxu0
        %v3013 = vadd.f32 0.0, %v3012
        %v3014 = vpop.f32.mrb[0].mxu0
        %3015 = vmatprep.mubr.f32.mxu0 0.0
        %3016 = vmatmul.mubr.f32.gmra.mrb[0].mxu0 %v2794
        %v3017 = vpop.f32.mrb[0].mxu0
        %v3018 = vadd.f32 0.0, %v3017
        %v3019 = vpop.f32.mrb[0].mxu0
        %3020 = vmatprep.mubr.f32.mxu0 0.0
        %3021 = vmatmul.mubr.f32.gmra.mrb[0].mxu0 %v2795
        %v3022 = vpop.f32.mrb[0].mxu0
        %v3023 = vadd.f32 0.0, %v3022
        %v3024 = vpop.f32.mrb[0].mxu0
        %3025 = vmatprep.mubr.f32.mxu0 0.0
        %3026 = vmatmul.mubr.f32.gmra.mrb[0].mxu0 %v2796
        %v3027 = vpop.f32.mrb[0].mxu0
        %v3028 = vadd.f32 0.0, %v3027
        %v3029 = vpop.f32.mrb[0].mxu0
        %3030 = vmatprep.mubr.f32.mxu0 0.0
        %3031 = vmatmul.mubr.f32.gmra.mrb[0].mxu0 %v2797
        %v3032 = vpop.f32.mrb[0].mxu0
        %v3033 = vadd.f32 0.0, %v3032
        %v3034 = vpop.f32.mrb[0].mxu0
        %3035 = vmatprep.mubr.f32.mxu0 0.0
        %3036 = vmatmul.mubr.f32.gmra.mrb[0].mxu0 %v2798
        %v3037 = vpop.f32.mrb[0].mxu0
        %v3038 = vadd.f32 0.0, %v3037
        %v3039 = vpop.f32.mrb[0].mxu0
        %3040 = vmatprep.mubr.f32.mxu0 0.0
        %3041 = vmatmul.mubr.f32.gmra.mrb[0].mxu0 %v2799
        %v3042 = vpop.f32.mrb[0].mxu0
        %v3043 = vadd.f32 0.0, %v3042
        %v3044 = vpop.f32.mrb[0].mxu0
        %3045 = vmatprep.mubr.f32.mxu0 0.0
        %3046 = vmatmul.mubr.f32.gmra.mrb[0].mxu0 %v2800
        %v3047 = vpop.f32.mrb[0].mxu0
        %v3048 = vadd.f32 0.0, %v3047
        %v3049 = vpop.f32.mrb[0].mxu0
        %3050 = vmatprep.mubr.f32.mxu0 0.0
        %3051 = vmatmul.mubr.f32.gmra.mrb[0].mxu0 %v2801
        %v3052 = vpop.f32.mrb[0].mxu0
        %v3053 = vadd.f32 0.0, %v3052
        %v3054 = vpop.f32.mrb[0].mxu0
        %3055 = vmatprep.mubr.f32.mxu0 0.0
        %3056 = vmatmul.mubr.f32.gmra.mrb[0].mxu0 %v2802
        %v3057 = vpop.f32.mrb[0].mxu0
        %v3058 = vadd.f32 0.0, %v3057
        %v3059 = vpop.f32.mrb[0].mxu0
        %3060 = vmatprep.mubr.f32.mxu0 0.0
        %3061 = vmatmul.mubr.f32.gmra.mrb[0].mxu0 %v2803
        %v3062 = vpop.f32.mrb[0].mxu0
        %v3063 = vadd.f32 0.0, %v3062
        %v3064 = vpop.f32.mrb[0].mxu0
        %3065 = vdwg.mxu0
        %v3066 = vadd.f32 %v2732, %v2888
        %v3067 = vadd.f32 %v2733, %v2893
        %v3068 = vadd.f32 %v2734, %v2898
        %v3069 = vadd.f32 %v2735, %v2903
        %v3070 = vadd.f32 %v2736, %v2908
        %v3071 = vadd.f32 %v2737, %v2913
        %v3072 = vadd.f32 %v2738, %v2918
        %v3073 = vadd.f32 %v2739, %v2923
        %v3074 = vadd.f32 %v2740, %v2928
        %v3075 = vadd.f32 %v2741, %v2933
        %v3076 = vadd.f32 %v2742, %v2938
        %v3077 = vadd.f32 %v2743, %v2943
        %v3078 = vadd.f32 %v2744, %v2948
        %v3079 = vadd.f32 %v2745, %v2953
        %v3080 = vadd.f32 %v2746, %v2958
        %v3081 = vadd.f32 %v2747, %v2963
        %v3082 = vadd.f32 %v2748, %v2968
        %v3083 = vadd.f32 %v2749, %v2973
        %v3084 = vadd.f32 %v2750, %v2978
        %v3085 = vadd.f32 %v2751, %v2983
        %v3086 = vadd.f32 %v2752, %v2988
        %v3087 = vadd.f32 %v2753, %v2993
        %v3088 = vadd.f32 %v2754, %v2998
        %v3089 = vadd.f32 %v2755, %v3003
        %v3090 = vadd.f32 %v2756, %v3008
        %v3091 = vadd.f32 %v2757, %v3013
        %v3092 = vadd.f32 %v2758, %v3018
        %v3093 = vadd.f32 %v2759, %v3023
        %v3094 = vadd.f32 %v2760, %v3028
        %v3095 = vadd.f32 %v2761, %v3033
        %v3096 = vadd.f32 %v2762, %v3038
        %v3097 = vadd.f32 %v2763, %v3043
        %v3098 = vadd.f32 %v2764, %v3048
        %v3099 = vadd.f32 %v2765, %v3053
        %v3100 = vadd.f32 %v2766, %v3058
        %v3101 = vadd.f32 %v2767, %v3063
        %v3102 = vld [vmem:[%s448 + $0x2b] sm:$0xff]
        %v3103 = vld [vmem:[%s448 + $0x33] sm:$0xff]
        %v3104 = vld [vmem:[%s448 + $0x3b] sm:$0xff]
        %v3105 = vld [vmem:[%s448 + $0x43] sm:$0xff]
        %v3106 = vld [vmem:[%s448 + $0x4b] sm:$0xff]
        %v3107 = vld [vmem:[%s448 + $0x53] sm:$0xff]
        %v3108 = vld [vmem:[%s448 + $0x5b] sm:$0xff]
        %v3109 = vld [vmem:[%s448 + $0x63] sm:$0xff]
        %v3110 = vld [vmem:[%s448 + $0x6b] sm:$0xff]
        %v3111 = vld [vmem:[%s448 + $0x73] sm:$0xff]
        %v3112 = vld [vmem:[%s448 + $0x7b] sm:$0xff]
        %v3113 = vld [vmem:[%s448 + $0x83] sm:$0xff]
        %v3114 = vld [vmem:[%s448 + $0x8b] sm:$0xff]
        %v3115 = vld [vmem:[%s448 + $0x93] sm:$0xff]
        %v3116 = vld [vmem:[%s448 + $0x9b] sm:$0xff]
        %v3117 = vld [vmem:[%s448 + $0xa3] sm:$0xff]
        %v3118 = vld [vmem:[%s448 + $0xab] sm:$0xff]
        %v3119 = vld [vmem:[%s448 + $0xb3] sm:$0xff]
        %v3120 = vld [vmem:[%s448 + $0xbb] sm:$0xff]
        %v3121 = vld [vmem:[%s448 + $0xc3] sm:$0xff]
        %v3122 = vld [vmem:[%s448 + $0xcb] sm:$0xff]
        %v3123 = vld [vmem:[%s448 + $0xd3] sm:$0xff]
        %v3124 = vld [vmem:[%s448 + $0xdb] sm:$0xff]
        %v3125 = vld [vmem:[%s448 + $0xe3] sm:$0xff]
        %v3126 = vld [vmem:[%s448 + $0xeb] sm:$0xff]
        %v3127 = vld [vmem:[%s448 + $0xf3] sm:$0xff]
        %v3128 = vld [vmem:[%s448 + $0xfb] sm:$0xff]
        %v3129 = vld [vmem:[%s448 + $0x103] sm:$0xff]
        %v3130 = vld [vmem:[%s448 + $0x10b] sm:$0xff]
        %v3131 = vld [vmem:[%s448 + $0x113] sm:$0xff]
        %v3132 = vld [vmem:[%s448 + $0x11b] sm:$0xff]
        %v3133 = vld [vmem:[%s448 + $0x123] sm:$0xff]
        %v3134 = vld [vmem:[%s448 + $0x12b] sm:$0xff]
        %v3135 = vld [vmem:[%s448 + $0x133] sm:$0xff]
        %v3136 = vld [vmem:[%s448 + $0x13b] sm:$0xff]
        %v3137 = vld [vmem:[%s448 + $0x143] sm:$0x3f]
        %s3138 = scalar_lea.vmem [#allocation6], 1024
        %v3139 = vld [vmem:[%s3138] sm:$0xff]
        %v3140 = vld [vmem:[%s3138 + $0x8] sm:$0xff]
        %v3141 = vld [vmem:[%s3138 + $0x10] sm:$0xff]
        %v3142 = vld [vmem:[%s3138 + $0x18] sm:$0xff]
        %v3143 = vld [vmem:[%s3138 + $0x20] sm:$0xff]
        %v3144 = vld [vmem:[%s3138 + $0x28] sm:$0xff]
        %v3145 = vld [vmem:[%s3138 + $0x30] sm:$0xff]
        %v3146 = vld [vmem:[%s3138 + $0x38] sm:$0xff]
        %v3147 = vld [vmem:[%s3138 + $0x40] sm:$0xff]
        %v3148 = vld [vmem:[%s3138 + $0x48] sm:$0xff]
        %v3149 = vld [vmem:[%s3138 + $0x50] sm:$0xff]
        %v3150 = vld [vmem:[%s3138 + $0x58] sm:$0xff]
        %v3151 = vld [vmem:[%s3138 + $0x60] sm:$0xff]
        %v3152 = vld [vmem:[%s3138 + $0x68] sm:$0xff]
        %v3153 = vld [vmem:[%s3138 + $0x70] sm:$0xff]
        %v3154 = vld [vmem:[%s3138 + $0x78] sm:$0xff]
        %3155 = vmatprep.subr.mxu0 0.0
        %3156 = vmatpush1.msra.mxu0 %v3139
        %3157 = vmatprep.subr.mxu0 0.0
        %3158 = vmatpush1.msra.mxu0 %v3140
        %3159 = vmatprep.subr.mxu0 0.0
        %3160 = vmatpush1.msra.mxu0 %v3141
        %3161 = vmatprep.subr.mxu0 0.0
        %3162 = vmatpush1.msra.mxu0 %v3142
        %3163 = vmatprep.subr.mxu0 0.0
        %3164 = vmatpush1.msra.mxu0 %v3143
        %3165 = vmatprep.subr.mxu0 0.0
        %3166 = vmatpush1.msra.mxu0 %v3144
        %3167 = vmatprep.subr.mxu0 0.0
        %3168 = vmatpush1.msra.mxu0 %v3145
        %3169 = vmatprep.subr.mxu0 0.0
        %3170 = vmatpush1.msra.mxu0 %v3146
        %3171 = vmatprep.subr.mxu0 0.0
        %3172 = vmatpush1.msra.mxu0 %v3147
        %3173 = vmatprep.subr.mxu0 0.0
        %3174 = vmatpush1.msra.mxu0 %v3148
        %3175 = vmatprep.subr.mxu0 0.0
        %3176 = vmatpush1.msra.mxu0 %v3149
        %3177 = vmatprep.subr.mxu0 0.0
        %3178 = vmatpush1.msra.mxu0 %v3150
        %3179 = vmatprep.subr.mxu0 0.0
        %3180 = vmatpush1.msra.mxu0 %v3151
        %3181 = vmatprep.subr.mxu0 0.0
        %3182 = vmatpush1.msra.mxu0 %v3152
        %3183 = vmatprep.subr.mxu0 0.0
        %3184 = vmatpush1.msra.mxu0 %v3153
        %3185 = vmatprep.subr.mxu0 0.0
        %3186 = vmatpush1.msra.mxu0 %v3154
        %3187 = vmatprep.subr.mxu0 0.0
        %3188 = vmatpush1.msra.mxu0 0.0
        %3189 = vmatprep.subr.mxu0 0.0
        %3190 = vmatpush1.msra.mxu0 0.0
        %3191 = vmatprep.subr.mxu0 0.0
        %3192 = vmatpush1.msra.mxu0 0.0
        %3193 = vmatprep.subr.mxu0 0.0
        %3194 = vmatpush1.msra.mxu0 0.0
        %3195 = vmatprep.subr.mxu0 0.0
        %3196 = vmatpush1.msra.mxu0 0.0
        %3197 = vmatprep.subr.mxu0 0.0
        %3198 = vmatpush1.msra.mxu0 0.0
        %3199 = vmatprep.subr.mxu0 0.0
        %3200 = vmatpush1.msra.mxu0 0.0
        %3201 = vmatprep.subr.mxu0 0.0
        %3202 = vmatpush1.msra.mxu0 0.0
        %3203 = vmatprep.subr.mxu0 0.0
        %3204 = vmatpush1.msra.mxu0 0.0
        %3205 = vmatprep.subr.mxu0 0.0
        %3206 = vmatpush1.msra.mxu0 0.0
        %3207 = vmatprep.subr.mxu0 0.0
        %3208 = vmatpush1.msra.mxu0 0.0
        %3209 = vmatprep.subr.mxu0 0.0
        %3210 = vmatpush1.msra.mxu0 0.0
        %3211 = vmatprep.subr.mxu0 0.0
        %3212 = vmatpush1.msra.mxu0 0.0
        %3213 = vmatprep.subr.mxu0 0.0
        %3214 = vmatpush1.msra.mxu0 0.0
        %3215 = vmatprep.subr.mxu0 0.0
        %3216 = vmatpush1.msra.mxu0 0.0
        %3217 = vmatprep.subr.mxu0 0.0
        %3218 = vmatpush1.msra.mxu0 0.0
        %3219 = vmatprep.mubr.f32.mxu0 0.0
        %3220 = vmatmul.mubr.f32.gmra.mrb[0].mxu0 %v3102
        %v3221 = vpop.f32.mrb[0].mxu0
        %v3222 = vadd.f32 0.0, %v3221
        %v3223 = vpop.f32.mrb[0].mxu0
        %3224 = vmatprep.mubr.f32.mxu0 0.0
        %3225 = vmatmul.mubr.f32.gmra.mrb[0].mxu0 %v3103
        %v3226 = vpop.f32.mrb[0].mxu0
        %v3227 = vadd.f32 0.0, %v3226
        %v3228 = vpop.f32.mrb[0].mxu0
        %3229 = vmatprep.mubr.f32.mxu0 0.0
        %3230 = vmatmul.mubr.f32.gmra.mrb[0].mxu0 %v3104
        %v3231 = vpop.f32.mrb[0].mxu0
        %v3232 = vadd.f32 0.0, %v3231
        %v3233 = vpop.f32.mrb[0].mxu0
        %3234 = vmatprep.mubr.f32.mxu0 0.0
        %3235 = vmatmul.mubr.f32.gmra.mrb[0].mxu0 %v3105
        %v3236 = vpop.f32.mrb[0].mxu0
        %v3237 = vadd.f32 0.0, %v3236
        %v3238 = vpop.f32.mrb[0].mxu0
        %3239 = vmatprep.mubr.f32.mxu0 0.0
        %3240 = vmatmul.mubr.f32.gmra.mrb[0].mxu0 %v3106
        %v3241 = vpop.f32.mrb[0].mxu0
        %v3242 = vadd.f32 0.0, %v3241
        %v3243 = vpop.f32.mrb[0].mxu0
        %3244 = vmatprep.mubr.f32.mxu0 0.0
        %3245 = vmatmul.mubr.f32.gmra.mrb[0].mxu0 %v3107
        %v3246 = vpop.f32.mrb[0].mxu0
        %v3247 = vadd.f32 0.0, %v3246
        %v3248 = vpop.f32.mrb[0].mxu0
        %3249 = vmatprep.mubr.f32.mxu0 0.0
        %3250 = vmatmul.mubr.f32.gmra.mrb[0].mxu0 %v3108
        %v3251 = vpop.f32.mrb[0].mxu0
        %v3252 = vadd.f32 0.0, %v3251
        %v3253 = vpop.f32.mrb[0].mxu0
        %3254 = vmatprep.mubr.f32.mxu0 0.0
        %3255 = vmatmul.mubr.f32.gmra.mrb[0].mxu0 %v3109
        %v3256 = vpop.f32.mrb[0].mxu0
        %v3257 = vadd.f32 0.0, %v3256
        %v3258 = vpop.f32.mrb[0].mxu0
        %3259 = vmatprep.mubr.f32.mxu0 0.0
        %3260 = vmatmul.mubr.f32.gmra.mrb[0].mxu0 %v3110
        %v3261 = vpop.f32.mrb[0].mxu0
        %v3262 = vadd.f32 0.0, %v3261
        %v3263 = vpop.f32.mrb[0].mxu0
        %3264 = vmatprep.mubr.f32.mxu0 0.0
        %3265 = vmatmul.mubr.f32.gmra.mrb[0].mxu0 %v3111
        %v3266 = vpop.f32.mrb[0].mxu0
        %v3267 = vadd.f32 0.0, %v3266
        %v3268 = vpop.f32.mrb[0].mxu0
        %3269 = vmatprep.mubr.f32.mxu0 0.0
        %3270 = vmatmul.mubr.f32.gmra.mrb[0].mxu0 %v3112
        %v3271 = vpop.f32.mrb[0].mxu0
        %v3272 = vadd.f32 0.0, %v3271
        %v3273 = vpop.f32.mrb[0].mxu0
        %3274 = vmatprep.mubr.f32.mxu0 0.0
        %3275 = vmatmul.mubr.f32.gmra.mrb[0].mxu0 %v3113
        %v3276 = vpop.f32.mrb[0].mxu0
        %v3277 = vadd.f32 0.0, %v3276
        %v3278 = vpop.f32.mrb[0].mxu0
        %3279 = vmatprep.mubr.f32.mxu0 0.0
        %3280 = vmatmul.mubr.f32.gmra.mrb[0].mxu0 %v3114
        %v3281 = vpop.f32.mrb[0].mxu0
        %v3282 = vadd.f32 0.0, %v3281
        %v3283 = vpop.f32.mrb[0].mxu0
        %3284 = vmatprep.mubr.f32.mxu0 0.0
        %3285 = vmatmul.mubr.f32.gmra.mrb[0].mxu0 %v3115
        %v3286 = vpop.f32.mrb[0].mxu0
        %v3287 = vadd.f32 0.0, %v3286
        %v3288 = vpop.f32.mrb[0].mxu0
        %3289 = vmatprep.mubr.f32.mxu0 0.0
        %3290 = vmatmul.mubr.f32.gmra.mrb[0].mxu0 %v3116
        %v3291 = vpop.f32.mrb[0].mxu0
        %v3292 = vadd.f32 0.0, %v3291
        %v3293 = vpop.f32.mrb[0].mxu0
        %3294 = vmatprep.mubr.f32.mxu0 0.0
        %3295 = vmatmul.mubr.f32.gmra.mrb[0].mxu0 %v3117
        %v3296 = vpop.f32.mrb[0].mxu0
        %v3297 = vadd.f32 0.0, %v3296
        %v3298 = vpop.f32.mrb[0].mxu0
        %3299 = vmatprep.mubr.f32.mxu0 0.0
        %3300 = vmatmul.mubr.f32.gmra.mrb[0].mxu0 %v3118
        %v3301 = vpop.f32.mrb[0].mxu0
        %v3302 = vadd.f32 0.0, %v3301
        %v3303 = vpop.f32.mrb[0].mxu0
        %3304 = vmatprep.mubr.f32.mxu0 0.0
        %3305 = vmatmul.mubr.f32.gmra.mrb[0].mxu0 %v3119
        %v3306 = vpop.f32.mrb[0].mxu0
        %v3307 = vadd.f32 0.0, %v3306
        %v3308 = vpop.f32.mrb[0].mxu0
        %3309 = vmatprep.mubr.f32.mxu0 0.0
        %3310 = vmatmul.mubr.f32.gmra.mrb[0].mxu0 %v3120
        %v3311 = vpop.f32.mrb[0].mxu0
        %v3312 = vadd.f32 0.0, %v3311
        %v3313 = vpop.f32.mrb[0].mxu0
        %3314 = vmatprep.mubr.f32.mxu0 0.0
        %3315 = vmatmul.mubr.f32.gmra.mrb[0].mxu0 %v3121
        %v3316 = vpop.f32.mrb[0].mxu0
        %v3317 = vadd.f32 0.0, %v3316
        %v3318 = vpop.f32.mrb[0].mxu0
        %3319 = vmatprep.mubr.f32.mxu0 0.0
        %3320 = vmatmul.mubr.f32.gmra.mrb[0].mxu0 %v3122
        %v3321 = vpop.f32.mrb[0].mxu0
        %v3322 = vadd.f32 0.0, %v3321
        %v3323 = vpop.f32.mrb[0].mxu0
        %3324 = vmatprep.mubr.f32.mxu0 0.0
        %3325 = vmatmul.mubr.f32.gmra.mrb[0].mxu0 %v3123
        %v3326 = vpop.f32.mrb[0].mxu0
        %v3327 = vadd.f32 0.0, %v3326
        %v3328 = vpop.f32.mrb[0].mxu0
        %3329 = vmatprep.mubr.f32.mxu0 0.0
        %3330 = vmatmul.mubr.f32.gmra.mrb[0].mxu0 %v3124
        %v3331 = vpop.f32.mrb[0].mxu0
        %v3332 = vadd.f32 0.0, %v3331
        %v3333 = vpop.f32.mrb[0].mxu0
        %3334 = vmatprep.mubr.f32.mxu0 0.0
        %3335 = vmatmul.mubr.f32.gmra.mrb[0].mxu0 %v3125
        %v3336 = vpop.f32.mrb[0].mxu0
        %v3337 = vadd.f32 0.0, %v3336
        %v3338 = vpop.f32.mrb[0].mxu0
        %3339 = vmatprep.mubr.f32.mxu0 0.0
        %3340 = vmatmul.mubr.f32.gmra.mrb[0].mxu0 %v3126
        %v3341 = vpop.f32.mrb[0].mxu0
        %v3342 = vadd.f32 0.0, %v3341
        %v3343 = vpop.f32.mrb[0].mxu0
        %3344 = vmatprep.mubr.f32.mxu0 0.0
        %3345 = vmatmul.mubr.f32.gmra.mrb[0].mxu0 %v3127
        %v3346 = vpop.f32.mrb[0].mxu0
        %v3347 = vadd.f32 0.0, %v3346
        %v3348 = vpop.f32.mrb[0].mxu0
        %3349 = vmatprep.mubr.f32.mxu0 0.0
        %3350 = vmatmul.mubr.f32.gmra.mrb[0].mxu0 %v3128
        %v3351 = vpop.f32.mrb[0].mxu0
        %v3352 = vadd.f32 0.0, %v3351
        %v3353 = vpop.f32.mrb[0].mxu0
        %3354 = vmatprep.mubr.f32.mxu0 0.0
        %3355 = vmatmul.mubr.f32.gmra.mrb[0].mxu0 %v3129
        %v3356 = vpop.f32.mrb[0].mxu0
        %v3357 = vadd.f32 0.0, %v3356
        %v3358 = vpop.f32.mrb[0].mxu0
        %3359 = vmatprep.mubr.f32.mxu0 0.0
        %3360 = vmatmul.mubr.f32.gmra.mrb[0].mxu0 %v3130
        %v3361 = vpop.f32.mrb[0].mxu0
        %v3362 = vadd.f32 0.0, %v3361
        %v3363 = vpop.f32.mrb[0].mxu0
        %3364 = vmatprep.mubr.f32.mxu0 0.0
        %3365 = vmatmul.mubr.f32.gmra.mrb[0].mxu0 %v3131
        %v3366 = vpop.f32.mrb[0].mxu0
        %v3367 = vadd.f32 0.0, %v3366
        %v3368 = vpop.f32.mrb[0].mxu0
        %3369 = vmatprep.mubr.f32.mxu0 0.0
        %3370 = vmatmul.mubr.f32.gmra.mrb[0].mxu0 %v3132
        %v3371 = vpop.f32.mrb[0].mxu0
        %v3372 = vadd.f32 0.0, %v3371
        %v3373 = vpop.f32.mrb[0].mxu0
        %3374 = vmatprep.mubr.f32.mxu0 0.0
        %3375 = vmatmul.mubr.f32.gmra.mrb[0].mxu0 %v3133
        %v3376 = vpop.f32.mrb[0].mxu0
        %v3377 = vadd.f32 0.0, %v3376
        %v3378 = vpop.f32.mrb[0].mxu0
        %3379 = vmatprep.mubr.f32.mxu0 0.0
        %3380 = vmatmul.mubr.f32.gmra.mrb[0].mxu0 %v3134
        %v3381 = vpop.f32.mrb[0].mxu0
        %v3382 = vadd.f32 0.0, %v3381
        %v3383 = vpop.f32.mrb[0].mxu0
        %3384 = vmatprep.mubr.f32.mxu0 0.0
        %3385 = vmatmul.mubr.f32.gmra.mrb[0].mxu0 %v3135
        %v3386 = vpop.f32.mrb[0].mxu0
        %v3387 = vadd.f32 0.0, %v3386
        %v3388 = vpop.f32.mrb[0].mxu0
        %3389 = vmatprep.mubr.f32.mxu0 0.0
        %3390 = vmatmul.mubr.f32.gmra.mrb[0].mxu0 %v3136
        %v3391 = vpop.f32.mrb[0].mxu0
        %v3392 = vadd.f32 0.0, %v3391
        %v3393 = vpop.f32.mrb[0].mxu0
        %3394 = vmatprep.mubr.f32.mxu0 0.0
        %3395 = vmatmul.mubr.f32.gmra.mrb[0].mxu0 %v3137
        %v3396 = vpop.f32.mrb[0].mxu0
        %v3397 = vadd.f32 0.0, %v3396
        %v3398 = vpop.f32.mrb[0].mxu0
        %3399 = vdwg.mxu0
        %v3400 = vadd.f32 %v3066, %v3222
        %v3401 = vadd.f32 %v3067, %v3227
        %v3402 = vadd.f32 %v3068, %v3232
        %v3403 = vadd.f32 %v3069, %v3237
        %v3404 = vadd.f32 %v3070, %v3242
        %v3405 = vadd.f32 %v3071, %v3247
        %v3406 = vadd.f32 %v3072, %v3252
        %v3407 = vadd.f32 %v3073, %v3257
        %v3408 = vadd.f32 %v3074, %v3262
        %v3409 = vadd.f32 %v3075, %v3267
        %v3410 = vadd.f32 %v3076, %v3272
        %v3411 = vadd.f32 %v3077, %v3277
        %v3412 = vadd.f32 %v3078, %v3282
        %v3413 = vadd.f32 %v3079, %v3287
        %v3414 = vadd.f32 %v3080, %v3292
        %v3415 = vadd.f32 %v3081, %v3297
        %v3416 = vadd.f32 %v3082, %v3302
        %v3417 = vadd.f32 %v3083, %v3307
        %v3418 = vadd.f32 %v3084, %v3312
        %v3419 = vadd.f32 %v3085, %v3317
        %v3420 = vadd.f32 %v3086, %v3322
        %v3421 = vadd.f32 %v3087, %v3327
        %v3422 = vadd.f32 %v3088, %v3332
        %v3423 = vadd.f32 %v3089, %v3337
        %v3424 = vadd.f32 %v3090, %v3342
        %v3425 = vadd.f32 %v3091, %v3347
        %v3426 = vadd.f32 %v3092, %v3352
        %v3427 = vadd.f32 %v3093, %v3357
        %v3428 = vadd.f32 %v3094, %v3362
        %v3429 = vadd.f32 %v3095, %v3367
        %v3430 = vadd.f32 %v3096, %v3372
        %v3431 = vadd.f32 %v3097, %v3377
        %v3432 = vadd.f32 %v3098, %v3382
        %v3433 = vadd.f32 %v3099, %v3387
        %v3434 = vadd.f32 %v3100, %v3392
        %v3435 = vadd.f32 %v3101, %v3397
        %v3436 = vld [vmem:[%s2] sm:$0x1]
        %v3438 = vlaneseq
        %v3439 = vshrl.u32 %v3438, 7
        %v3440 = vsub.s32 0, %v3439
        %v3441 = vrot.slane %v3436, %v3440
        %v3443 = vmul.f32 %v3400, %v3441
        %v3444 = vmul.f32 %v3401, %v3441
        %v3445 = vmul.f32 %v3402, %v3441
        %v3446 = vmul.f32 %v3403, %v3441
        %v3447 = vmul.f32 %v3404, %v3441
        %v3448 = vmul.f32 %v3405, %v3441
        %v3449 = vmul.f32 %v3406, %v3441
        %v3450 = vmul.f32 %v3407, %v3441
        %v3451 = vmul.f32 %v3408, %v3441
        %v3452 = vmul.f32 %v3409, %v3441
        %v3453 = vmul.f32 %v3410, %v3441
        %v3454 = vmul.f32 %v3411, %v3441
        %v3455 = vmul.f32 %v3412, %v3441
        %v3456 = vmul.f32 %v3413, %v3441
        %v3457 = vmul.f32 %v3414, %v3441
        %v3458 = vmul.f32 %v3415, %v3441
        %v3459 = vmul.f32 %v3416, %v3441
        %v3460 = vmul.f32 %v3417, %v3441
        %v3461 = vmul.f32 %v3418, %v3441
        %v3462 = vmul.f32 %v3419, %v3441
        %v3463 = vmul.f32 %v3420, %v3441
        %v3464 = vmul.f32 %v3421, %v3441
        %v3465 = vmul.f32 %v3422, %v3441
        %v3466 = vmul.f32 %v3423, %v3441
        %v3467 = vmul.f32 %v3424, %v3441
        %v3468 = vmul.f32 %v3425, %v3441
        %v3469 = vmul.f32 %v3426, %v3441
        %v3470 = vmul.f32 %v3427, %v3441
        %v3471 = vmul.f32 %v3428, %v3441
        %v3472 = vmul.f32 %v3429, %v3441
        %v3473 = vmul.f32 %v3430, %v3441
        %v3474 = vmul.f32 %v3431, %v3441
        %v3475 = vmul.f32 %v3432, %v3441
        %v3476 = vmul.f32 %v3433, %v3441
        %v3477 = vmul.f32 %v3434, %v3441
        %v3478 = vmul.f32 %v3435, %v3441
        %v3479 = vld [vmem:[%s3] sm:$0x1]
        %v3481 = vlaneseq
        %v3482 = vshrl.u32 %v3481, 7
        %v3483 = vsub.s32 0, %v3482
        %v3484 = vrot.slane %v3479, %v3483
        %v3486 = vadd.f32 %v3443, %v3484
        %v3487 = vadd.f32 %v3444, %v3484
        %v3488 = vadd.f32 %v3445, %v3484
        %v3489 = vadd.f32 %v3446, %v3484
        %v3490 = vadd.f32 %v3447, %v3484
        %v3491 = vadd.f32 %v3448, %v3484
        %v3492 = vadd.f32 %v3449, %v3484
        %v3493 = vadd.f32 %v3450, %v3484
        %v3494 = vadd.f32 %v3451, %v3484
        %v3495 = vadd.f32 %v3452, %v3484
        %v3496 = vadd.f32 %v3453, %v3484
        %v3497 = vadd.f32 %v3454, %v3484
        %v3498 = vadd.f32 %v3455, %v3484
        %v3499 = vadd.f32 %v3456, %v3484
        %v3500 = vadd.f32 %v3457, %v3484
        %v3501 = vadd.f32 %v3458, %v3484
        %v3502 = vadd.f32 %v3459, %v3484
        %v3503 = vadd.f32 %v3460, %v3484
        %v3504 = vadd.f32 %v3461, %v3484
        %v3505 = vadd.f32 %v3462, %v3484
        %v3506 = vadd.f32 %v3463, %v3484
        %v3507 = vadd.f32 %v3464, %v3484
        %v3508 = vadd.f32 %v3465, %v3484
        %v3509 = vadd.f32 %v3466, %v3484
        %v3510 = vadd.f32 %v3467, %v3484
        %v3511 = vadd.f32 %v3468, %v3484
        %v3512 = vadd.f32 %v3469, %v3484
        %v3513 = vadd.f32 %v3470, %v3484
        %v3514 = vadd.f32 %v3471, %v3484
        %v3515 = vadd.f32 %v3472, %v3484
        %v3516 = vadd.f32 %v3473, %v3484
        %v3517 = vadd.f32 %v3474, %v3484
        %v3518 = vadd.f32 %v3475, %v3484
        %v3519 = vadd.f32 %v3476, %v3484
        %v3520 = vadd.f32 %v3477, %v3484
        %v3521 = vadd.f32 %v3478, %v3484
        %v3522 = vmax.f32 %v3486, 0.0
        %v3523 = vmax.f32 %v3487, 0.0
        %v3524 = vmax.f32 %v3488, 0.0
        %v3525 = vmax.f32 %v3489, 0.0
        %v3526 = vmax.f32 %v3490, 0.0
        %v3527 = vmax.f32 %v3491, 0.0
        %v3528 = vmax.f32 %v3492, 0.0
        %v3529 = vmax.f32 %v3493, 0.0
        %v3530 = vmax.f32 %v3494, 0.0
        %v3531 = vmax.f32 %v3495, 0.0
        %v3532 = vmax.f32 %v3496, 0.0
        %v3533 = vmax.f32 %v3497, 0.0
        %v3534 = vmax.f32 %v3498, 0.0
        %v3535 = vmax.f32 %v3499, 0.0
        %v3536 = vmax.f32 %v3500, 0.0
        %v3537 = vmax.f32 %v3501, 0.0
        %v3538 = vmax.f32 %v3502, 0.0
        %v3539 = vmax.f32 %v3503, 0.0
        %v3540 = vmax.f32 %v3504, 0.0
        %v3541 = vmax.f32 %v3505, 0.0
        %v3542 = vmax.f32 %v3506, 0.0
        %v3543 = vmax.f32 %v3507, 0.0
        %v3544 = vmax.f32 %v3508, 0.0
        %v3545 = vmax.f32 %v3509, 0.0
        %v3546 = vmax.f32 %v3510, 0.0
        %v3547 = vmax.f32 %v3511, 0.0
        %v3548 = vmax.f32 %v3512, 0.0
        %v3549 = vmax.f32 %v3513, 0.0
        %v3550 = vmax.f32 %v3514, 0.0
        %v3551 = vmax.f32 %v3515, 0.0
        %v3552 = vmax.f32 %v3516, 0.0
        %v3553 = vmax.f32 %v3517, 0.0
        %v3554 = vmax.f32 %v3518, 0.0
        %v3555 = vmax.f32 %v3519, 0.0
        %v3556 = vmax.f32 %v3520, 0.0
        %v3557 = vmax.f32 %v3521, 0.0
        %v3558 = vld [vmem:[%s10] sm:$0xff]
        %v3559 = vld [vmem:[%s10 + $0x8] sm:$0xff]
        %v3560 = vld [vmem:[%s10 + $0x10] sm:$0xff]
        %v3561 = vld [vmem:[%s10 + $0x18] sm:$0xff]
        %v3562 = vld [vmem:[%s10 + $0x20] sm:$0xff]
        %v3563 = vld [vmem:[%s10 + $0x28] sm:$0xff]
        %v3564 = vld [vmem:[%s10 + $0x30] sm:$0xff]
        %v3565 = vld [vmem:[%s10 + $0x38] sm:$0xff]
        %v3566 = vld [vmem:[%s10 + $0x40] sm:$0xff]
        %v3567 = vld [vmem:[%s10 + $0x48] sm:$0xff]
        %v3568 = vld [vmem:[%s10 + $0x50] sm:$0xff]
        %v3569 = vld [vmem:[%s10 + $0x58] sm:$0xff]
        %v3570 = vld [vmem:[%s10 + $0x60] sm:$0xff]
        %v3571 = vld [vmem:[%s10 + $0x68] sm:$0xff]
        %v3572 = vld [vmem:[%s10 + $0x70] sm:$0xff]
        %v3573 = vld [vmem:[%s10 + $0x78] sm:$0xff]
        %v3574 = vld [vmem:[%s10 + $0x80] sm:$0xff]
        %v3575 = vld [vmem:[%s10 + $0x88] sm:$0xff]
        %v3576 = vld [vmem:[%s10 + $0x90] sm:$0xff]
        %v3577 = vld [vmem:[%s10 + $0x98] sm:$0xff]
        %v3578 = vld [vmem:[%s10 + $0xa0] sm:$0xff]
        %v3579 = vld [vmem:[%s10 + $0xa8] sm:$0xff]
        %v3580 = vld [vmem:[%s10 + $0xb0] sm:$0xff]
        %v3581 = vld [vmem:[%s10 + $0xb8] sm:$0xff]
        %v3582 = vld [vmem:[%s10 + $0xc0] sm:$0xff]
        %v3583 = vld [vmem:[%s10 + $0xc8] sm:$0xff]
        %v3584 = vld [vmem:[%s10 + $0xd0] sm:$0xff]
        %v3585 = vld [vmem:[%s10 + $0xd8] sm:$0xff]
        %v3586 = vld [vmem:[%s10 + $0xe0] sm:$0xff]
        %v3587 = vld [vmem:[%s10 + $0xe8] sm:$0xff]
        %v3588 = vld [vmem:[%s10 + $0xf0] sm:$0xff]
        %v3589 = vld [vmem:[%s10 + $0xf8] sm:$0xff]
        %v3590 = vld [vmem:[%s10 + $0x100] sm:$0xff]
        %v3591 = vld [vmem:[%s10 + $0x108] sm:$0xff]
        %v3592 = vld [vmem:[%s10 + $0x110] sm:$0xff]
        %v3593 = vld [vmem:[%s10 + $0x118] sm:$0x3f]
        %3595 = vset.pattern.permute.xlu0 0
        %3596 = vperm.xlu0 %3595, %v3558
        %v3597 = vpop.permute.xlu0 %3596
        %3600 = vset.pattern.permute.xlu0 0
        %3601 = vperm.xlu0 %3600, %v3559
        %v3602 = vpop.permute.xlu0 %3601
        %3605 = vset.pattern.permute.xlu0 0
        %3606 = vperm.xlu0 %3605, %v3560
        %v3607 = vpop.permute.xlu0 %3606
        %3610 = vset.pattern.permute.xlu0 0
        %3611 = vperm.xlu0 %3610, %v3561
        %v3612 = vpop.permute.xlu0 %3611
        %3615 = vset.pattern.permute.xlu0 0
        %3616 = vperm.xlu0 %3615, %v3562
        %v3617 = vpop.permute.xlu0 %3616
        %3620 = vset.pattern.permute.xlu0 0
        %3621 = vperm.xlu0 %3620, %v3563
        %v3622 = vpop.permute.xlu0 %3621
        %3625 = vset.pattern.permute.xlu0 0
        %3626 = vperm.xlu0 %3625, %v3564
        %v3627 = vpop.permute.xlu0 %3626
        %3630 = vset.pattern.permute.xlu0 0
        %3631 = vperm.xlu0 %3630, %v3565
        %v3632 = vpop.permute.xlu0 %3631
        %3635 = vset.pattern.permute.xlu0 0
        %3636 = vperm.xlu0 %3635, %v3566
        %v3637 = vpop.permute.xlu0 %3636
        %3640 = vset.pattern.permute.xlu0 0
        %3641 = vperm.xlu0 %3640, %v3567
        %v3642 = vpop.permute.xlu0 %3641
        %3645 = vset.pattern.permute.xlu0 0
        %3646 = vperm.xlu0 %3645, %v3568
        %v3647 = vpop.permute.xlu0 %3646
        %3650 = vset.pattern.permute.xlu0 0
        %3651 = vperm.xlu0 %3650, %v3569
        %v3652 = vpop.permute.xlu0 %3651
        %3655 = vset.pattern.permute.xlu0 0
        %3656 = vperm.xlu0 %3655, %v3570
        %v3657 = vpop.permute.xlu0 %3656
        %3660 = vset.pattern.permute.xlu0 0
        %3661 = vperm.xlu0 %3660, %v3571
        %v3662 = vpop.permute.xlu0 %3661
        %3665 = vset.pattern.permute.xlu0 0
        %3666 = vperm.xlu0 %3665, %v3572
        %v3667 = vpop.permute.xlu0 %3666
        %3670 = vset.pattern.permute.xlu0 0
        %3671 = vperm.xlu0 %3670, %v3573
        %v3672 = vpop.permute.xlu0 %3671
        %3675 = vset.pattern.permute.xlu0 0
        %3676 = vperm.xlu0 %3675, %v3574
        %v3677 = vpop.permute.xlu0 %3676
        %3680 = vset.pattern.permute.xlu0 0
        %3681 = vperm.xlu0 %3680, %v3575
        %v3682 = vpop.permute.xlu0 %3681
        %3685 = vset.pattern.permute.xlu0 0
        %3686 = vperm.xlu0 %3685, %v3576
        %v3687 = vpop.permute.xlu0 %3686
        %3690 = vset.pattern.permute.xlu0 0
        %3691 = vperm.xlu0 %3690, %v3577
        %v3692 = vpop.permute.xlu0 %3691
        %3695 = vset.pattern.permute.xlu0 0
        %3696 = vperm.xlu0 %3695, %v3578
        %v3697 = vpop.permute.xlu0 %3696
        %3700 = vset.pattern.permute.xlu0 0
        %3701 = vperm.xlu0 %3700, %v3579
        %v3702 = vpop.permute.xlu0 %3701
        %3705 = vset.pattern.permute.xlu0 0
        %3706 = vperm.xlu0 %3705, %v3580
        %v3707 = vpop.permute.xlu0 %3706
        %3710 = vset.pattern.permute.xlu0 0
        %3711 = vperm.xlu0 %3710, %v3581
        %v3712 = vpop.permute.xlu0 %3711
        %3715 = vset.pattern.permute.xlu0 0
        %3716 = vperm.xlu0 %3715, %v3582
        %v3717 = vpop.permute.xlu0 %3716
        %3720 = vset.pattern.permute.xlu0 0
        %3721 = vperm.xlu0 %3720, %v3583
        %v3722 = vpop.permute.xlu0 %3721
        %3725 = vset.pattern.permute.xlu0 0
        %3726 = vperm.xlu0 %3725, %v3584
        %v3727 = vpop.permute.xlu0 %3726
        %3730 = vset.pattern.permute.xlu0 0
        %3731 = vperm.xlu0 %3730, %v3585
        %v3732 = vpop.permute.xlu0 %3731
        %3735 = vset.pattern.permute.xlu0 0
        %3736 = vperm.xlu0 %3735, %v3586
        %v3737 = vpop.permute.xlu0 %3736
        %3740 = vset.pattern.permute.xlu0 0
        %3741 = vperm.xlu0 %3740, %v3587
        %v3742 = vpop.permute.xlu0 %3741
        %3745 = vset.pattern.permute.xlu0 0
        %3746 = vperm.xlu0 %3745, %v3588
        %v3747 = vpop.permute.xlu0 %3746
        %3750 = vset.pattern.permute.xlu0 0
        %3751 = vperm.xlu0 %3750, %v3589
        %v3752 = vpop.permute.xlu0 %3751
        %3755 = vset.pattern.permute.xlu0 0
        %3756 = vperm.xlu0 %3755, %v3590
        %v3757 = vpop.permute.xlu0 %3756
        %3760 = vset.pattern.permute.xlu0 0
        %3761 = vperm.xlu0 %3760, %v3591
        %v3762 = vpop.permute.xlu0 %3761
        %3765 = vset.pattern.permute.xlu0 0
        %3766 = vperm.xlu0 %3765, %v3592
        %v3767 = vpop.permute.xlu0 %3766
        %3770 = vset.pattern.permute.xlu0 0
        %3771 = vperm.xlu0 %3770, %v3593
        %v3772 = vpop.permute.xlu0 %3771
        %v3774 = vmul.f32 %v3522, %v3597
        %v3775 = vmul.f32 %v3523, %v3602
        %v3776 = vmul.f32 %v3524, %v3607
        %v3777 = vmul.f32 %v3525, %v3612
        %v3778 = vmul.f32 %v3526, %v3617
        %v3779 = vmul.f32 %v3527, %v3622
        %v3780 = vmul.f32 %v3528, %v3627
        %v3781 = vmul.f32 %v3529, %v3632
        %v3782 = vmul.f32 %v3530, %v3637
        %v3783 = vmul.f32 %v3531, %v3642
        %v3784 = vmul.f32 %v3532, %v3647
        %v3785 = vmul.f32 %v3533, %v3652
        %v3786 = vmul.f32 %v3534, %v3657
        %v3787 = vmul.f32 %v3535, %v3662
        %v3788 = vmul.f32 %v3536, %v3667
        %v3789 = vmul.f32 %v3537, %v3672
        %v3790 = vmul.f32 %v3538, %v3677
        %v3791 = vmul.f32 %v3539, %v3682
        %v3792 = vmul.f32 %v3540, %v3687
        %v3793 = vmul.f32 %v3541, %v3692
        %v3794 = vmul.f32 %v3542, %v3697
        %v3795 = vmul.f32 %v3543, %v3702
        %v3796 = vmul.f32 %v3544, %v3707
        %v3797 = vmul.f32 %v3545, %v3712
        %v3798 = vmul.f32 %v3546, %v3717
        %v3799 = vmul.f32 %v3547, %v3722
        %v3800 = vmul.f32 %v3548, %v3727
        %v3801 = vmul.f32 %v3549, %v3732
        %v3802 = vmul.f32 %v3550, %v3737
        %v3803 = vmul.f32 %v3551, %v3742
        %v3804 = vmul.f32 %v3552, %v3747
        %v3805 = vmul.f32 %v3553, %v3752
        %v3806 = vmul.f32 %v3554, %v3757
        %v3807 = vmul.f32 %v3555, %v3762
        %v3808 = vmul.f32 %v3556, %v3767
        %v3809 = vmul.f32 %v3557, %v3772
        %3810 = vst [vmem:[#allocation2] sm:$0xff] 0.0
        %3811 = vst [vmem:[#allocation2 + $0x8] sm:$0xff] 0.0
        %3812 = vst [vmem:[#allocation2 + $0x10] sm:$0xff] 0.0
        %3813 = vst [vmem:[#allocation2 + $0x130] sm:$0xff] 0.0
        %3814 = vst [vmem:[#allocation2 + $0x138] sm:$0xff] 0.0
        %3815 = vst [vmem:[#allocation2 + $0x140] sm:$0xff] 0.0
        %3816 = vst [vmem:[#allocation2 + $0x148] sm:$0xff] 0.0
        %3817 = vst [vmem:[#allocation2 + $0x18] sm:$0xff] %v3774
        %3818 = vst [vmem:[#allocation2 + $0x20] sm:$0xff] %v3775
        %3819 = vst [vmem:[#allocation2 + $0x28] sm:$0xff] %v3776
        %3820 = vst [vmem:[#allocation2 + $0x30] sm:$0xff] %v3777
        %3821 = vst [vmem:[#allocation2 + $0x38] sm:$0xff] %v3778
        %3822 = vst [vmem:[#allocation2 + $0x40] sm:$0xff] %v3779
        %3823 = vst [vmem:[#allocation2 + $0x48] sm:$0xff] %v3780
        %3824 = vst [vmem:[#allocation2 + $0x50] sm:$0xff] %v3781
        %3825 = vst [vmem:[#allocation2 + $0x58] sm:$0xff] %v3782
        %3826 = vst [vmem:[#allocation2 + $0x60] sm:$0xff] %v3783
        %3827 = vst [vmem:[#allocation2 + $0x68] sm:$0xff] %v3784
        %3828 = vst [vmem:[#allocation2 + $0x70] sm:$0xff] %v3785
        %3829 = vst [vmem:[#allocation2 + $0x78] sm:$0xff] %v3786
        %3830 = vst [vmem:[#allocation2 + $0x80] sm:$0xff] %v3787
        %3831 = vst [vmem:[#allocation2 + $0x88] sm:$0xff] %v3788
        %3832 = vst [vmem:[#allocation2 + $0x90] sm:$0xff] %v3789
        %3833 = vst [vmem:[#allocation2 + $0x98] sm:$0xff] %v3790
        %3834 = vst [vmem:[#allocation2 + $0xa0] sm:$0xff] %v3791
        %3835 = vst [vmem:[#allocation2 + $0xa8] sm:$0xff] %v3792
        %3836 = vst [vmem:[#allocation2 + $0xb0] sm:$0xff] %v3793
        %3837 = vst [vmem:[#allocation2 + $0xb8] sm:$0xff] %v3794
        %3838 = vst [vmem:[#allocation2 + $0xc0] sm:$0xff] %v3795
        %3839 = vst [vmem:[#allocation2 + $0xc8] sm:$0xff] %v3796
        %3840 = vst [vmem:[#allocation2 + $0xd0] sm:$0xff] %v3797
        %3841 = vst [vmem:[#allocation2 + $0xd8] sm:$0xff] %v3798
        %3842 = vst [vmem:[#allocation2 + $0xe0] sm:$0xff] %v3799
        %3843 = vst [vmem:[#allocation2 + $0xe8] sm:$0xff] %v3800
        %3844 = vst [vmem:[#allocation2 + $0xf0] sm:$0xff] %v3801
        %3845 = vst [vmem:[#allocation2 + $0xf8] sm:$0xff] %v3802
        %3846 = vst [vmem:[#allocation2 + $0x100] sm:$0xff] %v3803
        %3847 = vst [vmem:[#allocation2 + $0x108] sm:$0xff] %v3804
        %3848 = vst [vmem:[#allocation2 + $0x110] sm:$0xff] %v3805
        %3849 = vst [vmem:[#allocation2 + $0x118] sm:$0xff] %v3806
        %3850 = vst [vmem:[#allocation2 + $0x120] sm:$0xff] %v3807
        %3851 = vst [vmem:[#allocation2 + $0x128] sm:$0xff] %v3808
        %3852 = vst [vmem:[#allocation2 + $0x130] sm:$0x3f] %v3809
        %v3853 = vld [vmem:[#allocation2 + $0x5] sm:$0xff]
        %v3854 = vld [vmem:[#allocation2 + $0xd] sm:$0xff]
        %v3855 = vld [vmem:[#allocation2 + $0x15] sm:$0xff]
        %v3856 = vld [vmem:[#allocation2 + $0x1d] sm:$0xff]
        %v3857 = vld [vmem:[#allocation2 + $0x25] sm:$0xff]
        %v3858 = vld [vmem:[#allocation2 + $0x2d] sm:$0xff]
        %v3859 = vld [vmem:[#allocation2 + $0x35] sm:$0xff]
        %v3860 = vld [vmem:[#allocation2 + $0x3d] sm:$0xff]
        %v3861 = vld [vmem:[#allocation2 + $0x45] sm:$0xff]
        %v3862 = vld [vmem:[#allocation2 + $0x4d] sm:$0xff]
        %v3863 = vld [vmem:[#allocation2 + $0x55] sm:$0xff]
        %v3864 = vld [vmem:[#allocation2 + $0x5d] sm:$0xff]
        %v3865 = vld [vmem:[#allocation2 + $0x65] sm:$0xff]
        %v3866 = vld [vmem:[#allocation2 + $0x6d] sm:$0xff]
        %v3867 = vld [vmem:[#allocation2 + $0x75] sm:$0xff]
        %v3868 = vld [vmem:[#allocation2 + $0x7d] sm:$0xff]
        %v3869 = vld [vmem:[#allocation2 + $0x85] sm:$0xff]
        %v3870 = vld [vmem:[#allocation2 + $0x8d] sm:$0xff]
        %v3871 = vld [vmem:[#allocation2 + $0x95] sm:$0xff]
        %v3872 = vld [vmem:[#allocation2 + $0x9d] sm:$0xff]
        %v3873 = vld [vmem:[#allocation2 + $0xa5] sm:$0xff]
        %v3874 = vld [vmem:[#allocation2 + $0xad] sm:$0xff]
        %v3875 = vld [vmem:[#allocation2 + $0xb5] sm:$0xff]
        %v3876 = vld [vmem:[#allocation2 + $0xbd] sm:$0xff]
        %v3877 = vld [vmem:[#allocation2 + $0xc5] sm:$0xff]
        %v3878 = vld [vmem:[#allocation2 + $0xcd] sm:$0xff]
        %v3879 = vld [vmem:[#allocation2 + $0xd5] sm:$0xff]
        %v3880 = vld [vmem:[#allocation2 + $0xdd] sm:$0xff]
        %v3881 = vld [vmem:[#allocation2 + $0xe5] sm:$0xff]
        %v3882 = vld [vmem:[#allocation2 + $0xed] sm:$0xff]
        %v3883 = vld [vmem:[#allocation2 + $0xf5] sm:$0xff]
        %v3884 = vld [vmem:[#allocation2 + $0xfd] sm:$0xff]
        %v3885 = vld [vmem:[#allocation2 + $0x105] sm:$0xff]
        %v3886 = vld [vmem:[#allocation2 + $0x10d] sm:$0xff]
        %v3887 = vld [vmem:[#allocation2 + $0x115] sm:$0xff]
        %v3888 = vld [vmem:[#allocation2 + $0x11d] sm:$0x3f]
        %v3889 = vld [vmem:[#allocation8] sm:$0xff]
        %v3890 = vld [vmem:[#allocation8 + $0x8] sm:$0xff]
        %v3891 = vld [vmem:[#allocation8 + $0x10] sm:$0xff]
        %v3892 = vld [vmem:[#allocation8 + $0x18] sm:$0xff]
        %v3893 = vld [vmem:[#allocation8 + $0x20] sm:$0xff]
        %v3894 = vld [vmem:[#allocation8 + $0x28] sm:$0xff]
        %v3895 = vld [vmem:[#allocation8 + $0x30] sm:$0xff]
        %v3896 = vld [vmem:[#allocation8 + $0x38] sm:$0xff]
        %v3897 = vld [vmem:[#allocation8 + $0x40] sm:$0xff]
        %v3898 = vld [vmem:[#allocation8 + $0x48] sm:$0xff]
        %v3899 = vld [vmem:[#allocation8 + $0x50] sm:$0xff]
        %v3900 = vld [vmem:[#allocation8 + $0x58] sm:$0xff]
        %v3901 = vld [vmem:[#allocation8 + $0x60] sm:$0xff]
        %v3902 = vld [vmem:[#allocation8 + $0x68] sm:$0xff]
        %v3903 = vld [vmem:[#allocation8 + $0x70] sm:$0xff]
        %v3904 = vld [vmem:[#allocation8 + $0x78] sm:$0xff]
        %v3905 = vld [vmem:[#allocation2 + $0x6] sm:$0xff]
        %v3906 = vld [vmem:[#allocation2 + $0xe] sm:$0xff]
        %v3907 = vld [vmem:[#allocation2 + $0x16] sm:$0xff]
        %v3908 = vld [vmem:[#allocation2 + $0x1e] sm:$0xff]
        %v3909 = vld [vmem:[#allocation2 + $0x26] sm:$0xff]
        %v3910 = vld [vmem:[#allocation2 + $0x2e] sm:$0xff]
        %v3911 = vld [vmem:[#allocation2 + $0x36] sm:$0xff]
        %v3912 = vld [vmem:[#allocation2 + $0x3e] sm:$0xff]
        %v3913 = vld [vmem:[#allocation2 + $0x46] sm:$0xff]
        %v3914 = vld [vmem:[#allocation2 + $0x4e] sm:$0xff]
        %v3915 = vld [vmem:[#allocation2 + $0x56] sm:$0xff]
        %v3916 = vld [vmem:[#allocation2 + $0x5e] sm:$0xff]
        %v3917 = vld [vmem:[#allocation2 + $0x66] sm:$0xff]
        %v3918 = vld [vmem:[#allocation2 + $0x6e] sm:$0xff]
        %v3919 = vld [vmem:[#allocation2 + $0x76] sm:$0xff]
        %v3920 = vld [vmem:[#allocation2 + $0x7e] sm:$0xff]
        %v3921 = vld [vmem:[#allocation2 + $0x86] sm:$0xff]
        %v3922 = vld [vmem:[#allocation2 + $0x8e] sm:$0xff]
        %v3923 = vld [vmem:[#allocation2 + $0x96] sm:$0xff]
        %v3924 = vld [vmem:[#allocation2 + $0x9e] sm:$0xff]
        %v3925 = vld [vmem:[#allocation2 + $0xa6] sm:$0xff]
        %v3926 = vld [vmem:[#allocation2 + $0xae] sm:$0xff]
        %v3927 = vld [vmem:[#allocation2 + $0xb6] sm:$0xff]
        %v3928 = vld [vmem:[#allocation2 + $0xbe] sm:$0xff]
        %v3929 = vld [vmem:[#allocation2 + $0xc6] sm:$0xff]
        %v3930 = vld [vmem:[#allocation2 + $0xce] sm:$0xff]
        %v3931 = vld [vmem:[#allocation2 + $0xd6] sm:$0xff]
        %v3932 = vld [vmem:[#allocation2 + $0xde] sm:$0xff]
        %v3933 = vld [vmem:[#allocation2 + $0xe6] sm:$0xff]
        %v3934 = vld [vmem:[#allocation2 + $0xee] sm:$0xff]
        %v3935 = vld [vmem:[#allocation2 + $0xf6] sm:$0xff]
        %v3936 = vld [vmem:[#allocation2 + $0xfe] sm:$0xff]
        %v3937 = vld [vmem:[#allocation2 + $0x106] sm:$0xff]
        %v3938 = vld [vmem:[#allocation2 + $0x10e] sm:$0xff]
        %v3939 = vld [vmem:[#allocation2 + $0x116] sm:$0xff]
        %v3940 = vld [vmem:[#allocation2 + $0x11e] sm:$0x3f]
        %s3941 = scalar_lea.vmem [#allocation8], 128
        %v3942 = vld [vmem:[%s3941] sm:$0xff]
        %v3943 = vld [vmem:[%s3941 + $0x8] sm:$0xff]
        %v3944 = vld [vmem:[%s3941 + $0x10] sm:$0xff]
        %v3945 = vld [vmem:[%s3941 + $0x18] sm:$0xff]
        %v3946 = vld [vmem:[%s3941 + $0x20] sm:$0xff]
        %v3947 = vld [vmem:[%s3941 + $0x28] sm:$0xff]
        %v3948 = vld [vmem:[%s3941 + $0x30] sm:$0xff]
        %v3949 = vld [vmem:[%s3941 + $0x38] sm:$0xff]
        %v3950 = vld [vmem:[%s3941 + $0x40] sm:$0xff]
        %v3951 = vld [vmem:[%s3941 + $0x48] sm:$0xff]
        %v3952 = vld [vmem:[%s3941 + $0x50] sm:$0xff]
        %v3953 = vld [vmem:[%s3941 + $0x58] sm:$0xff]
        %v3954 = vld [vmem:[%s3941 + $0x60] sm:$0xff]
        %v3955 = vld [vmem:[%s3941 + $0x68] sm:$0xff]
        %v3956 = vld [vmem:[%s3941 + $0x70] sm:$0xff]
        %v3957 = vld [vmem:[%s3941 + $0x78] sm:$0xff]
        %3958 = vmatprep.subr.mxu0 0.0
        %3959 = vmatpush1.msra.mxu0 %v3942
        %3960 = vmatprep.subr.mxu0 0.0
        %3961 = vmatpush1.msra.mxu0 %v3943
        %3962 = vmatprep.subr.mxu0 0.0
        %3963 = vmatpush1.msra.mxu0 %v3944
        %3964 = vmatprep.subr.mxu0 0.0
        %3965 = vmatpush1.msra.mxu0 %v3945
        %3966 = vmatprep.subr.mxu0 0.0
        %3967 = vmatpush1.msra.mxu0 %v3946
        %3968 = vmatprep.subr.mxu0 0.0
        %3969 = vmatpush1.msra.mxu0 %v3947
        %3970 = vmatprep.subr.mxu0 0.0
        %3971 = vmatpush1.msra.mxu0 %v3948
        %3972 = vmatprep.subr.mxu0 0.0
        %3973 = vmatpush1.msra.mxu0 %v3949
        %3974 = vmatprep.subr.mxu0 0.0
        %3975 = vmatpush1.msra.mxu0 %v3950
        %3976 = vmatprep.subr.mxu0 0.0
        %3977 = vmatpush1.msra.mxu0 %v3951
        %3978 = vmatprep.subr.mxu0 0.0
        %3979 = vmatpush1.msra.mxu0 %v3952
        %3980 = vmatprep.subr.mxu0 0.0
        %3981 = vmatpush1.msra.mxu0 %v3953
        %3982 = vmatprep.subr.mxu0 0.0
        %3983 = vmatpush1.msra.mxu0 %v3954
        %3984 = vmatprep.subr.mxu0 0.0
        %3985 = vmatpush1.msra.mxu0 %v3955
        %3986 = vmatprep.subr.mxu0 0.0
        %3987 = vmatpush1.msra.mxu0 %v3956
        %3988 = vmatprep.subr.mxu0 0.0
        %3989 = vmatpush1.msra.mxu0 %v3957
        %3990 = vmatprep.subr.mxu0 0.0
        %3991 = vmatpush1.msra.mxu0 0.0
        %3992 = vmatprep.subr.mxu0 0.0
        %3993 = vmatpush1.msra.mxu0 0.0
        %3994 = vmatprep.subr.mxu0 0.0
        %3995 = vmatpush1.msra.mxu0 0.0
        %3996 = vmatprep.subr.mxu0 0.0
        %3997 = vmatpush1.msra.mxu0 0.0
        %3998 = vmatprep.subr.mxu0 0.0
        %3999 = vmatpush1.msra.mxu0 0.0
        %4000 = vmatprep.subr.mxu0 0.0
        %4001 = vmatpush1.msra.mxu0 0.0
        %4002 = vmatprep.subr.mxu0 0.0
        %4003 = vmatpush1.msra.mxu0 0.0
        %4004 = vmatprep.subr.mxu0 0.0
        %4005 = vmatpush1.msra.mxu0 0.0
        %4006 = vmatprep.subr.mxu0 0.0
        %4007 = vmatpush1.msra.mxu0 0.0
        %4008 = vmatprep.subr.mxu0 0.0
        %4009 = vmatpush1.msra.mxu0 0.0
        %4010 = vmatprep.subr.mxu0 0.0
        %4011 = vmatpush1.msra.mxu0 0.0
        %4012 = vmatprep.subr.mxu0 0.0
        %4013 = vmatpush1.msra.mxu0 0.0
        %4014 = vmatprep.subr.mxu0 0.0
        %4015 = vmatpush1.msra.mxu0 0.0
        %4016 = vmatprep.subr.mxu0 0.0
        %4017 = vmatpush1.msra.mxu0 0.0
        %4018 = vmatprep.subr.mxu0 0.0
        %4019 = vmatpush1.msra.mxu0 0.0
        %4020 = vmatprep.subr.mxu0 0.0
        %4021 = vmatpush1.msra.mxu0 0.0
        %4022 = vmatprep.mubr.f32.mxu0 0.0
        %4023 = vmatmul.mubr.f32.gmra.mrb[0].mxu0 %v3905
        %v4024 = vpop.f32.mrb[0].mxu0
        %v4025 = vadd.f32 0.0, %v4024
        %v4026 = vpop.f32.mrb[0].mxu0
        %4027 = vmatprep.mubr.f32.mxu0 0.0
        %4028 = vmatmul.mubr.f32.gmra.mrb[0].mxu0 %v3906
        %v4029 = vpop.f32.mrb[0].mxu0
        %v4030 = vadd.f32 0.0, %v4029
        %v4031 = vpop.f32.mrb[0].mxu0
        %4032 = vmatprep.mubr.f32.mxu0 0.0
        %4033 = vmatmul.mubr.f32.gmra.mrb[0].mxu0 %v3907
        %v4034 = vpop.f32.mrb[0].mxu0
        %v4035 = vadd.f32 0.0, %v4034
        %v4036 = vpop.f32.mrb[0].mxu0
        %4037 = vmatprep.mubr.f32.mxu0 0.0
        %4038 = vmatmul.mubr.f32.gmra.mrb[0].mxu0 %v3908
        %v4039 = vpop.f32.mrb[0].mxu0
        %v4040 = vadd.f32 0.0, %v4039
        %v4041 = vpop.f32.mrb[0].mxu0
        %4042 = vmatprep.mubr.f32.mxu0 0.0
        %4043 = vmatmul.mubr.f32.gmra.mrb[0].mxu0 %v3909
        %v4044 = vpop.f32.mrb[0].mxu0
        %v4045 = vadd.f32 0.0, %v4044
        %v4046 = vpop.f32.mrb[0].mxu0
        %4047 = vmatprep.mubr.f32.mxu0 0.0
        %4048 = vmatmul.mubr.f32.gmra.mrb[0].mxu0 %v3910
        %v4049 = vpop.f32.mrb[0].mxu0
        %v4050 = vadd.f32 0.0, %v4049
        %v4051 = vpop.f32.mrb[0].mxu0
        %4052 = vmatprep.mubr.f32.mxu0 0.0
        %4053 = vmatmul.mubr.f32.gmra.mrb[0].mxu0 %v3911
        %v4054 = vpop.f32.mrb[0].mxu0
        %v4055 = vadd.f32 0.0, %v4054
        %v4056 = vpop.f32.mrb[0].mxu0
        %4057 = vmatprep.mubr.f32.mxu0 0.0
        %4058 = vmatmul.mubr.f32.gmra.mrb[0].mxu0 %v3912
        %v4059 = vpop.f32.mrb[0].mxu0
        %v4060 = vadd.f32 0.0, %v4059
        %v4061 = vpop.f32.mrb[0].mxu0
        %4062 = vmatprep.mubr.f32.mxu0 0.0
        %4063 = vmatmul.mubr.f32.gmra.mrb[0].mxu0 %v3913
        %v4064 = vpop.f32.mrb[0].mxu0
        %v4065 = vadd.f32 0.0, %v4064
        %v4066 = vpop.f32.mrb[0].mxu0
        %4067 = vmatprep.mubr.f32.mxu0 0.0
        %4068 = vmatmul.mubr.f32.gmra.mrb[0].mxu0 %v3914
        %v4069 = vpop.f32.mrb[0].mxu0
        %v4070 = vadd.f32 0.0, %v4069
        %v4071 = vpop.f32.mrb[0].mxu0
        %4072 = vmatprep.mubr.f32.mxu0 0.0
        %4073 = vmatmul.mubr.f32.gmra.mrb[0].mxu0 %v3915
        %v4074 = vpop.f32.mrb[0].mxu0
        %v4075 = vadd.f32 0.0, %v4074
        %v4076 = vpop.f32.mrb[0].mxu0
        %4077 = vmatprep.mubr.f32.mxu0 0.0
        %4078 = vmatmul.mubr.f32.gmra.mrb[0].mxu0 %v3916
        %v4079 = vpop.f32.mrb[0].mxu0
        %v4080 = vadd.f32 0.0, %v4079
        %v4081 = vpop.f32.mrb[0].mxu0
        %4082 = vmatprep.mubr.f32.mxu0 0.0
        %4083 = vmatmul.mubr.f32.gmra.mrb[0].mxu0 %v3917
        %v4084 = vpop.f32.mrb[0].mxu0
        %v4085 = vadd.f32 0.0, %v4084
        %v4086 = vpop.f32.mrb[0].mxu0
        %4087 = vmatprep.mubr.f32.mxu0 0.0
        %4088 = vmatmul.mubr.f32.gmra.mrb[0].mxu0 %v3918
        %v4089 = vpop.f32.mrb[0].mxu0
        %v4090 = vadd.f32 0.0, %v4089
        %v4091 = vpop.f32.mrb[0].mxu0
        %4092 = vmatprep.mubr.f32.mxu0 0.0
        %4093 = vmatmul.mubr.f32.gmra.mrb[0].mxu0 %v3919
        %v4094 = vpop.f32.mrb[0].mxu0
        %v4095 = vadd.f32 0.0, %v4094
        %v4096 = vpop.f32.mrb[0].mxu0
        %4097 = vmatprep.mubr.f32.mxu0 0.0
        %4098 = vmatmul.mubr.f32.gmra.mrb[0].mxu0 %v3920
        %v4099 = vpop.f32.mrb[0].mxu0
        %v4100 = vadd.f32 0.0, %v4099
        %v4101 = vpop.f32.mrb[0].mxu0
        %4102 = vmatprep.mubr.f32.mxu0 0.0
        %4103 = vmatmul.mubr.f32.gmra.mrb[0].mxu0 %v3921
        %v4104 = vpop.f32.mrb[0].mxu0
        %v4105 = vadd.f32 0.0, %v4104
        %v4106 = vpop.f32.mrb[0].mxu0
        %4107 = vmatprep.mubr.f32.mxu0 0.0
        %4108 = vmatmul.mubr.f32.gmra.mrb[0].mxu0 %v3922
        %v4109 = vpop.f32.mrb[0].mxu0
        %v4110 = vadd.f32 0.0, %v4109
        %v4111 = vpop.f32.mrb[0].mxu0
        %4112 = vmatprep.mubr.f32.mxu0 0.0
        %4113 = vmatmul.mubr.f32.gmra.mrb[0].mxu0 %v3923
        %v4114 = vpop.f32.mrb[0].mxu0
        %v4115 = vadd.f32 0.0, %v4114
        %v4116 = vpop.f32.mrb[0].mxu0
        %4117 = vmatprep.mubr.f32.mxu0 0.0
        %4118 = vmatmul.mubr.f32.gmra.mrb[0].mxu0 %v3924
        %v4119 = vpop.f32.mrb[0].mxu0
        %v4120 = vadd.f32 0.0, %v4119
        %v4121 = vpop.f32.mrb[0].mxu0
        %4122 = vmatprep.mubr.f32.mxu0 0.0
        %4123 = vmatmul.mubr.f32.gmra.mrb[0].mxu0 %v3925
        %v4124 = vpop.f32.mrb[0].mxu0
        %v4125 = vadd.f32 0.0, %v4124
        %v4126 = vpop.f32.mrb[0].mxu0
        %4127 = vmatprep.mubr.f32.mxu0 0.0
        %4128 = vmatmul.mubr.f32.gmra.mrb[0].mxu0 %v3926
        %v4129 = vpop.f32.mrb[0].mxu0
        %v4130 = vadd.f32 0.0, %v4129
        %v4131 = vpop.f32.mrb[0].mxu0
        %4132 = vmatprep.mubr.f32.mxu0 0.0
        %4133 = vmatmul.mubr.f32.gmra.mrb[0].mxu0 %v3927
        %v4134 = vpop.f32.mrb[0].mxu0
        %v4135 = vadd.f32 0.0, %v4134
        %v4136 = vpop.f32.mrb[0].mxu0
        %4137 = vmatprep.mubr.f32.mxu0 0.0
        %4138 = vmatmul.mubr.f32.gmra.mrb[0].mxu0 %v3928
        %v4139 = vpop.f32.mrb[0].mxu0
        %v4140 = vadd.f32 0.0, %v4139
        %v4141 = vpop.f32.mrb[0].mxu0
        %4142 = vmatprep.mubr.f32.mxu0 0.0
        %4143 = vmatmul.mubr.f32.gmra.mrb[0].mxu0 %v3929
        %v4144 = vpop.f32.mrb[0].mxu0
        %v4145 = vadd.f32 0.0, %v4144
        %v4146 = vpop.f32.mrb[0].mxu0
        %4147 = vmatprep.mubr.f32.mxu0 0.0
        %4148 = vmatmul.mubr.f32.gmra.mrb[0].mxu0 %v3930
        %v4149 = vpop.f32.mrb[0].mxu0
        %v4150 = vadd.f32 0.0, %v4149
        %v4151 = vpop.f32.mrb[0].mxu0
        %4152 = vmatprep.mubr.f32.mxu0 0.0
        %4153 = vmatmul.mubr.f32.gmra.mrb[0].mxu0 %v3931
        %v4154 = vpop.f32.mrb[0].mxu0
        %v4155 = vadd.f32 0.0, %v4154
        %v4156 = vpop.f32.mrb[0].mxu0
        %4157 = vmatprep.mubr.f32.mxu0 0.0
        %4158 = vmatmul.mubr.f32.gmra.mrb[0].mxu0 %v3932
        %v4159 = vpop.f32.mrb[0].mxu0
        %v4160 = vadd.f32 0.0, %v4159
        %v4161 = vpop.f32.mrb[0].mxu0
        %4162 = vmatprep.mubr.f32.mxu0 0.0
        %4163 = vmatmul.mubr.f32.gmra.mrb[0].mxu0 %v3933
        %v4164 = vpop.f32.mrb[0].mxu0
        %v4165 = vadd.f32 0.0, %v4164
        %v4166 = vpop.f32.mrb[0].mxu0
        %4167 = vmatprep.mubr.f32.mxu0 0.0
        %4168 = vmatmul.mubr.f32.gmra.mrb[0].mxu0 %v3934
        %v4169 = vpop.f32.mrb[0].mxu0
        %v4170 = vadd.f32 0.0, %v4169
        %v4171 = vpop.f32.mrb[0].mxu0
        %4172 = vmatprep.mubr.f32.mxu0 0.0
        %4173 = vmatmul.mubr.f32.gmra.mrb[0].mxu0 %v3935
        %v4174 = vpop.f32.mrb[0].mxu0
        %v4175 = vadd.f32 0.0, %v4174
        %v4176 = vpop.f32.mrb[0].mxu0
        %4177 = vmatprep.mubr.f32.mxu0 0.0
        %4178 = vmatmul.mubr.f32.gmra.mrb[0].mxu0 %v3936
        %v4179 = vpop.f32.mrb[0].mxu0
        %v4180 = vadd.f32 0.0, %v4179
        %v4181 = vpop.f32.mrb[0].mxu0
        %4182 = vmatprep.mubr.f32.mxu0 0.0
        %4183 = vmatmul.mubr.f32.gmra.mrb[0].mxu0 %v3937
        %v4184 = vpop.f32.mrb[0].mxu0
        %v4185 = vadd.f32 0.0, %v4184
        %v4186 = vpop.f32.mrb[0].mxu0
        %4187 = vmatprep.mubr.f32.mxu0 0.0
        %4188 = vmatmul.mubr.f32.gmra.mrb[0].mxu0 %v3938
        %v4189 = vpop.f32.mrb[0].mxu0
        %v4190 = vadd.f32 0.0, %v4189
        %v4191 = vpop.f32.mrb[0].mxu0
        %4192 = vmatprep.mubr.f32.mxu0 0.0
        %4193 = vmatmul.mubr.f32.gmra.mrb[0].mxu0 %v3939
        %v4194 = vpop.f32.mrb[0].mxu0
        %v4195 = vadd.f32 0.0, %v4194
        %v4196 = vpop.f32.mrb[0].mxu0
        %4197 = vmatprep.mubr.f32.mxu0 0.0
        %4198 = vmatmul.mubr.f32.gmra.mrb[0].mxu0 %v3940
        %v4199 = vpop.f32.mrb[0].mxu0
        %v4200 = vadd.f32 0.0, %v4199
        %v4201 = vpop.f32.mrb[0].mxu0
        %4202 = vdwg.mxu0
        %4203 = vmatprep.subr.mxu0 0.0
        %4204 = vmatpush1.msra.mxu0 %v3889
        %4205 = vmatprep.subr.mxu0 0.0
        %4206 = vmatpush1.msra.mxu0 %v3890
        %4207 = vmatprep.subr.mxu0 0.0
        %4208 = vmatpush1.msra.mxu0 %v3891
        %4209 = vmatprep.subr.mxu0 0.0
        %4210 = vmatpush1.msra.mxu0 %v3892
        %4211 = vmatprep.subr.mxu0 0.0
        %4212 = vmatpush1.msra.mxu0 %v3893
        %4213 = vmatprep.subr.mxu0 0.0
        %4214 = vmatpush1.msra.mxu0 %v3894
        %4215 = vmatprep.subr.mxu0 0.0
        %4216 = vmatpush1.msra.mxu0 %v3895
        %4217 = vmatprep.subr.mxu0 0.0
        %4218 = vmatpush1.msra.mxu0 %v3896
        %4219 = vmatprep.subr.mxu0 0.0
        %4220 = vmatpush1.msra.mxu0 %v3897
        %4221 = vmatprep.subr.mxu0 0.0
        %4222 = vmatpush1.msra.mxu0 %v3898
        %4223 = vmatprep.subr.mxu0 0.0
        %4224 = vmatpush1.msra.mxu0 %v3899
        %4225 = vmatprep.subr.mxu0 0.0
        %4226 = vmatpush1.msra.mxu0 %v3900
        %4227 = vmatprep.subr.mxu0 0.0
        %4228 = vmatpush1.msra.mxu0 %v3901
        %4229 = vmatprep.subr.mxu0 0.0
        %4230 = vmatpush1.msra.mxu0 %v3902
        %4231 = vmatprep.subr.mxu0 0.0
        %4232 = vmatpush1.msra.mxu0 %v3903
        %4233 = vmatprep.subr.mxu0 0.0
        %4234 = vmatpush1.msra.mxu0 %v3904
        %4235 = vmatprep.subr.mxu0 0.0
        %4236 = vmatpush1.msra.mxu0 0.0
        %4237 = vmatprep.subr.mxu0 0.0
        %4238 = vmatpush1.msra.mxu0 0.0
        %4239 = vmatprep.subr.mxu0 0.0
        %4240 = vmatpush1.msra.mxu0 0.0
        %4241 = vmatprep.subr.mxu0 0.0
        %4242 = vmatpush1.msra.mxu0 0.0
        %4243 = vmatprep.subr.mxu0 0.0
        %4244 = vmatpush1.msra.mxu0 0.0
        %4245 = vmatprep.subr.mxu0 0.0
        %4246 = vmatpush1.msra.mxu0 0.0
        %4247 = vmatprep.subr.mxu0 0.0
        %4248 = vmatpush1.msra.mxu0 0.0
        %4249 = vmatprep.subr.mxu0 0.0
        %4250 = vmatpush1.msra.mxu0 0.0
        %4251 = vmatprep.subr.mxu0 0.0
        %4252 = vmatpush1.msra.mxu0 0.0
        %4253 = vmatprep.subr.mxu0 0.0
        %4254 = vmatpush1.msra.mxu0 0.0
        %4255 = vmatprep.subr.mxu0 0.0
        %4256 = vmatpush1.msra.mxu0 0.0
        %4257 = vmatprep.subr.mxu0 0.0
        %4258 = vmatpush1.msra.mxu0 0.0
        %4259 = vmatprep.subr.mxu0 0.0
        %4260 = vmatpush1.msra.mxu0 0.0
        %4261 = vmatprep.subr.mxu0 0.0
        %4262 = vmatpush1.msra.mxu0 0.0
        %4263 = vmatprep.subr.mxu0 0.0
        %4264 = vmatpush1.msra.mxu0 0.0
        %4265 = vmatprep.subr.mxu0 0.0
        %4266 = vmatpush1.msra.mxu0 0.0
        %4267 = vmatprep.mubr.f32.mxu0 0.0
        %4268 = vmatmul.mubr.f32.gmra.mrb[0].mxu0 %v3853
        %v4269 = vpop.f32.mrb[0].mxu0
        %v4270 = vadd.f32 %v4025, %v4269
        %v4271 = vpop.f32.mrb[0].mxu0
        %4272 = vmatprep.mubr.f32.mxu0 0.0
        %4273 = vmatmul.mubr.f32.gmra.mrb[0].mxu0 %v3854
        %v4274 = vpop.f32.mrb[0].mxu0
        %v4275 = vadd.f32 %v4030, %v4274
        %v4276 = vpop.f32.mrb[0].mxu0
        %4277 = vmatprep.mubr.f32.mxu0 0.0
        %4278 = vmatmul.mubr.f32.gmra.mrb[0].mxu0 %v3855
        %v4279 = vpop.f32.mrb[0].mxu0
        %v4280 = vadd.f32 %v4035, %v4279
        %v4281 = vpop.f32.mrb[0].mxu0
        %4282 = vmatprep.mubr.f32.mxu0 0.0
        %4283 = vmatmul.mubr.f32.gmra.mrb[0].mxu0 %v3856
        %v4284 = vpop.f32.mrb[0].mxu0
        %v4285 = vadd.f32 %v4040, %v4284
        %v4286 = vpop.f32.mrb[0].mxu0
        %4287 = vmatprep.mubr.f32.mxu0 0.0
        %4288 = vmatmul.mubr.f32.gmra.mrb[0].mxu0 %v3857
        %v4289 = vpop.f32.mrb[0].mxu0
        %v4290 = vadd.f32 %v4045, %v4289
        %v4291 = vpop.f32.mrb[0].mxu0
        %4292 = vmatprep.mubr.f32.mxu0 0.0
        %4293 = vmatmul.mubr.f32.gmra.mrb[0].mxu0 %v3858
        %v4294 = vpop.f32.mrb[0].mxu0
        %v4295 = vadd.f32 %v4050, %v4294
        %v4296 = vpop.f32.mrb[0].mxu0
        %4297 = vmatprep.mubr.f32.mxu0 0.0
        %4298 = vmatmul.mubr.f32.gmra.mrb[0].mxu0 %v3859
        %v4299 = vpop.f32.mrb[0].mxu0
        %v4300 = vadd.f32 %v4055, %v4299
        %v4301 = vpop.f32.mrb[0].mxu0
        %4302 = vmatprep.mubr.f32.mxu0 0.0
        %4303 = vmatmul.mubr.f32.gmra.mrb[0].mxu0 %v3860
        %v4304 = vpop.f32.mrb[0].mxu0
        %v4305 = vadd.f32 %v4060, %v4304
        %v4306 = vpop.f32.mrb[0].mxu0
        %4307 = vmatprep.mubr.f32.mxu0 0.0
        %4308 = vmatmul.mubr.f32.gmra.mrb[0].mxu0 %v3861
        %v4309 = vpop.f32.mrb[0].mxu0
        %v4310 = vadd.f32 %v4065, %v4309
        %v4311 = vpop.f32.mrb[0].mxu0
        %4312 = vmatprep.mubr.f32.mxu0 0.0
        %4313 = vmatmul.mubr.f32.gmra.mrb[0].mxu0 %v3862
        %v4314 = vpop.f32.mrb[0].mxu0
        %v4315 = vadd.f32 %v4070, %v4314
        %v4316 = vpop.f32.mrb[0].mxu0
        %4317 = vmatprep.mubr.f32.mxu0 0.0
        %4318 = vmatmul.mubr.f32.gmra.mrb[0].mxu0 %v3863
        %v4319 = vpop.f32.mrb[0].mxu0
        %v4320 = vadd.f32 %v4075, %v4319
        %v4321 = vpop.f32.mrb[0].mxu0
        %4322 = vmatprep.mubr.f32.mxu0 0.0
        %4323 = vmatmul.mubr.f32.gmra.mrb[0].mxu0 %v3864
        %v4324 = vpop.f32.mrb[0].mxu0
        %v4325 = vadd.f32 %v4080, %v4324
        %v4326 = vpop.f32.mrb[0].mxu0
        %4327 = vmatprep.mubr.f32.mxu0 0.0
        %4328 = vmatmul.mubr.f32.gmra.mrb[0].mxu0 %v3865
        %v4329 = vpop.f32.mrb[0].mxu0
        %v4330 = vadd.f32 %v4085, %v4329
        %v4331 = vpop.f32.mrb[0].mxu0
        %4332 = vmatprep.mubr.f32.mxu0 0.0
        %4333 = vmatmul.mubr.f32.gmra.mrb[0].mxu0 %v3866
        %v4334 = vpop.f32.mrb[0].mxu0
        %v4335 = vadd.f32 %v4090, %v4334
        %v4336 = vpop.f32.mrb[0].mxu0
        %4337 = vmatprep.mubr.f32.mxu0 0.0
        %4338 = vmatmul.mubr.f32.gmra.mrb[0].mxu0 %v3867
        %v4339 = vpop.f32.mrb[0].mxu0
        %v4340 = vadd.f32 %v4095, %v4339
        %v4341 = vpop.f32.mrb[0].mxu0
        %4342 = vmatprep.mubr.f32.mxu0 0.0
        %4343 = vmatmul.mubr.f32.gmra.mrb[0].mxu0 %v3868
        %v4344 = vpop.f32.mrb[0].mxu0
        %v4345 = vadd.f32 %v4100, %v4344
        %v4346 = vpop.f32.mrb[0].mxu0
        %4347 = vmatprep.mubr.f32.mxu0 0.0
        %4348 = vmatmul.mubr.f32.gmra.mrb[0].mxu0 %v3869
        %v4349 = vpop.f32.mrb[0].mxu0
        %v4350 = vadd.f32 %v4105, %v4349
        %v4351 = vpop.f32.mrb[0].mxu0
        %4352 = vmatprep.mubr.f32.mxu0 0.0
        %4353 = vmatmul.mubr.f32.gmra.mrb[0].mxu0 %v3870
        %v4354 = vpop.f32.mrb[0].mxu0
        %v4355 = vadd.f32 %v4110, %v4354
        %v4356 = vpop.f32.mrb[0].mxu0
        %4357 = vmatprep.mubr.f32.mxu0 0.0
        %4358 = vmatmul.mubr.f32.gmra.mrb[0].mxu0 %v3871
        %v4359 = vpop.f32.mrb[0].mxu0
        %v4360 = vadd.f32 %v4115, %v4359
        %v4361 = vpop.f32.mrb[0].mxu0
        %4362 = vmatprep.mubr.f32.mxu0 0.0
        %4363 = vmatmul.mubr.f32.gmra.mrb[0].mxu0 %v3872
        %v4364 = vpop.f32.mrb[0].mxu0
        %v4365 = vadd.f32 %v4120, %v4364
        %v4366 = vpop.f32.mrb[0].mxu0
        %4367 = vmatprep.mubr.f32.mxu0 0.0
        %4368 = vmatmul.mubr.f32.gmra.mrb[0].mxu0 %v3873
        %v4369 = vpop.f32.mrb[0].mxu0
        %v4370 = vadd.f32 %v4125, %v4369
        %v4371 = vpop.f32.mrb[0].mxu0
        %4372 = vmatprep.mubr.f32.mxu0 0.0
        %4373 = vmatmul.mubr.f32.gmra.mrb[0].mxu0 %v3874
        %v4374 = vpop.f32.mrb[0].mxu0
        %v4375 = vadd.f32 %v4130, %v4374
        %v4376 = vpop.f32.mrb[0].mxu0
        %4377 = vmatprep.mubr.f32.mxu0 0.0
        %4378 = vmatmul.mubr.f32.gmra.mrb[0].mxu0 %v3875
        %v4379 = vpop.f32.mrb[0].mxu0
        %v4380 = vadd.f32 %v4135, %v4379
        %v4381 = vpop.f32.mrb[0].mxu0
        %4382 = vmatprep.mubr.f32.mxu0 0.0
        %4383 = vmatmul.mubr.f32.gmra.mrb[0].mxu0 %v3876
        %v4384 = vpop.f32.mrb[0].mxu0
        %v4385 = vadd.f32 %v4140, %v4384
        %v4386 = vpop.f32.mrb[0].mxu0
        %4387 = vmatprep.mubr.f32.mxu0 0.0
        %4388 = vmatmul.mubr.f32.gmra.mrb[0].mxu0 %v3877
        %v4389 = vpop.f32.mrb[0].mxu0
        %v4390 = vadd.f32 %v4145, %v4389
        %v4391 = vpop.f32.mrb[0].mxu0
        %4392 = vmatprep.mubr.f32.mxu0 0.0
        %4393 = vmatmul.mubr.f32.gmra.mrb[0].mxu0 %v3878
        %v4394 = vpop.f32.mrb[0].mxu0
        %v4395 = vadd.f32 %v4150, %v4394
        %v4396 = vpop.f32.mrb[0].mxu0
        %4397 = vmatprep.mubr.f32.mxu0 0.0
        %4398 = vmatmul.mubr.f32.gmra.mrb[0].mxu0 %v3879
        %v4399 = vpop.f32.mrb[0].mxu0
        %v4400 = vadd.f32 %v4155, %v4399
        %v4401 = vpop.f32.mrb[0].mxu0
        %4402 = vmatprep.mubr.f32.mxu0 0.0
        %4403 = vmatmul.mubr.f32.gmra.mrb[0].mxu0 %v3880
        %v4404 = vpop.f32.mrb[0].mxu0
        %v4405 = vadd.f32 %v4160, %v4404
        %v4406 = vpop.f32.mrb[0].mxu0
        %4407 = vmatprep.mubr.f32.mxu0 0.0
        %4408 = vmatmul.mubr.f32.gmra.mrb[0].mxu0 %v3881
        %v4409 = vpop.f32.mrb[0].mxu0
        %v4410 = vadd.f32 %v4165, %v4409
        %v4411 = vpop.f32.mrb[0].mxu0
        %4412 = vmatprep.mubr.f32.mxu0 0.0
        %4413 = vmatmul.mubr.f32.gmra.mrb[0].mxu0 %v3882
        %v4414 = vpop.f32.mrb[0].mxu0
        %v4415 = vadd.f32 %v4170, %v4414
        %v4416 = vpop.f32.mrb[0].mxu0
        %4417 = vmatprep.mubr.f32.mxu0 0.0
        %4418 = vmatmul.mubr.f32.gmra.mrb[0].mxu0 %v3883
        %v4419 = vpop.f32.mrb[0].mxu0
        %v4420 = vadd.f32 %v4175, %v4419
        %v4421 = vpop.f32.mrb[0].mxu0
        %4422 = vmatprep.mubr.f32.mxu0 0.0
        %4423 = vmatmul.mubr.f32.gmra.mrb[0].mxu0 %v3884
        %v4424 = vpop.f32.mrb[0].mxu0
        %v4425 = vadd.f32 %v4180, %v4424
        %v4426 = vpop.f32.mrb[0].mxu0
        %4427 = vmatprep.mubr.f32.mxu0 0.0
        %4428 = vmatmul.mubr.f32.gmra.mrb[0].mxu0 %v3885
        %v4429 = vpop.f32.mrb[0].mxu0
        %v4430 = vadd.f32 %v4185, %v4429
        %v4431 = vpop.f32.mrb[0].mxu0
        %4432 = vmatprep.mubr.f32.mxu0 0.0
        %4433 = vmatmul.mubr.f32.gmra.mrb[0].mxu0 %v3886
        %v4434 = vpop.f32.mrb[0].mxu0
        %v4435 = vadd.f32 %v4190, %v4434
        %v4436 = vpop.f32.mrb[0].mxu0
        %4437 = vmatprep.mubr.f32.mxu0 0.0
        %4438 = vmatmul.mubr.f32.gmra.mrb[0].mxu0 %v3887
        %v4439 = vpop.f32.mrb[0].mxu0
        %v4440 = vadd.f32 %v4195, %v4439
        %v4441 = vpop.f32.mrb[0].mxu0
        %4442 = vmatprep.mubr.f32.mxu0 0.0
        %4443 = vmatmul.mubr.f32.gmra.mrb[0].mxu0 %v3888
        %v4444 = vpop.f32.mrb[0].mxu0
        %v4445 = vadd.f32 %v4200, %v4444
        %v4446 = vpop.f32.mrb[0].mxu0
        %4447 = vdwg.mxu0
        %v4448 = vld [vmem:[#allocation2 + $0x7] sm:$0xff]
        %v4449 = vld [vmem:[#allocation2 + $0xf] sm:$0xff]
        %v4450 = vld [vmem:[#allocation2 + $0x17] sm:$0xff]
        %v4451 = vld [vmem:[#allocation2 + $0x1f] sm:$0xff]
        %v4452 = vld [vmem:[#allocation2 + $0x27] sm:$0xff]
        %v4453 = vld [vmem:[#allocation2 + $0x2f] sm:$0xff]
        %v4454 = vld [vmem:[#allocation2 + $0x37] sm:$0xff]
        %v4455 = vld [vmem:[#allocation2 + $0x3f] sm:$0xff]
        %v4456 = vld [vmem:[#allocation2 + $0x47] sm:$0xff]
        %v4457 = vld [vmem:[#allocation2 + $0x4f] sm:$0xff]
        %v4458 = vld [vmem:[#allocation2 + $0x57] sm:$0xff]
        %v4459 = vld [vmem:[#allocation2 + $0x5f] sm:$0xff]
        %v4460 = vld [vmem:[#allocation2 + $0x67] sm:$0xff]
        %v4461 = vld [vmem:[#allocation2 + $0x6f] sm:$0xff]
        %v4462 = vld [vmem:[#allocation2 + $0x77] sm:$0xff]
        %v4463 = vld [vmem:[#allocation2 + $0x7f] sm:$0xff]
        %v4464 = vld [vmem:[#allocation2 + $0x87] sm:$0xff]
        %v4465 = vld [vmem:[#allocation2 + $0x8f] sm:$0xff]
        %v4466 = vld [vmem:[#allocation2 + $0x97] sm:$0xff]
        %v4467 = vld [vmem:[#allocation2 + $0x9f] sm:$0xff]
        %v4468 = vld [vmem:[#allocation2 + $0xa7] sm:$0xff]
        %v4469 = vld [vmem:[#allocation2 + $0xaf] sm:$0xff]
        %v4470 = vld [vmem:[#allocation2 + $0xb7] sm:$0xff]
        %v4471 = vld [vmem:[#allocation2 + $0xbf] sm:$0xff]
        %v4472 = vld [vmem:[#allocation2 + $0xc7] sm:$0xff]
        %v4473 = vld [vmem:[#allocation2 + $0xcf] sm:$0xff]
        %v4474 = vld [vmem:[#allocation2 + $0xd7] sm:$0xff]
        %v4475 = vld [vmem:[#allocation2 + $0xdf] sm:$0xff]
        %v4476 = vld [vmem:[#allocation2 + $0xe7] sm:$0xff]
        %v4477 = vld [vmem:[#allocation2 + $0xef] sm:$0xff]
        %v4478 = vld [vmem:[#allocation2 + $0xf7] sm:$0xff]
        %v4479 = vld [vmem:[#allocation2 + $0xff] sm:$0xff]
        %v4480 = vld [vmem:[#allocation2 + $0x107] sm:$0xff]
        %v4481 = vld [vmem:[#allocation2 + $0x10f] sm:$0xff]
        %v4482 = vld [vmem:[#allocation2 + $0x117] sm:$0xff]
        %v4483 = vld [vmem:[#allocation2 + $0x11f] sm:$0x3f]
        %s4484 = scalar_lea.vmem [#allocation8], 256
        %v4485 = vld [vmem:[%s4484] sm:$0xff]
        %v4486 = vld [vmem:[%s4484 + $0x8] sm:$0xff]
        %v4487 = vld [vmem:[%s4484 + $0x10] sm:$0xff]
        %v4488 = vld [vmem:[%s4484 + $0x18] sm:$0xff]
        %v4489 = vld [vmem:[%s4484 + $0x20] sm:$0xff]
        %v4490 = vld [vmem:[%s4484 + $0x28] sm:$0xff]
        %v4491 = vld [vmem:[%s4484 + $0x30] sm:$0xff]
        %v4492 = vld [vmem:[%s4484 + $0x38] sm:$0xff]
        %v4493 = vld [vmem:[%s4484 + $0x40] sm:$0xff]
        %v4494 = vld [vmem:[%s4484 + $0x48] sm:$0xff]
        %v4495 = vld [vmem:[%s4484 + $0x50] sm:$0xff]
        %v4496 = vld [vmem:[%s4484 + $0x58] sm:$0xff]
        %v4497 = vld [vmem:[%s4484 + $0x60] sm:$0xff]
        %v4498 = vld [vmem:[%s4484 + $0x68] sm:$0xff]
        %v4499 = vld [vmem:[%s4484 + $0x70] sm:$0xff]
        %v4500 = vld [vmem:[%s4484 + $0x78] sm:$0xff]
        %4501 = vmatprep.subr.mxu0 0.0
        %4502 = vmatpush1.msra.mxu0 %v4485
        %4503 = vmatprep.subr.mxu0 0.0
        %4504 = vmatpush1.msra.mxu0 %v4486
        %4505 = vmatprep.subr.mxu0 0.0
        %4506 = vmatpush1.msra.mxu0 %v4487
        %4507 = vmatprep.subr.mxu0 0.0
        %4508 = vmatpush1.msra.mxu0 %v4488
        %4509 = vmatprep.subr.mxu0 0.0
        %4510 = vmatpush1.msra.mxu0 %v4489
        %4511 = vmatprep.subr.mxu0 0.0
        %4512 = vmatpush1.msra.mxu0 %v4490
        %4513 = vmatprep.subr.mxu0 0.0
        %4514 = vmatpush1.msra.mxu0 %v4491
        %4515 = vmatprep.subr.mxu0 0.0
        %4516 = vmatpush1.msra.mxu0 %v4492
        %4517 = vmatprep.subr.mxu0 0.0
        %4518 = vmatpush1.msra.mxu0 %v4493
        %4519 = vmatprep.subr.mxu0 0.0
        %4520 = vmatpush1.msra.mxu0 %v4494
        %4521 = vmatprep.subr.mxu0 0.0
        %4522 = vmatpush1.msra.mxu0 %v4495
        %4523 = vmatprep.subr.mxu0 0.0
        %4524 = vmatpush1.msra.mxu0 %v4496
        %4525 = vmatprep.subr.mxu0 0.0
        %4526 = vmatpush1.msra.mxu0 %v4497
        %4527 = vmatprep.subr.mxu0 0.0
        %4528 = vmatpush1.msra.mxu0 %v4498
        %4529 = vmatprep.subr.mxu0 0.0
        %4530 = vmatpush1.msra.mxu0 %v4499
        %4531 = vmatprep.subr.mxu0 0.0
        %4532 = vmatpush1.msra.mxu0 %v4500
        %4533 = vmatprep.subr.mxu0 0.0
        %4534 = vmatpush1.msra.mxu0 0.0
        %4535 = vmatprep.subr.mxu0 0.0
        %4536 = vmatpush1.msra.mxu0 0.0
        %4537 = vmatprep.subr.mxu0 0.0
        %4538 = vmatpush1.msra.mxu0 0.0
        %4539 = vmatprep.subr.mxu0 0.0
        %4540 = vmatpush1.msra.mxu0 0.0
        %4541 = vmatprep.subr.mxu0 0.0
        %4542 = vmatpush1.msra.mxu0 0.0
        %4543 = vmatprep.subr.mxu0 0.0
        %4544 = vmatpush1.msra.mxu0 0.0
        %4545 = vmatprep.subr.mxu0 0.0
        %4546 = vmatpush1.msra.mxu0 0.0
        %4547 = vmatprep.subr.mxu0 0.0
        %4548 = vmatpush1.msra.mxu0 0.0
        %4549 = vmatprep.subr.mxu0 0.0
        %4550 = vmatpush1.msra.mxu0 0.0
        %4551 = vmatprep.subr.mxu0 0.0
        %4552 = vmatpush1.msra.mxu0 0.0
        %4553 = vmatprep.subr.mxu0 0.0
        %4554 = vmatpush1.msra.mxu0 0.0
        %4555 = vmatprep.subr.mxu0 0.0
        %4556 = vmatpush1.msra.mxu0 0.0
        %4557 = vmatprep.subr.mxu0 0.0
        %4558 = vmatpush1.msra.mxu0 0.0
        %4559 = vmatprep.subr.mxu0 0.0
        %4560 = vmatpush1.msra.mxu0 0.0
        %4561 = vmatprep.subr.mxu0 0.0
        %4562 = vmatpush1.msra.mxu0 0.0
        %4563 = vmatprep.subr.mxu0 0.0
        %4564 = vmatpush1.msra.mxu0 0.0
        %4565 = vmatprep.mubr.f32.mxu0 0.0
        %4566 = vmatmul.mubr.f32.gmra.mrb[0].mxu0 %v4448
        %v4567 = vpop.f32.mrb[0].mxu0
        %v4568 = vadd.f32 0.0, %v4567
        %v4569 = vpop.f32.mrb[0].mxu0
        %4570 = vmatprep.mubr.f32.mxu0 0.0
        %4571 = vmatmul.mubr.f32.gmra.mrb[0].mxu0 %v4449
        %v4572 = vpop.f32.mrb[0].mxu0
        %v4573 = vadd.f32 0.0, %v4572
        %v4574 = vpop.f32.mrb[0].mxu0
        %4575 = vmatprep.mubr.f32.mxu0 0.0
        %4576 = vmatmul.mubr.f32.gmra.mrb[0].mxu0 %v4450
        %v4577 = vpop.f32.mrb[0].mxu0
        %v4578 = vadd.f32 0.0, %v4577
        %v4579 = vpop.f32.mrb[0].mxu0
        %4580 = vmatprep.mubr.f32.mxu0 0.0
        %4581 = vmatmul.mubr.f32.gmra.mrb[0].mxu0 %v4451
        %v4582 = vpop.f32.mrb[0].mxu0
        %v4583 = vadd.f32 0.0, %v4582
        %v4584 = vpop.f32.mrb[0].mxu0
        %4585 = vmatprep.mubr.f32.mxu0 0.0
        %4586 = vmatmul.mubr.f32.gmra.mrb[0].mxu0 %v4452
        %v4587 = vpop.f32.mrb[0].mxu0
        %v4588 = vadd.f32 0.0, %v4587
        %v4589 = vpop.f32.mrb[0].mxu0
        %4590 = vmatprep.mubr.f32.mxu0 0.0
        %4591 = vmatmul.mubr.f32.gmra.mrb[0].mxu0 %v4453
        %v4592 = vpop.f32.mrb[0].mxu0
        %v4593 = vadd.f32 0.0, %v4592
        %v4594 = vpop.f32.mrb[0].mxu0
        %4595 = vmatprep.mubr.f32.mxu0 0.0
        %4596 = vmatmul.mubr.f32.gmra.mrb[0].mxu0 %v4454
        %v4597 = vpop.f32.mrb[0].mxu0
        %v4598 = vadd.f32 0.0, %v4597
        %v4599 = vpop.f32.mrb[0].mxu0
        %4600 = vmatprep.mubr.f32.mxu0 0.0
        %4601 = vmatmul.mubr.f32.gmra.mrb[0].mxu0 %v4455
        %v4602 = vpop.f32.mrb[0].mxu0
        %v4603 = vadd.f32 0.0, %v4602
        %v4604 = vpop.f32.mrb[0].mxu0
        %4605 = vmatprep.mubr.f32.mxu0 0.0
        %4606 = vmatmul.mubr.f32.gmra.mrb[0].mxu0 %v4456
        %v4607 = vpop.f32.mrb[0].mxu0
        %v4608 = vadd.f32 0.0, %v4607
        %v4609 = vpop.f32.mrb[0].mxu0
        %4610 = vmatprep.mubr.f32.mxu0 0.0
        %4611 = vmatmul.mubr.f32.gmra.mrb[0].mxu0 %v4457
        %v4612 = vpop.f32.mrb[0].mxu0
        %v4613 = vadd.f32 0.0, %v4612
        %v4614 = vpop.f32.mrb[0].mxu0
        %4615 = vmatprep.mubr.f32.mxu0 0.0
        %4616 = vmatmul.mubr.f32.gmra.mrb[0].mxu0 %v4458
        %v4617 = vpop.f32.mrb[0].mxu0
        %v4618 = vadd.f32 0.0, %v4617
        %v4619 = vpop.f32.mrb[0].mxu0
        %4620 = vmatprep.mubr.f32.mxu0 0.0
        %4621 = vmatmul.mubr.f32.gmra.mrb[0].mxu0 %v4459
        %v4622 = vpop.f32.mrb[0].mxu0
        %v4623 = vadd.f32 0.0, %v4622
        %v4624 = vpop.f32.mrb[0].mxu0
        %4625 = vmatprep.mubr.f32.mxu0 0.0
        %4626 = vmatmul.mubr.f32.gmra.mrb[0].mxu0 %v4460
        %v4627 = vpop.f32.mrb[0].mxu0
        %v4628 = vadd.f32 0.0, %v4627
        %v4629 = vpop.f32.mrb[0].mxu0
        %4630 = vmatprep.mubr.f32.mxu0 0.0
        %4631 = vmatmul.mubr.f32.gmra.mrb[0].mxu0 %v4461
        %v4632 = vpop.f32.mrb[0].mxu0
        %v4633 = vadd.f32 0.0, %v4632
        %v4634 = vpop.f32.mrb[0].mxu0
        %4635 = vmatprep.mubr.f32.mxu0 0.0
        %4636 = vmatmul.mubr.f32.gmra.mrb[0].mxu0 %v4462
        %v4637 = vpop.f32.mrb[0].mxu0
        %v4638 = vadd.f32 0.0, %v4637
        %v4639 = vpop.f32.mrb[0].mxu0
        %4640 = vmatprep.mubr.f32.mxu0 0.0
        %4641 = vmatmul.mubr.f32.gmra.mrb[0].mxu0 %v4463
        %v4642 = vpop.f32.mrb[0].mxu0
        %v4643 = vadd.f32 0.0, %v4642
        %v4644 = vpop.f32.mrb[0].mxu0
        %4645 = vmatprep.mubr.f32.mxu0 0.0
        %4646 = vmatmul.mubr.f32.gmra.mrb[0].mxu0 %v4464
        %v4647 = vpop.f32.mrb[0].mxu0
        %v4648 = vadd.f32 0.0, %v4647
        %v4649 = vpop.f32.mrb[0].mxu0
        %4650 = vmatprep.mubr.f32.mxu0 0.0
        %4651 = vmatmul.mubr.f32.gmra.mrb[0].mxu0 %v4465
        %v4652 = vpop.f32.mrb[0].mxu0
        %v4653 = vadd.f32 0.0, %v4652
        %v4654 = vpop.f32.mrb[0].mxu0
        %4655 = vmatprep.mubr.f32.mxu0 0.0
        %4656 = vmatmul.mubr.f32.gmra.mrb[0].mxu0 %v4466
        %v4657 = vpop.f32.mrb[0].mxu0
        %v4658 = vadd.f32 0.0, %v4657
        %v4659 = vpop.f32.mrb[0].mxu0
        %4660 = vmatprep.mubr.f32.mxu0 0.0
        %4661 = vmatmul.mubr.f32.gmra.mrb[0].mxu0 %v4467
        %v4662 = vpop.f32.mrb[0].mxu0
        %v4663 = vadd.f32 0.0, %v4662
        %v4664 = vpop.f32.mrb[0].mxu0
        %4665 = vmatprep.mubr.f32.mxu0 0.0
        %4666 = vmatmul.mubr.f32.gmra.mrb[0].mxu0 %v4468
        %v4667 = vpop.f32.mrb[0].mxu0
        %v4668 = vadd.f32 0.0, %v4667
        %v4669 = vpop.f32.mrb[0].mxu0
        %4670 = vmatprep.mubr.f32.mxu0 0.0
        %4671 = vmatmul.mubr.f32.gmra.mrb[0].mxu0 %v4469
        %v4672 = vpop.f32.mrb[0].mxu0
        %v4673 = vadd.f32 0.0, %v4672
        %v4674 = vpop.f32.mrb[0].mxu0
        %4675 = vmatprep.mubr.f32.mxu0 0.0
        %4676 = vmatmul.mubr.f32.gmra.mrb[0].mxu0 %v4470
        %v4677 = vpop.f32.mrb[0].mxu0
        %v4678 = vadd.f32 0.0, %v4677
        %v4679 = vpop.f32.mrb[0].mxu0
        %4680 = vmatprep.mubr.f32.mxu0 0.0
        %4681 = vmatmul.mubr.f32.gmra.mrb[0].mxu0 %v4471
        %v4682 = vpop.f32.mrb[0].mxu0
        %v4683 = vadd.f32 0.0, %v4682
        %v4684 = vpop.f32.mrb[0].mxu0
        %4685 = vmatprep.mubr.f32.mxu0 0.0
        %4686 = vmatmul.mubr.f32.gmra.mrb[0].mxu0 %v4472
        %v4687 = vpop.f32.mrb[0].mxu0
        %v4688 = vadd.f32 0.0, %v4687
        %v4689 = vpop.f32.mrb[0].mxu0
        %4690 = vmatprep.mubr.f32.mxu0 0.0
        %4691 = vmatmul.mubr.f32.gmra.mrb[0].mxu0 %v4473
        %v4692 = vpop.f32.mrb[0].mxu0
        %v4693 = vadd.f32 0.0, %v4692
        %v4694 = vpop.f32.mrb[0].mxu0
        %4695 = vmatprep.mubr.f32.mxu0 0.0
        %4696 = vmatmul.mubr.f32.gmra.mrb[0].mxu0 %v4474
        %v4697 = vpop.f32.mrb[0].mxu0
        %v4698 = vadd.f32 0.0, %v4697
        %v4699 = vpop.f32.mrb[0].mxu0
        %4700 = vmatprep.mubr.f32.mxu0 0.0
        %4701 = vmatmul.mubr.f32.gmra.mrb[0].mxu0 %v4475
        %v4702 = vpop.f32.mrb[0].mxu0
        %v4703 = vadd.f32 0.0, %v4702
        %v4704 = vpop.f32.mrb[0].mxu0
        %4705 = vmatprep.mubr.f32.mxu0 0.0
        %4706 = vmatmul.mubr.f32.gmra.mrb[0].mxu0 %v4476
        %v4707 = vpop.f32.mrb[0].mxu0
        %v4708 = vadd.f32 0.0, %v4707
        %v4709 = vpop.f32.mrb[0].mxu0
        %4710 = vmatprep.mubr.f32.mxu0 0.0
        %4711 = vmatmul.mubr.f32.gmra.mrb[0].mxu0 %v4477
        %v4712 = vpop.f32.mrb[0].mxu0
        %v4713 = vadd.f32 0.0, %v4712
        %v4714 = vpop.f32.mrb[0].mxu0
        %4715 = vmatprep.mubr.f32.mxu0 0.0
        %4716 = vmatmul.mubr.f32.gmra.mrb[0].mxu0 %v4478
        %v4717 = vpop.f32.mrb[0].mxu0
        %v4718 = vadd.f32 0.0, %v4717
        %v4719 = vpop.f32.mrb[0].mxu0
        %4720 = vmatprep.mubr.f32.mxu0 0.0
        %4721 = vmatmul.mubr.f32.gmra.mrb[0].mxu0 %v4479
        %v4722 = vpop.f32.mrb[0].mxu0
        %v4723 = vadd.f32 0.0, %v4722
        %v4724 = vpop.f32.mrb[0].mxu0
        %4725 = vmatprep.mubr.f32.mxu0 0.0
        %4726 = vmatmul.mubr.f32.gmra.mrb[0].mxu0 %v4480
        %v4727 = vpop.f32.mrb[0].mxu0
        %v4728 = vadd.f32 0.0, %v4727
        %v4729 = vpop.f32.mrb[0].mxu0
        %4730 = vmatprep.mubr.f32.mxu0 0.0
        %4731 = vmatmul.mubr.f32.gmra.mrb[0].mxu0 %v4481
        %v4732 = vpop.f32.mrb[0].mxu0
        %v4733 = vadd.f32 0.0, %v4732
        %v4734 = vpop.f32.mrb[0].mxu0
        %4735 = vmatprep.mubr.f32.mxu0 0.0
        %4736 = vmatmul.mubr.f32.gmra.mrb[0].mxu0 %v4482
        %v4737 = vpop.f32.mrb[0].mxu0
        %v4738 = vadd.f32 0.0, %v4737
        %v4739 = vpop.f32.mrb[0].mxu0
        %4740 = vmatprep.mubr.f32.mxu0 0.0
        %4741 = vmatmul.mubr.f32.gmra.mrb[0].mxu0 %v4483
        %v4742 = vpop.f32.mrb[0].mxu0
        %v4743 = vadd.f32 0.0, %v4742
        %v4744 = vpop.f32.mrb[0].mxu0
        %4745 = vdwg.mxu0
        %v4746 = vadd.f32 %v4270, %v4568
        %v4747 = vadd.f32 %v4275, %v4573
        %v4748 = vadd.f32 %v4280, %v4578
        %v4749 = vadd.f32 %v4285, %v4583
        %v4750 = vadd.f32 %v4290, %v4588
        %v4751 = vadd.f32 %v4295, %v4593
        %v4752 = vadd.f32 %v4300, %v4598
        %v4753 = vadd.f32 %v4305, %v4603
        %v4754 = vadd.f32 %v4310, %v4608
        %v4755 = vadd.f32 %v4315, %v4613
        %v4756 = vadd.f32 %v4320, %v4618
        %v4757 = vadd.f32 %v4325, %v4623
        %v4758 = vadd.f32 %v4330, %v4628
        %v4759 = vadd.f32 %v4335, %v4633
        %v4760 = vadd.f32 %v4340, %v4638
        %v4761 = vadd.f32 %v4345, %v4643
        %v4762 = vadd.f32 %v4350, %v4648
        %v4763 = vadd.f32 %v4355, %v4653
        %v4764 = vadd.f32 %v4360, %v4658
        %v4765 = vadd.f32 %v4365, %v4663
        %v4766 = vadd.f32 %v4370, %v4668
        %v4767 = vadd.f32 %v4375, %v4673
        %v4768 = vadd.f32 %v4380, %v4678
        %v4769 = vadd.f32 %v4385, %v4683
        %v4770 = vadd.f32 %v4390, %v4688
        %v4771 = vadd.f32 %v4395, %v4693
        %v4772 = vadd.f32 %v4400, %v4698
        %v4773 = vadd.f32 %v4405, %v4703
        %v4774 = vadd.f32 %v4410, %v4708
        %v4775 = vadd.f32 %v4415, %v4713
        %v4776 = vadd.f32 %v4420, %v4718
        %v4777 = vadd.f32 %v4425, %v4723
        %v4778 = vadd.f32 %v4430, %v4728
        %v4779 = vadd.f32 %v4435, %v4733
        %v4780 = vadd.f32 %v4440, %v4738
        %v4781 = vadd.f32 %v4445, %v4743
        %v4782 = vld [vmem:[#allocation2 + $0x17] sm:$0xff]
        %v4783 = vld [vmem:[#allocation2 + $0x1f] sm:$0xff]
        %v4784 = vld [vmem:[#allocation2 + $0x27] sm:$0xff]
        %v4785 = vld [vmem:[#allocation2 + $0x2f] sm:$0xff]
        %v4786 = vld [vmem:[#allocation2 + $0x37] sm:$0xff]
        %v4787 = vld [vmem:[#allocation2 + $0x3f] sm:$0xff]
        %v4788 = vld [vmem:[#allocation2 + $0x47] sm:$0xff]
        %v4789 = vld [vmem:[#allocation2 + $0x4f] sm:$0xff]
        %v4790 = vld [vmem:[#allocation2 + $0x57] sm:$0xff]
        %v4791 = vld [vmem:[#allocation2 + $0x5f] sm:$0xff]
        %v4792 = vld [vmem:[#allocation2 + $0x67] sm:$0xff]
        %v4793 = vld [vmem:[#allocation2 + $0x6f] sm:$0xff]
        %v4794 = vld [vmem:[#allocation2 + $0x77] sm:$0xff]
        %v4795 = vld [vmem:[#allocation2 + $0x7f] sm:$0xff]
        %v4796 = vld [vmem:[#allocation2 + $0x87] sm:$0xff]
        %v4797 = vld [vmem:[#allocation2 + $0x8f] sm:$0xff]
        %v4798 = vld [vmem:[#allocation2 + $0x97] sm:$0xff]
        %v4799 = vld [vmem:[#allocation2 + $0x9f] sm:$0xff]
        %v4800 = vld [vmem:[#allocation2 + $0xa7] sm:$0xff]
        %v4801 = vld [vmem:[#allocation2 + $0xaf] sm:$0xff]
        %v4802 = vld [vmem:[#allocation2 + $0xb7] sm:$0xff]
        %v4803 = vld [vmem:[#allocation2 + $0xbf] sm:$0xff]
        %v4804 = vld [vmem:[#allocation2 + $0xc7] sm:$0xff]
        %v4805 = vld [vmem:[#allocation2 + $0xcf] sm:$0xff]
        %v4806 = vld [vmem:[#allocation2 + $0xd7] sm:$0xff]
        %v4807 = vld [vmem:[#allocation2 + $0xdf] sm:$0xff]
        %v4808 = vld [vmem:[#allocation2 + $0xe7] sm:$0xff]
        %v4809 = vld [vmem:[#allocation2 + $0xef] sm:$0xff]
        %v4810 = vld [vmem:[#allocation2 + $0xf7] sm:$0xff]
        %v4811 = vld [vmem:[#allocation2 + $0xff] sm:$0xff]
        %v4812 = vld [vmem:[#allocation2 + $0x107] sm:$0xff]
        %v4813 = vld [vmem:[#allocation2 + $0x10f] sm:$0xff]
        %v4814 = vld [vmem:[#allocation2 + $0x117] sm:$0xff]
        %v4815 = vld [vmem:[#allocation2 + $0x11f] sm:$0xff]
        %v4816 = vld [vmem:[#allocation2 + $0x127] sm:$0xff]
        %v4817 = vld [vmem:[#allocation2 + $0x12f] sm:$0x3f]
        %s4818 = scalar_lea.vmem [#allocation8], 384
        %v4819 = vld [vmem:[%s4818] sm:$0xff]
        %v4820 = vld [vmem:[%s4818 + $0x8] sm:$0xff]
        %v4821 = vld [vmem:[%s4818 + $0x10] sm:$0xff]
        %v4822 = vld [vmem:[%s4818 + $0x18] sm:$0xff]
        %v4823 = vld [vmem:[%s4818 + $0x20] sm:$0xff]
        %v4824 = vld [vmem:[%s4818 + $0x28] sm:$0xff]
        %v4825 = vld [vmem:[%s4818 + $0x30] sm:$0xff]
        %v4826 = vld [vmem:[%s4818 + $0x38] sm:$0xff]
        %v4827 = vld [vmem:[%s4818 + $0x40] sm:$0xff]
        %v4828 = vld [vmem:[%s4818 + $0x48] sm:$0xff]
        %v4829 = vld [vmem:[%s4818 + $0x50] sm:$0xff]
        %v4830 = vld [vmem:[%s4818 + $0x58] sm:$0xff]
        %v4831 = vld [vmem:[%s4818 + $0x60] sm:$0xff]
        %v4832 = vld [vmem:[%s4818 + $0x68] sm:$0xff]
        %v4833 = vld [vmem:[%s4818 + $0x70] sm:$0xff]
        %v4834 = vld [vmem:[%s4818 + $0x78] sm:$0xff]
        %4835 = vmatprep.subr.mxu0 0.0
        %4836 = vmatpush1.msra.mxu0 %v4819
        %4837 = vmatprep.subr.mxu0 0.0
        %4838 = vmatpush1.msra.mxu0 %v4820
        %4839 = vmatprep.subr.mxu0 0.0
        %4840 = vmatpush1.msra.mxu0 %v4821
        %4841 = vmatprep.subr.mxu0 0.0
        %4842 = vmatpush1.msra.mxu0 %v4822
        %4843 = vmatprep.subr.mxu0 0.0
        %4844 = vmatpush1.msra.mxu0 %v4823
        %4845 = vmatprep.subr.mxu0 0.0
        %4846 = vmatpush1.msra.mxu0 %v4824
        %4847 = vmatprep.subr.mxu0 0.0
        %4848 = vmatpush1.msra.mxu0 %v4825
        %4849 = vmatprep.subr.mxu0 0.0
        %4850 = vmatpush1.msra.mxu0 %v4826
        %4851 = vmatprep.subr.mxu0 0.0
        %4852 = vmatpush1.msra.mxu0 %v4827
        %4853 = vmatprep.subr.mxu0 0.0
        %4854 = vmatpush1.msra.mxu0 %v4828
        %4855 = vmatprep.subr.mxu0 0.0
        %4856 = vmatpush1.msra.mxu0 %v4829
        %4857 = vmatprep.subr.mxu0 0.0
        %4858 = vmatpush1.msra.mxu0 %v4830
        %4859 = vmatprep.subr.mxu0 0.0
        %4860 = vmatpush1.msra.mxu0 %v4831
        %4861 = vmatprep.subr.mxu0 0.0
        %4862 = vmatpush1.msra.mxu0 %v4832
        %4863 = vmatprep.subr.mxu0 0.0
        %4864 = vmatpush1.msra.mxu0 %v4833
        %4865 = vmatprep.subr.mxu0 0.0
        %4866 = vmatpush1.msra.mxu0 %v4834
        %4867 = vmatprep.subr.mxu0 0.0
        %4868 = vmatpush1.msra.mxu0 0.0
        %4869 = vmatprep.subr.mxu0 0.0
        %4870 = vmatpush1.msra.mxu0 0.0
        %4871 = vmatprep.subr.mxu0 0.0
        %4872 = vmatpush1.msra.mxu0 0.0
        %4873 = vmatprep.subr.mxu0 0.0
        %4874 = vmatpush1.msra.mxu0 0.0
        %4875 = vmatprep.subr.mxu0 0.0
        %4876 = vmatpush1.msra.mxu0 0.0
        %4877 = vmatprep.subr.mxu0 0.0
        %4878 = vmatpush1.msra.mxu0 0.0
        %4879 = vmatprep.subr.mxu0 0.0
        %4880 = vmatpush1.msra.mxu0 0.0
        %4881 = vmatprep.subr.mxu0 0.0
        %4882 = vmatpush1.msra.mxu0 0.0
        %4883 = vmatprep.subr.mxu0 0.0
        %4884 = vmatpush1.msra.mxu0 0.0
        %4885 = vmatprep.subr.mxu0 0.0
        %4886 = vmatpush1.msra.mxu0 0.0
        %4887 = vmatprep.subr.mxu0 0.0
        %4888 = vmatpush1.msra.mxu0 0.0
        %4889 = vmatprep.subr.mxu0 0.0
        %4890 = vmatpush1.msra.mxu0 0.0
        %4891 = vmatprep.subr.mxu0 0.0
        %4892 = vmatpush1.msra.mxu0 0.0
        %4893 = vmatprep.subr.mxu0 0.0
        %4894 = vmatpush1.msra.mxu0 0.0
        %4895 = vmatprep.subr.mxu0 0.0
        %4896 = vmatpush1.msra.mxu0 0.0
        %4897 = vmatprep.subr.mxu0 0.0
        %4898 = vmatpush1.msra.mxu0 0.0
        %4899 = vmatprep.mubr.f32.mxu0 0.0
        %4900 = vmatmul.mubr.f32.gmra.mrb[0].mxu0 %v4782
        %v4901 = vpop.f32.mrb[0].mxu0
        %v4902 = vadd.f32 0.0, %v4901
        %v4903 = vpop.f32.mrb[0].mxu0
        %4904 = vmatprep.mubr.f32.mxu0 0.0
        %4905 = vmatmul.mubr.f32.gmra.mrb[0].mxu0 %v4783
        %v4906 = vpop.f32.mrb[0].mxu0
        %v4907 = vadd.f32 0.0, %v4906
        %v4908 = vpop.f32.mrb[0].mxu0
        %4909 = vmatprep.mubr.f32.mxu0 0.0
        %4910 = vmatmul.mubr.f32.gmra.mrb[0].mxu0 %v4784
        %v4911 = vpop.f32.mrb[0].mxu0
        %v4912 = vadd.f32 0.0, %v4911
        %v4913 = vpop.f32.mrb[0].mxu0
        %4914 = vmatprep.mubr.f32.mxu0 0.0
        %4915 = vmatmul.mubr.f32.gmra.mrb[0].mxu0 %v4785
        %v4916 = vpop.f32.mrb[0].mxu0
        %v4917 = vadd.f32 0.0, %v4916
        %v4918 = vpop.f32.mrb[0].mxu0
        %4919 = vmatprep.mubr.f32.mxu0 0.0
        %4920 = vmatmul.mubr.f32.gmra.mrb[0].mxu0 %v4786
        %v4921 = vpop.f32.mrb[0].mxu0
        %v4922 = vadd.f32 0.0, %v4921
        %v4923 = vpop.f32.mrb[0].mxu0
        %4924 = vmatprep.mubr.f32.mxu0 0.0
        %4925 = vmatmul.mubr.f32.gmra.mrb[0].mxu0 %v4787
        %v4926 = vpop.f32.mrb[0].mxu0
        %v4927 = vadd.f32 0.0, %v4926
        %v4928 = vpop.f32.mrb[0].mxu0
        %4929 = vmatprep.mubr.f32.mxu0 0.0
        %4930 = vmatmul.mubr.f32.gmra.mrb[0].mxu0 %v4788
        %v4931 = vpop.f32.mrb[0].mxu0
        %v4932 = vadd.f32 0.0, %v4931
        %v4933 = vpop.f32.mrb[0].mxu0
        %4934 = vmatprep.mubr.f32.mxu0 0.0
        %4935 = vmatmul.mubr.f32.gmra.mrb[0].mxu0 %v4789
        %v4936 = vpop.f32.mrb[0].mxu0
        %v4937 = vadd.f32 0.0, %v4936
        %v4938 = vpop.f32.mrb[0].mxu0
        %4939 = vmatprep.mubr.f32.mxu0 0.0
        %4940 = vmatmul.mubr.f32.gmra.mrb[0].mxu0 %v4790
        %v4941 = vpop.f32.mrb[0].mxu0
        %v4942 = vadd.f32 0.0, %v4941
        %v4943 = vpop.f32.mrb[0].mxu0
        %4944 = vmatprep.mubr.f32.mxu0 0.0
        %4945 = vmatmul.mubr.f32.gmra.mrb[0].mxu0 %v4791
        %v4946 = vpop.f32.mrb[0].mxu0
        %v4947 = vadd.f32 0.0, %v4946
        %v4948 = vpop.f32.mrb[0].mxu0
        %4949 = vmatprep.mubr.f32.mxu0 0.0
        %4950 = vmatmul.mubr.f32.gmra.mrb[0].mxu0 %v4792
        %v4951 = vpop.f32.mrb[0].mxu0
        %v4952 = vadd.f32 0.0, %v4951
        %v4953 = vpop.f32.mrb[0].mxu0
        %4954 = vmatprep.mubr.f32.mxu0 0.0
        %4955 = vmatmul.mubr.f32.gmra.mrb[0].mxu0 %v4793
        %v4956 = vpop.f32.mrb[0].mxu0
        %v4957 = vadd.f32 0.0, %v4956
        %v4958 = vpop.f32.mrb[0].mxu0
        %4959 = vmatprep.mubr.f32.mxu0 0.0
        %4960 = vmatmul.mubr.f32.gmra.mrb[0].mxu0 %v4794
        %v4961 = vpop.f32.mrb[0].mxu0
        %v4962 = vadd.f32 0.0, %v4961
        %v4963 = vpop.f32.mrb[0].mxu0
        %4964 = vmatprep.mubr.f32.mxu0 0.0
        %4965 = vmatmul.mubr.f32.gmra.mrb[0].mxu0 %v4795
        %v4966 = vpop.f32.mrb[0].mxu0
        %v4967 = vadd.f32 0.0, %v4966
        %v4968 = vpop.f32.mrb[0].mxu0
        %4969 = vmatprep.mubr.f32.mxu0 0.0
        %4970 = vmatmul.mubr.f32.gmra.mrb[0].mxu0 %v4796
        %v4971 = vpop.f32.mrb[0].mxu0
        %v4972 = vadd.f32 0.0, %v4971
        %v4973 = vpop.f32.mrb[0].mxu0
        %4974 = vmatprep.mubr.f32.mxu0 0.0
        %4975 = vmatmul.mubr.f32.gmra.mrb[0].mxu0 %v4797
        %v4976 = vpop.f32.mrb[0].mxu0
        %v4977 = vadd.f32 0.0, %v4976
        %v4978 = vpop.f32.mrb[0].mxu0
        %4979 = vmatprep.mubr.f32.mxu0 0.0
        %4980 = vmatmul.mubr.f32.gmra.mrb[0].mxu0 %v4798
        %v4981 = vpop.f32.mrb[0].mxu0
        %v4982 = vadd.f32 0.0, %v4981
        %v4983 = vpop.f32.mrb[0].mxu0
        %4984 = vmatprep.mubr.f32.mxu0 0.0
        %4985 = vmatmul.mubr.f32.gmra.mrb[0].mxu0 %v4799
        %v4986 = vpop.f32.mrb[0].mxu0
        %v4987 = vadd.f32 0.0, %v4986
        %v4988 = vpop.f32.mrb[0].mxu0
        %4989 = vmatprep.mubr.f32.mxu0 0.0
        %4990 = vmatmul.mubr.f32.gmra.mrb[0].mxu0 %v4800
        %v4991 = vpop.f32.mrb[0].mxu0
        %v4992 = vadd.f32 0.0, %v4991
        %v4993 = vpop.f32.mrb[0].mxu0
        %4994 = vmatprep.mubr.f32.mxu0 0.0
        %4995 = vmatmul.mubr.f32.gmra.mrb[0].mxu0 %v4801
        %v4996 = vpop.f32.mrb[0].mxu0
        %v4997 = vadd.f32 0.0, %v4996
        %v4998 = vpop.f32.mrb[0].mxu0
        %4999 = vmatprep.mubr.f32.mxu0 0.0
        %5000 = vmatmul.mubr.f32.gmra.mrb[0].mxu0 %v4802
        %v5001 = vpop.f32.mrb[0].mxu0
        %v5002 = vadd.f32 0.0, %v5001
        %v5003 = vpop.f32.mrb[0].mxu0
        %5004 = vmatprep.mubr.f32.mxu0 0.0
        %5005 = vmatmul.mubr.f32.gmra.mrb[0].mxu0 %v4803
        %v5006 = vpop.f32.mrb[0].mxu0
        %v5007 = vadd.f32 0.0, %v5006
        %v5008 = vpop.f32.mrb[0].mxu0
        %5009 = vmatprep.mubr.f32.mxu0 0.0
        %5010 = vmatmul.mubr.f32.gmra.mrb[0].mxu0 %v4804
        %v5011 = vpop.f32.mrb[0].mxu0
        %v5012 = vadd.f32 0.0, %v5011
        %v5013 = vpop.f32.mrb[0].mxu0
        %5014 = vmatprep.mubr.f32.mxu0 0.0
        %5015 = vmatmul.mubr.f32.gmra.mrb[0].mxu0 %v4805
        %v5016 = vpop.f32.mrb[0].mxu0
        %v5017 = vadd.f32 0.0, %v5016
        %v5018 = vpop.f32.mrb[0].mxu0
        %5019 = vmatprep.mubr.f32.mxu0 0.0
        %5020 = vmatmul.mubr.f32.gmra.mrb[0].mxu0 %v4806
        %v5021 = vpop.f32.mrb[0].mxu0
        %v5022 = vadd.f32 0.0, %v5021
        %v5023 = vpop.f32.mrb[0].mxu0
        %5024 = vmatprep.mubr.f32.mxu0 0.0
        %5025 = vmatmul.mubr.f32.gmra.mrb[0].mxu0 %v4807
        %v5026 = vpop.f32.mrb[0].mxu0
        %v5027 = vadd.f32 0.0, %v5026
        %v5028 = vpop.f32.mrb[0].mxu0
        %5029 = vmatprep.mubr.f32.mxu0 0.0
        %5030 = vmatmul.mubr.f32.gmra.mrb[0].mxu0 %v4808
        %v5031 = vpop.f32.mrb[0].mxu0
        %v5032 = vadd.f32 0.0, %v5031
        %v5033 = vpop.f32.mrb[0].mxu0
        %5034 = vmatprep.mubr.f32.mxu0 0.0
        %5035 = vmatmul.mubr.f32.gmra.mrb[0].mxu0 %v4809
        %v5036 = vpop.f32.mrb[0].mxu0
        %v5037 = vadd.f32 0.0, %v5036
        %v5038 = vpop.f32.mrb[0].mxu0
        %5039 = vmatprep.mubr.f32.mxu0 0.0
        %5040 = vmatmul.mubr.f32.gmra.mrb[0].mxu0 %v4810
        %v5041 = vpop.f32.mrb[0].mxu0
        %v5042 = vadd.f32 0.0, %v5041
        %v5043 = vpop.f32.mrb[0].mxu0
        %5044 = vmatprep.mubr.f32.mxu0 0.0
        %5045 = vmatmul.mubr.f32.gmra.mrb[0].mxu0 %v4811
        %v5046 = vpop.f32.mrb[0].mxu0
        %v5047 = vadd.f32 0.0, %v5046
        %v5048 = vpop.f32.mrb[0].mxu0
        %5049 = vmatprep.mubr.f32.mxu0 0.0
        %5050 = vmatmul.mubr.f32.gmra.mrb[0].mxu0 %v4812
        %v5051 = vpop.f32.mrb[0].mxu0
        %v5052 = vadd.f32 0.0, %v5051
        %v5053 = vpop.f32.mrb[0].mxu0
        %5054 = vmatprep.mubr.f32.mxu0 0.0
        %5055 = vmatmul.mubr.f32.gmra.mrb[0].mxu0 %v4813
        %v5056 = vpop.f32.mrb[0].mxu0
        %v5057 = vadd.f32 0.0, %v5056
        %v5058 = vpop.f32.mrb[0].mxu0
        %5059 = vmatprep.mubr.f32.mxu0 0.0
        %5060 = vmatmul.mubr.f32.gmra.mrb[0].mxu0 %v4814
        %v5061 = vpop.f32.mrb[0].mxu0
        %v5062 = vadd.f32 0.0, %v5061
        %v5063 = vpop.f32.mrb[0].mxu0
        %5064 = vmatprep.mubr.f32.mxu0 0.0
        %5065 = vmatmul.mubr.f32.gmra.mrb[0].mxu0 %v4815
        %v5066 = vpop.f32.mrb[0].mxu0
        %v5067 = vadd.f32 0.0, %v5066
        %v5068 = vpop.f32.mrb[0].mxu0
        %5069 = vmatprep.mubr.f32.mxu0 0.0
        %5070 = vmatmul.mubr.f32.gmra.mrb[0].mxu0 %v4816
        %v5071 = vpop.f32.mrb[0].mxu0
        %v5072 = vadd.f32 0.0, %v5071
        %v5073 = vpop.f32.mrb[0].mxu0
        %5074 = vmatprep.mubr.f32.mxu0 0.0
        %5075 = vmatmul.mubr.f32.gmra.mrb[0].mxu0 %v4817
        %v5076 = vpop.f32.mrb[0].mxu0
        %v5077 = vadd.f32 0.0, %v5076
        %v5078 = vpop.f32.mrb[0].mxu0
        %5079 = vdwg.mxu0
        %v5080 = vadd.f32 %v4746, %v4902
        %v5081 = vadd.f32 %v4747, %v4907
        %v5082 = vadd.f32 %v4748, %v4912
        %v5083 = vadd.f32 %v4749, %v4917
        %v5084 = vadd.f32 %v4750, %v4922
        %v5085 = vadd.f32 %v4751, %v4927
        %v5086 = vadd.f32 %v4752, %v4932
        %v5087 = vadd.f32 %v4753, %v4937
        %v5088 = vadd.f32 %v4754, %v4942
        %v5089 = vadd.f32 %v4755, %v4947
        %v5090 = vadd.f32 %v4756, %v4952
        %v5091 = vadd.f32 %v4757, %v4957
        %v5092 = vadd.f32 %v4758, %v4962
        %v5093 = vadd.f32 %v4759, %v4967
        %v5094 = vadd.f32 %v4760, %v4972
        %v5095 = vadd.f32 %v4761, %v4977
        %v5096 = vadd.f32 %v4762, %v4982
        %v5097 = vadd.f32 %v4763, %v4987
        %v5098 = vadd.f32 %v4764, %v4992
        %v5099 = vadd.f32 %v4765, %v4997
        %v5100 = vadd.f32 %v4766, %v5002
        %v5101 = vadd.f32 %v4767, %v5007
        %v5102 = vadd.f32 %v4768, %v5012
        %v5103 = vadd.f32 %v4769, %v5017
        %v5104 = vadd.f32 %v4770, %v5022
        %v5105 = vadd.f32 %v4771, %v5027
        %v5106 = vadd.f32 %v4772, %v5032
        %v5107 = vadd.f32 %v4773, %v5037
        %v5108 = vadd.f32 %v4774, %v5042
        %v5109 = vadd.f32 %v4775, %v5047
        %v5110 = vadd.f32 %v4776, %v5052
        %v5111 = vadd.f32 %v4777, %v5057
        %v5112 = vadd.f32 %v4778, %v5062
        %v5113 = vadd.f32 %v4779, %v5067
        %v5114 = vadd.f32 %v4780, %v5072
        %v5115 = vadd.f32 %v4781, %v5077
        %v5116 = vld [vmem:[#allocation2 + $0x18] sm:$0xff]
        %v5117 = vld [vmem:[#allocation2 + $0x20] sm:$0xff]
        %v5118 = vld [vmem:[#allocation2 + $0x28] sm:$0xff]
        %v5119 = vld [vmem:[#allocation2 + $0x30] sm:$0xff]
        %v5120 = vld [vmem:[#allocation2 + $0x38] sm:$0xff]
        %v5121 = vld [vmem:[#allocation2 + $0x40] sm:$0xff]
        %v5122 = vld [vmem:[#allocation2 + $0x48] sm:$0xff]
        %v5123 = vld [vmem:[#allocation2 + $0x50] sm:$0xff]
        %v5124 = vld [vmem:[#allocation2 + $0x58] sm:$0xff]
        %v5125 = vld [vmem:[#allocation2 + $0x60] sm:$0xff]
        %v5126 = vld [vmem:[#allocation2 + $0x68] sm:$0xff]
        %v5127 = vld [vmem:[#allocation2 + $0x70] sm:$0xff]
        %v5128 = vld [vmem:[#allocation2 + $0x78] sm:$0xff]
        %v5129 = vld [vmem:[#allocation2 + $0x80] sm:$0xff]
        %v5130 = vld [vmem:[#allocation2 + $0x88] sm:$0xff]
        %v5131 = vld [vmem:[#allocation2 + $0x90] sm:$0xff]
        %v5132 = vld [vmem:[#allocation2 + $0x98] sm:$0xff]
        %v5133 = vld [vmem:[#allocation2 + $0xa0] sm:$0xff]
        %v5134 = vld [vmem:[#allocation2 + $0xa8] sm:$0xff]
        %v5135 = vld [vmem:[#allocation2 + $0xb0] sm:$0xff]
        %v5136 = vld [vmem:[#allocation2 + $0xb8] sm:$0xff]
        %v5137 = vld [vmem:[#allocation2 + $0xc0] sm:$0xff]
        %v5138 = vld [vmem:[#allocation2 + $0xc8] sm:$0xff]
        %v5139 = vld [vmem:[#allocation2 + $0xd0] sm:$0xff]
        %v5140 = vld [vmem:[#allocation2 + $0xd8] sm:$0xff]
        %v5141 = vld [vmem:[#allocation2 + $0xe0] sm:$0xff]
        %v5142 = vld [vmem:[#allocation2 + $0xe8] sm:$0xff]
        %v5143 = vld [vmem:[#allocation2 + $0xf0] sm:$0xff]
        %v5144 = vld [vmem:[#allocation2 + $0xf8] sm:$0xff]
        %v5145 = vld [vmem:[#allocation2 + $0x100] sm:$0xff]
        %v5146 = vld [vmem:[#allocation2 + $0x108] sm:$0xff]
        %v5147 = vld [vmem:[#allocation2 + $0x110] sm:$0xff]
        %v5148 = vld [vmem:[#allocation2 + $0x118] sm:$0xff]
        %v5149 = vld [vmem:[#allocation2 + $0x120] sm:$0xff]
        %v5150 = vld [vmem:[#allocation2 + $0x128] sm:$0xff]
        %v5151 = vld [vmem:[#allocation2 + $0x130] sm:$0x3f]
        %s5152 = scalar_lea.vmem [#allocation8], 512
        %v5153 = vld [vmem:[%s5152] sm:$0xff]
        %v5154 = vld [vmem:[%s5152 + $0x8] sm:$0xff]
        %v5155 = vld [vmem:[%s5152 + $0x10] sm:$0xff]
        %v5156 = vld [vmem:[%s5152 + $0x18] sm:$0xff]
        %v5157 = vld [vmem:[%s5152 + $0x20] sm:$0xff]
        %v5158 = vld [vmem:[%s5152 + $0x28] sm:$0xff]
        %v5159 = vld [vmem:[%s5152 + $0x30] sm:$0xff]
        %v5160 = vld [vmem:[%s5152 + $0x38] sm:$0xff]
        %v5161 = vld [vmem:[%s5152 + $0x40] sm:$0xff]
        %v5162 = vld [vmem:[%s5152 + $0x48] sm:$0xff]
        %v5163 = vld [vmem:[%s5152 + $0x50] sm:$0xff]
        %v5164 = vld [vmem:[%s5152 + $0x58] sm:$0xff]
        %v5165 = vld [vmem:[%s5152 + $0x60] sm:$0xff]
        %v5166 = vld [vmem:[%s5152 + $0x68] sm:$0xff]
        %v5167 = vld [vmem:[%s5152 + $0x70] sm:$0xff]
        %v5168 = vld [vmem:[%s5152 + $0x78] sm:$0xff]
        %5169 = vmatprep.subr.mxu0 0.0
        %5170 = vmatpush1.msra.mxu0 %v5153
        %5171 = vmatprep.subr.mxu0 0.0
        %5172 = vmatpush1.msra.mxu0 %v5154
        %5173 = vmatprep.subr.mxu0 0.0
        %5174 = vmatpush1.msra.mxu0 %v5155
        %5175 = vmatprep.subr.mxu0 0.0
        %5176 = vmatpush1.msra.mxu0 %v5156
        %5177 = vmatprep.subr.mxu0 0.0
        %5178 = vmatpush1.msra.mxu0 %v5157
        %5179 = vmatprep.subr.mxu0 0.0
        %5180 = vmatpush1.msra.mxu0 %v5158
        %5181 = vmatprep.subr.mxu0 0.0
        %5182 = vmatpush1.msra.mxu0 %v5159
        %5183 = vmatprep.subr.mxu0 0.0
        %5184 = vmatpush1.msra.mxu0 %v5160
        %5185 = vmatprep.subr.mxu0 0.0
        %5186 = vmatpush1.msra.mxu0 %v5161
        %5187 = vmatprep.subr.mxu0 0.0
        %5188 = vmatpush1.msra.mxu0 %v5162
        %5189 = vmatprep.subr.mxu0 0.0
        %5190 = vmatpush1.msra.mxu0 %v5163
        %5191 = vmatprep.subr.mxu0 0.0
        %5192 = vmatpush1.msra.mxu0 %v5164
        %5193 = vmatprep.subr.mxu0 0.0
        %5194 = vmatpush1.msra.mxu0 %v5165
        %5195 = vmatprep.subr.mxu0 0.0
        %5196 = vmatpush1.msra.mxu0 %v5166
        %5197 = vmatprep.subr.mxu0 0.0
        %5198 = vmatpush1.msra.mxu0 %v5167
        %5199 = vmatprep.subr.mxu0 0.0
        %5200 = vmatpush1.msra.mxu0 %v5168
        %5201 = vmatprep.subr.mxu0 0.0
        %5202 = vmatpush1.msra.mxu0 0.0
        %5203 = vmatprep.subr.mxu0 0.0
        %5204 = vmatpush1.msra.mxu0 0.0
        %5205 = vmatprep.subr.mxu0 0.0
        %5206 = vmatpush1.msra.mxu0 0.0
        %5207 = vmatprep.subr.mxu0 0.0
        %5208 = vmatpush1.msra.mxu0 0.0
        %5209 = vmatprep.subr.mxu0 0.0
        %5210 = vmatpush1.msra.mxu0 0.0
        %5211 = vmatprep.subr.mxu0 0.0
        %5212 = vmatpush1.msra.mxu0 0.0
        %5213 = vmatprep.subr.mxu0 0.0
        %5214 = vmatpush1.msra.mxu0 0.0
        %5215 = vmatprep.subr.mxu0 0.0
        %5216 = vmatpush1.msra.mxu0 0.0
        %5217 = vmatprep.subr.mxu0 0.0
        %5218 = vmatpush1.msra.mxu0 0.0
        %5219 = vmatprep.subr.mxu0 0.0
        %5220 = vmatpush1.msra.mxu0 0.0
        %5221 = vmatprep.subr.mxu0 0.0
        %5222 = vmatpush1.msra.mxu0 0.0
        %5223 = vmatprep.subr.mxu0 0.0
        %5224 = vmatpush1.msra.mxu0 0.0
        %5225 = vmatprep.subr.mxu0 0.0
        %5226 = vmatpush1.msra.mxu0 0.0
        %5227 = vmatprep.subr.mxu0 0.0
        %5228 = vmatpush1.msra.mxu0 0.0
        %5229 = vmatprep.subr.mxu0 0.0
        %5230 = vmatpush1.msra.mxu0 0.0
        %5231 = vmatprep.subr.mxu0 0.0
        %5232 = vmatpush1.msra.mxu0 0.0
        %5233 = vmatprep.mubr.f32.mxu0 0.0
        %5234 = vmatmul.mubr.f32.gmra.mrb[0].mxu0 %v5116
        %v5235 = vpop.f32.mrb[0].mxu0
        %v5236 = vadd.f32 0.0, %v5235
        %v5237 = vpop.f32.mrb[0].mxu0
        %5238 = vmatprep.mubr.f32.mxu0 0.0
        %5239 = vmatmul.mubr.f32.gmra.mrb[0].mxu0 %v5117
        %v5240 = vpop.f32.mrb[0].mxu0
        %v5241 = vadd.f32 0.0, %v5240
        %v5242 = vpop.f32.mrb[0].mxu0
        %5243 = vmatprep.mubr.f32.mxu0 0.0
        %5244 = vmatmul.mubr.f32.gmra.mrb[0].mxu0 %v5118
        %v5245 = vpop.f32.mrb[0].mxu0
        %v5246 = vadd.f32 0.0, %v5245
        %v5247 = vpop.f32.mrb[0].mxu0
        %5248 = vmatprep.mubr.f32.mxu0 0.0
        %5249 = vmatmul.mubr.f32.gmra.mrb[0].mxu0 %v5119
        %v5250 = vpop.f32.mrb[0].mxu0
        %v5251 = vadd.f32 0.0, %v5250
        %v5252 = vpop.f32.mrb[0].mxu0
        %5253 = vmatprep.mubr.f32.mxu0 0.0
        %5254 = vmatmul.mubr.f32.gmra.mrb[0].mxu0 %v5120
        %v5255 = vpop.f32.mrb[0].mxu0
        %v5256 = vadd.f32 0.0, %v5255
        %v5257 = vpop.f32.mrb[0].mxu0
        %5258 = vmatprep.mubr.f32.mxu0 0.0
        %5259 = vmatmul.mubr.f32.gmra.mrb[0].mxu0 %v5121
        %v5260 = vpop.f32.mrb[0].mxu0
        %v5261 = vadd.f32 0.0, %v5260
        %v5262 = vpop.f32.mrb[0].mxu0
        %5263 = vmatprep.mubr.f32.mxu0 0.0
        %5264 = vmatmul.mubr.f32.gmra.mrb[0].mxu0 %v5122
        %v5265 = vpop.f32.mrb[0].mxu0
        %v5266 = vadd.f32 0.0, %v5265
        %v5267 = vpop.f32.mrb[0].mxu0
        %5268 = vmatprep.mubr.f32.mxu0 0.0
        %5269 = vmatmul.mubr.f32.gmra.mrb[0].mxu0 %v5123
        %v5270 = vpop.f32.mrb[0].mxu0
        %v5271 = vadd.f32 0.0, %v5270
        %v5272 = vpop.f32.mrb[0].mxu0
        %5273 = vmatprep.mubr.f32.mxu0 0.0
        %5274 = vmatmul.mubr.f32.gmra.mrb[0].mxu0 %v5124
        %v5275 = vpop.f32.mrb[0].mxu0
        %v5276 = vadd.f32 0.0, %v5275
        %v5277 = vpop.f32.mrb[0].mxu0
        %5278 = vmatprep.mubr.f32.mxu0 0.0
        %5279 = vmatmul.mubr.f32.gmra.mrb[0].mxu0 %v5125
        %v5280 = vpop.f32.mrb[0].mxu0
        %v5281 = vadd.f32 0.0, %v5280
        %v5282 = vpop.f32.mrb[0].mxu0
        %5283 = vmatprep.mubr.f32.mxu0 0.0
        %5284 = vmatmul.mubr.f32.gmra.mrb[0].mxu0 %v5126
        %v5285 = vpop.f32.mrb[0].mxu0
        %v5286 = vadd.f32 0.0, %v5285
        %v5287 = vpop.f32.mrb[0].mxu0
        %5288 = vmatprep.mubr.f32.mxu0 0.0
        %5289 = vmatmul.mubr.f32.gmra.mrb[0].mxu0 %v5127
        %v5290 = vpop.f32.mrb[0].mxu0
        %v5291 = vadd.f32 0.0, %v5290
        %v5292 = vpop.f32.mrb[0].mxu0
        %5293 = vmatprep.mubr.f32.mxu0 0.0
        %5294 = vmatmul.mubr.f32.gmra.mrb[0].mxu0 %v5128
        %v5295 = vpop.f32.mrb[0].mxu0
        %v5296 = vadd.f32 0.0, %v5295
        %v5297 = vpop.f32.mrb[0].mxu0
        %5298 = vmatprep.mubr.f32.mxu0 0.0
        %5299 = vmatmul.mubr.f32.gmra.mrb[0].mxu0 %v5129
        %v5300 = vpop.f32.mrb[0].mxu0
        %v5301 = vadd.f32 0.0, %v5300
        %v5302 = vpop.f32.mrb[0].mxu0
        %5303 = vmatprep.mubr.f32.mxu0 0.0
        %5304 = vmatmul.mubr.f32.gmra.mrb[0].mxu0 %v5130
        %v5305 = vpop.f32.mrb[0].mxu0
        %v5306 = vadd.f32 0.0, %v5305
        %v5307 = vpop.f32.mrb[0].mxu0
        %5308 = vmatprep.mubr.f32.mxu0 0.0
        %5309 = vmatmul.mubr.f32.gmra.mrb[0].mxu0 %v5131
        %v5310 = vpop.f32.mrb[0].mxu0
        %v5311 = vadd.f32 0.0, %v5310
        %v5312 = vpop.f32.mrb[0].mxu0
        %5313 = vmatprep.mubr.f32.mxu0 0.0
        %5314 = vmatmul.mubr.f32.gmra.mrb[0].mxu0 %v5132
        %v5315 = vpop.f32.mrb[0].mxu0
        %v5316 = vadd.f32 0.0, %v5315
        %v5317 = vpop.f32.mrb[0].mxu0
        %5318 = vmatprep.mubr.f32.mxu0 0.0
        %5319 = vmatmul.mubr.f32.gmra.mrb[0].mxu0 %v5133
        %v5320 = vpop.f32.mrb[0].mxu0
        %v5321 = vadd.f32 0.0, %v5320
        %v5322 = vpop.f32.mrb[0].mxu0
        %5323 = vmatprep.mubr.f32.mxu0 0.0
        %5324 = vmatmul.mubr.f32.gmra.mrb[0].mxu0 %v5134
        %v5325 = vpop.f32.mrb[0].mxu0
        %v5326 = vadd.f32 0.0, %v5325
        %v5327 = vpop.f32.mrb[0].mxu0
        %5328 = vmatprep.mubr.f32.mxu0 0.0
        %5329 = vmatmul.mubr.f32.gmra.mrb[0].mxu0 %v5135
        %v5330 = vpop.f32.mrb[0].mxu0
        %v5331 = vadd.f32 0.0, %v5330
        %v5332 = vpop.f32.mrb[0].mxu0
        %5333 = vmatprep.mubr.f32.mxu0 0.0
        %5334 = vmatmul.mubr.f32.gmra.mrb[0].mxu0 %v5136
        %v5335 = vpop.f32.mrb[0].mxu0
        %v5336 = vadd.f32 0.0, %v5335
        %v5337 = vpop.f32.mrb[0].mxu0
        %5338 = vmatprep.mubr.f32.mxu0 0.0
        %5339 = vmatmul.mubr.f32.gmra.mrb[0].mxu0 %v5137
        %v5340 = vpop.f32.mrb[0].mxu0
        %v5341 = vadd.f32 0.0, %v5340
        %v5342 = vpop.f32.mrb[0].mxu0
        %5343 = vmatprep.mubr.f32.mxu0 0.0
        %5344 = vmatmul.mubr.f32.gmra.mrb[0].mxu0 %v5138
        %v5345 = vpop.f32.mrb[0].mxu0
        %v5346 = vadd.f32 0.0, %v5345
        %v5347 = vpop.f32.mrb[0].mxu0
        %5348 = vmatprep.mubr.f32.mxu0 0.0
        %5349 = vmatmul.mubr.f32.gmra.mrb[0].mxu0 %v5139
        %v5350 = vpop.f32.mrb[0].mxu0
        %v5351 = vadd.f32 0.0, %v5350
        %v5352 = vpop.f32.mrb[0].mxu0
        %5353 = vmatprep.mubr.f32.mxu0 0.0
        %5354 = vmatmul.mubr.f32.gmra.mrb[0].mxu0 %v5140
        %v5355 = vpop.f32.mrb[0].mxu0
        %v5356 = vadd.f32 0.0, %v5355
        %v5357 = vpop.f32.mrb[0].mxu0
        %5358 = vmatprep.mubr.f32.mxu0 0.0
        %5359 = vmatmul.mubr.f32.gmra.mrb[0].mxu0 %v5141
        %v5360 = vpop.f32.mrb[0].mxu0
        %v5361 = vadd.f32 0.0, %v5360
        %v5362 = vpop.f32.mrb[0].mxu0
        %5363 = vmatprep.mubr.f32.mxu0 0.0
        %5364 = vmatmul.mubr.f32.gmra.mrb[0].mxu0 %v5142
        %v5365 = vpop.f32.mrb[0].mxu0
        %v5366 = vadd.f32 0.0, %v5365
        %v5367 = vpop.f32.mrb[0].mxu0
        %5368 = vmatprep.mubr.f32.mxu0 0.0
        %5369 = vmatmul.mubr.f32.gmra.mrb[0].mxu0 %v5143
        %v5370 = vpop.f32.mrb[0].mxu0
        %v5371 = vadd.f32 0.0, %v5370
        %v5372 = vpop.f32.mrb[0].mxu0
        %5373 = vmatprep.mubr.f32.mxu0 0.0
        %5374 = vmatmul.mubr.f32.gmra.mrb[0].mxu0 %v5144
        %v5375 = vpop.f32.mrb[0].mxu0
        %v5376 = vadd.f32 0.0, %v5375
        %v5377 = vpop.f32.mrb[0].mxu0
        %5378 = vmatprep.mubr.f32.mxu0 0.0
        %5379 = vmatmul.mubr.f32.gmra.mrb[0].mxu0 %v5145
        %v5380 = vpop.f32.mrb[0].mxu0
        %v5381 = vadd.f32 0.0, %v5380
        %v5382 = vpop.f32.mrb[0].mxu0
        %5383 = vmatprep.mubr.f32.mxu0 0.0
        %5384 = vmatmul.mubr.f32.gmra.mrb[0].mxu0 %v5146
        %v5385 = vpop.f32.mrb[0].mxu0
        %v5386 = vadd.f32 0.0, %v5385
        %v5387 = vpop.f32.mrb[0].mxu0
        %5388 = vmatprep.mubr.f32.mxu0 0.0
        %5389 = vmatmul.mubr.f32.gmra.mrb[0].mxu0 %v5147
        %v5390 = vpop.f32.mrb[0].mxu0
        %v5391 = vadd.f32 0.0, %v5390
        %v5392 = vpop.f32.mrb[0].mxu0
        %5393 = vmatprep.mubr.f32.mxu0 0.0
        %5394 = vmatmul.mubr.f32.gmra.mrb[0].mxu0 %v5148
        %v5395 = vpop.f32.mrb[0].mxu0
        %v5396 = vadd.f32 0.0, %v5395
        %v5397 = vpop.f32.mrb[0].mxu0
        %5398 = vmatprep.mubr.f32.mxu0 0.0
        %5399 = vmatmul.mubr.f32.gmra.mrb[0].mxu0 %v5149
        %v5400 = vpop.f32.mrb[0].mxu0
        %v5401 = vadd.f32 0.0, %v5400
        %v5402 = vpop.f32.mrb[0].mxu0
        %5403 = vmatprep.mubr.f32.mxu0 0.0
        %5404 = vmatmul.mubr.f32.gmra.mrb[0].mxu0 %v5150
        %v5405 = vpop.f32.mrb[0].mxu0
        %v5406 = vadd.f32 0.0, %v5405
        %v5407 = vpop.f32.mrb[0].mxu0
        %5408 = vmatprep.mubr.f32.mxu0 0.0
        %5409 = vmatmul.mubr.f32.gmra.mrb[0].mxu0 %v5151
        %v5410 = vpop.f32.mrb[0].mxu0
        %v5411 = vadd.f32 0.0, %v5410
        %v5412 = vpop.f32.mrb[0].mxu0
        %5413 = vdwg.mxu0
        %v5414 = vadd.f32 %v5080, %v5236
        %v5415 = vadd.f32 %v5081, %v5241
        %v5416 = vadd.f32 %v5082, %v5246
        %v5417 = vadd.f32 %v5083, %v5251
        %v5418 = vadd.f32 %v5084, %v5256
        %v5419 = vadd.f32 %v5085, %v5261
        %v5420 = vadd.f32 %v5086, %v5266
        %v5421 = vadd.f32 %v5087, %v5271
        %v5422 = vadd.f32 %v5088, %v5276
        %v5423 = vadd.f32 %v5089, %v5281
        %v5424 = vadd.f32 %v5090, %v5286
        %v5425 = vadd.f32 %v5091, %v5291
        %v5426 = vadd.f32 %v5092, %v5296
        %v5427 = vadd.f32 %v5093, %v5301
        %v5428 = vadd.f32 %v5094, %v5306
        %v5429 = vadd.f32 %v5095, %v5311
        %v5430 = vadd.f32 %v5096, %v5316
        %v5431 = vadd.f32 %v5097, %v5321
        %v5432 = vadd.f32 %v5098, %v5326
        %v5433 = vadd.f32 %v5099, %v5331
        %v5434 = vadd.f32 %v5100, %v5336
        %v5435 = vadd.f32 %v5101, %v5341
        %v5436 = vadd.f32 %v5102, %v5346
        %v5437 = vadd.f32 %v5103, %v5351
        %v5438 = vadd.f32 %v5104, %v5356
        %v5439 = vadd.f32 %v5105, %v5361
        %v5440 = vadd.f32 %v5106, %v5366
        %v5441 = vadd.f32 %v5107, %v5371
        %v5442 = vadd.f32 %v5108, %v5376
        %v5443 = vadd.f32 %v5109, %v5381
        %v5444 = vadd.f32 %v5110, %v5386
        %v5445 = vadd.f32 %v5111, %v5391
        %v5446 = vadd.f32 %v5112, %v5396
        %v5447 = vadd.f32 %v5113, %v5401
        %v5448 = vadd.f32 %v5114, %v5406
        %v5449 = vadd.f32 %v5115, %v5411
        %v5450 = vld [vmem:[#allocation2 + $0x19] sm:$0xff]
        %v5451 = vld [vmem:[#allocation2 + $0x21] sm:$0xff]
        %v5452 = vld [vmem:[#allocation2 + $0x29] sm:$0xff]
        %v5453 = vld [vmem:[#allocation2 + $0x31] sm:$0xff]
        %v5454 = vld [vmem:[#allocation2 + $0x39] sm:$0xff]
        %v5455 = vld [vmem:[#allocation2 + $0x41] sm:$0xff]
        %v5456 = vld [vmem:[#allocation2 + $0x49] sm:$0xff]
        %v5457 = vld [vmem:[#allocation2 + $0x51] sm:$0xff]
        %v5458 = vld [vmem:[#allocation2 + $0x59] sm:$0xff]
        %v5459 = vld [vmem:[#allocation2 + $0x61] sm:$0xff]
        %v5460 = vld [vmem:[#allocation2 + $0x69] sm:$0xff]
        %v5461 = vld [vmem:[#allocation2 + $0x71] sm:$0xff]
        %v5462 = vld [vmem:[#allocation2 + $0x79] sm:$0xff]
        %v5463 = vld [vmem:[#allocation2 + $0x81] sm:$0xff]
        %v5464 = vld [vmem:[#allocation2 + $0x89] sm:$0xff]
        %v5465 = vld [vmem:[#allocation2 + $0x91] sm:$0xff]
        %v5466 = vld [vmem:[#allocation2 + $0x99] sm:$0xff]
        %v5467 = vld [vmem:[#allocation2 + $0xa1] sm:$0xff]
        %v5468 = vld [vmem:[#allocation2 + $0xa9] sm:$0xff]
        %v5469 = vld [vmem:[#allocation2 + $0xb1] sm:$0xff]
        %v5470 = vld [vmem:[#allocation2 + $0xb9] sm:$0xff]
        %v5471 = vld [vmem:[#allocation2 + $0xc1] sm:$0xff]
        %v5472 = vld [vmem:[#allocation2 + $0xc9] sm:$0xff]
        %v5473 = vld [vmem:[#allocation2 + $0xd1] sm:$0xff]
        %v5474 = vld [vmem:[#allocation2 + $0xd9] sm:$0xff]
        %v5475 = vld [vmem:[#allocation2 + $0xe1] sm:$0xff]
        %v5476 = vld [vmem:[#allocation2 + $0xe9] sm:$0xff]
        %v5477 = vld [vmem:[#allocation2 + $0xf1] sm:$0xff]
        %v5478 = vld [vmem:[#allocation2 + $0xf9] sm:$0xff]
        %v5479 = vld [vmem:[#allocation2 + $0x101] sm:$0xff]
        %v5480 = vld [vmem:[#allocation2 + $0x109] sm:$0xff]
        %v5481 = vld [vmem:[#allocation2 + $0x111] sm:$0xff]
        %v5482 = vld [vmem:[#allocation2 + $0x119] sm:$0xff]
        %v5483 = vld [vmem:[#allocation2 + $0x121] sm:$0xff]
        %v5484 = vld [vmem:[#allocation2 + $0x129] sm:$0xff]
        %v5485 = vld [vmem:[#allocation2 + $0x131] sm:$0x3f]
        %s5486 = scalar_lea.vmem [#allocation8], 640
        %v5487 = vld [vmem:[%s5486] sm:$0xff]
        %v5488 = vld [vmem:[%s5486 + $0x8] sm:$0xff]
        %v5489 = vld [vmem:[%s5486 + $0x10] sm:$0xff]
        %v5490 = vld [vmem:[%s5486 + $0x18] sm:$0xff]
        %v5491 = vld [vmem:[%s5486 + $0x20] sm:$0xff]
        %v5492 = vld [vmem:[%s5486 + $0x28] sm:$0xff]
        %v5493 = vld [vmem:[%s5486 + $0x30] sm:$0xff]
        %v5494 = vld [vmem:[%s5486 + $0x38] sm:$0xff]
        %v5495 = vld [vmem:[%s5486 + $0x40] sm:$0xff]
        %v5496 = vld [vmem:[%s5486 + $0x48] sm:$0xff]
        %v5497 = vld [vmem:[%s5486 + $0x50] sm:$0xff]
        %v5498 = vld [vmem:[%s5486 + $0x58] sm:$0xff]
        %v5499 = vld [vmem:[%s5486 + $0x60] sm:$0xff]
        %v5500 = vld [vmem:[%s5486 + $0x68] sm:$0xff]
        %v5501 = vld [vmem:[%s5486 + $0x70] sm:$0xff]
        %v5502 = vld [vmem:[%s5486 + $0x78] sm:$0xff]
        %5503 = vmatprep.subr.mxu0 0.0
        %5504 = vmatpush1.msra.mxu0 %v5487
        %5505 = vmatprep.subr.mxu0 0.0
        %5506 = vmatpush1.msra.mxu0 %v5488
        %5507 = vmatprep.subr.mxu0 0.0
        %5508 = vmatpush1.msra.mxu0 %v5489
        %5509 = vmatprep.subr.mxu0 0.0
        %5510 = vmatpush1.msra.mxu0 %v5490
        %5511 = vmatprep.subr.mxu0 0.0
        %5512 = vmatpush1.msra.mxu0 %v5491
        %5513 = vmatprep.subr.mxu0 0.0
        %5514 = vmatpush1.msra.mxu0 %v5492
        %5515 = vmatprep.subr.mxu0 0.0
        %5516 = vmatpush1.msra.mxu0 %v5493
        %5517 = vmatprep.subr.mxu0 0.0
        %5518 = vmatpush1.msra.mxu0 %v5494
        %5519 = vmatprep.subr.mxu0 0.0
        %5520 = vmatpush1.msra.mxu0 %v5495
        %5521 = vmatprep.subr.mxu0 0.0
        %5522 = vmatpush1.msra.mxu0 %v5496
        %5523 = vmatprep.subr.mxu0 0.0
        %5524 = vmatpush1.msra.mxu0 %v5497
        %5525 = vmatprep.subr.mxu0 0.0
        %5526 = vmatpush1.msra.mxu0 %v5498
        %5527 = vmatprep.subr.mxu0 0.0
        %5528 = vmatpush1.msra.mxu0 %v5499
        %5529 = vmatprep.subr.mxu0 0.0
        %5530 = vmatpush1.msra.mxu0 %v5500
        %5531 = vmatprep.subr.mxu0 0.0
        %5532 = vmatpush1.msra.mxu0 %v5501
        %5533 = vmatprep.subr.mxu0 0.0
        %5534 = vmatpush1.msra.mxu0 %v5502
        %5535 = vmatprep.subr.mxu0 0.0
        %5536 = vmatpush1.msra.mxu0 0.0
        %5537 = vmatprep.subr.mxu0 0.0
        %5538 = vmatpush1.msra.mxu0 0.0
        %5539 = vmatprep.subr.mxu0 0.0
        %5540 = vmatpush1.msra.mxu0 0.0
        %5541 = vmatprep.subr.mxu0 0.0
        %5542 = vmatpush1.msra.mxu0 0.0
        %5543 = vmatprep.subr.mxu0 0.0
        %5544 = vmatpush1.msra.mxu0 0.0
        %5545 = vmatprep.subr.mxu0 0.0
        %5546 = vmatpush1.msra.mxu0 0.0
        %5547 = vmatprep.subr.mxu0 0.0
        %5548 = vmatpush1.msra.mxu0 0.0
        %5549 = vmatprep.subr.mxu0 0.0
        %5550 = vmatpush1.msra.mxu0 0.0
        %5551 = vmatprep.subr.mxu0 0.0
        %5552 = vmatpush1.msra.mxu0 0.0
        %5553 = vmatprep.subr.mxu0 0.0
        %5554 = vmatpush1.msra.mxu0 0.0
        %5555 = vmatprep.subr.mxu0 0.0
        %5556 = vmatpush1.msra.mxu0 0.0
        %5557 = vmatprep.subr.mxu0 0.0
        %5558 = vmatpush1.msra.mxu0 0.0
        %5559 = vmatprep.subr.mxu0 0.0
        %5560 = vmatpush1.msra.mxu0 0.0
        %5561 = vmatprep.subr.mxu0 0.0
        %5562 = vmatpush1.msra.mxu0 0.0
        %5563 = vmatprep.subr.mxu0 0.0
        %5564 = vmatpush1.msra.mxu0 0.0
        %5565 = vmatprep.subr.mxu0 0.0
        %5566 = vmatpush1.msra.mxu0 0.0
        %5567 = vmatprep.mubr.f32.mxu0 0.0
        %5568 = vmatmul.mubr.f32.gmra.mrb[0].mxu0 %v5450
        %v5569 = vpop.f32.mrb[0].mxu0
        %v5570 = vadd.f32 0.0, %v5569
        %v5571 = vpop.f32.mrb[0].mxu0
        %5572 = vmatprep.mubr.f32.mxu0 0.0
        %5573 = vmatmul.mubr.f32.gmra.mrb[0].mxu0 %v5451
        %v5574 = vpop.f32.mrb[0].mxu0
        %v5575 = vadd.f32 0.0, %v5574
        %v5576 = vpop.f32.mrb[0].mxu0
        %5577 = vmatprep.mubr.f32.mxu0 0.0
        %5578 = vmatmul.mubr.f32.gmra.mrb[0].mxu0 %v5452
        %v5579 = vpop.f32.mrb[0].mxu0
        %v5580 = vadd.f32 0.0, %v5579
        %v5581 = vpop.f32.mrb[0].mxu0
        %5582 = vmatprep.mubr.f32.mxu0 0.0
        %5583 = vmatmul.mubr.f32.gmra.mrb[0].mxu0 %v5453
        %v5584 = vpop.f32.mrb[0].mxu0
        %v5585 = vadd.f32 0.0, %v5584
        %v5586 = vpop.f32.mrb[0].mxu0
        %5587 = vmatprep.mubr.f32.mxu0 0.0
        %5588 = vmatmul.mubr.f32.gmra.mrb[0].mxu0 %v5454
        %v5589 = vpop.f32.mrb[0].mxu0
        %v5590 = vadd.f32 0.0, %v5589
        %v5591 = vpop.f32.mrb[0].mxu0
        %5592 = vmatprep.mubr.f32.mxu0 0.0
        %5593 = vmatmul.mubr.f32.gmra.mrb[0].mxu0 %v5455
        %v5594 = vpop.f32.mrb[0].mxu0
        %v5595 = vadd.f32 0.0, %v5594
        %v5596 = vpop.f32.mrb[0].mxu0
        %5597 = vmatprep.mubr.f32.mxu0 0.0
        %5598 = vmatmul.mubr.f32.gmra.mrb[0].mxu0 %v5456
        %v5599 = vpop.f32.mrb[0].mxu0
        %v5600 = vadd.f32 0.0, %v5599
        %v5601 = vpop.f32.mrb[0].mxu0
        %5602 = vmatprep.mubr.f32.mxu0 0.0
        %5603 = vmatmul.mubr.f32.gmra.mrb[0].mxu0 %v5457
        %v5604 = vpop.f32.mrb[0].mxu0
        %v5605 = vadd.f32 0.0, %v5604
        %v5606 = vpop.f32.mrb[0].mxu0
        %5607 = vmatprep.mubr.f32.mxu0 0.0
        %5608 = vmatmul.mubr.f32.gmra.mrb[0].mxu0 %v5458
        %v5609 = vpop.f32.mrb[0].mxu0
        %v5610 = vadd.f32 0.0, %v5609
        %v5611 = vpop.f32.mrb[0].mxu0
        %5612 = vmatprep.mubr.f32.mxu0 0.0
        %5613 = vmatmul.mubr.f32.gmra.mrb[0].mxu0 %v5459
        %v5614 = vpop.f32.mrb[0].mxu0
        %v5615 = vadd.f32 0.0, %v5614
        %v5616 = vpop.f32.mrb[0].mxu0
        %5617 = vmatprep.mubr.f32.mxu0 0.0
        %5618 = vmatmul.mubr.f32.gmra.mrb[0].mxu0 %v5460
        %v5619 = vpop.f32.mrb[0].mxu0
        %v5620 = vadd.f32 0.0, %v5619
        %v5621 = vpop.f32.mrb[0].mxu0
        %5622 = vmatprep.mubr.f32.mxu0 0.0
        %5623 = vmatmul.mubr.f32.gmra.mrb[0].mxu0 %v5461
        %v5624 = vpop.f32.mrb[0].mxu0
        %v5625 = vadd.f32 0.0, %v5624
        %v5626 = vpop.f32.mrb[0].mxu0
        %5627 = vmatprep.mubr.f32.mxu0 0.0
        %5628 = vmatmul.mubr.f32.gmra.mrb[0].mxu0 %v5462
        %v5629 = vpop.f32.mrb[0].mxu0
        %v5630 = vadd.f32 0.0, %v5629
        %v5631 = vpop.f32.mrb[0].mxu0
        %5632 = vmatprep.mubr.f32.mxu0 0.0
        %5633 = vmatmul.mubr.f32.gmra.mrb[0].mxu0 %v5463
        %v5634 = vpop.f32.mrb[0].mxu0
        %v5635 = vadd.f32 0.0, %v5634
        %v5636 = vpop.f32.mrb[0].mxu0
        %5637 = vmatprep.mubr.f32.mxu0 0.0
        %5638 = vmatmul.mubr.f32.gmra.mrb[0].mxu0 %v5464
        %v5639 = vpop.f32.mrb[0].mxu0
        %v5640 = vadd.f32 0.0, %v5639
        %v5641 = vpop.f32.mrb[0].mxu0
        %5642 = vmatprep.mubr.f32.mxu0 0.0
        %5643 = vmatmul.mubr.f32.gmra.mrb[0].mxu0 %v5465
        %v5644 = vpop.f32.mrb[0].mxu0
        %v5645 = vadd.f32 0.0, %v5644
        %v5646 = vpop.f32.mrb[0].mxu0
        %5647 = vmatprep.mubr.f32.mxu0 0.0
        %5648 = vmatmul.mubr.f32.gmra.mrb[0].mxu0 %v5466
        %v5649 = vpop.f32.mrb[0].mxu0
        %v5650 = vadd.f32 0.0, %v5649
        %v5651 = vpop.f32.mrb[0].mxu0
        %5652 = vmatprep.mubr.f32.mxu0 0.0
        %5653 = vmatmul.mubr.f32.gmra.mrb[0].mxu0 %v5467
        %v5654 = vpop.f32.mrb[0].mxu0
        %v5655 = vadd.f32 0.0, %v5654
        %v5656 = vpop.f32.mrb[0].mxu0
        %5657 = vmatprep.mubr.f32.mxu0 0.0
        %5658 = vmatmul.mubr.f32.gmra.mrb[0].mxu0 %v5468
        %v5659 = vpop.f32.mrb[0].mxu0
        %v5660 = vadd.f32 0.0, %v5659
        %v5661 = vpop.f32.mrb[0].mxu0
        %5662 = vmatprep.mubr.f32.mxu0 0.0
        %5663 = vmatmul.mubr.f32.gmra.mrb[0].mxu0 %v5469
        %v5664 = vpop.f32.mrb[0].mxu0
        %v5665 = vadd.f32 0.0, %v5664
        %v5666 = vpop.f32.mrb[0].mxu0
        %5667 = vmatprep.mubr.f32.mxu0 0.0
        %5668 = vmatmul.mubr.f32.gmra.mrb[0].mxu0 %v5470
        %v5669 = vpop.f32.mrb[0].mxu0
        %v5670 = vadd.f32 0.0, %v5669
        %v5671 = vpop.f32.mrb[0].mxu0
        %5672 = vmatprep.mubr.f32.mxu0 0.0
        %5673 = vmatmul.mubr.f32.gmra.mrb[0].mxu0 %v5471
        %v5674 = vpop.f32.mrb[0].mxu0
        %v5675 = vadd.f32 0.0, %v5674
        %v5676 = vpop.f32.mrb[0].mxu0
        %5677 = vmatprep.mubr.f32.mxu0 0.0
        %5678 = vmatmul.mubr.f32.gmra.mrb[0].mxu0 %v5472
        %v5679 = vpop.f32.mrb[0].mxu0
        %v5680 = vadd.f32 0.0, %v5679
        %v5681 = vpop.f32.mrb[0].mxu0
        %5682 = vmatprep.mubr.f32.mxu0 0.0
        %5683 = vmatmul.mubr.f32.gmra.mrb[0].mxu0 %v5473
        %v5684 = vpop.f32.mrb[0].mxu0
        %v5685 = vadd.f32 0.0, %v5684
        %v5686 = vpop.f32.mrb[0].mxu0
        %5687 = vmatprep.mubr.f32.mxu0 0.0
        %5688 = vmatmul.mubr.f32.gmra.mrb[0].mxu0 %v5474
        %v5689 = vpop.f32.mrb[0].mxu0
        %v5690 = vadd.f32 0.0, %v5689
        %v5691 = vpop.f32.mrb[0].mxu0
        %5692 = vmatprep.mubr.f32.mxu0 0.0
        %5693 = vmatmul.mubr.f32.gmra.mrb[0].mxu0 %v5475
        %v5694 = vpop.f32.mrb[0].mxu0
        %v5695 = vadd.f32 0.0, %v5694
        %v5696 = vpop.f32.mrb[0].mxu0
        %5697 = vmatprep.mubr.f32.mxu0 0.0
        %5698 = vmatmul.mubr.f32.gmra.mrb[0].mxu0 %v5476
        %v5699 = vpop.f32.mrb[0].mxu0
        %v5700 = vadd.f32 0.0, %v5699
        %v5701 = vpop.f32.mrb[0].mxu0
        %5702 = vmatprep.mubr.f32.mxu0 0.0
        %5703 = vmatmul.mubr.f32.gmra.mrb[0].mxu0 %v5477
        %v5704 = vpop.f32.mrb[0].mxu0
        %v5705 = vadd.f32 0.0, %v5704
        %v5706 = vpop.f32.mrb[0].mxu0
        %5707 = vmatprep.mubr.f32.mxu0 0.0
        %5708 = vmatmul.mubr.f32.gmra.mrb[0].mxu0 %v5478
        %v5709 = vpop.f32.mrb[0].mxu0
        %v5710 = vadd.f32 0.0, %v5709
        %v5711 = vpop.f32.mrb[0].mxu0
        %5712 = vmatprep.mubr.f32.mxu0 0.0
        %5713 = vmatmul.mubr.f32.gmra.mrb[0].mxu0 %v5479
        %v5714 = vpop.f32.mrb[0].mxu0
        %v5715 = vadd.f32 0.0, %v5714
        %v5716 = vpop.f32.mrb[0].mxu0
        %5717 = vmatprep.mubr.f32.mxu0 0.0
        %5718 = vmatmul.mubr.f32.gmra.mrb[0].mxu0 %v5480
        %v5719 = vpop.f32.mrb[0].mxu0
        %v5720 = vadd.f32 0.0, %v5719
        %v5721 = vpop.f32.mrb[0].mxu0
        %5722 = vmatprep.mubr.f32.mxu0 0.0
        %5723 = vmatmul.mubr.f32.gmra.mrb[0].mxu0 %v5481
        %v5724 = vpop.f32.mrb[0].mxu0
        %v5725 = vadd.f32 0.0, %v5724
        %v5726 = vpop.f32.mrb[0].mxu0
        %5727 = vmatprep.mubr.f32.mxu0 0.0
        %5728 = vmatmul.mubr.f32.gmra.mrb[0].mxu0 %v5482
        %v5729 = vpop.f32.mrb[0].mxu0
        %v5730 = vadd.f32 0.0, %v5729
        %v5731 = vpop.f32.mrb[0].mxu0
        %5732 = vmatprep.mubr.f32.mxu0 0.0
        %5733 = vmatmul.mubr.f32.gmra.mrb[0].mxu0 %v5483
        %v5734 = vpop.f32.mrb[0].mxu0
        %v5735 = vadd.f32 0.0, %v5734
        %v5736 = vpop.f32.mrb[0].mxu0
        %5737 = vmatprep.mubr.f32.mxu0 0.0
        %5738 = vmatmul.mubr.f32.gmra.mrb[0].mxu0 %v5484
        %v5739 = vpop.f32.mrb[0].mxu0
        %v5740 = vadd.f32 0.0, %v5739
        %v5741 = vpop.f32.mrb[0].mxu0
        %5742 = vmatprep.mubr.f32.mxu0 0.0
        %5743 = vmatmul.mubr.f32.gmra.mrb[0].mxu0 %v5485
        %v5744 = vpop.f32.mrb[0].mxu0
        %v5745 = vadd.f32 0.0, %v5744
        %v5746 = vpop.f32.mrb[0].mxu0
        %5747 = vdwg.mxu0
        %v5748 = vadd.f32 %v5414, %v5570
        %v5749 = vadd.f32 %v5415, %v5575
        %v5750 = vadd.f32 %v5416, %v5580
        %v5751 = vadd.f32 %v5417, %v5585
        %v5752 = vadd.f32 %v5418, %v5590
        %v5753 = vadd.f32 %v5419, %v5595
        %v5754 = vadd.f32 %v5420, %v5600
        %v5755 = vadd.f32 %v5421, %v5605
        %v5756 = vadd.f32 %v5422, %v5610
        %v5757 = vadd.f32 %v5423, %v5615
        %v5758 = vadd.f32 %v5424, %v5620
        %v5759 = vadd.f32 %v5425, %v5625
        %v5760 = vadd.f32 %v5426, %v5630
        %v5761 = vadd.f32 %v5427, %v5635
        %v5762 = vadd.f32 %v5428, %v5640
        %v5763 = vadd.f32 %v5429, %v5645
        %v5764 = vadd.f32 %v5430, %v5650
        %v5765 = vadd.f32 %v5431, %v5655
        %v5766 = vadd.f32 %v5432, %v5660
        %v5767 = vadd.f32 %v5433, %v5665
        %v5768 = vadd.f32 %v5434, %v5670
        %v5769 = vadd.f32 %v5435, %v5675
        %v5770 = vadd.f32 %v5436, %v5680
        %v5771 = vadd.f32 %v5437, %v5685
        %v5772 = vadd.f32 %v5438, %v5690
        %v5773 = vadd.f32 %v5439, %v5695
        %v5774 = vadd.f32 %v5440, %v5700
        %v5775 = vadd.f32 %v5441, %v5705
        %v5776 = vadd.f32 %v5442, %v5710
        %v5777 = vadd.f32 %v5443, %v5715
        %v5778 = vadd.f32 %v5444, %v5720
        %v5779 = vadd.f32 %v5445, %v5725
        %v5780 = vadd.f32 %v5446, %v5730
        %v5781 = vadd.f32 %v5447, %v5735
        %v5782 = vadd.f32 %v5448, %v5740
        %v5783 = vadd.f32 %v5449, %v5745
        %v5784 = vld [vmem:[#allocation2 + $0x29] sm:$0xff]
        %v5785 = vld [vmem:[#allocation2 + $0x31] sm:$0xff]
        %v5786 = vld [vmem:[#allocation2 + $0x39] sm:$0xff]
        %v5787 = vld [vmem:[#allocation2 + $0x41] sm:$0xff]
        %v5788 = vld [vmem:[#allocation2 + $0x49] sm:$0xff]
        %v5789 = vld [vmem:[#allocation2 + $0x51] sm:$0xff]
        %v5790 = vld [vmem:[#allocation2 + $0x59] sm:$0xff]
        %v5791 = vld [vmem:[#allocation2 + $0x61] sm:$0xff]
        %v5792 = vld [vmem:[#allocation2 + $0x69] sm:$0xff]
        %v5793 = vld [vmem:[#allocation2 + $0x71] sm:$0xff]
        %v5794 = vld [vmem:[#allocation2 + $0x79] sm:$0xff]
        %v5795 = vld [vmem:[#allocation2 + $0x81] sm:$0xff]
        %v5796 = vld [vmem:[#allocation2 + $0x89] sm:$0xff]
        %v5797 = vld [vmem:[#allocation2 + $0x91] sm:$0xff]
        %v5798 = vld [vmem:[#allocation2 + $0x99] sm:$0xff]
        %v5799 = vld [vmem:[#allocation2 + $0xa1] sm:$0xff]
        %v5800 = vld [vmem:[#allocation2 + $0xa9] sm:$0xff]
        %v5801 = vld [vmem:[#allocation2 + $0xb1] sm:$0xff]
        %v5802 = vld [vmem:[#allocation2 + $0xb9] sm:$0xff]
        %v5803 = vld [vmem:[#allocation2 + $0xc1] sm:$0xff]
        %v5804 = vld [vmem:[#allocation2 + $0xc9] sm:$0xff]
        %v5805 = vld [vmem:[#allocation2 + $0xd1] sm:$0xff]
        %v5806 = vld [vmem:[#allocation2 + $0xd9] sm:$0xff]
        %v5807 = vld [vmem:[#allocation2 + $0xe1] sm:$0xff]
        %v5808 = vld [vmem:[#allocation2 + $0xe9] sm:$0xff]
        %v5809 = vld [vmem:[#allocation2 + $0xf1] sm:$0xff]
        %v5810 = vld [vmem:[#allocation2 + $0xf9] sm:$0xff]
        %v5811 = vld [vmem:[#allocation2 + $0x101] sm:$0xff]
        %v5812 = vld [vmem:[#allocation2 + $0x109] sm:$0xff]
        %v5813 = vld [vmem:[#allocation2 + $0x111] sm:$0xff]
        %v5814 = vld [vmem:[#allocation2 + $0x119] sm:$0xff]
        %v5815 = vld [vmem:[#allocation2 + $0x121] sm:$0xff]
        %v5816 = vld [vmem:[#allocation2 + $0x129] sm:$0xff]
        %v5817 = vld [vmem:[#allocation2 + $0x131] sm:$0xff]
        %v5818 = vld [vmem:[#allocation2 + $0x139] sm:$0xff]
        %v5819 = vld [vmem:[#allocation2 + $0x141] sm:$0x3f]
        %s5820 = scalar_lea.vmem [#allocation8], 768
        %v5821 = vld [vmem:[%s5820] sm:$0xff]
        %v5822 = vld [vmem:[%s5820 + $0x8] sm:$0xff]
        %v5823 = vld [vmem:[%s5820 + $0x10] sm:$0xff]
        %v5824 = vld [vmem:[%s5820 + $0x18] sm:$0xff]
        %v5825 = vld [vmem:[%s5820 + $0x20] sm:$0xff]
        %v5826 = vld [vmem:[%s5820 + $0x28] sm:$0xff]
        %v5827 = vld [vmem:[%s5820 + $0x30] sm:$0xff]
        %v5828 = vld [vmem:[%s5820 + $0x38] sm:$0xff]
        %v5829 = vld [vmem:[%s5820 + $0x40] sm:$0xff]
        %v5830 = vld [vmem:[%s5820 + $0x48] sm:$0xff]
        %v5831 = vld [vmem:[%s5820 + $0x50] sm:$0xff]
        %v5832 = vld [vmem:[%s5820 + $0x58] sm:$0xff]
        %v5833 = vld [vmem:[%s5820 + $0x60] sm:$0xff]
        %v5834 = vld [vmem:[%s5820 + $0x68] sm:$0xff]
        %v5835 = vld [vmem:[%s5820 + $0x70] sm:$0xff]
        %v5836 = vld [vmem:[%s5820 + $0x78] sm:$0xff]
        %5837 = vmatprep.subr.mxu0 0.0
        %5838 = vmatpush1.msra.mxu0 %v5821
        %5839 = vmatprep.subr.mxu0 0.0
        %5840 = vmatpush1.msra.mxu0 %v5822
        %5841 = vmatprep.subr.mxu0 0.0
        %5842 = vmatpush1.msra.mxu0 %v5823
        %5843 = vmatprep.subr.mxu0 0.0
        %5844 = vmatpush1.msra.mxu0 %v5824
        %5845 = vmatprep.subr.mxu0 0.0
        %5846 = vmatpush1.msra.mxu0 %v5825
        %5847 = vmatprep.subr.mxu0 0.0
        %5848 = vmatpush1.msra.mxu0 %v5826
        %5849 = vmatprep.subr.mxu0 0.0
        %5850 = vmatpush1.msra.mxu0 %v5827
        %5851 = vmatprep.subr.mxu0 0.0
        %5852 = vmatpush1.msra.mxu0 %v5828
        %5853 = vmatprep.subr.mxu0 0.0
        %5854 = vmatpush1.msra.mxu0 %v5829
        %5855 = vmatprep.subr.mxu0 0.0
        %5856 = vmatpush1.msra.mxu0 %v5830
        %5857 = vmatprep.subr.mxu0 0.0
        %5858 = vmatpush1.msra.mxu0 %v5831
        %5859 = vmatprep.subr.mxu0 0.0
        %5860 = vmatpush1.msra.mxu0 %v5832
        %5861 = vmatprep.subr.mxu0 0.0
        %5862 = vmatpush1.msra.mxu0 %v5833
        %5863 = vmatprep.subr.mxu0 0.0
        %5864 = vmatpush1.msra.mxu0 %v5834
        %5865 = vmatprep.subr.mxu0 0.0
        %5866 = vmatpush1.msra.mxu0 %v5835
        %5867 = vmatprep.subr.mxu0 0.0
        %5868 = vmatpush1.msra.mxu0 %v5836
        %5869 = vmatprep.subr.mxu0 0.0
        %5870 = vmatpush1.msra.mxu0 0.0
        %5871 = vmatprep.subr.mxu0 0.0
        %5872 = vmatpush1.msra.mxu0 0.0
        %5873 = vmatprep.subr.mxu0 0.0
        %5874 = vmatpush1.msra.mxu0 0.0
        %5875 = vmatprep.subr.mxu0 0.0
        %5876 = vmatpush1.msra.mxu0 0.0
        %5877 = vmatprep.subr.mxu0 0.0
        %5878 = vmatpush1.msra.mxu0 0.0
        %5879 = vmatprep.subr.mxu0 0.0
        %5880 = vmatpush1.msra.mxu0 0.0
        %5881 = vmatprep.subr.mxu0 0.0
        %5882 = vmatpush1.msra.mxu0 0.0
        %5883 = vmatprep.subr.mxu0 0.0
        %5884 = vmatpush1.msra.mxu0 0.0
        %5885 = vmatprep.subr.mxu0 0.0
        %5886 = vmatpush1.msra.mxu0 0.0
        %5887 = vmatprep.subr.mxu0 0.0
        %5888 = vmatpush1.msra.mxu0 0.0
        %5889 = vmatprep.subr.mxu0 0.0
        %5890 = vmatpush1.msra.mxu0 0.0
        %5891 = vmatprep.subr.mxu0 0.0
        %5892 = vmatpush1.msra.mxu0 0.0
        %5893 = vmatprep.subr.mxu0 0.0
        %5894 = vmatpush1.msra.mxu0 0.0
        %5895 = vmatprep.subr.mxu0 0.0
        %5896 = vmatpush1.msra.mxu0 0.0
        %5897 = vmatprep.subr.mxu0 0.0
        %5898 = vmatpush1.msra.mxu0 0.0
        %5899 = vmatprep.subr.mxu0 0.0
        %5900 = vmatpush1.msra.mxu0 0.0
        %5901 = vmatprep.mubr.f32.mxu0 0.0
        %5902 = vmatmul.mubr.f32.gmra.mrb[0].mxu0 %v5784
        %v5903 = vpop.f32.mrb[0].mxu0
        %v5904 = vadd.f32 0.0, %v5903
        %v5905 = vpop.f32.mrb[0].mxu0
        %5906 = vmatprep.mubr.f32.mxu0 0.0
        %5907 = vmatmul.mubr.f32.gmra.mrb[0].mxu0 %v5785
        %v5908 = vpop.f32.mrb[0].mxu0
        %v5909 = vadd.f32 0.0, %v5908
        %v5910 = vpop.f32.mrb[0].mxu0
        %5911 = vmatprep.mubr.f32.mxu0 0.0
        %5912 = vmatmul.mubr.f32.gmra.mrb[0].mxu0 %v5786
        %v5913 = vpop.f32.mrb[0].mxu0
        %v5914 = vadd.f32 0.0, %v5913
        %v5915 = vpop.f32.mrb[0].mxu0
        %5916 = vmatprep.mubr.f32.mxu0 0.0
        %5917 = vmatmul.mubr.f32.gmra.mrb[0].mxu0 %v5787
        %v5918 = vpop.f32.mrb[0].mxu0
        %v5919 = vadd.f32 0.0, %v5918
        %v5920 = vpop.f32.mrb[0].mxu0
        %5921 = vmatprep.mubr.f32.mxu0 0.0
        %5922 = vmatmul.mubr.f32.gmra.mrb[0].mxu0 %v5788
        %v5923 = vpop.f32.mrb[0].mxu0
        %v5924 = vadd.f32 0.0, %v5923
        %v5925 = vpop.f32.mrb[0].mxu0
        %5926 = vmatprep.mubr.f32.mxu0 0.0
        %5927 = vmatmul.mubr.f32.gmra.mrb[0].mxu0 %v5789
        %v5928 = vpop.f32.mrb[0].mxu0
        %v5929 = vadd.f32 0.0, %v5928
        %v5930 = vpop.f32.mrb[0].mxu0
        %5931 = vmatprep.mubr.f32.mxu0 0.0
        %5932 = vmatmul.mubr.f32.gmra.mrb[0].mxu0 %v5790
        %v5933 = vpop.f32.mrb[0].mxu0
        %v5934 = vadd.f32 0.0, %v5933
        %v5935 = vpop.f32.mrb[0].mxu0
        %5936 = vmatprep.mubr.f32.mxu0 0.0
        %5937 = vmatmul.mubr.f32.gmra.mrb[0].mxu0 %v5791
        %v5938 = vpop.f32.mrb[0].mxu0
        %v5939 = vadd.f32 0.0, %v5938
        %v5940 = vpop.f32.mrb[0].mxu0
        %5941 = vmatprep.mubr.f32.mxu0 0.0
        %5942 = vmatmul.mubr.f32.gmra.mrb[0].mxu0 %v5792
        %v5943 = vpop.f32.mrb[0].mxu0
        %v5944 = vadd.f32 0.0, %v5943
        %v5945 = vpop.f32.mrb[0].mxu0
        %5946 = vmatprep.mubr.f32.mxu0 0.0
        %5947 = vmatmul.mubr.f32.gmra.mrb[0].mxu0 %v5793
        %v5948 = vpop.f32.mrb[0].mxu0
        %v5949 = vadd.f32 0.0, %v5948
        %v5950 = vpop.f32.mrb[0].mxu0
        %5951 = vmatprep.mubr.f32.mxu0 0.0
        %5952 = vmatmul.mubr.f32.gmra.mrb[0].mxu0 %v5794
        %v5953 = vpop.f32.mrb[0].mxu0
        %v5954 = vadd.f32 0.0, %v5953
        %v5955 = vpop.f32.mrb[0].mxu0
        %5956 = vmatprep.mubr.f32.mxu0 0.0
        %5957 = vmatmul.mubr.f32.gmra.mrb[0].mxu0 %v5795
        %v5958 = vpop.f32.mrb[0].mxu0
        %v5959 = vadd.f32 0.0, %v5958
        %v5960 = vpop.f32.mrb[0].mxu0
        %5961 = vmatprep.mubr.f32.mxu0 0.0
        %5962 = vmatmul.mubr.f32.gmra.mrb[0].mxu0 %v5796
        %v5963 = vpop.f32.mrb[0].mxu0
        %v5964 = vadd.f32 0.0, %v5963
        %v5965 = vpop.f32.mrb[0].mxu0
        %5966 = vmatprep.mubr.f32.mxu0 0.0
        %5967 = vmatmul.mubr.f32.gmra.mrb[0].mxu0 %v5797
        %v5968 = vpop.f32.mrb[0].mxu0
        %v5969 = vadd.f32 0.0, %v5968
        %v5970 = vpop.f32.mrb[0].mxu0
        %5971 = vmatprep.mubr.f32.mxu0 0.0
        %5972 = vmatmul.mubr.f32.gmra.mrb[0].mxu0 %v5798
        %v5973 = vpop.f32.mrb[0].mxu0
        %v5974 = vadd.f32 0.0, %v5973
        %v5975 = vpop.f32.mrb[0].mxu0
        %5976 = vmatprep.mubr.f32.mxu0 0.0
        %5977 = vmatmul.mubr.f32.gmra.mrb[0].mxu0 %v5799
        %v5978 = vpop.f32.mrb[0].mxu0
        %v5979 = vadd.f32 0.0, %v5978
        %v5980 = vpop.f32.mrb[0].mxu0
        %5981 = vmatprep.mubr.f32.mxu0 0.0
        %5982 = vmatmul.mubr.f32.gmra.mrb[0].mxu0 %v5800
        %v5983 = vpop.f32.mrb[0].mxu0
        %v5984 = vadd.f32 0.0, %v5983
        %v5985 = vpop.f32.mrb[0].mxu0
        %5986 = vmatprep.mubr.f32.mxu0 0.0
        %5987 = vmatmul.mubr.f32.gmra.mrb[0].mxu0 %v5801
        %v5988 = vpop.f32.mrb[0].mxu0
        %v5989 = vadd.f32 0.0, %v5988
        %v5990 = vpop.f32.mrb[0].mxu0
        %5991 = vmatprep.mubr.f32.mxu0 0.0
        %5992 = vmatmul.mubr.f32.gmra.mrb[0].mxu0 %v5802
        %v5993 = vpop.f32.mrb[0].mxu0
        %v5994 = vadd.f32 0.0, %v5993
        %v5995 = vpop.f32.mrb[0].mxu0
        %5996 = vmatprep.mubr.f32.mxu0 0.0
        %5997 = vmatmul.mubr.f32.gmra.mrb[0].mxu0 %v5803
        %v5998 = vpop.f32.mrb[0].mxu0
        %v5999 = vadd.f32 0.0, %v5998
        %v6000 = vpop.f32.mrb[0].mxu0
        %6001 = vmatprep.mubr.f32.mxu0 0.0
        %6002 = vmatmul.mubr.f32.gmra.mrb[0].mxu0 %v5804
        %v6003 = vpop.f32.mrb[0].mxu0
        %v6004 = vadd.f32 0.0, %v6003
        %v6005 = vpop.f32.mrb[0].mxu0
        %6006 = vmatprep.mubr.f32.mxu0 0.0
        %6007 = vmatmul.mubr.f32.gmra.mrb[0].mxu0 %v5805
        %v6008 = vpop.f32.mrb[0].mxu0
        %v6009 = vadd.f32 0.0, %v6008
        %v6010 = vpop.f32.mrb[0].mxu0
        %6011 = vmatprep.mubr.f32.mxu0 0.0
        %6012 = vmatmul.mubr.f32.gmra.mrb[0].mxu0 %v5806
        %v6013 = vpop.f32.mrb[0].mxu0
        %v6014 = vadd.f32 0.0, %v6013
        %v6015 = vpop.f32.mrb[0].mxu0
        %6016 = vmatprep.mubr.f32.mxu0 0.0
        %6017 = vmatmul.mubr.f32.gmra.mrb[0].mxu0 %v5807
        %v6018 = vpop.f32.mrb[0].mxu0
        %v6019 = vadd.f32 0.0, %v6018
        %v6020 = vpop.f32.mrb[0].mxu0
        %6021 = vmatprep.mubr.f32.mxu0 0.0
        %6022 = vmatmul.mubr.f32.gmra.mrb[0].mxu0 %v5808
        %v6023 = vpop.f32.mrb[0].mxu0
        %v6024 = vadd.f32 0.0, %v6023
        %v6025 = vpop.f32.mrb[0].mxu0
        %6026 = vmatprep.mubr.f32.mxu0 0.0
        %6027 = vmatmul.mubr.f32.gmra.mrb[0].mxu0 %v5809
        %v6028 = vpop.f32.mrb[0].mxu0
        %v6029 = vadd.f32 0.0, %v6028
        %v6030 = vpop.f32.mrb[0].mxu0
        %6031 = vmatprep.mubr.f32.mxu0 0.0
        %6032 = vmatmul.mubr.f32.gmra.mrb[0].mxu0 %v5810
        %v6033 = vpop.f32.mrb[0].mxu0
        %v6034 = vadd.f32 0.0, %v6033
        %v6035 = vpop.f32.mrb[0].mxu0
        %6036 = vmatprep.mubr.f32.mxu0 0.0
        %6037 = vmatmul.mubr.f32.gmra.mrb[0].mxu0 %v5811
        %v6038 = vpop.f32.mrb[0].mxu0
        %v6039 = vadd.f32 0.0, %v6038
        %v6040 = vpop.f32.mrb[0].mxu0
        %6041 = vmatprep.mubr.f32.mxu0 0.0
        %6042 = vmatmul.mubr.f32.gmra.mrb[0].mxu0 %v5812
        %v6043 = vpop.f32.mrb[0].mxu0
        %v6044 = vadd.f32 0.0, %v6043
        %v6045 = vpop.f32.mrb[0].mxu0
        %6046 = vmatprep.mubr.f32.mxu0 0.0
        %6047 = vmatmul.mubr.f32.gmra.mrb[0].mxu0 %v5813
        %v6048 = vpop.f32.mrb[0].mxu0
        %v6049 = vadd.f32 0.0, %v6048
        %v6050 = vpop.f32.mrb[0].mxu0
        %6051 = vmatprep.mubr.f32.mxu0 0.0
        %6052 = vmatmul.mubr.f32.gmra.mrb[0].mxu0 %v5814
        %v6053 = vpop.f32.mrb[0].mxu0
        %v6054 = vadd.f32 0.0, %v6053
        %v6055 = vpop.f32.mrb[0].mxu0
        %6056 = vmatprep.mubr.f32.mxu0 0.0
        %6057 = vmatmul.mubr.f32.gmra.mrb[0].mxu0 %v5815
        %v6058 = vpop.f32.mrb[0].mxu0
        %v6059 = vadd.f32 0.0, %v6058
        %v6060 = vpop.f32.mrb[0].mxu0
        %6061 = vmatprep.mubr.f32.mxu0 0.0
        %6062 = vmatmul.mubr.f32.gmra.mrb[0].mxu0 %v5816
        %v6063 = vpop.f32.mrb[0].mxu0
        %v6064 = vadd.f32 0.0, %v6063
        %v6065 = vpop.f32.mrb[0].mxu0
        %6066 = vmatprep.mubr.f32.mxu0 0.0
        %6067 = vmatmul.mubr.f32.gmra.mrb[0].mxu0 %v5817
        %v6068 = vpop.f32.mrb[0].mxu0
        %v6069 = vadd.f32 0.0, %v6068
        %v6070 = vpop.f32.mrb[0].mxu0
        %6071 = vmatprep.mubr.f32.mxu0 0.0
        %6072 = vmatmul.mubr.f32.gmra.mrb[0].mxu0 %v5818
        %v6073 = vpop.f32.mrb[0].mxu0
        %v6074 = vadd.f32 0.0, %v6073
        %v6075 = vpop.f32.mrb[0].mxu0
        %6076 = vmatprep.mubr.f32.mxu0 0.0
        %6077 = vmatmul.mubr.f32.gmra.mrb[0].mxu0 %v5819
        %v6078 = vpop.f32.mrb[0].mxu0
        %v6079 = vadd.f32 0.0, %v6078
        %v6080 = vpop.f32.mrb[0].mxu0
        %6081 = vdwg.mxu0
        %v6082 = vadd.f32 %v5748, %v5904
        %v6083 = vadd.f32 %v5749, %v5909
        %v6084 = vadd.f32 %v5750, %v5914
        %v6085 = vadd.f32 %v5751, %v5919
        %v6086 = vadd.f32 %v5752, %v5924
        %v6087 = vadd.f32 %v5753, %v5929
        %v6088 = vadd.f32 %v5754, %v5934
        %v6089 = vadd.f32 %v5755, %v5939
        %v6090 = vadd.f32 %v5756, %v5944
        %v6091 = vadd.f32 %v5757, %v5949
        %v6092 = vadd.f32 %v5758, %v5954
        %v6093 = vadd.f32 %v5759, %v5959
        %v6094 = vadd.f32 %v5760, %v5964
        %v6095 = vadd.f32 %v5761, %v5969
        %v6096 = vadd.f32 %v5762, %v5974
        %v6097 = vadd.f32 %v5763, %v5979
        %v6098 = vadd.f32 %v5764, %v5984
        %v6099 = vadd.f32 %v5765, %v5989
        %v6100 = vadd.f32 %v5766, %v5994
        %v6101 = vadd.f32 %v5767, %v5999
        %v6102 = vadd.f32 %v5768, %v6004
        %v6103 = vadd.f32 %v5769, %v6009
        %v6104 = vadd.f32 %v5770, %v6014
        %v6105 = vadd.f32 %v5771, %v6019
        %v6106 = vadd.f32 %v5772, %v6024
        %v6107 = vadd.f32 %v5773, %v6029
        %v6108 = vadd.f32 %v5774, %v6034
        %v6109 = vadd.f32 %v5775, %v6039
        %v6110 = vadd.f32 %v5776, %v6044
        %v6111 = vadd.f32 %v5777, %v6049
        %v6112 = vadd.f32 %v5778, %v6054
        %v6113 = vadd.f32 %v5779, %v6059
        %v6114 = vadd.f32 %v5780, %v6064
        %v6115 = vadd.f32 %v5781, %v6069
        %v6116 = vadd.f32 %v5782, %v6074
        %v6117 = vadd.f32 %v5783, %v6079
        %v6118 = vld [vmem:[#allocation2 + $0x2a] sm:$0xff]
        %v6119 = vld [vmem:[#allocation2 + $0x32] sm:$0xff]
        %v6120 = vld [vmem:[#allocation2 + $0x3a] sm:$0xff]
        %v6121 = vld [vmem:[#allocation2 + $0x42] sm:$0xff]
        %v6122 = vld [vmem:[#allocation2 + $0x4a] sm:$0xff]
        %v6123 = vld [vmem:[#allocation2 + $0x52] sm:$0xff]
        %v6124 = vld [vmem:[#allocation2 + $0x5a] sm:$0xff]
        %v6125 = vld [vmem:[#allocation2 + $0x62] sm:$0xff]
        %v6126 = vld [vmem:[#allocation2 + $0x6a] sm:$0xff]
        %v6127 = vld [vmem:[#allocation2 + $0x72] sm:$0xff]
        %v6128 = vld [vmem:[#allocation2 + $0x7a] sm:$0xff]
        %v6129 = vld [vmem:[#allocation2 + $0x82] sm:$0xff]
        %v6130 = vld [vmem:[#allocation2 + $0x8a] sm:$0xff]
        %v6131 = vld [vmem:[#allocation2 + $0x92] sm:$0xff]
        %v6132 = vld [vmem:[#allocation2 + $0x9a] sm:$0xff]
        %v6133 = vld [vmem:[#allocation2 + $0xa2] sm:$0xff]
        %v6134 = vld [vmem:[#allocation2 + $0xaa] sm:$0xff]
        %v6135 = vld [vmem:[#allocation2 + $0xb2] sm:$0xff]
        %v6136 = vld [vmem:[#allocation2 + $0xba] sm:$0xff]
        %v6137 = vld [vmem:[#allocation2 + $0xc2] sm:$0xff]
        %v6138 = vld [vmem:[#allocation2 + $0xca] sm:$0xff]
        %v6139 = vld [vmem:[#allocation2 + $0xd2] sm:$0xff]
        %v6140 = vld [vmem:[#allocation2 + $0xda] sm:$0xff]
        %v6141 = vld [vmem:[#allocation2 + $0xe2] sm:$0xff]
        %v6142 = vld [vmem:[#allocation2 + $0xea] sm:$0xff]
        %v6143 = vld [vmem:[#allocation2 + $0xf2] sm:$0xff]
        %v6144 = vld [vmem:[#allocation2 + $0xfa] sm:$0xff]
        %v6145 = vld [vmem:[#allocation2 + $0x102] sm:$0xff]
        %v6146 = vld [vmem:[#allocation2 + $0x10a] sm:$0xff]
        %v6147 = vld [vmem:[#allocation2 + $0x112] sm:$0xff]
        %v6148 = vld [vmem:[#allocation2 + $0x11a] sm:$0xff]
        %v6149 = vld [vmem:[#allocation2 + $0x122] sm:$0xff]
        %v6150 = vld [vmem:[#allocation2 + $0x12a] sm:$0xff]
        %v6151 = vld [vmem:[#allocation2 + $0x132] sm:$0xff]
        %v6152 = vld [vmem:[#allocation2 + $0x13a] sm:$0xff]
        %v6153 = vld [vmem:[#allocation2 + $0x142] sm:$0x3f]
        %s6154 = scalar_lea.vmem [#allocation8], 896
        %v6155 = vld [vmem:[%s6154] sm:$0xff]
        %v6156 = vld [vmem:[%s6154 + $0x8] sm:$0xff]
        %v6157 = vld [vmem:[%s6154 + $0x10] sm:$0xff]
        %v6158 = vld [vmem:[%s6154 + $0x18] sm:$0xff]
        %v6159 = vld [vmem:[%s6154 + $0x20] sm:$0xff]
        %v6160 = vld [vmem:[%s6154 + $0x28] sm:$0xff]
        %v6161 = vld [vmem:[%s6154 + $0x30] sm:$0xff]
        %v6162 = vld [vmem:[%s6154 + $0x38] sm:$0xff]
        %v6163 = vld [vmem:[%s6154 + $0x40] sm:$0xff]
        %v6164 = vld [vmem:[%s6154 + $0x48] sm:$0xff]
        %v6165 = vld [vmem:[%s6154 + $0x50] sm:$0xff]
        %v6166 = vld [vmem:[%s6154 + $0x58] sm:$0xff]
        %v6167 = vld [vmem:[%s6154 + $0x60] sm:$0xff]
        %v6168 = vld [vmem:[%s6154 + $0x68] sm:$0xff]
        %v6169 = vld [vmem:[%s6154 + $0x70] sm:$0xff]
        %v6170 = vld [vmem:[%s6154 + $0x78] sm:$0xff]
        %6171 = vmatprep.subr.mxu0 0.0
        %6172 = vmatpush1.msra.mxu0 %v6155
        %6173 = vmatprep.subr.mxu0 0.0
        %6174 = vmatpush1.msra.mxu0 %v6156
        %6175 = vmatprep.subr.mxu0 0.0
        %6176 = vmatpush1.msra.mxu0 %v6157
        %6177 = vmatprep.subr.mxu0 0.0
        %6178 = vmatpush1.msra.mxu0 %v6158
        %6179 = vmatprep.subr.mxu0 0.0
        %6180 = vmatpush1.msra.mxu0 %v6159
        %6181 = vmatprep.subr.mxu0 0.0
        %6182 = vmatpush1.msra.mxu0 %v6160
        %6183 = vmatprep.subr.mxu0 0.0
        %6184 = vmatpush1.msra.mxu0 %v6161
        %6185 = vmatprep.subr.mxu0 0.0
        %6186 = vmatpush1.msra.mxu0 %v6162
        %6187 = vmatprep.subr.mxu0 0.0
        %6188 = vmatpush1.msra.mxu0 %v6163
        %6189 = vmatprep.subr.mxu0 0.0
        %6190 = vmatpush1.msra.mxu0 %v6164
        %6191 = vmatprep.subr.mxu0 0.0
        %6192 = vmatpush1.msra.mxu0 %v6165
        %6193 = vmatprep.subr.mxu0 0.0
        %6194 = vmatpush1.msra.mxu0 %v6166
        %6195 = vmatprep.subr.mxu0 0.0
        %6196 = vmatpush1.msra.mxu0 %v6167
        %6197 = vmatprep.subr.mxu0 0.0
        %6198 = vmatpush1.msra.mxu0 %v6168
        %6199 = vmatprep.subr.mxu0 0.0
        %6200 = vmatpush1.msra.mxu0 %v6169
        %6201 = vmatprep.subr.mxu0 0.0
        %6202 = vmatpush1.msra.mxu0 %v6170
        %6203 = vmatprep.subr.mxu0 0.0
        %6204 = vmatpush1.msra.mxu0 0.0
        %6205 = vmatprep.subr.mxu0 0.0
        %6206 = vmatpush1.msra.mxu0 0.0
        %6207 = vmatprep.subr.mxu0 0.0
        %6208 = vmatpush1.msra.mxu0 0.0
        %6209 = vmatprep.subr.mxu0 0.0
        %6210 = vmatpush1.msra.mxu0 0.0
        %6211 = vmatprep.subr.mxu0 0.0
        %6212 = vmatpush1.msra.mxu0 0.0
        %6213 = vmatprep.subr.mxu0 0.0
        %6214 = vmatpush1.msra.mxu0 0.0
        %6215 = vmatprep.subr.mxu0 0.0
        %6216 = vmatpush1.msra.mxu0 0.0
        %6217 = vmatprep.subr.mxu0 0.0
        %6218 = vmatpush1.msra.mxu0 0.0
        %6219 = vmatprep.subr.mxu0 0.0
        %6220 = vmatpush1.msra.mxu0 0.0
        %6221 = vmatprep.subr.mxu0 0.0
        %6222 = vmatpush1.msra.mxu0 0.0
        %6223 = vmatprep.subr.mxu0 0.0
        %6224 = vmatpush1.msra.mxu0 0.0
        %6225 = vmatprep.subr.mxu0 0.0
        %6226 = vmatpush1.msra.mxu0 0.0
        %6227 = vmatprep.subr.mxu0 0.0
        %6228 = vmatpush1.msra.mxu0 0.0
        %6229 = vmatprep.subr.mxu0 0.0
        %6230 = vmatpush1.msra.mxu0 0.0
        %6231 = vmatprep.subr.mxu0 0.0
        %6232 = vmatpush1.msra.mxu0 0.0
        %6233 = vmatprep.subr.mxu0 0.0
        %6234 = vmatpush1.msra.mxu0 0.0
        %6235 = vmatprep.mubr.f32.mxu0 0.0
        %6236 = vmatmul.mubr.f32.gmra.mrb[0].mxu0 %v6118
        %v6237 = vpop.f32.mrb[0].mxu0
        %v6238 = vadd.f32 0.0, %v6237
        %v6239 = vpop.f32.mrb[0].mxu0
        %6240 = vmatprep.mubr.f32.mxu0 0.0
        %6241 = vmatmul.mubr.f32.gmra.mrb[0].mxu0 %v6119
        %v6242 = vpop.f32.mrb[0].mxu0
        %v6243 = vadd.f32 0.0, %v6242
        %v6244 = vpop.f32.mrb[0].mxu0
        %6245 = vmatprep.mubr.f32.mxu0 0.0
        %6246 = vmatmul.mubr.f32.gmra.mrb[0].mxu0 %v6120
        %v6247 = vpop.f32.mrb[0].mxu0
        %v6248 = vadd.f32 0.0, %v6247
        %v6249 = vpop.f32.mrb[0].mxu0
        %6250 = vmatprep.mubr.f32.mxu0 0.0
        %6251 = vmatmul.mubr.f32.gmra.mrb[0].mxu0 %v6121
        %v6252 = vpop.f32.mrb[0].mxu0
        %v6253 = vadd.f32 0.0, %v6252
        %v6254 = vpop.f32.mrb[0].mxu0
        %6255 = vmatprep.mubr.f32.mxu0 0.0
        %6256 = vmatmul.mubr.f32.gmra.mrb[0].mxu0 %v6122
        %v6257 = vpop.f32.mrb[0].mxu0
        %v6258 = vadd.f32 0.0, %v6257
        %v6259 = vpop.f32.mrb[0].mxu0
        %6260 = vmatprep.mubr.f32.mxu0 0.0
        %6261 = vmatmul.mubr.f32.gmra.mrb[0].mxu0 %v6123
        %v6262 = vpop.f32.mrb[0].mxu0
        %v6263 = vadd.f32 0.0, %v6262
        %v6264 = vpop.f32.mrb[0].mxu0
        %6265 = vmatprep.mubr.f32.mxu0 0.0
        %6266 = vmatmul.mubr.f32.gmra.mrb[0].mxu0 %v6124
        %v6267 = vpop.f32.mrb[0].mxu0
        %v6268 = vadd.f32 0.0, %v6267
        %v6269 = vpop.f32.mrb[0].mxu0
        %6270 = vmatprep.mubr.f32.mxu0 0.0
        %6271 = vmatmul.mubr.f32.gmra.mrb[0].mxu0 %v6125
        %v6272 = vpop.f32.mrb[0].mxu0
        %v6273 = vadd.f32 0.0, %v6272
        %v6274 = vpop.f32.mrb[0].mxu0
        %6275 = vmatprep.mubr.f32.mxu0 0.0
        %6276 = vmatmul.mubr.f32.gmra.mrb[0].mxu0 %v6126
        %v6277 = vpop.f32.mrb[0].mxu0
        %v6278 = vadd.f32 0.0, %v6277
        %v6279 = vpop.f32.mrb[0].mxu0
        %6280 = vmatprep.mubr.f32.mxu0 0.0
        %6281 = vmatmul.mubr.f32.gmra.mrb[0].mxu0 %v6127
        %v6282 = vpop.f32.mrb[0].mxu0
        %v6283 = vadd.f32 0.0, %v6282
        %v6284 = vpop.f32.mrb[0].mxu0
        %6285 = vmatprep.mubr.f32.mxu0 0.0
        %6286 = vmatmul.mubr.f32.gmra.mrb[0].mxu0 %v6128
        %v6287 = vpop.f32.mrb[0].mxu0
        %v6288 = vadd.f32 0.0, %v6287
        %v6289 = vpop.f32.mrb[0].mxu0
        %6290 = vmatprep.mubr.f32.mxu0 0.0
        %6291 = vmatmul.mubr.f32.gmra.mrb[0].mxu0 %v6129
        %v6292 = vpop.f32.mrb[0].mxu0
        %v6293 = vadd.f32 0.0, %v6292
        %v6294 = vpop.f32.mrb[0].mxu0
        %6295 = vmatprep.mubr.f32.mxu0 0.0
        %6296 = vmatmul.mubr.f32.gmra.mrb[0].mxu0 %v6130
        %v6297 = vpop.f32.mrb[0].mxu0
        %v6298 = vadd.f32 0.0, %v6297
        %v6299 = vpop.f32.mrb[0].mxu0
        %6300 = vmatprep.mubr.f32.mxu0 0.0
        %6301 = vmatmul.mubr.f32.gmra.mrb[0].mxu0 %v6131
        %v6302 = vpop.f32.mrb[0].mxu0
        %v6303 = vadd.f32 0.0, %v6302
        %v6304 = vpop.f32.mrb[0].mxu0
        %6305 = vmatprep.mubr.f32.mxu0 0.0
        %6306 = vmatmul.mubr.f32.gmra.mrb[0].mxu0 %v6132
        %v6307 = vpop.f32.mrb[0].mxu0
        %v6308 = vadd.f32 0.0, %v6307
        %v6309 = vpop.f32.mrb[0].mxu0
        %6310 = vmatprep.mubr.f32.mxu0 0.0
        %6311 = vmatmul.mubr.f32.gmra.mrb[0].mxu0 %v6133
        %v6312 = vpop.f32.mrb[0].mxu0
        %v6313 = vadd.f32 0.0, %v6312
        %v6314 = vpop.f32.mrb[0].mxu0
        %6315 = vmatprep.mubr.f32.mxu0 0.0
        %6316 = vmatmul.mubr.f32.gmra.mrb[0].mxu0 %v6134
        %v6317 = vpop.f32.mrb[0].mxu0
        %v6318 = vadd.f32 0.0, %v6317
        %v6319 = vpop.f32.mrb[0].mxu0
        %6320 = vmatprep.mubr.f32.mxu0 0.0
        %6321 = vmatmul.mubr.f32.gmra.mrb[0].mxu0 %v6135
        %v6322 = vpop.f32.mrb[0].mxu0
        %v6323 = vadd.f32 0.0, %v6322
        %v6324 = vpop.f32.mrb[0].mxu0
        %6325 = vmatprep.mubr.f32.mxu0 0.0
        %6326 = vmatmul.mubr.f32.gmra.mrb[0].mxu0 %v6136
        %v6327 = vpop.f32.mrb[0].mxu0
        %v6328 = vadd.f32 0.0, %v6327
        %v6329 = vpop.f32.mrb[0].mxu0
        %6330 = vmatprep.mubr.f32.mxu0 0.0
        %6331 = vmatmul.mubr.f32.gmra.mrb[0].mxu0 %v6137
        %v6332 = vpop.f32.mrb[0].mxu0
        %v6333 = vadd.f32 0.0, %v6332
        %v6334 = vpop.f32.mrb[0].mxu0
        %6335 = vmatprep.mubr.f32.mxu0 0.0
        %6336 = vmatmul.mubr.f32.gmra.mrb[0].mxu0 %v6138
        %v6337 = vpop.f32.mrb[0].mxu0
        %v6338 = vadd.f32 0.0, %v6337
        %v6339 = vpop.f32.mrb[0].mxu0
        %6340 = vmatprep.mubr.f32.mxu0 0.0
        %6341 = vmatmul.mubr.f32.gmra.mrb[0].mxu0 %v6139
        %v6342 = vpop.f32.mrb[0].mxu0
        %v6343 = vadd.f32 0.0, %v6342
        %v6344 = vpop.f32.mrb[0].mxu0
        %6345 = vmatprep.mubr.f32.mxu0 0.0
        %6346 = vmatmul.mubr.f32.gmra.mrb[0].mxu0 %v6140
        %v6347 = vpop.f32.mrb[0].mxu0
        %v6348 = vadd.f32 0.0, %v6347
        %v6349 = vpop.f32.mrb[0].mxu0
        %6350 = vmatprep.mubr.f32.mxu0 0.0
        %6351 = vmatmul.mubr.f32.gmra.mrb[0].mxu0 %v6141
        %v6352 = vpop.f32.mrb[0].mxu0
        %v6353 = vadd.f32 0.0, %v6352
        %v6354 = vpop.f32.mrb[0].mxu0
        %6355 = vmatprep.mubr.f32.mxu0 0.0
        %6356 = vmatmul.mubr.f32.gmra.mrb[0].mxu0 %v6142
        %v6357 = vpop.f32.mrb[0].mxu0
        %v6358 = vadd.f32 0.0, %v6357
        %v6359 = vpop.f32.mrb[0].mxu0
        %6360 = vmatprep.mubr.f32.mxu0 0.0
        %6361 = vmatmul.mubr.f32.gmra.mrb[0].mxu0 %v6143
        %v6362 = vpop.f32.mrb[0].mxu0
        %v6363 = vadd.f32 0.0, %v6362
        %v6364 = vpop.f32.mrb[0].mxu0
        %6365 = vmatprep.mubr.f32.mxu0 0.0
        %6366 = vmatmul.mubr.f32.gmra.mrb[0].mxu0 %v6144
        %v6367 = vpop.f32.mrb[0].mxu0
        %v6368 = vadd.f32 0.0, %v6367
        %v6369 = vpop.f32.mrb[0].mxu0
        %6370 = vmatprep.mubr.f32.mxu0 0.0
        %6371 = vmatmul.mubr.f32.gmra.mrb[0].mxu0 %v6145
        %v6372 = vpop.f32.mrb[0].mxu0
        %v6373 = vadd.f32 0.0, %v6372
        %v6374 = vpop.f32.mrb[0].mxu0
        %6375 = vmatprep.mubr.f32.mxu0 0.0
        %6376 = vmatmul.mubr.f32.gmra.mrb[0].mxu0 %v6146
        %v6377 = vpop.f32.mrb[0].mxu0
        %v6378 = vadd.f32 0.0, %v6377
        %v6379 = vpop.f32.mrb[0].mxu0
        %6380 = vmatprep.mubr.f32.mxu0 0.0
        %6381 = vmatmul.mubr.f32.gmra.mrb[0].mxu0 %v6147
        %v6382 = vpop.f32.mrb[0].mxu0
        %v6383 = vadd.f32 0.0, %v6382
        %v6384 = vpop.f32.mrb[0].mxu0
        %6385 = vmatprep.mubr.f32.mxu0 0.0
        %6386 = vmatmul.mubr.f32.gmra.mrb[0].mxu0 %v6148
        %v6387 = vpop.f32.mrb[0].mxu0
        %v6388 = vadd.f32 0.0, %v6387
        %v6389 = vpop.f32.mrb[0].mxu0
        %6390 = vmatprep.mubr.f32.mxu0 0.0
        %6391 = vmatmul.mubr.f32.gmra.mrb[0].mxu0 %v6149
        %v6392 = vpop.f32.mrb[0].mxu0
        %v6393 = vadd.f32 0.0, %v6392
        %v6394 = vpop.f32.mrb[0].mxu0
        %6395 = vmatprep.mubr.f32.mxu0 0.0
        %6396 = vmatmul.mubr.f32.gmra.mrb[0].mxu0 %v6150
        %v6397 = vpop.f32.mrb[0].mxu0
        %v6398 = vadd.f32 0.0, %v6397
        %v6399 = vpop.f32.mrb[0].mxu0
        %6400 = vmatprep.mubr.f32.mxu0 0.0
        %6401 = vmatmul.mubr.f32.gmra.mrb[0].mxu0 %v6151
        %v6402 = vpop.f32.mrb[0].mxu0
        %v6403 = vadd.f32 0.0, %v6402
        %v6404 = vpop.f32.mrb[0].mxu0
        %6405 = vmatprep.mubr.f32.mxu0 0.0
        %6406 = vmatmul.mubr.f32.gmra.mrb[0].mxu0 %v6152
        %v6407 = vpop.f32.mrb[0].mxu0
        %v6408 = vadd.f32 0.0, %v6407
        %v6409 = vpop.f32.mrb[0].mxu0
        %6410 = vmatprep.mubr.f32.mxu0 0.0
        %6411 = vmatmul.mubr.f32.gmra.mrb[0].mxu0 %v6153
        %v6412 = vpop.f32.mrb[0].mxu0
        %v6413 = vadd.f32 0.0, %v6412
        %v6414 = vpop.f32.mrb[0].mxu0
        %6415 = vdwg.mxu0
        %v6416 = vadd.f32 %v6082, %v6238
        %v6417 = vadd.f32 %v6083, %v6243
        %v6418 = vadd.f32 %v6084, %v6248
        %v6419 = vadd.f32 %v6085, %v6253
        %v6420 = vadd.f32 %v6086, %v6258
        %v6421 = vadd.f32 %v6087, %v6263
        %v6422 = vadd.f32 %v6088, %v6268
        %v6423 = vadd.f32 %v6089, %v6273
        %v6424 = vadd.f32 %v6090, %v6278
        %v6425 = vadd.f32 %v6091, %v6283
        %v6426 = vadd.f32 %v6092, %v6288
        %v6427 = vadd.f32 %v6093, %v6293
        %v6428 = vadd.f32 %v6094, %v6298
        %v6429 = vadd.f32 %v6095, %v6303
        %v6430 = vadd.f32 %v6096, %v6308
        %v6431 = vadd.f32 %v6097, %v6313
        %v6432 = vadd.f32 %v6098, %v6318
        %v6433 = vadd.f32 %v6099, %v6323
        %v6434 = vadd.f32 %v6100, %v6328
        %v6435 = vadd.f32 %v6101, %v6333
        %v6436 = vadd.f32 %v6102, %v6338
        %v6437 = vadd.f32 %v6103, %v6343
        %v6438 = vadd.f32 %v6104, %v6348
        %v6439 = vadd.f32 %v6105, %v6353
        %v6440 = vadd.f32 %v6106, %v6358
        %v6441 = vadd.f32 %v6107, %v6363
        %v6442 = vadd.f32 %v6108, %v6368
        %v6443 = vadd.f32 %v6109, %v6373
        %v6444 = vadd.f32 %v6110, %v6378
        %v6445 = vadd.f32 %v6111, %v6383
        %v6446 = vadd.f32 %v6112, %v6388
        %v6447 = vadd.f32 %v6113, %v6393
        %v6448 = vadd.f32 %v6114, %v6398
        %v6449 = vadd.f32 %v6115, %v6403
        %v6450 = vadd.f32 %v6116, %v6408
        %v6451 = vadd.f32 %v6117, %v6413
        %v6452 = vld [vmem:[#allocation2 + $0x2b] sm:$0xff]
        %v6453 = vld [vmem:[#allocation2 + $0x33] sm:$0xff]
        %v6454 = vld [vmem:[#allocation2 + $0x3b] sm:$0xff]
        %v6455 = vld [vmem:[#allocation2 + $0x43] sm:$0xff]
        %v6456 = vld [vmem:[#allocation2 + $0x4b] sm:$0xff]
        %v6457 = vld [vmem:[#allocation2 + $0x53] sm:$0xff]
        %v6458 = vld [vmem:[#allocation2 + $0x5b] sm:$0xff]
        %v6459 = vld [vmem:[#allocation2 + $0x63] sm:$0xff]
        %v6460 = vld [vmem:[#allocation2 + $0x6b] sm:$0xff]
        %v6461 = vld [vmem:[#allocation2 + $0x73] sm:$0xff]
        %v6462 = vld [vmem:[#allocation2 + $0x7b] sm:$0xff]
        %v6463 = vld [vmem:[#allocation2 + $0x83] sm:$0xff]
        %v6464 = vld [vmem:[#allocation2 + $0x8b] sm:$0xff]
        %v6465 = vld [vmem:[#allocation2 + $0x93] sm:$0xff]
        %v6466 = vld [vmem:[#allocation2 + $0x9b] sm:$0xff]
        %v6467 = vld [vmem:[#allocation2 + $0xa3] sm:$0xff]
        %v6468 = vld [vmem:[#allocation2 + $0xab] sm:$0xff]
        %v6469 = vld [vmem:[#allocation2 + $0xb3] sm:$0xff]
        %v6470 = vld [vmem:[#allocation2 + $0xbb] sm:$0xff]
        %v6471 = vld [vmem:[#allocation2 + $0xc3] sm:$0xff]
        %v6472 = vld [vmem:[#allocation2 + $0xcb] sm:$0xff]
        %v6473 = vld [vmem:[#allocation2 + $0xd3] sm:$0xff]
        %v6474 = vld [vmem:[#allocation2 + $0xdb] sm:$0xff]
        %v6475 = vld [vmem:[#allocation2 + $0xe3] sm:$0xff]
        %v6476 = vld [vmem:[#allocation2 + $0xeb] sm:$0xff]
        %v6477 = vld [vmem:[#allocation2 + $0xf3] sm:$0xff]
        %v6478 = vld [vmem:[#allocation2 + $0xfb] sm:$0xff]
        %v6479 = vld [vmem:[#allocation2 + $0x103] sm:$0xff]
        %v6480 = vld [vmem:[#allocation2 + $0x10b] sm:$0xff]
        %v6481 = vld [vmem:[#allocation2 + $0x113] sm:$0xff]
        %v6482 = vld [vmem:[#allocation2 + $0x11b] sm:$0xff]
        %v6483 = vld [vmem:[#allocation2 + $0x123] sm:$0xff]
        %v6484 = vld [vmem:[#allocation2 + $0x12b] sm:$0xff]
        %v6485 = vld [vmem:[#allocation2 + $0x133] sm:$0xff]
        %v6486 = vld [vmem:[#allocation2 + $0x13b] sm:$0xff]
        %v6487 = vld [vmem:[#allocation2 + $0x143] sm:$0x3f]
        %s6488 = scalar_lea.vmem [#allocation8], 1024
        %v6489 = vld [vmem:[%s6488] sm:$0xff]
        %v6490 = vld [vmem:[%s6488 + $0x8] sm:$0xff]
        %v6491 = vld [vmem:[%s6488 + $0x10] sm:$0xff]
        %v6492 = vld [vmem:[%s6488 + $0x18] sm:$0xff]
        %v6493 = vld [vmem:[%s6488 + $0x20] sm:$0xff]
        %v6494 = vld [vmem:[%s6488 + $0x28] sm:$0xff]
        %v6495 = vld [vmem:[%s6488 + $0x30] sm:$0xff]
        %v6496 = vld [vmem:[%s6488 + $0x38] sm:$0xff]
        %v6497 = vld [vmem:[%s6488 + $0x40] sm:$0xff]
        %v6498 = vld [vmem:[%s6488 + $0x48] sm:$0xff]
        %v6499 = vld [vmem:[%s6488 + $0x50] sm:$0xff]
        %v6500 = vld [vmem:[%s6488 + $0x58] sm:$0xff]
        %v6501 = vld [vmem:[%s6488 + $0x60] sm:$0xff]
        %v6502 = vld [vmem:[%s6488 + $0x68] sm:$0xff]
        %v6503 = vld [vmem:[%s6488 + $0x70] sm:$0xff]
        %v6504 = vld [vmem:[%s6488 + $0x78] sm:$0xff]
        %6505 = vmatprep.subr.mxu0 0.0
        %6506 = vmatpush1.msra.mxu0 %v6489
        %6507 = vmatprep.subr.mxu0 0.0
        %6508 = vmatpush1.msra.mxu0 %v6490
        %6509 = vmatprep.subr.mxu0 0.0
        %6510 = vmatpush1.msra.mxu0 %v6491
        %6511 = vmatprep.subr.mxu0 0.0
        %6512 = vmatpush1.msra.mxu0 %v6492
        %6513 = vmatprep.subr.mxu0 0.0
        %6514 = vmatpush1.msra.mxu0 %v6493
        %6515 = vmatprep.subr.mxu0 0.0
        %6516 = vmatpush1.msra.mxu0 %v6494
        %6517 = vmatprep.subr.mxu0 0.0
        %6518 = vmatpush1.msra.mxu0 %v6495
        %6519 = vmatprep.subr.mxu0 0.0
        %6520 = vmatpush1.msra.mxu0 %v6496
        %6521 = vmatprep.subr.mxu0 0.0
        %6522 = vmatpush1.msra.mxu0 %v6497
        %6523 = vmatprep.subr.mxu0 0.0
        %6524 = vmatpush1.msra.mxu0 %v6498
        %6525 = vmatprep.subr.mxu0 0.0
        %6526 = vmatpush1.msra.mxu0 %v6499
        %6527 = vmatprep.subr.mxu0 0.0
        %6528 = vmatpush1.msra.mxu0 %v6500
        %6529 = vmatprep.subr.mxu0 0.0
        %6530 = vmatpush1.msra.mxu0 %v6501
        %6531 = vmatprep.subr.mxu0 0.0
        %6532 = vmatpush1.msra.mxu0 %v6502
        %6533 = vmatprep.subr.mxu0 0.0
        %6534 = vmatpush1.msra.mxu0 %v6503
        %6535 = vmatprep.subr.mxu0 0.0
        %6536 = vmatpush1.msra.mxu0 %v6504
        %6537 = vmatprep.subr.mxu0 0.0
        %6538 = vmatpush1.msra.mxu0 0.0
        %6539 = vmatprep.subr.mxu0 0.0
        %6540 = vmatpush1.msra.mxu0 0.0
        %6541 = vmatprep.subr.mxu0 0.0
        %6542 = vmatpush1.msra.mxu0 0.0
        %6543 = vmatprep.subr.mxu0 0.0
        %6544 = vmatpush1.msra.mxu0 0.0
        %6545 = vmatprep.subr.mxu0 0.0
        %6546 = vmatpush1.msra.mxu0 0.0
        %6547 = vmatprep.subr.mxu0 0.0
        %6548 = vmatpush1.msra.mxu0 0.0
        %6549 = vmatprep.subr.mxu0 0.0
        %6550 = vmatpush1.msra.mxu0 0.0
        %6551 = vmatprep.subr.mxu0 0.0
        %6552 = vmatpush1.msra.mxu0 0.0
        %6553 = vmatprep.subr.mxu0 0.0
        %6554 = vmatpush1.msra.mxu0 0.0
        %6555 = vmatprep.subr.mxu0 0.0
        %6556 = vmatpush1.msra.mxu0 0.0
        %6557 = vmatprep.subr.mxu0 0.0
        %6558 = vmatpush1.msra.mxu0 0.0
        %6559 = vmatprep.subr.mxu0 0.0
        %6560 = vmatpush1.msra.mxu0 0.0
        %6561 = vmatprep.subr.mxu0 0.0
        %6562 = vmatpush1.msra.mxu0 0.0
        %6563 = vmatprep.subr.mxu0 0.0
        %6564 = vmatpush1.msra.mxu0 0.0
        %6565 = vmatprep.subr.mxu0 0.0
        %6566 = vmatpush1.msra.mxu0 0.0
        %6567 = vmatprep.subr.mxu0 0.0
        %6568 = vmatpush1.msra.mxu0 0.0
        %6569 = vmatprep.mubr.f32.mxu0 0.0
        %6570 = vmatmul.mubr.f32.gmra.mrb[0].mxu0 %v6452
        %v6571 = vpop.f32.mrb[0].mxu0
        %v6572 = vadd.f32 0.0, %v6571
        %v6573 = vpop.f32.mrb[0].mxu0
        %6574 = vmatprep.mubr.f32.mxu0 0.0
        %6575 = vmatmul.mubr.f32.gmra.mrb[0].mxu0 %v6453
        %v6576 = vpop.f32.mrb[0].mxu0
        %v6577 = vadd.f32 0.0, %v6576
        %v6578 = vpop.f32.mrb[0].mxu0
        %6579 = vmatprep.mubr.f32.mxu0 0.0
        %6580 = vmatmul.mubr.f32.gmra.mrb[0].mxu0 %v6454
        %v6581 = vpop.f32.mrb[0].mxu0
        %v6582 = vadd.f32 0.0, %v6581
        %v6583 = vpop.f32.mrb[0].mxu0
        %6584 = vmatprep.mubr.f32.mxu0 0.0
        %6585 = vmatmul.mubr.f32.gmra.mrb[0].mxu0 %v6455
        %v6586 = vpop.f32.mrb[0].mxu0
        %v6587 = vadd.f32 0.0, %v6586
        %v6588 = vpop.f32.mrb[0].mxu0
        %6589 = vmatprep.mubr.f32.mxu0 0.0
        %6590 = vmatmul.mubr.f32.gmra.mrb[0].mxu0 %v6456
        %v6591 = vpop.f32.mrb[0].mxu0
        %v6592 = vadd.f32 0.0, %v6591
        %v6593 = vpop.f32.mrb[0].mxu0
        %6594 = vmatprep.mubr.f32.mxu0 0.0
        %6595 = vmatmul.mubr.f32.gmra.mrb[0].mxu0 %v6457
        %v6596 = vpop.f32.mrb[0].mxu0
        %v6597 = vadd.f32 0.0, %v6596
        %v6598 = vpop.f32.mrb[0].mxu0
        %6599 = vmatprep.mubr.f32.mxu0 0.0
        %6600 = vmatmul.mubr.f32.gmra.mrb[0].mxu0 %v6458
        %v6601 = vpop.f32.mrb[0].mxu0
        %v6602 = vadd.f32 0.0, %v6601
        %v6603 = vpop.f32.mrb[0].mxu0
        %6604 = vmatprep.mubr.f32.mxu0 0.0
        %6605 = vmatmul.mubr.f32.gmra.mrb[0].mxu0 %v6459
        %v6606 = vpop.f32.mrb[0].mxu0
        %v6607 = vadd.f32 0.0, %v6606
        %v6608 = vpop.f32.mrb[0].mxu0
        %6609 = vmatprep.mubr.f32.mxu0 0.0
        %6610 = vmatmul.mubr.f32.gmra.mrb[0].mxu0 %v6460
        %v6611 = vpop.f32.mrb[0].mxu0
        %v6612 = vadd.f32 0.0, %v6611
        %v6613 = vpop.f32.mrb[0].mxu0
        %6614 = vmatprep.mubr.f32.mxu0 0.0
        %6615 = vmatmul.mubr.f32.gmra.mrb[0].mxu0 %v6461
        %v6616 = vpop.f32.mrb[0].mxu0
        %v6617 = vadd.f32 0.0, %v6616
        %v6618 = vpop.f32.mrb[0].mxu0
        %6619 = vmatprep.mubr.f32.mxu0 0.0
        %6620 = vmatmul.mubr.f32.gmra.mrb[0].mxu0 %v6462
        %v6621 = vpop.f32.mrb[0].mxu0
        %v6622 = vadd.f32 0.0, %v6621
        %v6623 = vpop.f32.mrb[0].mxu0
        %6624 = vmatprep.mubr.f32.mxu0 0.0
        %6625 = vmatmul.mubr.f32.gmra.mrb[0].mxu0 %v6463
        %v6626 = vpop.f32.mrb[0].mxu0
        %v6627 = vadd.f32 0.0, %v6626
        %v6628 = vpop.f32.mrb[0].mxu0
        %6629 = vmatprep.mubr.f32.mxu0 0.0
        %6630 = vmatmul.mubr.f32.gmra.mrb[0].mxu0 %v6464
        %v6631 = vpop.f32.mrb[0].mxu0
        %v6632 = vadd.f32 0.0, %v6631
        %v6633 = vpop.f32.mrb[0].mxu0
        %6634 = vmatprep.mubr.f32.mxu0 0.0
        %6635 = vmatmul.mubr.f32.gmra.mrb[0].mxu0 %v6465
        %v6636 = vpop.f32.mrb[0].mxu0
        %v6637 = vadd.f32 0.0, %v6636
        %v6638 = vpop.f32.mrb[0].mxu0
        %6639 = vmatprep.mubr.f32.mxu0 0.0
        %6640 = vmatmul.mubr.f32.gmra.mrb[0].mxu0 %v6466
        %v6641 = vpop.f32.mrb[0].mxu0
        %v6642 = vadd.f32 0.0, %v6641
        %v6643 = vpop.f32.mrb[0].mxu0
        %6644 = vmatprep.mubr.f32.mxu0 0.0
        %6645 = vmatmul.mubr.f32.gmra.mrb[0].mxu0 %v6467
        %v6646 = vpop.f32.mrb[0].mxu0
        %v6647 = vadd.f32 0.0, %v6646
        %v6648 = vpop.f32.mrb[0].mxu0
        %6649 = vmatprep.mubr.f32.mxu0 0.0
        %6650 = vmatmul.mubr.f32.gmra.mrb[0].mxu0 %v6468
        %v6651 = vpop.f32.mrb[0].mxu0
        %v6652 = vadd.f32 0.0, %v6651
        %v6653 = vpop.f32.mrb[0].mxu0
        %6654 = vmatprep.mubr.f32.mxu0 0.0
        %6655 = vmatmul.mubr.f32.gmra.mrb[0].mxu0 %v6469
        %v6656 = vpop.f32.mrb[0].mxu0
        %v6657 = vadd.f32 0.0, %v6656
        %v6658 = vpop.f32.mrb[0].mxu0
        %6659 = vmatprep.mubr.f32.mxu0 0.0
        %6660 = vmatmul.mubr.f32.gmra.mrb[0].mxu0 %v6470
        %v6661 = vpop.f32.mrb[0].mxu0
        %v6662 = vadd.f32 0.0, %v6661
        %v6663 = vpop.f32.mrb[0].mxu0
        %6664 = vmatprep.mubr.f32.mxu0 0.0
        %6665 = vmatmul.mubr.f32.gmra.mrb[0].mxu0 %v6471
        %v6666 = vpop.f32.mrb[0].mxu0
        %v6667 = vadd.f32 0.0, %v6666
        %v6668 = vpop.f32.mrb[0].mxu0
        %6669 = vmatprep.mubr.f32.mxu0 0.0
        %6670 = vmatmul.mubr.f32.gmra.mrb[0].mxu0 %v6472
        %v6671 = vpop.f32.mrb[0].mxu0
        %v6672 = vadd.f32 0.0, %v6671
        %v6673 = vpop.f32.mrb[0].mxu0
        %6674 = vmatprep.mubr.f32.mxu0 0.0
        %6675 = vmatmul.mubr.f32.gmra.mrb[0].mxu0 %v6473
        %v6676 = vpop.f32.mrb[0].mxu0
        %v6677 = vadd.f32 0.0, %v6676
        %v6678 = vpop.f32.mrb[0].mxu0
        %6679 = vmatprep.mubr.f32.mxu0 0.0
        %6680 = vmatmul.mubr.f32.gmra.mrb[0].mxu0 %v6474
        %v6681 = vpop.f32.mrb[0].mxu0
        %v6682 = vadd.f32 0.0, %v6681
        %v6683 = vpop.f32.mrb[0].mxu0
        %6684 = vmatprep.mubr.f32.mxu0 0.0
        %6685 = vmatmul.mubr.f32.gmra.mrb[0].mxu0 %v6475
        %v6686 = vpop.f32.mrb[0].mxu0
        %v6687 = vadd.f32 0.0, %v6686
        %v6688 = vpop.f32.mrb[0].mxu0
        %6689 = vmatprep.mubr.f32.mxu0 0.0
        %6690 = vmatmul.mubr.f32.gmra.mrb[0].mxu0 %v6476
        %v6691 = vpop.f32.mrb[0].mxu0
        %v6692 = vadd.f32 0.0, %v6691
        %v6693 = vpop.f32.mrb[0].mxu0
        %6694 = vmatprep.mubr.f32.mxu0 0.0
        %6695 = vmatmul.mubr.f32.gmra.mrb[0].mxu0 %v6477
        %v6696 = vpop.f32.mrb[0].mxu0
        %v6697 = vadd.f32 0.0, %v6696
        %v6698 = vpop.f32.mrb[0].mxu0
        %6699 = vmatprep.mubr.f32.mxu0 0.0
        %6700 = vmatmul.mubr.f32.gmra.mrb[0].mxu0 %v6478
        %v6701 = vpop.f32.mrb[0].mxu0
        %v6702 = vadd.f32 0.0, %v6701
        %v6703 = vpop.f32.mrb[0].mxu0
        %6704 = vmatprep.mubr.f32.mxu0 0.0
        %6705 = vmatmul.mubr.f32.gmra.mrb[0].mxu0 %v6479
        %v6706 = vpop.f32.mrb[0].mxu0
        %v6707 = vadd.f32 0.0, %v6706
        %v6708 = vpop.f32.mrb[0].mxu0
        %6709 = vmatprep.mubr.f32.mxu0 0.0
        %6710 = vmatmul.mubr.f32.gmra.mrb[0].mxu0 %v6480
        %v6711 = vpop.f32.mrb[0].mxu0
        %v6712 = vadd.f32 0.0, %v6711
        %v6713 = vpop.f32.mrb[0].mxu0
        %6714 = vmatprep.mubr.f32.mxu0 0.0
        %6715 = vmatmul.mubr.f32.gmra.mrb[0].mxu0 %v6481
        %v6716 = vpop.f32.mrb[0].mxu0
        %v6717 = vadd.f32 0.0, %v6716
        %v6718 = vpop.f32.mrb[0].mxu0
        %6719 = vmatprep.mubr.f32.mxu0 0.0
        %6720 = vmatmul.mubr.f32.gmra.mrb[0].mxu0 %v6482
        %v6721 = vpop.f32.mrb[0].mxu0
        %v6722 = vadd.f32 0.0, %v6721
        %v6723 = vpop.f32.mrb[0].mxu0
        %6724 = vmatprep.mubr.f32.mxu0 0.0
        %6725 = vmatmul.mubr.f32.gmra.mrb[0].mxu0 %v6483
        %v6726 = vpop.f32.mrb[0].mxu0
        %v6727 = vadd.f32 0.0, %v6726
        %v6728 = vpop.f32.mrb[0].mxu0
        %6729 = vmatprep.mubr.f32.mxu0 0.0
        %6730 = vmatmul.mubr.f32.gmra.mrb[0].mxu0 %v6484
        %v6731 = vpop.f32.mrb[0].mxu0
        %v6732 = vadd.f32 0.0, %v6731
        %v6733 = vpop.f32.mrb[0].mxu0
        %6734 = vmatprep.mubr.f32.mxu0 0.0
        %6735 = vmatmul.mubr.f32.gmra.mrb[0].mxu0 %v6485
        %v6736 = vpop.f32.mrb[0].mxu0
        %v6737 = vadd.f32 0.0, %v6736
        %v6738 = vpop.f32.mrb[0].mxu0
        %6739 = vmatprep.mubr.f32.mxu0 0.0
        %6740 = vmatmul.mubr.f32.gmra.mrb[0].mxu0 %v6486
        %v6741 = vpop.f32.mrb[0].mxu0
        %v6742 = vadd.f32 0.0, %v6741
        %v6743 = vpop.f32.mrb[0].mxu0
        %6744 = vmatprep.mubr.f32.mxu0 0.0
        %6745 = vmatmul.mubr.f32.gmra.mrb[0].mxu0 %v6487
        %v6746 = vpop.f32.mrb[0].mxu0
        %v6747 = vadd.f32 0.0, %v6746
        %v6748 = vpop.f32.mrb[0].mxu0
        %6749 = vdwg.mxu0
        %v6750 = vadd.f32 %v6416, %v6572
        %v6751 = vadd.f32 %v6417, %v6577
        %v6752 = vadd.f32 %v6418, %v6582
        %v6753 = vadd.f32 %v6419, %v6587
        %v6754 = vadd.f32 %v6420, %v6592
        %v6755 = vadd.f32 %v6421, %v6597
        %v6756 = vadd.f32 %v6422, %v6602
        %v6757 = vadd.f32 %v6423, %v6607
        %v6758 = vadd.f32 %v6424, %v6612
        %v6759 = vadd.f32 %v6425, %v6617
        %v6760 = vadd.f32 %v6426, %v6622
        %v6761 = vadd.f32 %v6427, %v6627
        %v6762 = vadd.f32 %v6428, %v6632
        %v6763 = vadd.f32 %v6429, %v6637
        %v6764 = vadd.f32 %v6430, %v6642
        %v6765 = vadd.f32 %v6431, %v6647
        %v6766 = vadd.f32 %v6432, %v6652
        %v6767 = vadd.f32 %v6433, %v6657
        %v6768 = vadd.f32 %v6434, %v6662
        %v6769 = vadd.f32 %v6435, %v6667
        %v6770 = vadd.f32 %v6436, %v6672
        %v6771 = vadd.f32 %v6437, %v6677
        %v6772 = vadd.f32 %v6438, %v6682
        %v6773 = vadd.f32 %v6439, %v6687
        %v6774 = vadd.f32 %v6440, %v6692
        %v6775 = vadd.f32 %v6441, %v6697
        %v6776 = vadd.f32 %v6442, %v6702
        %v6777 = vadd.f32 %v6443, %v6707
        %v6778 = vadd.f32 %v6444, %v6712
        %v6779 = vadd.f32 %v6445, %v6717
        %v6780 = vadd.f32 %v6446, %v6722
        %v6781 = vadd.f32 %v6447, %v6727
        %v6782 = vadd.f32 %v6448, %v6732
        %v6783 = vadd.f32 %v6449, %v6737
        %v6784 = vadd.f32 %v6450, %v6742
        %v6785 = vadd.f32 %v6451, %v6747
        %v6786 = vld [vmem:[%s5] sm:$0x1]
        %v6788 = vlaneseq
        %v6789 = vshrl.u32 %v6788, 7
        %v6790 = vsub.s32 0, %v6789
        %v6791 = vrot.slane %v6786, %v6790
        %v6793 = vmul.f32 %v6750, %v6791
        %v6794 = vmul.f32 %v6751, %v6791
        %v6795 = vmul.f32 %v6752, %v6791
        %v6796 = vmul.f32 %v6753, %v6791
        %v6797 = vmul.f32 %v6754, %v6791
        %v6798 = vmul.f32 %v6755, %v6791
        %v6799 = vmul.f32 %v6756, %v6791
        %v6800 = vmul.f32 %v6757, %v6791
        %v6801 = vmul.f32 %v6758, %v6791
        %v6802 = vmul.f32 %v6759, %v6791
        %v6803 = vmul.f32 %v6760, %v6791
        %v6804 = vmul.f32 %v6761, %v6791
        %v6805 = vmul.f32 %v6762, %v6791
        %v6806 = vmul.f32 %v6763, %v6791
        %v6807 = vmul.f32 %v6764, %v6791
        %v6808 = vmul.f32 %v6765, %v6791
        %v6809 = vmul.f32 %v6766, %v6791
        %v6810 = vmul.f32 %v6767, %v6791
        %v6811 = vmul.f32 %v6768, %v6791
        %v6812 = vmul.f32 %v6769, %v6791
        %v6813 = vmul.f32 %v6770, %v6791
        %v6814 = vmul.f32 %v6771, %v6791
        %v6815 = vmul.f32 %v6772, %v6791
        %v6816 = vmul.f32 %v6773, %v6791
        %v6817 = vmul.f32 %v6774, %v6791
        %v6818 = vmul.f32 %v6775, %v6791
        %v6819 = vmul.f32 %v6776, %v6791
        %v6820 = vmul.f32 %v6777, %v6791
        %v6821 = vmul.f32 %v6778, %v6791
        %v6822 = vmul.f32 %v6779, %v6791
        %v6823 = vmul.f32 %v6780, %v6791
        %v6824 = vmul.f32 %v6781, %v6791
        %v6825 = vmul.f32 %v6782, %v6791
        %v6826 = vmul.f32 %v6783, %v6791
        %v6827 = vmul.f32 %v6784, %v6791
        %v6828 = vmul.f32 %v6785, %v6791
        %v6829 = vld [vmem:[%s6] sm:$0x1]
        %v6831 = vlaneseq
        %v6832 = vshrl.u32 %v6831, 7
        %v6833 = vsub.s32 0, %v6832
        %v6834 = vrot.slane %v6829, %v6833
        %v6836 = vadd.f32 %v6793, %v6834
        %v6837 = vadd.f32 %v6794, %v6834
        %v6838 = vadd.f32 %v6795, %v6834
        %v6839 = vadd.f32 %v6796, %v6834
        %v6840 = vadd.f32 %v6797, %v6834
        %v6841 = vadd.f32 %v6798, %v6834
        %v6842 = vadd.f32 %v6799, %v6834
        %v6843 = vadd.f32 %v6800, %v6834
        %v6844 = vadd.f32 %v6801, %v6834
        %v6845 = vadd.f32 %v6802, %v6834
        %v6846 = vadd.f32 %v6803, %v6834
        %v6847 = vadd.f32 %v6804, %v6834
        %v6848 = vadd.f32 %v6805, %v6834
        %v6849 = vadd.f32 %v6806, %v6834
        %v6850 = vadd.f32 %v6807, %v6834
        %v6851 = vadd.f32 %v6808, %v6834
        %v6852 = vadd.f32 %v6809, %v6834
        %v6853 = vadd.f32 %v6810, %v6834
        %v6854 = vadd.f32 %v6811, %v6834
        %v6855 = vadd.f32 %v6812, %v6834
        %v6856 = vadd.f32 %v6813, %v6834
        %v6857 = vadd.f32 %v6814, %v6834
        %v6858 = vadd.f32 %v6815, %v6834
        %v6859 = vadd.f32 %v6816, %v6834
        %v6860 = vadd.f32 %v6817, %v6834
        %v6861 = vadd.f32 %v6818, %v6834
        %v6862 = vadd.f32 %v6819, %v6834
        %v6863 = vadd.f32 %v6820, %v6834
        %v6864 = vadd.f32 %v6821, %v6834
        %v6865 = vadd.f32 %v6822, %v6834
        %v6866 = vadd.f32 %v6823, %v6834
        %v6867 = vadd.f32 %v6824, %v6834
        %v6868 = vadd.f32 %v6825, %v6834
        %v6869 = vadd.f32 %v6826, %v6834
        %v6870 = vadd.f32 %v6827, %v6834
        %v6871 = vadd.f32 %v6828, %v6834
        %v6872 = vld [vmem:[%s11] sm:$0xff]
        %v6873 = vld [vmem:[%s11 + $0x8] sm:$0xff]
        %v6874 = vld [vmem:[%s11 + $0x10] sm:$0xff]
        %v6875 = vld [vmem:[%s11 + $0x18] sm:$0xff]
        %v6876 = vld [vmem:[%s11 + $0x20] sm:$0xff]
        %v6877 = vld [vmem:[%s11 + $0x28] sm:$0xff]
        %v6878 = vld [vmem:[%s11 + $0x30] sm:$0xff]
        %v6879 = vld [vmem:[%s11 + $0x38] sm:$0xff]
        %v6880 = vld [vmem:[%s11 + $0x40] sm:$0xff]
        %v6881 = vld [vmem:[%s11 + $0x48] sm:$0xff]
        %v6882 = vld [vmem:[%s11 + $0x50] sm:$0xff]
        %v6883 = vld [vmem:[%s11 + $0x58] sm:$0xff]
        %v6884 = vld [vmem:[%s11 + $0x60] sm:$0xff]
        %v6885 = vld [vmem:[%s11 + $0x68] sm:$0xff]
        %v6886 = vld [vmem:[%s11 + $0x70] sm:$0xff]
        %v6887 = vld [vmem:[%s11 + $0x78] sm:$0xff]
        %v6888 = vld [vmem:[%s11 + $0x80] sm:$0xff]
        %v6889 = vld [vmem:[%s11 + $0x88] sm:$0xff]
        %v6890 = vld [vmem:[%s11 + $0x90] sm:$0xff]
        %v6891 = vld [vmem:[%s11 + $0x98] sm:$0xff]
        %v6892 = vld [vmem:[%s11 + $0xa0] sm:$0xff]
        %v6893 = vld [vmem:[%s11 + $0xa8] sm:$0xff]
        %v6894 = vld [vmem:[%s11 + $0xb0] sm:$0xff]
        %v6895 = vld [vmem:[%s11 + $0xb8] sm:$0xff]
        %v6896 = vld [vmem:[#allocation9] sm:$0xff]
        %v6897 = vld [vmem:[#allocation9 + $0x8] sm:$0xff]
        %v6898 = vld [vmem:[#allocation9 + $0x10] sm:$0xff]
        %v6899 = vld [vmem:[#allocation9 + $0x18] sm:$0xff]
        %v6900 = vld [vmem:[#allocation9 + $0x20] sm:$0xff]
        %v6901 = vld [vmem:[#allocation9 + $0x28] sm:$0xff]
        %v6902 = vld [vmem:[#allocation9 + $0x30] sm:$0xff]
        %v6903 = vld [vmem:[#allocation9 + $0x38] sm:$0xff]
        %v6904 = vld [vmem:[#allocation9 + $0x40] sm:$0xff]
        %v6905 = vld [vmem:[#allocation9 + $0x48] sm:$0xff]
        %v6906 = vld [vmem:[#allocation9 + $0x50] sm:$0xff]
        %v6907 = vld [vmem:[#allocation9 + $0x58] sm:$0xff]
        %v6908 = vld [vmem:[#allocation9 + $0x60] sm:$0xff]
        %v6909 = vld [vmem:[#allocation9 + $0x68] sm:$0xff]
        %v6910 = vld [vmem:[#allocation9 + $0x70] sm:$0xff]
        %v6911 = vld [vmem:[#allocation9 + $0x78] sm:$0xff]
        %v6912 = vld [vmem:[#allocation9 + $0x80] sm:$0xff]
        %v6913 = vld [vmem:[#allocation9 + $0x88] sm:$0xff]
        %v6914 = vld [vmem:[#allocation9 + $0x90] sm:$0xff]
        %v6915 = vld [vmem:[#allocation9 + $0x98] sm:$0xff]
        %v6916 = vld [vmem:[#allocation9 + $0xa0] sm:$0xff]
        %v6917 = vld [vmem:[#allocation9 + $0xa8] sm:$0xff]
        %v6918 = vld [vmem:[#allocation9 + $0xb0] sm:$0xff]
        %v6919 = vld [vmem:[#allocation9 + $0xb8] sm:$0xff]
        %v6920 = vld [vmem:[%s448] sm:$0xff]
        %v6921 = vld [vmem:[%s448 + $0x8] sm:$0xff]
        %v6922 = vld [vmem:[%s448 + $0x10] sm:$0xff]
        %v6923 = vld [vmem:[%s448 + $0x18] sm:$0xff]
        %v6924 = vld [vmem:[%s448 + $0x20] sm:$0xff]
        %v6925 = vld [vmem:[%s448 + $0x28] sm:$0xff]
        %v6926 = vld [vmem:[%s448 + $0x30] sm:$0xff]
        %v6927 = vld [vmem:[%s448 + $0x38] sm:$0xff]
        %v6928 = vld [vmem:[%s448 + $0x40] sm:$0xff]
        %v6929 = vld [vmem:[%s448 + $0x48] sm:$0xff]
        %v6930 = vld [vmem:[%s448 + $0x50] sm:$0xff]
        %v6931 = vld [vmem:[%s448 + $0x58] sm:$0xff]
        %v6932 = vld [vmem:[%s448 + $0x60] sm:$0xff]
        %v6933 = vld [vmem:[%s448 + $0x68] sm:$0xff]
        %v6934 = vld [vmem:[%s448 + $0x70] sm:$0xff]
        %v6935 = vld [vmem:[%s448 + $0x78] sm:$0xff]
        %v6936 = vld [vmem:[%s448 + $0x80] sm:$0xff]
        %v6937 = vld [vmem:[%s448 + $0x88] sm:$0xff]
        %v6938 = vld [vmem:[%s448 + $0x90] sm:$0xff]
        %v6939 = vld [vmem:[%s448 + $0x98] sm:$0xff]
        %v6940 = vld [vmem:[%s448 + $0xa0] sm:$0xff]
        %v6941 = vld [vmem:[%s448 + $0xa8] sm:$0xff]
        %v6942 = vld [vmem:[%s448 + $0xb0] sm:$0xff]
        %v6943 = vld [vmem:[%s448 + $0xb8] sm:$0xff]
        %v6944 = vld [vmem:[%s448 + $0xc0] sm:$0xff]
        %v6945 = vld [vmem:[%s448 + $0xc8] sm:$0xff]
        %v6946 = vld [vmem:[%s448 + $0xd0] sm:$0xff]
        %v6947 = vld [vmem:[%s448 + $0xd8] sm:$0xff]
        %v6948 = vld [vmem:[%s448 + $0xe0] sm:$0xff]
        %v6949 = vld [vmem:[%s448 + $0xe8] sm:$0xff]
        %v6950 = vld [vmem:[%s448 + $0xf0] sm:$0xff]
        %v6951 = vld [vmem:[%s448 + $0xf8] sm:$0xff]
        %v6952 = vld [vmem:[%s448 + $0x100] sm:$0xff]
        %v6953 = vld [vmem:[%s448 + $0x108] sm:$0xff]
        %v6954 = vld [vmem:[%s448 + $0x110] sm:$0xff]
        %v6955 = vld [vmem:[%s448 + $0x118] sm:$0xff]
        %v6956 = vld [vmem:[%s448 + $0x120] sm:$0xff]
        %v6957 = vld [vmem:[%s448 + $0x128] sm:$0xff]
        %v6958 = vld [vmem:[%s448 + $0x130] sm:$0xff]
        %v6959 = vld [vmem:[%s448 + $0x138] sm:$0xff]
        %v6960 = vld [vmem:[%s448 + $0x140] sm:$0xff]
        %v6961 = vld [vmem:[%s448 + $0x148] sm:$0xff]
        %vm6962 = vcmask 654336
        %v6964 = vsel %vm6962, %v6898, 0
        %v6967 = vsel %vm6962, %v6901, 0
        %v6970 = vsel %vm6962, %v6904, 0
        %v6973 = vsel %vm6962, %v6907, 0
        %v6976 = vsel %vm6962, %v6910, 0
        %v6979 = vsel %vm6962, %v6913, 0
        %v6982 = vsel %vm6962, %v6916, 0
        %v6985 = vsel %vm6962, %v6919, 0
        %6987 = vmatprep.subr.mxu0 0.0
        %6988 = vmatpush1.msra.mxu0 %v6920
        %6989 = vmatprep.subr.mxu0 0.0
        %6990 = vmatpush1.msra.mxu0 %v6921
        %6991 = vmatprep.subr.mxu0 0.0
        %6992 = vmatpush1.msra.mxu0 %v6922
        %6993 = vmatprep.subr.mxu0 0.0
        %6994 = vmatpush1.msra.mxu0 %v6923
        %6995 = vmatprep.subr.mxu0 0.0
        %6996 = vmatpush1.msra.mxu0 %v6924
        %6997 = vmatprep.subr.mxu0 0.0
        %6998 = vmatpush1.msra.mxu0 %v6925
        %6999 = vmatprep.subr.mxu0 0.0
        %7000 = vmatpush1.msra.mxu0 %v6926
        %7001 = vmatprep.subr.mxu0 0.0
        %7002 = vmatpush1.msra.mxu0 %v6927
        %7003 = vmatprep.subr.mxu0 0.0
        %7004 = vmatpush1.msra.mxu0 %v6928
        %7005 = vmatprep.subr.mxu0 0.0
        %7006 = vmatpush1.msra.mxu0 %v6929
        %7007 = vmatprep.subr.mxu0 0.0
        %7008 = vmatpush1.msra.mxu0 %v6930
        %7009 = vmatprep.subr.mxu0 0.0
        %7010 = vmatpush1.msra.mxu0 %v6931
        %7011 = vmatprep.subr.mxu0 0.0
        %7012 = vmatpush1.msra.mxu0 %v6932
        %7013 = vmatprep.subr.mxu0 0.0
        %7014 = vmatpush1.msra.mxu0 %v6933
        %7015 = vmatprep.subr.mxu0 0.0
        %7016 = vmatpush1.msra.mxu0 %v6934
        %7017 = vmatprep.subr.mxu0 0.0
        %7018 = vmatpush1.msra.mxu0 %v6935
        %7019 = vmatprep.subr.mxu0 0.0
        %7020 = vmatpush1.msra.mxu0 %v6936
        %7021 = vmatprep.subr.mxu0 0.0
        %7022 = vmatpush1.msra.mxu0 %v6937
        %7023 = vmatprep.subr.mxu0 0.0
        %7024 = vmatpush1.msra.mxu0 %v6938
        %7025 = vmatprep.subr.mxu0 0.0
        %7026 = vmatpush1.msra.mxu0 %v6939
        %7027 = vmatprep.subr.mxu0 0.0
        %7028 = vmatpush1.msra.mxu0 %v6940
        %7029 = vmatprep.subr.mxu0 0.0
        %7030 = vmatpush1.msra.mxu0 %v6941
        %7031 = vmatprep.subr.mxu0 0.0
        %7032 = vmatpush1.msra.mxu0 %v6942
        %7033 = vmatprep.subr.mxu0 0.0
        %7034 = vmatpush1.msra.mxu0 %v6943
        %7035 = vmatprep.subr.mxu0 0.0
        %7036 = vmatpush1.msra.mxu0 %v6944
        %7037 = vmatprep.subr.mxu0 0.0
        %7038 = vmatpush1.msra.mxu0 %v6945
        %7039 = vmatprep.subr.mxu0 0.0
        %7040 = vmatpush1.msra.mxu0 %v6946
        %7041 = vmatprep.subr.mxu0 0.0
        %7042 = vmatpush1.msra.mxu0 %v6947
        %7043 = vmatprep.subr.mxu0 0.0
        %7044 = vmatpush1.msra.mxu0 %v6948
        %7045 = vmatprep.subr.mxu0 0.0
        %7046 = vmatpush1.msra.mxu0 %v6949
        %7047 = vmatprep.subr.mxu0 0.0
        %7048 = vmatpush1.msra.mxu0 %v6950
        %7049 = vmatprep.subr.mxu0 0.0
        %7050 = vmatpush1.msra.mxu0 %v6951
        %7051 = vmatprep.mubr.f32.mxu0 %v6897
        %7052 = vmatmul.mubr.f32.gmra.mrb[0].mxu0 %v6896
        %v7053 = vpop.f32.mrb[0].mxu0
        %v7054 = vadd.f32 0.0, %v7053
        %v7055 = vpop.f32.mrb[0].mxu0
        %7056 = vmatprep.mubr.f32.mxu0 %v6900
        %7057 = vmatmul.mubr.f32.gmra.mrb[0].mxu0 %v6899
        %v7058 = vpop.f32.mrb[0].mxu0
        %v7059 = vadd.f32 0.0, %v7058
        %v7060 = vpop.f32.mrb[0].mxu0
        %7061 = vmatprep.mubr.f32.mxu0 %v6903
        %7062 = vmatmul.mubr.f32.gmra.mrb[0].mxu0 %v6902
        %v7063 = vpop.f32.mrb[0].mxu0
        %v7064 = vadd.f32 0.0, %v7063
        %v7065 = vpop.f32.mrb[0].mxu0
        %7066 = vmatprep.mubr.f32.mxu0 %v6906
        %7067 = vmatmul.mubr.f32.gmra.mrb[0].mxu0 %v6905
        %v7068 = vpop.f32.mrb[0].mxu0
        %v7069 = vadd.f32 0.0, %v7068
        %v7070 = vpop.f32.mrb[0].mxu0
        %7071 = vmatprep.mubr.f32.mxu0 %v6909
        %7072 = vmatmul.mubr.f32.gmra.mrb[0].mxu0 %v6908
        %v7073 = vpop.f32.mrb[0].mxu0
        %v7074 = vadd.f32 0.0, %v7073
        %v7075 = vpop.f32.mrb[0].mxu0
        %7076 = vmatprep.mubr.f32.mxu0 %v6912
        %7077 = vmatmul.mubr.f32.gmra.mrb[0].mxu0 %v6911
        %v7078 = vpop.f32.mrb[0].mxu0
        %v7079 = vadd.f32 0.0, %v7078
        %v7080 = vpop.f32.mrb[0].mxu0
        %7081 = vmatprep.mubr.f32.mxu0 %v6915
        %7082 = vmatmul.mubr.f32.gmra.mrb[0].mxu0 %v6914
        %v7083 = vpop.f32.mrb[0].mxu0
        %v7084 = vadd.f32 0.0, %v7083
        %v7085 = vpop.f32.mrb[0].mxu0
        %7086 = vmatprep.mubr.f32.mxu0 %v6918
        %7087 = vmatmul.mubr.f32.gmra.mrb[0].mxu0 %v6917
        %v7088 = vpop.f32.mrb[0].mxu0
        %v7089 = vadd.f32 0.0, %v7088
        %v7090 = vpop.f32.mrb[0].mxu0
        %7091 = vdwg.mxu0
        %7092 = vmatprep.subr.mxu0 0.0
        %7093 = vmatpush1.msra.mxu0 %v6952
        %7094 = vmatprep.subr.mxu0 0.0
        %7095 = vmatpush1.msra.mxu0 %v6953
        %7096 = vmatprep.subr.mxu0 0.0
        %7097 = vmatpush1.msra.mxu0 %v6954
        %7098 = vmatprep.subr.mxu0 0.0
        %7099 = vmatpush1.msra.mxu0 %v6955
        %7100 = vmatprep.subr.mxu0 0.0
        %7101 = vmatpush1.msra.mxu0 %v6956
        %7102 = vmatprep.subr.mxu0 0.0
        %7103 = vmatpush1.msra.mxu0 %v6957
        %7104 = vmatprep.subr.mxu0 0.0
        %7105 = vmatpush1.msra.mxu0 %v6958
        %7106 = vmatprep.subr.mxu0 0.0
        %7107 = vmatpush1.msra.mxu0 %v6959
        %7108 = vmatprep.subr.mxu0 0.0
        %7109 = vmatpush1.msra.mxu0 %v6960
        %7110 = vmatprep.subr.mxu0 0.0
        %7111 = vmatpush1.msra.mxu0 %v6961
        %7112 = vmatprep.subr.mxu0 0.0
        %7113 = vmatpush1.msra.mxu0 0.0
        %7114 = vmatprep.subr.mxu0 0.0
        %7115 = vmatpush1.msra.mxu0 0.0
        %7116 = vmatprep.subr.mxu0 0.0
        %7117 = vmatpush1.msra.mxu0 0.0
        %7118 = vmatprep.subr.mxu0 0.0
        %7119 = vmatpush1.msra.mxu0 0.0
        %7120 = vmatprep.subr.mxu0 0.0
        %7121 = vmatpush1.msra.mxu0 0.0
        %7122 = vmatprep.subr.mxu0 0.0
        %7123 = vmatpush1.msra.mxu0 0.0
        %7124 = vmatprep.subr.mxu0 0.0
        %7125 = vmatpush1.msra.mxu0 0.0
        %7126 = vmatprep.subr.mxu0 0.0
        %7127 = vmatpush1.msra.mxu0 0.0
        %7128 = vmatprep.subr.mxu0 0.0
        %7129 = vmatpush1.msra.mxu0 0.0
        %7130 = vmatprep.subr.mxu0 0.0
        %7131 = vmatpush1.msra.mxu0 0.0
        %7132 = vmatprep.subr.mxu0 0.0
        %7133 = vmatpush1.msra.mxu0 0.0
        %7134 = vmatprep.subr.mxu0 0.0
        %7135 = vmatpush1.msra.mxu0 0.0
        %7136 = vmatprep.subr.mxu0 0.0
        %7137 = vmatpush1.msra.mxu0 0.0
        %7138 = vmatprep.subr.mxu0 0.0
        %7139 = vmatpush1.msra.mxu0 0.0
        %7140 = vmatprep.subr.mxu0 0.0
        %7141 = vmatpush1.msra.mxu0 0.0
        %7142 = vmatprep.subr.mxu0 0.0
        %7143 = vmatpush1.msra.mxu0 0.0
        %7144 = vmatprep.subr.mxu0 0.0
        %7145 = vmatpush1.msra.mxu0 0.0
        %7146 = vmatprep.subr.mxu0 0.0
        %7147 = vmatpush1.msra.mxu0 0.0
        %7148 = vmatprep.subr.mxu0 0.0
        %7149 = vmatpush1.msra.mxu0 0.0
        %7150 = vmatprep.subr.mxu0 0.0
        %7151 = vmatpush1.msra.mxu0 0.0
        %7152 = vmatprep.subr.mxu0 0.0
        %7153 = vmatpush1.msra.mxu0 0.0
        %7154 = vmatprep.subr.mxu0 0.0
        %7155 = vmatpush1.msra.mxu0 0.0
        %7156 = vmatprep.mubr.f32.mxu0 0.0
        %7157 = vmatmul.mubr.f32.gmra.mrb[0].mxu0 %v6964
        %v7158 = vpop.f32.mrb[0].mxu0
        %v7159 = vadd.f32 %v7054, %v7158
        %v7160 = vpop.f32.mrb[0].mxu0
        %7161 = vmatprep.mubr.f32.mxu0 0.0
        %7162 = vmatmul.mubr.f32.gmra.mrb[0].mxu0 %v6967
        %v7163 = vpop.f32.mrb[0].mxu0
        %v7164 = vadd.f32 %v7059, %v7163
        %v7165 = vpop.f32.mrb[0].mxu0
        %7166 = vmatprep.mubr.f32.mxu0 0.0
        %7167 = vmatmul.mubr.f32.gmra.mrb[0].mxu0 %v6970
        %v7168 = vpop.f32.mrb[0].mxu0
        %v7169 = vadd.f32 %v7064, %v7168
        %v7170 = vpop.f32.mrb[0].mxu0
        %7171 = vmatprep.mubr.f32.mxu0 0.0
        %7172 = vmatmul.mubr.f32.gmra.mrb[0].mxu0 %v6973
        %v7173 = vpop.f32.mrb[0].mxu0
        %v7174 = vadd.f32 %v7069, %v7173
        %v7175 = vpop.f32.mrb[0].mxu0
        %7176 = vmatprep.mubr.f32.mxu0 0.0
        %7177 = vmatmul.mubr.f32.gmra.mrb[0].mxu0 %v6976
        %v7178 = vpop.f32.mrb[0].mxu0
        %v7179 = vadd.f32 %v7074, %v7178
        %v7180 = vpop.f32.mrb[0].mxu0
        %7181 = vmatprep.mubr.f32.mxu0 0.0
        %7182 = vmatmul.mubr.f32.gmra.mrb[0].mxu0 %v6979
        %v7183 = vpop.f32.mrb[0].mxu0
        %v7184 = vadd.f32 %v7079, %v7183
        %v7185 = vpop.f32.mrb[0].mxu0
        %7186 = vmatprep.mubr.f32.mxu0 0.0
        %7187 = vmatmul.mubr.f32.gmra.mrb[0].mxu0 %v6982
        %v7188 = vpop.f32.mrb[0].mxu0
        %v7189 = vadd.f32 %v7084, %v7188
        %v7190 = vpop.f32.mrb[0].mxu0
        %7191 = vmatprep.mubr.f32.mxu0 0.0
        %7192 = vmatmul.mubr.f32.gmra.mrb[0].mxu0 %v6985
        %v7193 = vpop.f32.mrb[0].mxu0
        %v7194 = vadd.f32 %v7089, %v7193
        %v7195 = vpop.f32.mrb[0].mxu0
        %7196 = vdwg.mxu0
        %v7197 = vld [vmem:[%s7] sm:$0xff]
        %v7198 = vld [vmem:[%s7 + $0x8] sm:$0xff]
        %v7199 = vld [vmem:[%s7 + $0x10] sm:$0xff]
        %v7200 = vld [vmem:[%s7 + $0x18] sm:$0xff]
        %v7201 = vld [vmem:[%s7 + $0x20] sm:$0xff]
        %v7202 = vld [vmem:[%s7 + $0x28] sm:$0xff]
        %v7203 = vld [vmem:[%s7 + $0x30] sm:$0xff]
        %v7204 = vld [vmem:[%s7 + $0x38] sm:$0xff]
        %v7205 = vld [vmem:[%s7 + $0x40] sm:$0xff]
        %v7206 = vld [vmem:[%s7 + $0x48] sm:$0xff]
        %v7207 = vld [vmem:[%s7 + $0x50] sm:$0xff]
        %v7208 = vld [vmem:[%s7 + $0x58] sm:$0xff]
        %v7209 = vld [vmem:[%s7 + $0x60] sm:$0xff]
        %v7210 = vld [vmem:[%s7 + $0x68] sm:$0xff]
        %v7211 = vld [vmem:[%s7 + $0x70] sm:$0xff]
        %v7212 = vld [vmem:[%s7 + $0x78] sm:$0xff]
        %7213 = vmatprep.subr.mxu0 0.0
        %7214 = vmatpush1.msra.mxu0 %v7197
        %7215 = vmatprep.subr.mxu0 0.0
        %7216 = vmatpush1.msra.mxu0 %v7198
        %7217 = vmatprep.subr.mxu0 0.0
        %7218 = vmatpush1.msra.mxu0 %v7199
        %7219 = vmatprep.subr.mxu0 0.0
        %7220 = vmatpush1.msra.mxu0 %v7200
        %7221 = vmatprep.subr.mxu0 0.0
        %7222 = vmatpush1.msra.mxu0 %v7201
        %7223 = vmatprep.subr.mxu0 0.0
        %7224 = vmatpush1.msra.mxu0 %v7202
        %7225 = vmatprep.subr.mxu0 0.0
        %7226 = vmatpush1.msra.mxu0 %v7203
        %7227 = vmatprep.subr.mxu0 0.0
        %7228 = vmatpush1.msra.mxu0 %v7204
        %7229 = vmatprep.subr.mxu0 0.0
        %7230 = vmatpush1.msra.mxu0 %v7205
        %7231 = vmatprep.subr.mxu0 0.0
        %7232 = vmatpush1.msra.mxu0 %v7206
        %7233 = vmatprep.subr.mxu0 0.0
        %7234 = vmatpush1.msra.mxu0 %v7207
        %7235 = vmatprep.subr.mxu0 0.0
        %7236 = vmatpush1.msra.mxu0 %v7208
        %7237 = vmatprep.subr.mxu0 0.0
        %7238 = vmatpush1.msra.mxu0 %v7209
        %7239 = vmatprep.subr.mxu0 0.0
        %7240 = vmatpush1.msra.mxu0 %v7210
        %7241 = vmatprep.subr.mxu0 0.0
        %7242 = vmatpush1.msra.mxu0 %v7211
        %7243 = vmatprep.subr.mxu0 0.0
        %7244 = vmatpush1.msra.mxu0 %v7212
        %7245 = vmatprep.subr.mxu0 0.0
        %7246 = vmatpush1.msra.mxu0 0.0
        %7247 = vmatprep.subr.mxu0 0.0
        %7248 = vmatpush1.msra.mxu0 0.0
        %7249 = vmatprep.subr.mxu0 0.0
        %7250 = vmatpush1.msra.mxu0 0.0
        %7251 = vmatprep.subr.mxu0 0.0
        %7252 = vmatpush1.msra.mxu0 0.0
        %7253 = vmatprep.subr.mxu0 0.0
        %7254 = vmatpush1.msra.mxu0 0.0
        %7255 = vmatprep.subr.mxu0 0.0
        %7256 = vmatpush1.msra.mxu0 0.0
        %7257 = vmatprep.subr.mxu0 0.0
        %7258 = vmatpush1.msra.mxu0 0.0
        %7259 = vmatprep.subr.mxu0 0.0
        %7260 = vmatpush1.msra.mxu0 0.0
        %7261 = vmatprep.subr.mxu0 0.0
        %7262 = vmatpush1.msra.mxu0 0.0
        %7263 = vmatprep.subr.mxu0 0.0
        %7264 = vmatpush1.msra.mxu0 0.0
        %7265 = vmatprep.subr.mxu0 0.0
        %7266 = vmatpush1.msra.mxu0 0.0
        %7267 = vmatprep.subr.mxu0 0.0
        %7268 = vmatpush1.msra.mxu0 0.0
        %7269 = vmatprep.subr.mxu0 0.0
        %7270 = vmatpush1.msra.mxu0 0.0
        %7271 = vmatprep.subr.mxu0 0.0
        %7272 = vmatpush1.msra.mxu0 0.0
        %7273 = vmatprep.subr.mxu0 0.0
        %7274 = vmatpush1.msra.mxu0 0.0
        %7275 = vmatprep.subr.mxu0 0.0
        %7276 = vmatpush1.msra.mxu0 0.0
        %7277 = vmatprep.mubr.f32.mxu0 0.0
        %7278 = vmatmul.mubr.f32.gmra.mrb[0].mxu0 %v7159
        %v7279 = vpop.f32.mrb[0].mxu0
        %v7280 = vadd.f32 0.0, %v7279
        %v7281 = vpop.f32.mrb[0].mxu0
        %7282 = vmatprep.mubr.f32.mxu0 0.0
        %7283 = vmatmul.mubr.f32.gmra.mrb[0].mxu0 %v7164
        %v7284 = vpop.f32.mrb[0].mxu0
        %v7285 = vadd.f32 0.0, %v7284
        %v7286 = vpop.f32.mrb[0].mxu0
        %7287 = vmatprep.mubr.f32.mxu0 0.0
        %7288 = vmatmul.mubr.f32.gmra.mrb[0].mxu0 %v7169
        %v7289 = vpop.f32.mrb[0].mxu0
        %v7290 = vadd.f32 0.0, %v7289
        %v7291 = vpop.f32.mrb[0].mxu0
        %7292 = vmatprep.mubr.f32.mxu0 0.0
        %7293 = vmatmul.mubr.f32.gmra.mrb[0].mxu0 %v7174
        %v7294 = vpop.f32.mrb[0].mxu0
        %v7295 = vadd.f32 0.0, %v7294
        %v7296 = vpop.f32.mrb[0].mxu0
        %7297 = vmatprep.mubr.f32.mxu0 0.0
        %7298 = vmatmul.mubr.f32.gmra.mrb[0].mxu0 %v7179
        %v7299 = vpop.f32.mrb[0].mxu0
        %v7300 = vadd.f32 0.0, %v7299
        %v7301 = vpop.f32.mrb[0].mxu0
        %7302 = vmatprep.mubr.f32.mxu0 0.0
        %7303 = vmatmul.mubr.f32.gmra.mrb[0].mxu0 %v7184
        %v7304 = vpop.f32.mrb[0].mxu0
        %v7305 = vadd.f32 0.0, %v7304
        %v7306 = vpop.f32.mrb[0].mxu0
        %7307 = vmatprep.mubr.f32.mxu0 0.0
        %7308 = vmatmul.mubr.f32.gmra.mrb[0].mxu0 %v7189
        %v7309 = vpop.f32.mrb[0].mxu0
        %v7310 = vadd.f32 0.0, %v7309
        %v7311 = vpop.f32.mrb[0].mxu0
        %7312 = vmatprep.mubr.f32.mxu0 0.0
        %7313 = vmatmul.mubr.f32.gmra.mrb[0].mxu0 %v7194
        %v7314 = vpop.f32.mrb[0].mxu0
        %v7315 = vadd.f32 0.0, %v7314
        %v7316 = vpop.f32.mrb[0].mxu0
        %7317 = vdwg.mxu0
        %v7318 = vld [vmem:[%s8] sm:$0x1]
        %v7320 = vlaneseq
        %v7321 = vshrl.u32 %v7320, 7
        %v7322 = vsub.s32 0, %v7321
        %v7323 = vrot.slane %v7318, %v7322
        %v7325 = vmul.f32 %v7280, %v7323
        %v7326 = vmul.f32 %v7285, %v7323
        %v7327 = vmul.f32 %v7290, %v7323
        %v7328 = vmul.f32 %v7295, %v7323
        %v7329 = vmul.f32 %v7300, %v7323
        %v7330 = vmul.f32 %v7305, %v7323
        %v7331 = vmul.f32 %v7310, %v7323
        %v7332 = vmul.f32 %v7315, %v7323
        %v7333 = vld [vmem:[%s9] sm:$0x1]
        %v7335 = vlaneseq
        %v7336 = vshrl.u32 %v7335, 7
        %v7337 = vsub.s32 0, %v7336
        %v7338 = vrot.slane %v7333, %v7337
        %v7340 = vadd.f32 %v7325, %v7338
        %v7341 = vadd.f32 %v7326, %v7338
        %v7342 = vadd.f32 %v7327, %v7338
        %v7343 = vadd.f32 %v7328, %v7338
        %v7344 = vadd.f32 %v7329, %v7338
        %v7345 = vadd.f32 %v7330, %v7338
        %v7346 = vadd.f32 %v7331, %v7338
        %v7347 = vadd.f32 %v7332, %v7338
        %vm7348 = vcmask 244736
        %v7350 = vsel %vm7348, %v6874, 0
        %v7353 = vsel %vm7348, %v6877, 0
        %v7356 = vsel %vm7348, %v6880, 0
        %v7359 = vsel %vm7348, %v6883, 0
        %v7362 = vsel %vm7348, %v6886, 0
        %v7365 = vsel %vm7348, %v6889, 0
        %v7368 = vsel %vm7348, %v6892, 0
        %v7371 = vsel %vm7348, %v6895, 0
        %vm7373 = vcmask 1045504
        %v7375 = vsel %vm7373, %v6871, 0
        %7377 = vmatprep.subr.mxu0 0.0
        %7378 = vmatpush1.msra.mxu0 %v6836
        %7379 = vmatprep.subr.mxu0 0.0
        %7380 = vmatpush1.msra.mxu0 %v6837
        %7381 = vmatprep.subr.mxu0 0.0
        %7382 = vmatpush1.msra.mxu0 %v6838
        %7383 = vmatprep.subr.mxu0 0.0
        %7384 = vmatpush1.msra.mxu0 %v6839
        %7385 = vmatprep.subr.mxu0 0.0
        %7386 = vmatpush1.msra.mxu0 %v6840
        %7387 = vmatprep.subr.mxu0 0.0
        %7388 = vmatpush1.msra.mxu0 %v6841
        %7389 = vmatprep.subr.mxu0 0.0
        %7390 = vmatpush1.msra.mxu0 %v6842
        %7391 = vmatprep.subr.mxu0 0.0
        %7392 = vmatpush1.msra.mxu0 %v6843
        %7393 = vmatprep.subr.mxu0 0.0
        %7394 = vmatpush1.msra.mxu0 %v6844
        %7395 = vmatprep.subr.mxu0 0.0
        %7396 = vmatpush1.msra.mxu0 %v6845
        %7397 = vmatprep.subr.mxu0 0.0
        %7398 = vmatpush1.msra.mxu0 %v6846
        %7399 = vmatprep.subr.mxu0 0.0
        %7400 = vmatpush1.msra.mxu0 %v6847
        %7401 = vmatprep.subr.mxu0 0.0
        %7402 = vmatpush1.msra.mxu0 %v6848
        %7403 = vmatprep.subr.mxu0 0.0
        %7404 = vmatpush1.msra.mxu0 %v6849
        %7405 = vmatprep.subr.mxu0 0.0
        %7406 = vmatpush1.msra.mxu0 %v6850
        %7407 = vmatprep.subr.mxu0 0.0
        %7408 = vmatpush1.msra.mxu0 %v6851
        %7409 = vmatprep.subr.mxu0 0.0
        %7410 = vmatpush1.msra.mxu0 %v6852
        %7411 = vmatprep.subr.mxu0 0.0
        %7412 = vmatpush1.msra.mxu0 %v6853
        %7413 = vmatprep.subr.mxu0 0.0
        %7414 = vmatpush1.msra.mxu0 %v6854
        %7415 = vmatprep.subr.mxu0 0.0
        %7416 = vmatpush1.msra.mxu0 %v6855
        %7417 = vmatprep.subr.mxu0 0.0
        %7418 = vmatpush1.msra.mxu0 %v6856
        %7419 = vmatprep.subr.mxu0 0.0
        %7420 = vmatpush1.msra.mxu0 %v6857
        %7421 = vmatprep.subr.mxu0 0.0
        %7422 = vmatpush1.msra.mxu0 %v6858
        %7423 = vmatprep.subr.mxu0 0.0
        %7424 = vmatpush1.msra.mxu0 %v6859
        %7425 = vmatprep.subr.mxu0 0.0
        %7426 = vmatpush1.msra.mxu0 %v6860
        %7427 = vmatprep.subr.mxu0 0.0
        %7428 = vmatpush1.msra.mxu0 %v6861
        %7429 = vmatprep.subr.mxu0 0.0
        %7430 = vmatpush1.msra.mxu0 %v6862
        %7431 = vmatprep.subr.mxu0 0.0
        %7432 = vmatpush1.msra.mxu0 %v6863
        %7433 = vmatprep.subr.mxu0 0.0
        %7434 = vmatpush1.msra.mxu0 %v6864
        %7435 = vmatprep.subr.mxu0 0.0
        %7436 = vmatpush1.msra.mxu0 %v6865
        %7437 = vmatprep.subr.mxu0 0.0
        %7438 = vmatpush1.msra.mxu0 %v6866
        %7439 = vmatprep.subr.mxu0 0.0
        %7440 = vmatpush1.msra.mxu0 %v6867
        %7441 = vmatprep.mubr.f32.mxu0 %v6873
        %7442 = vmatmul.mubr.f32.gmra.mrb[0].mxu0 %v6872
        %v7443 = vpop.f32.mrb[0].mxu0
        %v7444 = vadd.f32 %v7340, %v7443
        %v7445 = vpop.f32.mrb[0].mxu0
        %7446 = vmatprep.mubr.f32.mxu0 %v6876
        %7447 = vmatmul.mubr.f32.gmra.mrb[0].mxu0 %v6875
        %v7448 = vpop.f32.mrb[0].mxu0
        %v7449 = vadd.f32 %v7341, %v7448
        %v7450 = vpop.f32.mrb[0].mxu0
        %7451 = vmatprep.mubr.f32.mxu0 %v6879
        %7452 = vmatmul.mubr.f32.gmra.mrb[0].mxu0 %v6878
        %v7453 = vpop.f32.mrb[0].mxu0
        %v7454 = vadd.f32 %v7342, %v7453
        %v7455 = vpop.f32.mrb[0].mxu0
        %7456 = vmatprep.mubr.f32.mxu0 %v6882
        %7457 = vmatmul.mubr.f32.gmra.mrb[0].mxu0 %v6881
        %v7458 = vpop.f32.mrb[0].mxu0
        %v7459 = vadd.f32 %v7343, %v7458
        %v7460 = vpop.f32.mrb[0].mxu0
        %7461 = vmatprep.mubr.f32.mxu0 %v6885
        %7462 = vmatmul.mubr.f32.gmra.mrb[0].mxu0 %v6884
        %v7463 = vpop.f32.mrb[0].mxu0
        %v7464 = vadd.f32 %v7344, %v7463
        %v7465 = vpop.f32.mrb[0].mxu0
        %7466 = vmatprep.mubr.f32.mxu0 %v6888
        %7467 = vmatmul.mubr.f32.gmra.mrb[0].mxu0 %v6887
        %v7468 = vpop.f32.mrb[0].mxu0
        %v7469 = vadd.f32 %v7345, %v7468
        %v7470 = vpop.f32.mrb[0].mxu0
        %7471 = vmatprep.mubr.f32.mxu0 %v6891
        %7472 = vmatmul.mubr.f32.gmra.mrb[0].mxu0 %v6890
        %v7473 = vpop.f32.mrb[0].mxu0
        %v7474 = vadd.f32 %v7346, %v7473
        %v7475 = vpop.f32.mrb[0].mxu0
        %7476 = vmatprep.mubr.f32.mxu0 %v6894
        %7477 = vmatmul.mubr.f32.gmra.mrb[0].mxu0 %v6893
        %v7478 = vpop.f32.mrb[0].mxu0
        %v7479 = vadd.f32 %v7347, %v7478
        %v7480 = vpop.f32.mrb[0].mxu0
        %7481 = vdwg.mxu0
        %7482 = vmatprep.subr.mxu0 0.0
        %7483 = vmatpush1.msra.mxu0 %v6868
        %7484 = vmatprep.subr.mxu0 0.0
        %7485 = vmatpush1.msra.mxu0 %v6869
        %7486 = vmatprep.subr.mxu0 0.0
        %7487 = vmatpush1.msra.mxu0 %v6870
        %7488 = vmatprep.subr.mxu0 0.0
        %7489 = vmatpush1.msra.mxu0 %v7375
        %7490 = vmatprep.subr.mxu0 0.0
        %7491 = vmatpush1.msra.mxu0 0.0
        %7492 = vmatprep.subr.mxu0 0.0
        %7493 = vmatpush1.msra.mxu0 0.0
        %7494 = vmatprep.subr.mxu0 0.0
        %7495 = vmatpush1.msra.mxu0 0.0
        %7496 = vmatprep.subr.mxu0 0.0
        %7497 = vmatpush1.msra.mxu0 0.0
        %7498 = vmatprep.subr.mxu0 0.0
        %7499 = vmatpush1.msra.mxu0 0.0
        %7500 = vmatprep.subr.mxu0 0.0
        %7501 = vmatpush1.msra.mxu0 0.0
        %7502 = vmatprep.subr.mxu0 0.0
        %7503 = vmatpush1.msra.mxu0 0.0
        %7504 = vmatprep.subr.mxu0 0.0
        %7505 = vmatpush1.msra.mxu0 0.0
        %7506 = vmatprep.subr.mxu0 0.0
        %7507 = vmatpush1.msra.mxu0 0.0
        %7508 = vmatprep.subr.mxu0 0.0
        %7509 = vmatpush1.msra.mxu0 0.0
        %7510 = vmatprep.subr.mxu0 0.0
        %7511 = vmatpush1.msra.mxu0 0.0
        %7512 = vmatprep.subr.mxu0 0.0
        %7513 = vmatpush1.msra.mxu0 0.0
        %7514 = vmatprep.subr.mxu0 0.0
        %7515 = vmatpush1.msra.mxu0 0.0
        %7516 = vmatprep.subr.mxu0 0.0
        %7517 = vmatpush1.msra.mxu0 0.0
        %7518 = vmatprep.subr.mxu0 0.0
        %7519 = vmatpush1.msra.mxu0 0.0
        %7520 = vmatprep.subr.mxu0 0.0
        %7521 = vmatpush1.msra.mxu0 0.0
        %7522 = vmatprep.subr.mxu0 0.0
        %7523 = vmatpush1.msra.mxu0 0.0
        %7524 = vmatprep.subr.mxu0 0.0
        %7525 = vmatpush1.msra.mxu0 0.0
        %7526 = vmatprep.subr.mxu0 0.0
        %7527 = vmatpush1.msra.mxu0 0.0
        %7528 = vmatprep.subr.mxu0 0.0
        %7529 = vmatpush1.msra.mxu0 0.0
        %7530 = vmatprep.subr.mxu0 0.0
        %7531 = vmatpush1.msra.mxu0 0.0
        %7532 = vmatprep.subr.mxu0 0.0
        %7533 = vmatpush1.msra.mxu0 0.0
        %7534 = vmatprep.subr.mxu0 0.0
        %7535 = vmatpush1.msra.mxu0 0.0
        %7536 = vmatprep.subr.mxu0 0.0
        %7537 = vmatpush1.msra.mxu0 0.0
        %7538 = vmatprep.subr.mxu0 0.0
        %7539 = vmatpush1.msra.mxu0 0.0
        %7540 = vmatprep.subr.mxu0 0.0
        %7541 = vmatpush1.msra.mxu0 0.0
        %7542 = vmatprep.subr.mxu0 0.0
        %7543 = vmatpush1.msra.mxu0 0.0
        %7544 = vmatprep.subr.mxu0 0.0
        %7545 = vmatpush1.msra.mxu0 0.0
        %7546 = vmatprep.mubr.f32.mxu0 0.0
        %7547 = vmatmul.mubr.f32.gmra.mrb[0].mxu0 %v7350
        %v7548 = vpop.f32.mrb[0].mxu0
        %v7549 = vadd.f32 %v7444, %v7548
        %v7550 = vpop.f32.mrb[0].mxu0
        %7551 = vmatprep.mubr.f32.mxu0 0.0
        %7552 = vmatmul.mubr.f32.gmra.mrb[0].mxu0 %v7353
        %v7553 = vpop.f32.mrb[0].mxu0
        %v7554 = vadd.f32 %v7449, %v7553
        %v7555 = vpop.f32.mrb[0].mxu0
        %7556 = vmatprep.mubr.f32.mxu0 0.0
        %7557 = vmatmul.mubr.f32.gmra.mrb[0].mxu0 %v7356
        %v7558 = vpop.f32.mrb[0].mxu0
        %v7559 = vadd.f32 %v7454, %v7558
        %v7560 = vpop.f32.mrb[0].mxu0
        %7561 = vmatprep.mubr.f32.mxu0 0.0
        %7562 = vmatmul.mubr.f32.gmra.mrb[0].mxu0 %v7359
        %v7563 = vpop.f32.mrb[0].mxu0
        %v7564 = vadd.f32 %v7459, %v7563
        %v7565 = vpop.f32.mrb[0].mxu0
        %7566 = vmatprep.mubr.f32.mxu0 0.0
        %7567 = vmatmul.mubr.f32.gmra.mrb[0].mxu0 %v7362
        %v7568 = vpop.f32.mrb[0].mxu0
        %v7569 = vadd.f32 %v7464, %v7568
        %v7570 = vpop.f32.mrb[0].mxu0
        %7571 = vmatprep.mubr.f32.mxu0 0.0
        %7572 = vmatmul.mubr.f32.gmra.mrb[0].mxu0 %v7365
        %v7573 = vpop.f32.mrb[0].mxu0
        %v7574 = vadd.f32 %v7469, %v7573
        %v7575 = vpop.f32.mrb[0].mxu0
        %7576 = vmatprep.mubr.f32.mxu0 0.0
        %7577 = vmatmul.mubr.f32.gmra.mrb[0].mxu0 %v7368
        %v7578 = vpop.f32.mrb[0].mxu0
        %v7579 = vadd.f32 %v7474, %v7578
        %v7580 = vpop.f32.mrb[0].mxu0
        %7581 = vmatprep.mubr.f32.mxu0 0.0
        %7582 = vmatmul.mubr.f32.gmra.mrb[0].mxu0 %v7371
        %v7583 = vpop.f32.mrb[0].mxu0
        %v7584 = vadd.f32 %v7479, %v7583
        %v7585 = vpop.f32.mrb[0].mxu0
        %7586 = vdwg.mxu0
        %7587 = vst [vmem:[%s502] sm:$0xff] %v7549
        %7588 = vst [vmem:[%s502 + $0x8] sm:$0xff] %v7554
        %7589 = vst [vmem:[%s502 + $0x10] sm:$0xff] %v7559
        %7590 = vst [vmem:[%s502 + $0x18] sm:$0xff] %v7564
        %7591 = vst [vmem:[%s502 + $0x20] sm:$0xff] %v7569
        %7592 = vst [vmem:[%s502 + $0x28] sm:$0xff] %v7574
        %7593 = vst [vmem:[%s502 + $0x30] sm:$0xff] %v7579
        %7594 = vst [vmem:[%s502 + $0x38] sm:$0xff] %v7584
        %s7595 = sand.u32 %s318, 1
        %s7596 = scalar_lea.sflag [#allocation5], %s7595
        %s7597 = sand.u32 %s318, 1
        %s7598 = smul.addr %s7597, 64
        %s7599 = scalar_lea.vmem [#allocation11], %s7598
        // Predicated region
        $region89: #{tpu_custom_call.1} parent=71 // pred_check
          %p7600 = pneg %p328
        $region90: #{tpu_custom_call.1} parent=71 // pred_check_branch
          %7602 = sbr.rel (%p7600) target = $region92
        $region91: #{tpu_custom_call.1} parent=71 // pred_region
          %s7604 = ssub.s32 1024, 1024
          %7605 = vsyncadd %s7596, %s7604
          %s7606 = smul.addr %s32, 8
          %s7607 = smul.addr %s7606, 128
          %s7608 = scalar_lea.hbm %s13, %s7607
          %s7609 = sshll.u32 %s7599, 4
          %s7610 = int_to_ptr.vmem [resolvable:$true] %s7609
          %7615 = dma.vmem_to_hbm [thread:$0]  %s7610, 1024, %s7608, %s7596, 128, 128, 8
        $region92: #{tpu_custom_call.1} parent=71 // pred_fallthru
          _
      $region72: #{tpu_custom_call.1} parent=5 // pred_fallthru
        _
      %p7616 = scmp.le.s32.totalorder 2, %s27
      // Predicated region
      $region93: #{tpu_custom_call.1} parent=5 // pred_check
        %p7617 = pneg %p7616
      $region94: #{tpu_custom_call.1} parent=5 // pred_check_branch
        %7619 = sbr.rel (%p7617) target = $region96
      $region95: #{tpu_custom_call.1} parent=5 // pred_region
        %s7620 = ssub.s32 %s27, 2
        // Predicated region
        $region97: #{tpu_custom_call.1} parent=95 // pred_check
          %p7621 = pneg %p334
        $region98: #{tpu_custom_call.1} parent=95 // pred_check_branch
          %7623 = sbr.rel (%p7621) target = $region100
        $region99: #{tpu_custom_call.1} parent=95 // pred_region
          %s7624 = sand.u32 %s319, 1
          %s7625 = scalar_lea.sflag [#allocation5], %s7624
          %s7626 = sand.u32 %s319, 1
          %s7627 = smul.addr %s7626, 64
          %s7628 = scalar_lea.vmem [#allocation11], %s7627
          %7629 = dma.done %s7625, 1024
        $region100: #{tpu_custom_call.1} parent=95 // pred_fallthru
          _
      $region96: #{tpu_custom_call.1} parent=5 // pred_fallthru
        _
    $region6: #{tpu_custom_call.1} parent=1 // loop_footer
      %s31 = sadd.s32 1, %s27
    $region7: #{tpu_custom_call.1} parent=1 // loop_footer_branch
      %26 = sbr.rel target = $region3
    $region8: #{tpu_custom_call.1} parent=1 // loop_exit
      _
    %7630 = vsyncpa [#allocation4], 1
    %s7631 = scalar_lea.sflag [#allocation4], 1
    %7632 = vsyncpa %s7631, 1
    %7633 = vsyncpa [#allocation7], 1
    %7634 = vsyncpa [#allocation10], 1
    %7635 = vsyncpa [#allocation5], 1
    %s7636 = scalar_lea.sflag [#allocation5], 1
    %7637 = vsyncpa %s7636, 1

</llo_original>
